<compile_context>
chip_gen: v5e
topology: v5e:2x2
jax: 0.10.0
libtpu: 0.0.40
codegen_flags: <defaults>
</compile_context>

<pallas_src>
import functools

import jax
import jax.numpy as jnp
from jax.experimental import pallas as pl
from jax.experimental.pallas import tpu as pltpu


# ----------------------------- kernels ------------------------------------ #

def _project_kernel(h_ref, w_ref, a1_ref, a2_ref, wh_ref, f1_ref, f2_ref, *,
                    nheads, fout):
    """Wh for all heads (one wide bf16 matmul) + per-head f1/f2 VPU reductions."""
    h = h_ref[...].astype(jnp.bfloat16)
    wh = jnp.dot(h, w_ref[...], preferred_element_type=jnp.float32)  # (TQ, H*Fout) f32
    a1 = a1_ref[...]                                                  # (H, Fout) f32
    a2 = a2_ref[...]
    f1_cols = []
    f2_cols = []
    for hd in range(nheads):
        wh_h = wh[:, hd * fout:(hd + 1) * fout]                       # (TQ, Fout)
        f1_cols.append(jnp.sum(wh_h * a1[hd:hd + 1, :], axis=-1, keepdims=True))
        f2_cols.append(jnp.sum(wh_h * a2[hd:hd + 1, :], axis=-1, keepdims=True))
    f1_ref[...] = jnp.concatenate(f1_cols, axis=-1)                   # (TQ, H)
    f2_ref[...] = jnp.concatenate(f2_cols, axis=-1)                   # (TQ, H)
    wh_ref[...] = wh.astype(wh_ref.dtype)                             # bf16 for pass 2


def _attend_kernel(adj_ref, f1_ref, f2t_ref, wh_ref, out_ref, *,
                   nheads, fout, alpha, apply_elu):
    """Masked softmax attention + aggregation for all heads of one layer."""
    mask = adj_ref[...] > 0.0                  # (TQ, N)
    f1 = f1_ref[...]                           # (TQ, H) f32
    f2t = f2t_ref[...]                         # (H, N)  f32
    wh_all = wh_ref[...]                       # (N, H*Fout) bf16
    neg = jnp.float32(-9e15)                   # keep mask bias in f32 only
    outs = []
    for hd in range(nheads):
        e = f1[:, hd:hd + 1] + f2t[hd:hd + 1, :]            # (TQ, N)
        e = jnp.where(e > 0.0, e, alpha * e)                # LeakyReLU(alpha)
        e = jnp.where(mask, e, neg)                         # mask non-edges
        # Rows are guaranteed non-empty (self-loops), so the mask never cancels.
        e = e - jnp.max(e, axis=-1, keepdims=True)          # stable softmax (dim=1)
        p = jnp.exp(e)
        denom = jnp.sum(p, axis=-1, keepdims=True)
        p = p * pl.reciprocal(denom, approx=True)           # EUP divide
        # TODO(synk): attention dropout is identity in eval mode, so omitted.
        hp = jnp.dot(p.astype(jnp.bfloat16),
                     wh_all[:, hd * fout:(hd + 1) * fout],
                     preferred_element_type=jnp.float32)    # (TQ, Fout)
        if apply_elu:
            # ELU; clamp before exp so the positive branch never produces inf.
            hp = jnp.where(hp > 0.0, hp, jnp.exp(jnp.minimum(hp, 0.0)) - 1.0)
        outs.append(hp)
    out_ref[...] = jnp.concatenate(outs, axis=-1).astype(out_ref.dtype)


# ----------------------------- wrappers ------------------------------------ #

def gat_layer(h, adj, w_stacked, a1, a2, *, alpha, apply_elu):
    """One fused multi-head GAT layer (all heads in a single pallas_call pair)."""
    N, fin = h.shape
    nheads, fout = a1.shape
    fo_tot = nheads * fout
    tq = 128 if N % 128 == 0 else N            # query-row tile
    grid = (pl.cdiv(N, tq),)
    cparams = pltpu.CompilerParams(dimension_semantics=("parallel",))

    # Pass 1: projection + per-head attention features.
    wh, f1, f2 = pl.pallas_call(
        functools.partial(_project_kernel, nheads=nheads, fout=fout),
        grid=grid,
        in_specs=[
            pl.BlockSpec((tq, fin), lambda i: (i, 0)),
            pl.BlockSpec((fin, fo_tot), lambda i: (0, 0)),      # resident weights
            pl.BlockSpec((nheads, fout), lambda i: (0, 0)),
            pl.BlockSpec((nheads, fout), lambda i: (0, 0)),
        ],
        out_specs=[
            pl.BlockSpec((tq, fo_tot), lambda i: (i, 0)),
            pl.BlockSpec((tq, nheads), lambda i: (i, 0)),
            pl.BlockSpec((tq, nheads), lambda i: (i, 0)),
        ],
        out_shape=[
            jax.ShapeDtypeStruct((N, fo_tot), jnp.bfloat16),
            jax.ShapeDtypeStruct((N, nheads), jnp.float32),
            jax.ShapeDtypeStruct((N, nheads), jnp.float32),
        ],
        compiler_params=cparams,
    )(h, w_stacked, a1, a2)

    f2t = f2.T  # tiny (H, N) transpose in XLA so the kernel only does sublane slices

    # Pass 2: attention + aggregation, tiled over query rows.
    out = pl.pallas_call(
        functools.partial(_attend_kernel, nheads=nheads, fout=fout,
                          alpha=alpha, apply_elu=apply_elu),
        grid=grid,
        in_specs=[
            pl.BlockSpec((tq, N), lambda i: (i, 0)),            # adj row tile
            pl.BlockSpec((tq, nheads), lambda i: (i, 0)),       # f1 row tile
            pl.BlockSpec((nheads, N), lambda i: (0, 0)),        # f2^T resident
            pl.BlockSpec((N, fo_tot), lambda i: (0, 0)),        # Wh resident (keys)
        ],
        out_specs=pl.BlockSpec((tq, fo_tot), lambda i: (i, 0)), # lane-dense fused output
        out_shape=jax.ShapeDtypeStruct((N, fo_tot), jnp.float32),
        compiler_params=cparams,
    )(adj, f1, f2t, wh)
    return out


def init_gat_params(key, nfeat, nclass, nheads_list, nhid_list):
    """Head params packed per layer: W_stacked (Fin, H*Fout) bf16, a1/a2 (H, Fout) f32."""
    assert len(nheads_list) == len(nhid_list)
    layers = []
    fin = nfeat
    for heads, fout in zip(nheads_list, nhid_list):
        key, kw, ka = jax.random.split(key, 3)
        w3 = jax.random.normal(kw, (heads, fin, fout), jnp.float32) * 0.1
        a = jax.random.normal(ka, (heads, 2 * fout), jnp.float32) * 0.1
        w_stacked = jnp.transpose(w3, (1, 0, 2)).reshape(fin, heads * fout)
        layers.append((w_stacked.astype(jnp.bfloat16), a[:, :fout], a[:, fout:]))
        fin = heads * fout
    key, kw, ka = jax.random.split(key, 3)
    w_out = jax.random.normal(kw, (fin, nclass), jnp.float32) * 0.1
    a_out = jax.random.normal(ka, (2 * nclass,), jnp.float32) * 0.1
    out = (w_out.astype(jnp.bfloat16),
           a_out[:nclass][None, :], a_out[nclass:][None, :])
    return {"layers": layers, "out": out}


def gat_forward(x, adj, params, *, alpha):
    # F.dropout(x, p, training=False) == identity, so dropout is omitted.
    for (w, a1, a2) in params["layers"]:
        x = gat_layer(x, adj, w, a1, a2, alpha=alpha, apply_elu=True)
    w, a1, a2 = params["out"]
    x = gat_layer(x, adj, w, a1, a2, alpha=alpha, apply_elu=False)
    return x


# ------------------------------- demo -------------------------------------- #

if __name__ == "__main__":
    key = jax.random.PRNGKey(0)

    # Small, forward-consistent shapes (hidden width 4*32 = 128 → lane-dense).
    N = 256
    nfeat = 64
    nhid_list = [32, 32]
    nheads_list = [4, 4]
    nclass = 16
    alpha = 0.2
    dropout = 0.6     # unused at inference

    kx, kadj, kparams = jax.random.split(key, 3)
    x = jax.random.normal(kx, (N, nfeat), jnp.float32)
    # Random sparse symmetric adjacency with self-loops (rows are never empty).
    rnd = jax.random.uniform(kadj, (N, N))
    adj = ((rnd + rnd.T) * 0.5 < 0.1).astype(jnp.float32)
    adj = jnp.maximum(adj, jnp.eye(N, dtype=jnp.float32))

    params = init_gat_params(kparams, nfeat, nclass, nheads_list, nhid_list)

    fwd = jax.jit(functools.partial(gat_forward, alpha=alpha))
    out = jax.block_until_ready(fwd(x, adj, params))

    assert out.shape == (N, nclass), out.shape
    assert bool(jnp.all(jnp.isfinite(out)))
    print("KERNEL_OK")
</pallas_src>

<mosaic_0001>
module attributes {stable_mosaic.version = 11 : i64} {
  func.func @_project_kernel(%arg0: i32, %arg1: memref<128x64xf32, #tpu.memory_space<vmem>>, %arg2: memref<64x128xbf16, #tpu.memory_space<vmem>>, %arg3: memref<4x32xf32, #tpu.memory_space<vmem>>, %arg4: memref<4x32xf32, #tpu.memory_space<vmem>>, %arg5: memref<128x128xbf16, #tpu.memory_space<vmem>>, %arg6: memref<128x4xf32, #tpu.memory_space<vmem>>, %arg7: memref<128x4xf32, #tpu.memory_space<vmem>>) attributes {dimension_semantics = [#tpu.dimension_semantics<parallel>], iteration_bounds = array<i64: 2>, scalar_prefetch = 0 : i64, scratch_operands = 0 : i64, tpu.core_type = #tpu.core_type<tc>, window_params = [{transform_indices = @transform_0, window_bounds = array<i64: 128, 64>}, {pipeline_mode = #tpu.pipeline_mode<synchronous>, transform_indices = @transform_1, window_bounds = array<i64: 64, 128>}, {pipeline_mode = #tpu.pipeline_mode<synchronous>, transform_indices = @transform_2, window_bounds = array<i64: 4, 32>}, {pipeline_mode = #tpu.pipeline_mode<synchronous>, transform_indices = @transform_3, window_bounds = array<i64: 4, 32>}, {transform_indices = @transform_4, window_bounds = array<i64: 128, 128>}, {transform_indices = @transform_5, window_bounds = array<i64: 128, 4>}, {transform_indices = @transform_6, window_bounds = array<i64: 128, 4>}]} {
    %c0 = arith.constant 0 : index
    %c0_0 = arith.constant 0 : index
    %0 = vector.load %arg1[%c0, %c0_0] : memref<128x64xf32, #tpu.memory_space<vmem>>, vector<128x64xf32>
    %1 = arith.truncf %0 : vector<128x64xf32> to vector<128x64xbf16>
    %c0_1 = arith.constant 0 : index
    %c0_2 = arith.constant 0 : index
    %2 = vector.load %arg2[%c0_1, %c0_2] : memref<64x128xbf16, #tpu.memory_space<vmem>>, vector<64x128xbf16>
    %cst = arith.constant dense<0.000000e+00> : vector<128x128xf32>
    %3 = tpu.matmul %1, %2, %cst {dimension_numbers = #tpu.dot_dimension_numbers<[1], [0], [0], [1], [0, 0, 1, 1], [], []>} : vector<128x64xbf16>, vector<64x128xbf16>, vector<128x128xf32> -> vector<128x128xf32>
    %c0_3 = arith.constant 0 : index
    %c0_4 = arith.constant 0 : index
    %4 = vector.load %arg3[%c0_3, %c0_4] : memref<4x32xf32, #tpu.memory_space<vmem>>, vector<4x32xf32>
    %c0_5 = arith.constant 0 : index
    %c0_6 = arith.constant 0 : index
    %5 = vector.load %arg4[%c0_5, %c0_6] : memref<4x32xf32, #tpu.memory_space<vmem>>, vector<4x32xf32>
    %6 = vector.extract_strided_slice %3 {offsets = [0, 0], sizes = [128, 32], strides = [1, 1]} : vector<128x128xf32> to vector<128x32xf32>
    %7 = vector.extract_strided_slice %4 {offsets = [0, 0], sizes = [1, 32], strides = [1, 1]} : vector<4x32xf32> to vector<1x32xf32>
    %8 = vector.broadcast %7 : vector<1x32xf32> to vector<128x32xf32>
    %9 = arith.mulf %6, %8 : vector<128x32xf32>
    %cst_7 = arith.constant dense<0.000000e+00> : vector<128xf32>
    %10 = vector.multi_reduction <add>, %9, %cst_7 [1] : vector<128x32xf32> to vector<128xf32>
    %11 = vector.shape_cast %10 : vector<128xf32> to vector<128x1xf32>
    %12 = vector.extract_strided_slice %5 {offsets = [0, 0], sizes = [1, 32], strides = [1, 1]} : vector<4x32xf32> to vector<1x32xf32>
    %13 = vector.broadcast %12 : vector<1x32xf32> to vector<128x32xf32>
    %14 = arith.mulf %6, %13 : vector<128x32xf32>
    %cst_8 = arith.constant dense<0.000000e+00> : vector<128xf32>
    %15 = vector.multi_reduction <add>, %14, %cst_8 [1] : vector<128x32xf32> to vector<128xf32>
    %16 = vector.shape_cast %15 : vector<128xf32> to vector<128x1xf32>
    %17 = vector.extract_strided_slice %3 {offsets = [0, 32], sizes = [128, 32], strides = [1, 1]} : vector<128x128xf32> to vector<128x32xf32>
    %18 = vector.extract_strided_slice %4 {offsets = [1, 0], sizes = [1, 32], strides = [1, 1]} : vector<4x32xf32> to vector<1x32xf32>
    %19 = vector.broadcast %18 : vector<1x32xf32> to vector<128x32xf32>
    %20 = arith.mulf %17, %19 : vector<128x32xf32>
    %cst_9 = arith.constant dense<0.000000e+00> : vector<128xf32>
    %21 = vector.multi_reduction <add>, %20, %cst_9 [1] : vector<128x32xf32> to vector<128xf32>
    %22 = vector.shape_cast %21 : vector<128xf32> to vector<128x1xf32>
    %23 = vector.extract_strided_slice %5 {offsets = [1, 0], sizes = [1, 32], strides = [1, 1]} : vector<4x32xf32> to vector<1x32xf32>
    %24 = vector.broadcast %23 : vector<1x32xf32> to vector<128x32xf32>
    %25 = arith.mulf %17, %24 : vector<128x32xf32>
    %cst_10 = arith.constant dense<0.000000e+00> : vector<128xf32>
    %26 = vector.multi_reduction <add>, %25, %cst_10 [1] : vector<128x32xf32> to vector<128xf32>
    %27 = vector.shape_cast %26 : vector<128xf32> to vector<128x1xf32>
    %28 = vector.extract_strided_slice %3 {offsets = [0, 64], sizes = [128, 32], strides = [1, 1]} : vector<128x128xf32> to vector<128x32xf32>
    %29 = vector.extract_strided_slice %4 {offsets = [2, 0], sizes = [1, 32], strides = [1, 1]} : vector<4x32xf32> to vector<1x32xf32>
    %30 = vector.broadcast %29 : vector<1x32xf32> to vector<128x32xf32>
    %31 = arith.mulf %28, %30 : vector<128x32xf32>
    %cst_11 = arith.constant dense<0.000000e+00> : vector<128xf32>
    %32 = vector.multi_reduction <add>, %31, %cst_11 [1] : vector<128x32xf32> to vector<128xf32>
    %33 = vector.shape_cast %32 : vector<128xf32> to vector<128x1xf32>
    %34 = vector.extract_strided_slice %5 {offsets = [2, 0], sizes = [1, 32], strides = [1, 1]} : vector<4x32xf32> to vector<1x32xf32>
    %35 = vector.broadcast %34 : vector<1x32xf32> to vector<128x32xf32>
    %36 = arith.mulf %28, %35 : vector<128x32xf32>
    %cst_12 = arith.constant dense<0.000000e+00> : vector<128xf32>
    %37 = vector.multi_reduction <add>, %36, %cst_12 [1] : vector<128x32xf32> to vector<128xf32>
    %38 = vector.shape_cast %37 : vector<128xf32> to vector<128x1xf32>
    %39 = vector.extract_strided_slice %3 {offsets = [0, 96], sizes = [128, 32], strides = [1, 1]} : vector<128x128xf32> to vector<128x32xf32>
    %40 = vector.extract_strided_slice %4 {offsets = [3, 0], sizes = [1, 32], strides = [1, 1]} : vector<4x32xf32> to vector<1x32xf32>
    %41 = vector.broadcast %40 : vector<1x32xf32> to vector<128x32xf32>
    %42 = arith.mulf %39, %41 : vector<128x32xf32>
    %cst_13 = arith.constant dense<0.000000e+00> : vector<128xf32>
    %43 = vector.multi_reduction <add>, %42, %cst_13 [1] : vector<128x32xf32> to vector<128xf32>
    %44 = vector.shape_cast %43 : vector<128xf32> to vector<128x1xf32>
    %45 = vector.extract_strided_slice %5 {offsets = [3, 0], sizes = [1, 32], strides = [1, 1]} : vector<4x32xf32> to vector<1x32xf32>
    %46 = vector.broadcast %45 : vector<1x32xf32> to vector<128x32xf32>
    %47 = arith.mulf %39, %46 : vector<128x32xf32>
    %cst_14 = arith.constant dense<0.000000e+00> : vector<128xf32>
    %48 = vector.multi_reduction <add>, %47, %cst_14 [1] : vector<128x32xf32> to vector<128xf32>
    %49 = vector.shape_cast %48 : vector<128xf32> to vector<128x1xf32>
    %50 = tpu.concatenate %11, %22, %33, %44 in 1 : vector<128x1xf32>, vector<128x1xf32>, vector<128x1xf32>, vector<128x1xf32> -> vector<128x4xf32>
    %c0_15 = arith.constant 0 : index
    %c0_16 = arith.constant 0 : index
    %51 = vector.load %arg6[%c0_15, %c0_16] : memref<128x4xf32, #tpu.memory_space<vmem>>, vector<128x4xf32>
    tpu.vector_store %arg6[%c0_15, %c0_16], %50 {strides = array<i32>} : memref<128x4xf32, #tpu.memory_space<vmem>>, vector<128x4xf32>,
    %52 = tpu.concatenate %16, %27, %38, %49 in 1 : vector<128x1xf32>, vector<128x1xf32>, vector<128x1xf32>, vector<128x1xf32> -> vector<128x4xf32>
    %c0_17 = arith.constant 0 : index
    %c0_18 = arith.constant 0 : index
    %53 = vector.load %arg7[%c0_17, %c0_18] : memref<128x4xf32, #tpu.memory_space<vmem>>, vector<128x4xf32>
    tpu.vector_store %arg7[%c0_17, %c0_18], %52 {strides = array<i32>} : memref<128x4xf32, #tpu.memory_space<vmem>>, vector<128x4xf32>,
    %54 = arith.truncf %3 : vector<128x128xf32> to vector<128x128xbf16>
    %c0_19 = arith.constant 0 : index
    %c0_20 = arith.constant 0 : index
    %55 = vector.load %arg5[%c0_19, %c0_20] : memref<128x128xbf16, #tpu.memory_space<vmem>>, vector<128x128xbf16>
    tpu.vector_store %arg5[%c0_19, %c0_20], %54 {strides = array<i32>} : memref<128x128xbf16, #tpu.memory_space<vmem>>, vector<128x128xbf16>,
    return
  }
  func.func @transform_0(%arg0: i32) -> (i32, i32) {
    %c0_i32 = arith.constant 0 : i32
    %c0_i32_0 = arith.constant 0 : i32
    return %arg0, %c0_i32 : i32, i32
  }
  func.func @transform_1(%arg0: i32) -> (i32, i32) {
    %c0_i32 = arith.constant 0 : i32
    %c0_i32_0 = arith.constant 0 : i32
    %c0_i32_1 = arith.constant 0 : i32
    return %c0_i32, %c0_i32_0 : i32, i32
  }
  func.func @transform_2(%arg0: i32) -> (i32, i32) {
    %c0_i32 = arith.constant 0 : i32
    %c0_i32_0 = arith.constant 0 : i32
    %c0_i32_1 = arith.constant 0 : i32
    return %c0_i32, %c0_i32_0 : i32, i32
  }
  func.func @transform_3(%arg0: i32) -> (i32, i32) {
    %c0_i32 = arith.constant 0 : i32
    %c0_i32_0 = arith.constant 0 : i32
    %c0_i32_1 = arith.constant 0 : i32
    return %c0_i32, %c0_i32_0 : i32, i32
  }
  func.func @transform_4(%arg0: i32) -> (i32, i32) {
    %c0_i32 = arith.constant 0 : i32
    %c0_i32_0 = arith.constant 0 : i32
    return %arg0, %c0_i32 : i32, i32
  }
  func.func @transform_5(%arg0: i32) -> (i32, i32) {
    %c0_i32 = arith.constant 0 : i32
    %c0_i32_0 = arith.constant 0 : i32
    return %arg0, %c0_i32 : i32, i32
  }
  func.func @transform_6(%arg0: i32) -> (i32, i32) {
    %c0_i32 = arith.constant 0 : i32
    %c0_i32_0 = arith.constant 0 : i32
    return %arg0, %c0_i32 : i32, i32
  }
}

module attributes {stable_mosaic.version = 11 : i64} {
  func.func @_project_kernel(%arg0: i32, %arg1: memref<128x128xf32, #tpu.memory_space<vmem>>, %arg2: memref<128x16xbf16, #tpu.memory_space<vmem>>, %arg3: memref<1x16xf32, #tpu.memory_space<vmem>>, %arg4: memref<1x16xf32, #tpu.memory_space<vmem>>, %arg5: memref<128x16xbf16, #tpu.memory_space<vmem>>, %arg6: memref<128x1xf32, #tpu.memory_space<vmem>>, %arg7: memref<128x1xf32, #tpu.memory_space<vmem>>) attributes {dimension_semantics = [#tpu.dimension_semantics<parallel>], iteration_bounds = array<i64: 2>, scalar_prefetch = 0 : i64, scratch_operands = 0 : i64, tpu.core_type = #tpu.core_type<tc>, window_params = [{transform_indices = @transform_0, window_bounds = array<i64: 128, 128>}, {pipeline_mode = #tpu.pipeline_mode<synchronous>, transform_indices = @transform_1, window_bounds = array<i64: 128, 16>}, {pipeline_mode = #tpu.pipeline_mode<synchronous>, transform_indices = @transform_2, window_bounds = array<i64: 1, 16>}, {pipeline_mode = #tpu.pipeline_mode<synchronous>, transform_indices = @transform_3, window_bounds = array<i64: 1, 16>}, {transform_indices = @transform_4, window_bounds = array<i64: 128, 16>}, {transform_indices = @transform_5, window_bounds = array<i64: 128, 1>}, {transform_indices = @transform_6, window_bounds = array<i64: 128, 1>}]} {
    %c0 = arith.constant 0 : index
    %c0_0 = arith.constant 0 : index
    %0 = vector.load %arg1[%c0, %c0_0] : memref<128x128xf32, #tpu.memory_space<vmem>>, vector<128x128xf32>
    %1 = arith.truncf %0 : vector<128x128xf32> to vector<128x128xbf16>
    %c0_1 = arith.constant 0 : index
    %c0_2 = arith.constant 0 : index
    %2 = vector.load %arg2[%c0_1, %c0_2] : memref<128x16xbf16, #tpu.memory_space<vmem>>, vector<128x16xbf16>
    %cst = arith.constant dense<0.000000e+00> : vector<128x16xf32>
    %3 = tpu.matmul %1, %2, %cst {dimension_numbers = #tpu.dot_dimension_numbers<[1], [0], [0], [1], [0, 0, 1, 1], [], []>} : vector<128x128xbf16>, vector<128x16xbf16>, vector<128x16xf32> -> vector<128x16xf32>
    %c0_3 = arith.constant 0 : index
    %c0_4 = arith.constant 0 : index
    %4 = vector.load %arg3[%c0_3, %c0_4] : memref<1x16xf32, #tpu.memory_space<vmem>>, vector<1x16xf32>
    %c0_5 = arith.constant 0 : index
    %c0_6 = arith.constant 0 : index
    %5 = vector.load %arg4[%c0_5, %c0_6] : memref<1x16xf32, #tpu.memory_space<vmem>>, vector<1x16xf32>
    %6 = vector.broadcast %4 : vector<1x16xf32> to vector<128x16xf32>
    %7 = arith.mulf %3, %6 : vector<128x16xf32>
    %cst_7 = arith.constant dense<0.000000e+00> : vector<128xf32>
    %8 = vector.multi_reduction <add>, %7, %cst_7 [1] : vector<128x16xf32> to vector<128xf32>
    %9 = vector.shape_cast %8 : vector<128xf32> to vector<128x1xf32>
    %10 = vector.broadcast %5 : vector<1x16xf32> to vector<128x16xf32>
    %11 = arith.mulf %3, %10 : vector<128x16xf32>
    %cst_8 = arith.constant dense<0.000000e+00> : vector<128xf32>
    %12 = vector.multi_reduction <add>, %11, %cst_8 [1] : vector<128x16xf32> to vector<128xf32>
    %13 = vector.shape_cast %12 : vector<128xf32> to vector<128x1xf32>
    %c0_9 = arith.constant 0 : index
    %c0_10 = arith.constant 0 : index
    %14 = vector.load %arg6[%c0_9, %c0_10] : memref<128x1xf32, #tpu.memory_space<vmem>>, vector<128x1xf32>
    tpu.vector_store %arg6[%c0_9, %c0_10], %9 {strides = array<i32>} : memref<128x1xf32, #tpu.memory_space<vmem>>, vector<128x1xf32>,
    %c0_11 = arith.constant 0 : index
    %c0_12 = arith.constant 0 : index
    %15 = vector.load %arg7[%c0_11, %c0_12] : memref<128x1xf32, #tpu.memory_space<vmem>>, vector<128x1xf32>
    tpu.vector_store %arg7[%c0_11, %c0_12], %13 {strides = array<i32>} : memref<128x1xf32, #tpu.memory_space<vmem>>, vector<128x1xf32>,
    %16 = arith.truncf %3 : vector<128x16xf32> to vector<128x16xbf16>
    %c0_13 = arith.constant 0 : index
    %c0_14 = arith.constant 0 : index
    %17 = vector.load %arg5[%c0_13, %c0_14] : memref<128x16xbf16, #tpu.memory_space<vmem>>, vector<128x16xbf16>
    tpu.vector_store %arg5[%c0_13, %c0_14], %16 {strides = array<i32>} : memref<128x16xbf16, #tpu.memory_space<vmem>>, vector<128x16xbf16>,
    return
  }
  func.func @transform_0(%arg0: i32) -> (i32, i32) {
    %c0_i32 = arith.constant 0 : i32
    %c0_i32_0 = arith.constant 0 : i32
    return %arg0, %c0_i32 : i32, i32
  }
  func.func @transform_1(%arg0: i32) -> (i32, i32) {
    %c0_i32 = arith.constant 0 : i32
    %c0_i32_0 = arith.constant 0 : i32
    %c0_i32_1 = arith.constant 0 : i32
    return %c0_i32, %c0_i32_0 : i32, i32
  }
  func.func @transform_2(%arg0: i32) -> (i32, i32) {
    %c0_i32 = arith.constant 0 : i32
    %c0_i32_0 = arith.constant 0 : i32
    %c0_i32_1 = arith.constant 0 : i32
    return %c0_i32, %c0_i32_0 : i32, i32
  }
  func.func @transform_3(%arg0: i32) -> (i32, i32) {
    %c0_i32 = arith.constant 0 : i32
    %c0_i32_0 = arith.constant 0 : i32
    %c0_i32_1 = arith.constant 0 : i32
    return %c0_i32, %c0_i32_0 : i32, i32
  }
  func.func @transform_4(%arg0: i32) -> (i32, i32) {
    %c0_i32 = arith.constant 0 : i32
    %c0_i32_0 = arith.constant 0 : i32
    return %arg0, %c0_i32 : i32, i32
  }
  func.func @transform_5(%arg0: i32) -> (i32, i32) {
    %c0_i32 = arith.constant 0 : i32
    %c0_i32_0 = arith.constant 0 : i32
    return %arg0, %c0_i32 : i32, i32
  }
  func.func @transform_6(%arg0: i32) -> (i32, i32) {
    %c0_i32 = arith.constant 0 : i32
    %c0_i32_0 = arith.constant 0 : i32
    return %arg0, %c0_i32 : i32, i32
  }
}

module attributes {stable_mosaic.version = 11 : i64} {
  func.func @_project_kernel(%arg0: i32, %arg1: memref<128x128xf32, #tpu.memory_space<vmem>>, %arg2: memref<128x128xbf16, #tpu.memory_space<vmem>>, %arg3: memref<4x32xf32, #tpu.memory_space<vmem>>, %arg4: memref<4x32xf32, #tpu.memory_space<vmem>>, %arg5: memref<128x128xbf16, #tpu.memory_space<vmem>>, %arg6: memref<128x4xf32, #tpu.memory_space<vmem>>, %arg7: memref<128x4xf32, #tpu.memory_space<vmem>>) attributes {dimension_semantics = [#tpu.dimension_semantics<parallel>], iteration_bounds = array<i64: 2>, scalar_prefetch = 0 : i64, scratch_operands = 0 : i64, tpu.core_type = #tpu.core_type<tc>, window_params = [{transform_indices = @transform_0, window_bounds = array<i64: 128, 128>}, {pipeline_mode = #tpu.pipeline_mode<synchronous>, transform_indices = @transform_1, window_bounds = array<i64: 128, 128>}, {pipeline_mode = #tpu.pipeline_mode<synchronous>, transform_indices = @transform_2, window_bounds = array<i64: 4, 32>}, {pipeline_mode = #tpu.pipeline_mode<synchronous>, transform_indices = @transform_3, window_bounds = array<i64: 4, 32>}, {transform_indices = @transform_4, window_bounds = array<i64: 128, 128>}, {transform_indices = @transform_5, window_bounds = array<i64: 128, 4>}, {transform_indices = @transform_6, window_bounds = array<i64: 128, 4>}]} {
    %c0 = arith.constant 0 : index
    %c0_0 = arith.constant 0 : index
    %0 = vector.load %arg1[%c0, %c0_0] : memref<128x128xf32, #tpu.memory_space<vmem>>, vector<128x128xf32>
    %1 = arith.truncf %0 : vector<128x128xf32> to vector<128x128xbf16>
    %c0_1 = arith.constant 0 : index
    %c0_2 = arith.constant 0 : index
    %2 = vector.load %arg2[%c0_1, %c0_2] : memref<128x128xbf16, #tpu.memory_space<vmem>>, vector<128x128xbf16>
    %cst = arith.constant dense<0.000000e+00> : vector<128x128xf32>
    %3 = tpu.matmul %1, %2, %cst {dimension_numbers = #tpu.dot_dimension_numbers<[1], [0], [0], [1], [0, 0, 1, 1], [], []>} : vector<128x128xbf16>, vector<128x128xbf16>, vector<128x128xf32> -> vector<128x128xf32>
    %c0_3 = arith.constant 0 : index
    %c0_4 = arith.constant 0 : index
    %4 = vector.load %arg3[%c0_3, %c0_4] : memref<4x32xf32, #tpu.memory_space<vmem>>, vector<4x32xf32>
    %c0_5 = arith.constant 0 : index
    %c0_6 = arith.constant 0 : index
    %5 = vector.load %arg4[%c0_5, %c0_6] : memref<4x32xf32, #tpu.memory_space<vmem>>, vector<4x32xf32>
    %6 = vector.extract_strided_slice %3 {offsets = [0, 0], sizes = [128, 32], strides = [1, 1]} : vector<128x128xf32> to vector<128x32xf32>
    %7 = vector.extract_strided_slice %4 {offsets = [0, 0], sizes = [1, 32], strides = [1, 1]} : vector<4x32xf32> to vector<1x32xf32>
    %8 = vector.broadcast %7 : vector<1x32xf32> to vector<128x32xf32>
    %9 = arith.mulf %6, %8 : vector<128x32xf32>
    %cst_7 = arith.constant dense<0.000000e+00> : vector<128xf32>
    %10 = vector.multi_reduction <add>, %9, %cst_7 [1] : vector<128x32xf32> to vector<128xf32>
    %11 = vector.shape_cast %10 : vector<128xf32> to vector<128x1xf32>
    %12 = vector.extract_strided_slice %5 {offsets = [0, 0], sizes = [1, 32], strides = [1, 1]} : vector<4x32xf32> to vector<1x32xf32>
    %13 = vector.broadcast %12 : vector<1x32xf32> to vector<128x32xf32>
    %14 = arith.mulf %6, %13 : vector<128x32xf32>
    %cst_8 = arith.constant dense<0.000000e+00> : vector<128xf32>
    %15 = vector.multi_reduction <add>, %14, %cst_8 [1] : vector<128x32xf32> to vector<128xf32>
    %16 = vector.shape_cast %15 : vector<128xf32> to vector<128x1xf32>
    %17 = vector.extract_strided_slice %3 {offsets = [0, 32], sizes = [128, 32], strides = [1, 1]} : vector<128x128xf32> to vector<128x32xf32>
    %18 = vector.extract_strided_slice %4 {offsets = [1, 0], sizes = [1, 32], strides = [1, 1]} : vector<4x32xf32> to vector<1x32xf32>
    %19 = vector.broadcast %18 : vector<1x32xf32> to vector<128x32xf32>
    %20 = arith.mulf %17, %19 : vector<128x32xf32>
    %cst_9 = arith.constant dense<0.000000e+00> : vector<128xf32>
    %21 = vector.multi_reduction <add>, %20, %cst_9 [1] : vector<128x32xf32> to vector<128xf32>
    %22 = vector.shape_cast %21 : vector<128xf32> to vector<128x1xf32>
    %23 = vector.extract_strided_slice %5 {offsets = [1, 0], sizes = [1, 32], strides = [1, 1]} : vector<4x32xf32> to vector<1x32xf32>
    %24 = vector.broadcast %23 : vector<1x32xf32> to vector<128x32xf32>
    %25 = arith.mulf %17, %24 : vector<128x32xf32>
    %cst_10 = arith.constant dense<0.000000e+00> : vector<128xf32>
    %26 = vector.multi_reduction <add>, %25, %cst_10 [1] : vector<128x32xf32> to vector<128xf32>
    %27 = vector.shape_cast %26 : vector<128xf32> to vector<128x1xf32>
    %28 = vector.extract_strided_slice %3 {offsets = [0, 64], sizes = [128, 32], strides = [1, 1]} : vector<128x128xf32> to vector<128x32xf32>
    %29 = vector.extract_strided_slice %4 {offsets = [2, 0], sizes = [1, 32], strides = [1, 1]} : vector<4x32xf32> to vector<1x32xf32>
    %30 = vector.broadcast %29 : vector<1x32xf32> to vector<128x32xf32>
    %31 = arith.mulf %28, %30 : vector<128x32xf32>
    %cst_11 = arith.constant dense<0.000000e+00> : vector<128xf32>
    %32 = vector.multi_reduction <add>, %31, %cst_11 [1] : vector<128x32xf32> to vector<128xf32>
    %33 = vector.shape_cast %32 : vector<128xf32> to vector<128x1xf32>
    %34 = vector.extract_strided_slice %5 {offsets = [2, 0], sizes = [1, 32], strides = [1, 1]} : vector<4x32xf32> to vector<1x32xf32>
    %35 = vector.broadcast %34 : vector<1x32xf32> to vector<128x32xf32>
    %36 = arith.mulf %28, %35 : vector<128x32xf32>
    %cst_12 = arith.constant dense<0.000000e+00> : vector<128xf32>
    %37 = vector.multi_reduction <add>, %36, %cst_12 [1] : vector<128x32xf32> to vector<128xf32>
    %38 = vector.shape_cast %37 : vector<128xf32> to vector<128x1xf32>
    %39 = vector.extract_strided_slice %3 {offsets = [0, 96], sizes = [128, 32], strides = [1, 1]} : vector<128x128xf32> to vector<128x32xf32>
    %40 = vector.extract_strided_slice %4 {offsets = [3, 0], sizes = [1, 32], strides = [1, 1]} : vector<4x32xf32> to vector<1x32xf32>
    %41 = vector.broadcast %40 : vector<1x32xf32> to vector<128x32xf32>
    %42 = arith.mulf %39, %41 : vector<128x32xf32>
    %cst_13 = arith.constant dense<0.000000e+00> : vector<128xf32>
    %43 = vector.multi_reduction <add>, %42, %cst_13 [1] : vector<128x32xf32> to vector<128xf32>
    %44 = vector.shape_cast %43 : vector<128xf32> to vector<128x1xf32>
    %45 = vector.extract_strided_slice %5 {offsets = [3, 0], sizes = [1, 32], strides = [1, 1]} : vector<4x32xf32> to vector<1x32xf32>
    %46 = vector.broadcast %45 : vector<1x32xf32> to vector<128x32xf32>
    %47 = arith.mulf %39, %46 : vector<128x32xf32>
    %cst_14 = arith.constant dense<0.000000e+00> : vector<128xf32>
    %48 = vector.multi_reduction <add>, %47, %cst_14 [1] : vector<128x32xf32> to vector<128xf32>
    %49 = vector.shape_cast %48 : vector<128xf32> to vector<128x1xf32>
    %50 = tpu.concatenate %11, %22, %33, %44 in 1 : vector<128x1xf32>, vector<128x1xf32>, vector<128x1xf32>, vector<128x1xf32> -> vector<128x4xf32>
    %c0_15 = arith.constant 0 : index
    %c0_16 = arith.constant 0 : index
    %51 = vector.load %arg6[%c0_15, %c0_16] : memref<128x4xf32, #tpu.memory_space<vmem>>, vector<128x4xf32>
    tpu.vector_store %arg6[%c0_15, %c0_16], %50 {strides = array<i32>} : memref<128x4xf32, #tpu.memory_space<vmem>>, vector<128x4xf32>,
    %52 = tpu.concatenate %16, %27, %38, %49 in 1 : vector<128x1xf32>, vector<128x1xf32>, vector<128x1xf32>, vector<128x1xf32> -> vector<128x4xf32>
    %c0_17 = arith.constant 0 : index
    %c0_18 = arith.constant 0 : index
    %53 = vector.load %arg7[%c0_17, %c0_18] : memref<128x4xf32, #tpu.memory_space<vmem>>, vector<128x4xf32>
    tpu.vector_store %arg7[%c0_17, %c0_18], %52 {strides = array<i32>} : memref<128x4xf32, #tpu.memory_space<vmem>>, vector<128x4xf32>,
    %54 = arith.truncf %3 : vector<128x128xf32> to vector<128x128xbf16>
    %c0_19 = arith.constant 0 : index
    %c0_20 = arith.constant 0 : index
    %55 = vector.load %arg5[%c0_19, %c0_20] : memref<128x128xbf16, #tpu.memory_space<vmem>>, vector<128x128xbf16>
    tpu.vector_store %arg5[%c0_19, %c0_20], %54 {strides = array<i32>} : memref<128x128xbf16, #tpu.memory_space<vmem>>, vector<128x128xbf16>,
    return
  }
  func.func @transform_0(%arg0: i32) -> (i32, i32) {
    %c0_i32 = arith.constant 0 : i32
    %c0_i32_0 = arith.constant 0 : i32
    return %arg0, %c0_i32 : i32, i32
  }
  func.func @transform_1(%arg0: i32) -> (i32, i32) {
    %c0_i32 = arith.constant 0 : i32
    %c0_i32_0 = arith.constant 0 : i32
    %c0_i32_1 = arith.constant 0 : i32
    return %c0_i32, %c0_i32_0 : i32, i32
  }
  func.func @transform_2(%arg0: i32) -> (i32, i32) {
    %c0_i32 = arith.constant 0 : i32
    %c0_i32_0 = arith.constant 0 : i32
    %c0_i32_1 = arith.constant 0 : i32
    return %c0_i32, %c0_i32_0 : i32, i32
  }
  func.func @transform_3(%arg0: i32) -> (i32, i32) {
    %c0_i32 = arith.constant 0 : i32
    %c0_i32_0 = arith.constant 0 : i32
    %c0_i32_1 = arith.constant 0 : i32
    return %c0_i32, %c0_i32_0 : i32, i32
  }
  func.func @transform_4(%arg0: i32) -> (i32, i32) {
    %c0_i32 = arith.constant 0 : i32
    %c0_i32_0 = arith.constant 0 : i32
    return %arg0, %c0_i32 : i32, i32
  }
  func.func @transform_5(%arg0: i32) -> (i32, i32) {
    %c0_i32 = arith.constant 0 : i32
    %c0_i32_0 = arith.constant 0 : i32
    return %arg0, %c0_i32 : i32, i32
  }
  func.func @transform_6(%arg0: i32) -> (i32, i32) {
    %c0_i32 = arith.constant 0 : i32
    %c0_i32_0 = arith.constant 0 : i32
    return %arg0, %c0_i32 : i32, i32
  }
}

module attributes {stable_mosaic.version = 11 : i64} {
  func.func @_attend_kernel(%arg0: i32, %arg1: memref<128x256xf32, #tpu.memory_space<vmem>>, %arg2: memref<128x4xf32, #tpu.memory_space<vmem>>, %arg3: memref<4x256xf32, #tpu.memory_space<vmem>>, %arg4: memref<256x128xbf16, #tpu.memory_space<vmem>>, %arg5: memref<128x128xf32, #tpu.memory_space<vmem>>) attributes {dimension_semantics = [#tpu.dimension_semantics<parallel>], iteration_bounds = array<i64: 2>, scalar_prefetch = 0 : i64, scratch_operands = 0 : i64, tpu.core_type = #tpu.core_type<tc>, window_params = [{transform_indices = @transform_0, window_bounds = array<i64: 128, 256>}, {transform_indices = @transform_1, window_bounds = array<i64: 128, 4>}, {pipeline_mode = #tpu.pipeline_mode<synchronous>, transform_indices = @transform_2, window_bounds = array<i64: 4, 256>}, {pipeline_mode = #tpu.pipeline_mode<synchronous>, transform_indices = @transform_3, window_bounds = array<i64: 256, 128>}, {transform_indices = @transform_4, window_bounds = array<i64: 128, 128>}]} {
    %c0 = arith.constant 0 : index
    %c0_0 = arith.constant 0 : index
    %0 = vector.load %arg1[%c0, %c0_0] : memref<128x256xf32, #tpu.memory_space<vmem>>, vector<128x256xf32>
    %cst = arith.constant 0.000000e+00 : f32
    %1 = vector.broadcast %cst : f32 to vector<128x256xf32>
    %2 = arith.cmpf ogt, %0, %1 : vector<128x256xf32>
    %c0_1 = arith.constant 0 : index
    %c0_2 = arith.constant 0 : index
    %3 = vector.load %arg2[%c0_1, %c0_2] : memref<128x4xf32, #tpu.memory_space<vmem>>, vector<128x4xf32>
    %c0_3 = arith.constant 0 : index
    %c0_4 = arith.constant 0 : index
    %4 = vector.load %arg3[%c0_3, %c0_4] : memref<4x256xf32, #tpu.memory_space<vmem>>, vector<4x256xf32>
    %c0_5 = arith.constant 0 : index
    %c0_6 = arith.constant 0 : index
    %5 = vector.load %arg4[%c0_5, %c0_6] : memref<256x128xbf16, #tpu.memory_space<vmem>>, vector<256x128xbf16>
    %6 = vector.extract_strided_slice %3 {offsets = [0, 0], sizes = [128, 1], strides = [1, 1]} : vector<128x4xf32> to vector<128x1xf32>
    %7 = vector.extract_strided_slice %4 {offsets = [0, 0], sizes = [1, 256], strides = [1, 1]} : vector<4x256xf32> to vector<1x256xf32>
    %8 = vector.broadcast %6 : vector<128x1xf32> to vector<128x256xf32>
    %9 = vector.broadcast %7 : vector<1x256xf32> to vector<128x256xf32>
    %10 = arith.addf %8, %9 : vector<128x256xf32>
    %cst_7 = arith.constant 0.000000e+00 : f32
    %11 = vector.broadcast %cst_7 : f32 to vector<128x256xf32>
    %12 = arith.cmpf ogt, %10, %11 : vector<128x256xf32>
    %cst_8 = arith.constant 2.000000e-01 : f32
    %13 = vector.broadcast %cst_8 : f32 to vector<128x256xf32>
    %14 = arith.mulf %13, %10 : vector<128x256xf32>
    %15 = arith.select %12, %10, %14 : vector<128x256xi1>, vector<128x256xf32>
    %cst_9 = arith.constant -9.000000e+15 : f32
    %16 = vector.broadcast %cst_9 : f32 to vector<128x256xf32>
    %17 = arith.select %2, %15, %16 : vector<128x256xi1>, vector<128x256xf32>
    %cst_10 = arith.constant dense<0xFF800000> : vector<128xf32>
    %18 = vector.multi_reduction <maximumf>, %17, %cst_10 [1] : vector<128x256xf32> to vector<128xf32>
    %19 = vector.shape_cast %18 : vector<128xf32> to vector<128x1xf32>
    %20 = vector.broadcast %19 : vector<128x1xf32> to vector<128x256xf32>
    %21 = arith.subf %17, %20 : vector<128x256xf32>
    %22 = math.exp %21 : vector<128x256xf32>
    %cst_11 = arith.constant dense<0.000000e+00> : vector<128xf32>
    %23 = vector.multi_reduction <add>, %22, %cst_11 [1] : vector<128x256xf32> to vector<128xf32>
    %24 = vector.shape_cast %23 : vector<128xf32> to vector<128x1xf32>
    %25 = tpu.reciprocal %24 {approx = true} : vector<128x1xf32> -> vector<128x1xf32>
    %26 = vector.broadcast %25 : vector<128x1xf32> to vector<128x256xf32>
    %27 = arith.mulf %22, %26 : vector<128x256xf32>
    %28 = arith.truncf %27 : vector<128x256xf32> to vector<128x256xbf16>
    %29 = vector.extract_strided_slice %5 {offsets = [0, 0], sizes = [256, 32], strides = [1, 1]} : vector<256x128xbf16> to vector<256x32xbf16>
    %cst_12 = arith.constant dense<0.000000e+00> : vector<128x32xf32>
    %30 = tpu.matmul %28, %29, %cst_12 {dimension_numbers = #tpu.dot_dimension_numbers<[1], [0], [0], [1], [0, 0, 1, 1], [], []>} : vector<128x256xbf16>, vector<256x32xbf16>, vector<128x32xf32> -> vector<128x32xf32>
    %cst_13 = arith.constant 0.000000e+00 : f32
    %31 = vector.broadcast %cst_13 : f32 to vector<128x32xf32>
    %32 = arith.cmpf ogt, %30, %31 : vector<128x32xf32>
    %cst_14 = arith.constant 0.000000e+00 : f32
    %33 = vector.broadcast %cst_14 : f32 to vector<128x32xf32>
    %34 = arith.minimumf %30, %33 : vector<128x32xf32>
    %35 = math.exp %34 : vector<128x32xf32>
    %cst_15 = arith.constant 1.000000e+00 : f32
    %36 = vector.broadcast %cst_15 : f32 to vector<128x32xf32>
    %37 = arith.subf %35, %36 : vector<128x32xf32>
    %38 = arith.select %32, %30, %37 : vector<128x32xi1>, vector<128x32xf32>
    %39 = vector.extract_strided_slice %3 {offsets = [0, 1], sizes = [128, 1], strides = [1, 1]} : vector<128x4xf32> to vector<128x1xf32>
    %40 = vector.extract_strided_slice %4 {offsets = [1, 0], sizes = [1, 256], strides = [1, 1]} : vector<4x256xf32> to vector<1x256xf32>
    %41 = vector.broadcast %39 : vector<128x1xf32> to vector<128x256xf32>
    %42 = vector.broadcast %40 : vector<1x256xf32> to vector<128x256xf32>
    %43 = arith.addf %41, %42 : vector<128x256xf32>
    %cst_16 = arith.constant 0.000000e+00 : f32
    %44 = vector.broadcast %cst_16 : f32 to vector<128x256xf32>
    %45 = arith.cmpf ogt, %43, %44 : vector<128x256xf32>
    %cst_17 = arith.constant 2.000000e-01 : f32
    %46 = vector.broadcast %cst_17 : f32 to vector<128x256xf32>
    %47 = arith.mulf %46, %43 : vector<128x256xf32>
    %48 = arith.select %45, %43, %47 : vector<128x256xi1>, vector<128x256xf32>
    %cst_18 = arith.constant -9.000000e+15 : f32
    %49 = vector.broadcast %cst_18 : f32 to vector<128x256xf32>
    %50 = arith.select %2, %48, %49 : vector<128x256xi1>, vector<128x256xf32>
    %cst_19 = arith.constant dense<0xFF800000> : vector<128xf32>
    %51 = vector.multi_reduction <maximumf>, %50, %cst_19 [1] : vector<128x256xf32> to vector<128xf32>
    %52 = vector.shape_cast %51 : vector<128xf32> to vector<128x1xf32>
    %53 = vector.broadcast %52 : vector<128x1xf32> to vector<128x256xf32>
    %54 = arith.subf %50, %53 : vector<128x256xf32>
    %55 = math.exp %54 : vector<128x256xf32>
    %cst_20 = arith.constant dense<0.000000e+00> : vector<128xf32>
    %56 = vector.multi_reduction <add>, %55, %cst_20 [1] : vector<128x256xf32> to vector<128xf32>
    %57 = vector.shape_cast %56 : vector<128xf32> to vector<128x1xf32>
    %58 = tpu.reciprocal %57 {approx = true} : vector<128x1xf32> -> vector<128x1xf32>
    %59 = vector.broadcast %58 : vector<128x1xf32> to vector<128x256xf32>
    %60 = arith.mulf %55, %59 : vector<128x256xf32>
    %61 = arith.truncf %60 : vector<128x256xf32> to vector<128x256xbf16>
    %62 = vector.extract_strided_slice %5 {offsets = [0, 32], sizes = [256, 32], strides = [1, 1]} : vector<256x128xbf16> to vector<256x32xbf16>
    %cst_21 = arith.constant dense<0.000000e+00> : vector<128x32xf32>
    %63 = tpu.matmul %61, %62, %cst_21 {dimension_numbers = #tpu.dot_dimension_numbers<[1], [0], [0], [1], [0, 0, 1, 1], [], []>} : vector<128x256xbf16>, vector<256x32xbf16>, vector<128x32xf32> -> vector<128x32xf32>
    %cst_22 = arith.constant 0.000000e+00 : f32
    %64 = vector.broadcast %cst_22 : f32 to vector<128x32xf32>
    %65 = arith.cmpf ogt, %63, %64 : vector<128x32xf32>
    %cst_23 = arith.constant 0.000000e+00 : f32
    %66 = vector.broadcast %cst_23 : f32 to vector<128x32xf32>
    %67 = arith.minimumf %63, %66 : vector<128x32xf32>
    %68 = math.exp %67 : vector<128x32xf32>
    %cst_24 = arith.constant 1.000000e+00 : f32
    %69 = vector.broadcast %cst_24 : f32 to vector<128x32xf32>
    %70 = arith.subf %68, %69 : vector<128x32xf32>
    %71 = arith.select %65, %63, %70 : vector<128x32xi1>, vector<128x32xf32>
    %72 = vector.extract_strided_slice %3 {offsets = [0, 2], sizes = [128, 1], strides = [1, 1]} : vector<128x4xf32> to vector<128x1xf32>
    %73 = vector.extract_strided_slice %4 {offsets = [2, 0], sizes = [1, 256], strides = [1, 1]} : vector<4x256xf32> to vector<1x256xf32>
    %74 = vector.broadcast %72 : vector<128x1xf32> to vector<128x256xf32>
    %75 = vector.broadcast %73 : vector<1x256xf32> to vector<128x256xf32>
    %76 = arith.addf %74, %75 : vector<128x256xf32>
    %cst_25 = arith.constant 0.000000e+00 : f32
    %77 = vector.broadcast %cst_25 : f32 to vector<128x256xf32>
    %78 = arith.cmpf ogt, %76, %77 : vector<128x256xf32>
    %cst_26 = arith.constant 2.000000e-01 : f32
    %79 = vector.broadcast %cst_26 : f32 to vector<128x256xf32>
    %80 = arith.mulf %79, %76 : vector<128x256xf32>
    %81 = arith.select %78, %76, %80 : vector<128x256xi1>, vector<128x256xf32>
    %cst_27 = arith.constant -9.000000e+15 : f32
    %82 = vector.broadcast %cst_27 : f32 to vector<128x256xf32>
    %83 = arith.select %2, %81, %82 : vector<128x256xi1>, vector<128x256xf32>
    %cst_28 = arith.constant dense<0xFF800000> : vector<128xf32>
    %84 = vector.multi_reduction <maximumf>, %83, %cst_28 [1] : vector<128x256xf32> to vector<128xf32>
    %85 = vector.shape_cast %84 : vector<128xf32> to vector<128x1xf32>
    %86 = vector.broadcast %85 : vector<128x1xf32> to vector<128x256xf32>
    %87 = arith.subf %83, %86 : vector<128x256xf32>
    %88 = math.exp %87 : vector<128x256xf32>
    %cst_29 = arith.constant dense<0.000000e+00> : vector<128xf32>
    %89 = vector.multi_reduction <add>, %88, %cst_29 [1] : vector<128x256xf32> to vector<128xf32>
    %90 = vector.shape_cast %89 : vector<128xf32> to vector<128x1xf32>
    %91 = tpu.reciprocal %90 {approx = true} : vector<128x1xf32> -> vector<128x1xf32>
    %92 = vector.broadcast %91 : vector<128x1xf32> to vector<128x256xf32>
    %93 = arith.mulf %88, %92 : vector<128x256xf32>
    %94 = arith.truncf %93 : vector<128x256xf32> to vector<128x256xbf16>
    %95 = vector.extract_strided_slice %5 {offsets = [0, 64], sizes = [256, 32], strides = [1, 1]} : vector<256x128xbf16> to vector<256x32xbf16>
    %cst_30 = arith.constant dense<0.000000e+00> : vector<128x32xf32>
    %96 = tpu.matmul %94, %95, %cst_30 {dimension_numbers = #tpu.dot_dimension_numbers<[1], [0], [0], [1], [0, 0, 1, 1], [], []>} : vector<128x256xbf16>, vector<256x32xbf16>, vector<128x32xf32> -> vector<128x32xf32>
    %cst_31 = arith.constant 0.000000e+00 : f32
    %97 = vector.broadcast %cst_31 : f32 to vector<128x32xf32>
    %98 = arith.cmpf ogt, %96, %97 : vector<128x32xf32>
    %cst_32 = arith.constant 0.000000e+00 : f32
    %99 = vector.broadcast %cst_32 : f32 to vector<128x32xf32>
    %100 = arith.minimumf %96, %99 : vector<128x32xf32>
    %101 = math.exp %100 : vector<128x32xf32>
    %cst_33 = arith.constant 1.000000e+00 : f32
    %102 = vector.broadcast %cst_33 : f32 to vector<128x32xf32>
    %103 = arith.subf %101, %102 : vector<128x32xf32>
    %104 = arith.select %98, %96, %103 : vector<128x32xi1>, vector<128x32xf32>
    %105 = vector.extract_strided_slice %3 {offsets = [0, 3], sizes = [128, 1], strides = [1, 1]} : vector<128x4xf32> to vector<128x1xf32>
    %106 = vector.extract_strided_slice %4 {offsets = [3, 0], sizes = [1, 256], strides = [1, 1]} : vector<4x256xf32> to vector<1x256xf32>
    %107 = vector.broadcast %105 : vector<128x1xf32> to vector<128x256xf32>
    %108 = vector.broadcast %106 : vector<1x256xf32> to vector<128x256xf32>
    %109 = arith.addf %107, %108 : vector<128x256xf32>
    %cst_34 = arith.constant 0.000000e+00 : f32
    %110 = vector.broadcast %cst_34 : f32 to vector<128x256xf32>
    %111 = arith.cmpf ogt, %109, %110 : vector<128x256xf32>
    %cst_35 = arith.constant 2.000000e-01 : f32
    %112 = vector.broadcast %cst_35 : f32 to vector<128x256xf32>
    %113 = arith.mulf %112, %109 : vector<128x256xf32>
    %114 = arith.select %111, %109, %113 : vector<128x256xi1>, vector<128x256xf32>
    %cst_36 = arith.constant -9.000000e+15 : f32
    %115 = vector.broadcast %cst_36 : f32 to vector<128x256xf32>
    %116 = arith.select %2, %114, %115 : vector<128x256xi1>, vector<128x256xf32>
    %cst_37 = arith.constant dense<0xFF800000> : vector<128xf32>
    %117 = vector.multi_reduction <maximumf>, %116, %cst_37 [1] : vector<128x256xf32> to vector<128xf32>
    %118 = vector.shape_cast %117 : vector<128xf32> to vector<128x1xf32>
    %119 = vector.broadcast %118 : vector<128x1xf32> to vector<128x256xf32>
    %120 = arith.subf %116, %119 : vector<128x256xf32>
    %121 = math.exp %120 : vector<128x256xf32>
    %cst_38 = arith.constant dense<0.000000e+00> : vector<128xf32>
    %122 = vector.multi_reduction <add>, %121, %cst_38 [1] : vector<128x256xf32> to vector<128xf32>
    %123 = vector.shape_cast %122 : vector<128xf32> to vector<128x1xf32>
    %124 = tpu.reciprocal %123 {approx = true} : vector<128x1xf32> -> vector<128x1xf32>
    %125 = vector.broadcast %124 : vector<128x1xf32> to vector<128x256xf32>
    %126 = arith.mulf %121, %125 : vector<128x256xf32>
    %127 = arith.truncf %126 : vector<128x256xf32> to vector<128x256xbf16>
    %128 = vector.extract_strided_slice %5 {offsets = [0, 96], sizes = [256, 32], strides = [1, 1]} : vector<256x128xbf16> to vector<256x32xbf16>
    %cst_39 = arith.constant dense<0.000000e+00> : vector<128x32xf32>
    %129 = tpu.matmul %127, %128, %cst_39 {dimension_numbers = #tpu.dot_dimension_numbers<[1], [0], [0], [1], [0, 0, 1, 1], [], []>} : vector<128x256xbf16>, vector<256x32xbf16>, vector<128x32xf32> -> vector<128x32xf32>
    %cst_40 = arith.constant 0.000000e+00 : f32
    %130 = vector.broadcast %cst_40 : f32 to vector<128x32xf32>
    %131 = arith.cmpf ogt, %129, %130 : vector<128x32xf32>
    %cst_41 = arith.constant 0.000000e+00 : f32
    %132 = vector.broadcast %cst_41 : f32 to vector<128x32xf32>
    %133 = arith.minimumf %129, %132 : vector<128x32xf32>
    %134 = math.exp %133 : vector<128x32xf32>
    %cst_42 = arith.constant 1.000000e+00 : f32
    %135 = vector.broadcast %cst_42 : f32 to vector<128x32xf32>
    %136 = arith.subf %134, %135 : vector<128x32xf32>
    %137 = arith.select %131, %129, %136 : vector<128x32xi1>, vector<128x32xf32>
    %138 = tpu.concatenate %38, %71, %104, %137 in 1 : vector<128x32xf32>, vector<128x32xf32>, vector<128x32xf32>, vector<128x32xf32> -> vector<128x128xf32>
    %c0_43 = arith.constant 0 : index
    %c0_44 = arith.constant 0 : index
    %139 = vector.load %arg5[%c0_43, %c0_44] : memref<128x128xf32, #tpu.memory_space<vmem>>, vector<128x128xf32>
    tpu.vector_store %arg5[%c0_43, %c0_44], %138 {strides = array<i32>} : memref<128x128xf32, #tpu.memory_space<vmem>>, vector<128x128xf32>,
    return
  }
  func.func @transform_0(%arg0: i32) -> (i32, i32) {
    %c0_i32 = arith.constant 0 : i32
    %c0_i32_0 = arith.constant 0 : i32
    return %arg0, %c0_i32 : i32, i32
  }
  func.func @transform_1(%arg0: i32) -> (i32, i32) {
    %c0_i32 = arith.constant 0 : i32
    %c0_i32_0 = arith.constant 0 : i32
    return %arg0, %c0_i32 : i32, i32
  }
  func.func @transform_2(%arg0: i32) -> (i32, i32) {
    %c0_i32 = arith.constant 0 : i32
    %c0_i32_0 = arith.constant 0 : i32
    %c0_i32_1 = arith.constant 0 : i32
    return %c0_i32, %c0_i32_0 : i32, i32
  }
  func.func @transform_3(%arg0: i32) -> (i32, i32) {
    %c0_i32 = arith.constant 0 : i32
    %c0_i32_0 = arith.constant 0 : i32
    %c0_i32_1 = arith.constant 0 : i32
    return %c0_i32, %c0_i32_0 : i32, i32
  }
  func.func @transform_4(%arg0: i32) -> (i32, i32) {
    %c0_i32 = arith.constant 0 : i32
    %c0_i32_0 = arith.constant 0 : i32
    return %arg0, %c0_i32 : i32, i32
  }
}

module attributes {stable_mosaic.version = 11 : i64} {
  func.func @_attend_kernel(%arg0: i32, %arg1: memref<128x256xf32, #tpu.memory_space<vmem>>, %arg2: memref<128x1xf32, #tpu.memory_space<vmem>>, %arg3: memref<1x256xf32, #tpu.memory_space<vmem>>, %arg4: memref<256x16xbf16, #tpu.memory_space<vmem>>, %arg5: memref<128x16xf32, #tpu.memory_space<vmem>>) attributes {dimension_semantics = [#tpu.dimension_semantics<parallel>], iteration_bounds = array<i64: 2>, scalar_prefetch = 0 : i64, scratch_operands = 0 : i64, tpu.core_type = #tpu.core_type<tc>, window_params = [{transform_indices = @transform_0, window_bounds = array<i64: 128, 256>}, {transform_indices = @transform_1, window_bounds = array<i64: 128, 1>}, {pipeline_mode = #tpu.pipeline_mode<synchronous>, transform_indices = @transform_2, window_bounds = array<i64: 1, 256>}, {pipeline_mode = #tpu.pipeline_mode<synchronous>, transform_indices = @transform_3, window_bounds = array<i64: 256, 16>}, {transform_indices = @transform_4, window_bounds = array<i64: 128, 16>}]} {
    %c0 = arith.constant 0 : index
    %c0_0 = arith.constant 0 : index
    %0 = vector.load %arg1[%c0, %c0_0] : memref<128x256xf32, #tpu.memory_space<vmem>>, vector<128x256xf32>
    %cst = arith.constant 0.000000e+00 : f32
    %1 = vector.broadcast %cst : f32 to vector<128x256xf32>
    %2 = arith.cmpf ogt, %0, %1 : vector<128x256xf32>
    %c0_1 = arith.constant 0 : index
    %c0_2 = arith.constant 0 : index
    %3 = vector.load %arg2[%c0_1, %c0_2] : memref<128x1xf32, #tpu.memory_space<vmem>>, vector<128x1xf32>
    %c0_3 = arith.constant 0 : index
    %c0_4 = arith.constant 0 : index
    %4 = vector.load %arg3[%c0_3, %c0_4] : memref<1x256xf32, #tpu.memory_space<vmem>>, vector<1x256xf32>
    %c0_5 = arith.constant 0 : index
    %c0_6 = arith.constant 0 : index
    %5 = vector.load %arg4[%c0_5, %c0_6] : memref<256x16xbf16, #tpu.memory_space<vmem>>, vector<256x16xbf16>
    %6 = vector.broadcast %3 : vector<128x1xf32> to vector<128x256xf32>
    %7 = vector.broadcast %4 : vector<1x256xf32> to vector<128x256xf32>
    %8 = arith.addf %6, %7 : vector<128x256xf32>
    %cst_7 = arith.constant 0.000000e+00 : f32
    %9 = vector.broadcast %cst_7 : f32 to vector<128x256xf32>
    %10 = arith.cmpf ogt, %8, %9 : vector<128x256xf32>
    %cst_8 = arith.constant 2.000000e-01 : f32
    %11 = vector.broadcast %cst_8 : f32 to vector<128x256xf32>
    %12 = arith.mulf %11, %8 : vector<128x256xf32>
    %13 = arith.select %10, %8, %12 : vector<128x256xi1>, vector<128x256xf32>
    %cst_9 = arith.constant -9.000000e+15 : f32
    %14 = vector.broadcast %cst_9 : f32 to vector<128x256xf32>
    %15 = arith.select %2, %13, %14 : vector<128x256xi1>, vector<128x256xf32>
    %cst_10 = arith.constant dense<0xFF800000> : vector<128xf32>
    %16 = vector.multi_reduction <maximumf>, %15, %cst_10 [1] : vector<128x256xf32> to vector<128xf32>
    %17 = vector.shape_cast %16 : vector<128xf32> to vector<128x1xf32>
    %18 = vector.broadcast %17 : vector<128x1xf32> to vector<128x256xf32>
    %19 = arith.subf %15, %18 : vector<128x256xf32>
    %20 = math.exp %19 : vector<128x256xf32>
    %cst_11 = arith.constant dense<0.000000e+00> : vector<128xf32>
    %21 = vector.multi_reduction <add>, %20, %cst_11 [1] : vector<128x256xf32> to vector<128xf32>
    %22 = vector.shape_cast %21 : vector<128xf32> to vector<128x1xf32>
    %23 = tpu.reciprocal %22 {approx = true} : vector<128x1xf32> -> vector<128x1xf32>
    %24 = vector.broadcast %23 : vector<128x1xf32> to vector<128x256xf32>
    %25 = arith.mulf %20, %24 : vector<128x256xf32>
    %26 = arith.truncf %25 : vector<128x256xf32> to vector<128x256xbf16>
    %cst_12 = arith.constant dense<0.000000e+00> : vector<128x16xf32>
    %27 = tpu.matmul %26, %5, %cst_12 {dimension_numbers = #tpu.dot_dimension_numbers<[1], [0], [0], [1], [0, 0, 1, 1], [], []>} : vector<128x256xbf16>, vector<256x16xbf16>, vector<128x16xf32> -> vector<128x16xf32>
    %c0_13 = arith.constant 0 : index
    %c0_14 = arith.constant 0 : index
    %28 = vector.load %arg5[%c0_13, %c0_14] : memref<128x16xf32, #tpu.memory_space<vmem>>, vector<128x16xf32>
    tpu.vector_store %arg5[%c0_13, %c0_14], %27 {strides = array<i32>} : memref<128x16xf32, #tpu.memory_space<vmem>>, vector<128x16xf32>,
    return
  }
  func.func @transform_0(%arg0: i32) -> (i32, i32) {
    %c0_i32 = arith.constant 0 : i32
    %c0_i32_0 = arith.constant 0 : i32
    return %arg0, %c0_i32 : i32, i32
  }
  func.func @transform_1(%arg0: i32) -> (i32, i32) {
    %c0_i32 = arith.constant 0 : i32
    %c0_i32_0 = arith.constant 0 : i32
    return %arg0, %c0_i32 : i32, i32
  }
  func.func @transform_2(%arg0: i32) -> (i32, i32) {
    %c0_i32 = arith.constant 0 : i32
    %c0_i32_0 = arith.constant 0 : i32
    %c0_i32_1 = arith.constant 0 : i32
    return %c0_i32, %c0_i32_0 : i32, i32
  }
  func.func @transform_3(%arg0: i32) -> (i32, i32) {
    %c0_i32 = arith.constant 0 : i32
    %c0_i32_0 = arith.constant 0 : i32
    %c0_i32_1 = arith.constant 0 : i32
    return %c0_i32, %c0_i32_0 : i32, i32
  }
  func.func @transform_4(%arg0: i32) -> (i32, i32) {
    %c0_i32 = arith.constant 0 : i32
    %c0_i32_0 = arith.constant 0 : i32
    return %arg0, %c0_i32 : i32, i32
  }
}

</mosaic_0001>

<llo_original>
// kernel: gat_forward.10
$region0: #{gat_forward.10}
  #allocation0 [shape = 'u32[]', space=smem, size = 0x4, offset = 0x4, fixed_abs, tag = 'smem constant byte address 0x4 - core index']
  #allocation1 [shape = 'u32[72,128]{1,0:T(1,128)}', space=vmem, size = 0x9000, scoped, tag = 'internal scratch']
  %s0 = inlined_call_operand.vmem [shape: f32[256,128], index: 0, kind: input, shape index: {}]
  %s1 = inlined_call_operand.vmem [shape: bf16[128,16], index: 1, kind: input, shape index: {}]
  %s2 = inlined_call_operand.vmem [shape: f32[1,16], index: 2, kind: input, shape index: {}]
  %s3 = inlined_call_operand.vmem [shape: f32[1,16], index: 3, kind: input, shape index: {}]
  %s4 = inlined_call_operand.vmem [shape: bf16[256,16], index: 4, kind: output, shape index: {0}]
  %s5 = inlined_call_operand.vmem [shape: f32[256,1], index: 5, kind: output, shape index: {1}]
  %s6 = inlined_call_operand.vmem [shape: f32[256,1], index: 6, kind: output, shape index: {2}]
  %7 = xla_tuple %s4, %s5, %s6
  %s8 = sld [smem:[#allocation0]]
  $region65: #{gat_forward.10} parent=0
    _
  %s10 = ssub.s32 1, %s8
  %s11 = scalar_select 0, %s10, %s8
  loop: start=0, step=1, limit=4
  $region2: #{gat_forward.10} parent=0 // loop_pre_header
    _
  $region3: #{gat_forward.10} parent=0 // loop_header
    %s13 = sphi 0, %s17
    %p14 = scmp.ge.s32.totalorder %s13, 4
    %s23 = sphi 0, %s25
    %s26 = sphi 0, %s23
    %s27 = sphi 0, %s26
    %s43 = sphi 0, %s27
    %s47 = sphi 0, %s47
    %s49 = sphi 0, %s47
    %s50 = sphi 0, %s49
    %s64 = sphi 0, %s50
    %s68 = sphi 0, %s68
    %s70 = sphi 0, %s68
    %s71 = sphi 0, %s70
    %s85 = sphi 0, %s71
    %s89 = sphi 0, %s89
    %s91 = sphi 0, %s89
    %s92 = sphi 0, %s91
    %s106 = sphi 0, %s92
    %s112 = sphi 0, %s114
    %s115 = sphi 0, %s112
    %s116 = sphi 0, %s115
    %s132 = sphi 0, %s116
    %s138 = sphi 0, %s140
    %s141 = sphi 0, %s138
    %s142 = sphi 0, %s141
    %s158 = sphi 0, %s142
    %s164 = sphi 0, %s166
    %s167 = sphi 0, %s164
    %s168 = sphi 0, %s167
    %s184 = sphi 0, %s168
  $region4: #{gat_forward.10} parent=0 // loop_header_branch
    %16 = sbr.rel (%p14) target = $region8
  $region5: #{gat_forward.10} parent=0 // loop_body
    %s18 = ssub.s32 %s13, 1
    %s19 = ssub.s32 %s13, 2
    %s20 = sadd.s32 %s13, 1
    %s21 = ssub.s32 %s13, %s20
    %p22 = scmp.eq.s32.totalorder %s21, 0
    %s24 = sadd.s32 %s23, 1
    %s25 = scalar_select %p22, %s23, %s24
    %p28 = pneg %p22
    %p29 = scmp.eq.s32.totalorder %s13, 1
    %p30 = por %p28, %p29
    %p31 = scmp.ne.s32.totalorder %s23, %s26
    %p32 = scmp.eq.s32.totalorder %s13, 0
    %p33 = por %p31, %p32
    %p34 = scmp.ne.s32.totalorder %s23, %s26
    %p35 = scmp.eq.s32.totalorder %s18, 1
    %p36 = por %p34, %p35
    %p37 = scmp.ne.s32.totalorder %s26, %s27
    %p38 = scmp.eq.s32.totalorder %s18, 0
    %p39 = por %p37, %p38
    %p40 = scmp.ne.s32.totalorder %s26, %s27
    %p41 = scmp.eq.s32.totalorder %s19, 1
    %p42 = por %p40, %p41
    %p44 = scmp.ne.s32.totalorder %s27, %s43
    %p45 = scmp.eq.s32.totalorder %s19, 0
    %p46 = por %p44, %p45
    %s48 = sadd.s32 %s47, 1
    %p51 = scmp.eq.s32.totalorder %s13, 1
    %p52 = scmp.ne.s32.totalorder %s47, %s49
    %p53 = scmp.eq.s32.totalorder %s13, 0
    %p54 = por %p52, %p53
    %p55 = scmp.ne.s32.totalorder %s47, %s49
    %p56 = scmp.eq.s32.totalorder %s18, 1
    %p57 = por %p55, %p56
    %p58 = scmp.ne.s32.totalorder %s49, %s50
    %p59 = scmp.eq.s32.totalorder %s18, 0
    %p60 = por %p58, %p59
    %p61 = scmp.ne.s32.totalorder %s49, %s50
    %p62 = scmp.eq.s32.totalorder %s19, 1
    %p63 = por %p61, %p62
    %p65 = scmp.ne.s32.totalorder %s50, %s64
    %p66 = scmp.eq.s32.totalorder %s19, 0
    %p67 = por %p65, %p66
    %s69 = sadd.s32 %s68, 1
    %p72 = scmp.eq.s32.totalorder %s13, 1
    %p73 = scmp.ne.s32.totalorder %s68, %s70
    %p74 = scmp.eq.s32.totalorder %s13, 0
    %p75 = por %p73, %p74
    %p76 = scmp.ne.s32.totalorder %s68, %s70
    %p77 = scmp.eq.s32.totalorder %s18, 1
    %p78 = por %p76, %p77
    %p79 = scmp.ne.s32.totalorder %s70, %s71
    %p80 = scmp.eq.s32.totalorder %s18, 0
    %p81 = por %p79, %p80
    %p82 = scmp.ne.s32.totalorder %s70, %s71
    %p83 = scmp.eq.s32.totalorder %s19, 1
    %p84 = por %p82, %p83
    %p86 = scmp.ne.s32.totalorder %s71, %s85
    %p87 = scmp.eq.s32.totalorder %s19, 0
    %p88 = por %p86, %p87
    %s90 = sadd.s32 %s89, 1
    %p93 = scmp.eq.s32.totalorder %s13, 1
    %p94 = scmp.ne.s32.totalorder %s89, %s91
    %p95 = scmp.eq.s32.totalorder %s13, 0
    %p96 = por %p94, %p95
    %p97 = scmp.ne.s32.totalorder %s89, %s91
    %p98 = scmp.eq.s32.totalorder %s18, 1
    %p99 = por %p97, %p98
    %p100 = scmp.ne.s32.totalorder %s91, %s92
    %p101 = scmp.eq.s32.totalorder %s18, 0
    %p102 = por %p100, %p101
    %p103 = scmp.ne.s32.totalorder %s91, %s92
    %p104 = scmp.eq.s32.totalorder %s19, 1
    %p105 = por %p103, %p104
    %p107 = scmp.ne.s32.totalorder %s92, %s106
    %p108 = scmp.eq.s32.totalorder %s19, 0
    %p109 = por %p107, %p108
    %s110 = ssub.s32 %s13, %s20
    %p111 = scmp.eq.s32.totalorder %s110, 0
    %s113 = sadd.s32 %s112, 1
    %s114 = scalar_select %p111, %s112, %s113
    %p117 = pneg %p111
    %p118 = scmp.eq.s32.totalorder %s13, 1
    %p119 = por %p117, %p118
    %p120 = scmp.ne.s32.totalorder %s112, %s115
    %p121 = scmp.eq.s32.totalorder %s13, 0
    %p122 = por %p120, %p121
    %p123 = scmp.ne.s32.totalorder %s112, %s115
    %p124 = scmp.eq.s32.totalorder %s18, 1
    %p125 = por %p123, %p124
    %p126 = scmp.ne.s32.totalorder %s115, %s116
    %p127 = scmp.eq.s32.totalorder %s18, 0
    %p128 = por %p126, %p127
    %p129 = scmp.ne.s32.totalorder %s115, %s116
    %p130 = scmp.eq.s32.totalorder %s19, 1
    %p131 = por %p129, %p130
    %p133 = scmp.ne.s32.totalorder %s116, %s132
    %p134 = scmp.eq.s32.totalorder %s19, 0
    %p135 = por %p133, %p134
    %s136 = ssub.s32 %s13, %s20
    %p137 = scmp.eq.s32.totalorder %s136, 0
    %s139 = sadd.s32 %s138, 1
    %s140 = scalar_select %p137, %s138, %s139
    %p143 = pneg %p137
    %p144 = scmp.eq.s32.totalorder %s13, 1
    %p145 = por %p143, %p144
    %p146 = scmp.ne.s32.totalorder %s138, %s141
    %p147 = scmp.eq.s32.totalorder %s13, 0
    %p148 = por %p146, %p147
    %p149 = scmp.ne.s32.totalorder %s138, %s141
    %p150 = scmp.eq.s32.totalorder %s18, 1
    %p151 = por %p149, %p150
    %p152 = scmp.ne.s32.totalorder %s141, %s142
    %p153 = scmp.eq.s32.totalorder %s18, 0
    %p154 = por %p152, %p153
    %p155 = scmp.ne.s32.totalorder %s141, %s142
    %p156 = scmp.eq.s32.totalorder %s19, 1
    %p157 = por %p155, %p156
    %p159 = scmp.ne.s32.totalorder %s142, %s158
    %p160 = scmp.eq.s32.totalorder %s19, 0
    %p161 = por %p159, %p160
    %s162 = ssub.s32 %s13, %s20
    %p163 = scmp.eq.s32.totalorder %s162, 0
    %s165 = sadd.s32 %s164, 1
    %s166 = scalar_select %p163, %s164, %s165
    %p169 = pneg %p163
    %p170 = scmp.eq.s32.totalorder %s13, 1
    %p171 = por %p169, %p170
    %p172 = scmp.ne.s32.totalorder %s164, %s167
    %p173 = scmp.eq.s32.totalorder %s13, 0
    %p174 = por %p172, %p173
    %p175 = scmp.ne.s32.totalorder %s164, %s167
    %p176 = scmp.eq.s32.totalorder %s18, 1
    %p177 = por %p175, %p176
    %p178 = scmp.ne.s32.totalorder %s167, %s168
    %p179 = scmp.eq.s32.totalorder %s18, 0
    %p180 = por %p178, %p179
    %p181 = scmp.ne.s32.totalorder %s167, %s168
    %p182 = scmp.eq.s32.totalorder %s19, 1
    %p183 = por %p181, %p182
    %p185 = scmp.ne.s32.totalorder %s168, %s184
    %p186 = scmp.eq.s32.totalorder %s19, 0
    %p187 = por %p185, %p186
    %p188 = scmp.le.s32.totalorder 1, %s13
    %p189 = scmp.lt.s32.totalorder %s13, 3
    %p190 = pnand %p188, %p189
    %p191 = pneg %p190
    // Predicated region
    $region9: #{gat_forward.10} parent=5 // pred_check
      _
    $region10: #{gat_forward.10} parent=5 // pred_check_branch
      %193 = sbr.rel (%p190) target = $region12
    $region11: #{gat_forward.10} parent=5 // pred_region
      %s194 = ssub.s32 %s13, 1
      // Predicated region
      $region13: #{gat_forward.10} parent=11 // pred_check
        %p195 = pneg %p60
      $region14: #{gat_forward.10} parent=11 // pred_check_branch
        %197 = sbr.rel (%p195) target = $region16
      $region15: #{gat_forward.10} parent=11 // pred_region
        _
      $region16: #{gat_forward.10} parent=11 // pred_fallthru
        _
      // Predicated region
      $region17: #{gat_forward.10} parent=11 // pred_check
        %p198 = pneg %p81
      $region18: #{gat_forward.10} parent=11 // pred_check_branch
        %200 = sbr.rel (%p198) target = $region20
      $region19: #{gat_forward.10} parent=11 // pred_region
        _
      $region20: #{gat_forward.10} parent=11 // pred_fallthru
        _
      // Predicated region
      $region21: #{gat_forward.10} parent=11 // pred_check
        %p201 = pneg %p102
      $region22: #{gat_forward.10} parent=11 // pred_check_branch
        %203 = sbr.rel (%p201) target = $region24
      $region23: #{gat_forward.10} parent=11 // pred_region
        _
      $region24: #{gat_forward.10} parent=11 // pred_fallthru
        _
    $region12: #{gat_forward.10} parent=5 // pred_fallthru
      _
    %p204 = scmp.lt.s32.totalorder %s13, 2
    // Predicated region
    $region25: #{gat_forward.10} parent=5 // pred_check
      %p205 = pneg %p204
    $region26: #{gat_forward.10} parent=5 // pred_check_branch
      %207 = sbr.rel (%p205) target = $region28
    $region27: #{gat_forward.10} parent=5 // pred_region
      // Predicated region
      $region29: #{gat_forward.10} parent=27 // pred_check
        %p208 = pneg %p33
      $region30: #{gat_forward.10} parent=27 // pred_check_branch
        %210 = sbr.rel (%p208) target = $region32
      $region31: #{gat_forward.10} parent=27 // pred_region
        %s211 = smul.u32 16, %s13
        %p212 = scmp.lt.s32.totalorder %s211, 31
        %s213 = scalar_select %p212, %s211, 31
        %s214 = smul.addr %s213, 8
        %s215 = scalar_lea.vmem %s0, %s214
        %s216 = smul.u32 16, %s13
      $region32: #{gat_forward.10} parent=27 // pred_fallthru
        _
    $region28: #{gat_forward.10} parent=5 // pred_fallthru
      _
    %p217 = scmp.le.s32.totalorder 1, %s13
    %p218 = scmp.lt.s32.totalorder %s13, 3
    %p219 = pnand %p217, %p218
    %p220 = pneg %p219
    // Predicated region
    $region33: #{gat_forward.10} parent=5 // pred_check
      _
    $region34: #{gat_forward.10} parent=5 // pred_check_branch
      %222 = sbr.rel (%p219) target = $region36
    $region35: #{gat_forward.10} parent=5 // pred_region
      %s223 = ssub.s32 %s13, 1
      %s224 = smul.u32 16, %s18
      %p225 = scmp.lt.s32.totalorder %s224, 31
      %s226 = scalar_select %p225, %s224, 31
      %s227 = smul.addr %s226, 8
      %s228 = scalar_lea.vmem %s0, %s227
      %p229 = pneg %p39
      %p230 = pneg %p36
      %p231 = pneg %p60
      %p232 = pneg %p57
      %p233 = pneg %p81
      %p234 = pneg %p78
      %p235 = pneg %p102
      %p236 = pneg %p99
      %p237 = pneg %p128
      %p238 = pneg %p125
      %s239 = smul.u32 16, %s18
      %p240 = scmp.lt.s32.totalorder %s239, 31
      %s241 = scalar_select %p240, %s239, 31
      %s242 = smul.addr %s241, 4
      %s243 = scalar_lea.vmem %s4, %s242
      %p244 = pneg %p154
      %p245 = pneg %p151
      %s246 = smul.u32 16, %s18
      %p247 = scmp.lt.s32.totalorder %s246, 31
      %s248 = scalar_select %p247, %s246, 31
      %s249 = smul.addr %s248, 8
      %s250 = scalar_lea.vmem %s5, %s249
      %p251 = pneg %p180
      %p252 = pneg %p177
      %s253 = smul.u32 16, %s18
      %p254 = scmp.lt.s32.totalorder %s253, 31
      %s255 = scalar_select %p254, %s253, 31
      %s256 = smul.addr %s255, 8
      %s257 = scalar_lea.vmem %s6, %s256
      %s258 = smul.u32 16, %s18
      %p259 = scmp.lt.s32.totalorder %s258, 31
      %s260 = scalar_select %p259, %s258, 31
      %s261 = smul.addr %s260, 8
      %s262 = scalar_lea.vmem %s0, %s261
      %s263 = smul.u32 16, %s18
      %s264 = smul.u32 16, %s18
      %p265 = scmp.lt.s32.totalorder %s264, 31
      %s266 = scalar_select %p265, %s264, 31
      %s267 = smul.addr %s266, 4
      %s268 = scalar_lea.vmem %s4, %s267
      %s269 = smul.u32 16, %s18
      %s270 = smul.u32 16, %s18
      %p271 = scmp.lt.s32.totalorder %s270, 31
      %s272 = scalar_select %p271, %s270, 31
      %s273 = smul.addr %s272, 8
      %s274 = scalar_lea.vmem %s5, %s273
      %s275 = smul.u32 16, %s18
      %s276 = smul.u32 16, %s18
      %p277 = scmp.lt.s32.totalorder %s276, 31
      %s278 = scalar_select %p277, %s276, 31
      %s279 = smul.addr %s278, 8
      %s280 = scalar_lea.vmem %s6, %s279
      %s281 = smul.u32 16, %s18
      %v282 = vld [vmem:[%s262] sm:$0xff]
      %v283 = vld [vmem:[%s262 + $0x8] sm:$0xff]
      %v284 = vld [vmem:[%s262 + $0x10] sm:$0xff]
      %v285 = vld [vmem:[%s262 + $0x18] sm:$0xff]
      %v286 = vld [vmem:[%s262 + $0x20] sm:$0xff]
      %v287 = vld [vmem:[%s262 + $0x28] sm:$0xff]
      %v288 = vld [vmem:[%s262 + $0x30] sm:$0xff]
      %v289 = vld [vmem:[%s262 + $0x38] sm:$0xff]
      %v290 = vld [vmem:[%s262 + $0x40] sm:$0xff]
      %v291 = vld [vmem:[%s262 + $0x48] sm:$0xff]
      %v292 = vld [vmem:[%s262 + $0x50] sm:$0xff]
      %v293 = vld [vmem:[%s262 + $0x58] sm:$0xff]
      %v294 = vld [vmem:[%s262 + $0x60] sm:$0xff]
      %v295 = vld [vmem:[%s262 + $0x68] sm:$0xff]
      %v296 = vld [vmem:[%s262 + $0x70] sm:$0xff]
      %v297 = vld [vmem:[%s262 + $0x78] sm:$0xff]
      %v298 = vpack.c.bf16 %v283, %v282
      %v299 = vpack.c.bf16 %v285, %v284
      %v300 = vpack.c.bf16 %v287, %v286
      %v301 = vpack.c.bf16 %v289, %v288
      %v302 = vpack.c.bf16 %v291, %v290
      %v303 = vpack.c.bf16 %v293, %v292
      %v304 = vpack.c.bf16 %v295, %v294
      %v305 = vpack.c.bf16 %v297, %v296
      %v306 = vld [vmem:[%s1] sm:$0xf]
      %v307 = vld [vmem:[%s1 + $0x4] sm:$0xf]
      %v308 = vld [vmem:[%s1 + $0x8] sm:$0xf]
      %v309 = vld [vmem:[%s1 + $0xc] sm:$0xf]
      %v310 = vld [vmem:[%s1 + $0x10] sm:$0xf]
      %v311 = vld [vmem:[%s1 + $0x14] sm:$0xf]
      %v312 = vld [vmem:[%s1 + $0x18] sm:$0xf]
      %v313 = vld [vmem:[%s1 + $0x1c] sm:$0xf]
      %v314 = vld [vmem:[%s1 + $0x20] sm:$0xf]
      %v315 = vld [vmem:[%s1 + $0x24] sm:$0xf]
      %v316 = vld [vmem:[%s1 + $0x28] sm:$0xf]
      %v317 = vld [vmem:[%s1 + $0x2c] sm:$0xf]
      %v318 = vld [vmem:[%s1 + $0x30] sm:$0xf]
      %v319 = vld [vmem:[%s1 + $0x34] sm:$0xf]
      %v320 = vld [vmem:[%s1 + $0x38] sm:$0xf]
      %v321 = vld [vmem:[%s1 + $0x3c] sm:$0xf]
      %v338 = vunpack.c.l.b16 %v306
      %v339 = vunpack.c.l.b16 %v307
      %v340 = vunpack.c.l.b16 %v308
      %v341 = vunpack.c.l.b16 %v309
      %v342 = vunpack.c.l.b16 %v310
      %v343 = vunpack.c.l.b16 %v311
      %v344 = vunpack.c.l.b16 %v312
      %v345 = vunpack.c.l.b16 %v313
      %v346 = vunpack.c.l.b16 %v314
      %v347 = vunpack.c.l.b16 %v315
      %v348 = vunpack.c.l.b16 %v316
      %v349 = vunpack.c.l.b16 %v317
      %v350 = vunpack.c.l.b16 %v318
      %v351 = vunpack.c.l.b16 %v319
      %v352 = vunpack.c.l.b16 %v320
      %v353 = vunpack.c.l.b16 %v321
      %v354 = vpack.c.b16 %v339, %v338
      %v355 = vpack.c.b16 %v341, %v340
      %v356 = vpack.c.b16 %v343, %v342
      %v357 = vpack.c.b16 %v345, %v344
      %v358 = vpack.c.b16 %v347, %v346
      %v359 = vpack.c.b16 %v349, %v348
      %v360 = vpack.c.b16 %v351, %v350
      %v361 = vpack.c.b16 %v353, %v352
      %370 = vmatpush.bf16.msra.mxu0 %v361
      %371 = vmatpush.bf16.msra.mxu0 %v360
      %372 = vmatpush.bf16.msra.mxu0 %v359
      %373 = vmatpush.bf16.msra.mxu0 %v358
      %374 = vmatpush.bf16.msra.mxu0 %v357
      %375 = vmatpush.bf16.msra.mxu0 %v356
      %376 = vmatpush.bf16.msra.mxu0 %v355
      %377 = vmatpush.bf16.msra.mxu0 %v354
      %378 = vmatmul.bf16.gmra.mxu0 %v298
      %v379 = vpop.f32.mrf.mxu0
      %v380 = vadd.f32 0.0, %v379
      %v381 = vpop.f32.mrf.mxu0
      %v382 = vadd.f32 0.0, %v381
      %383 = vmatmul.bf16.gmra.mxu0 %v299
      %v384 = vpop.f32.mrf.mxu0
      %v385 = vadd.f32 0.0, %v384
      %v386 = vpop.f32.mrf.mxu0
      %v387 = vadd.f32 0.0, %v386
      %388 = vmatmul.bf16.gmra.mxu0 %v300
      %v389 = vpop.f32.mrf.mxu0
      %v390 = vadd.f32 0.0, %v389
      %v391 = vpop.f32.mrf.mxu0
      %v392 = vadd.f32 0.0, %v391
      %393 = vmatmul.bf16.gmra.mxu0 %v301
      %v394 = vpop.f32.mrf.mxu0
      %v395 = vadd.f32 0.0, %v394
      %v396 = vpop.f32.mrf.mxu0
      %v397 = vadd.f32 0.0, %v396
      %398 = vmatmul.bf16.gmra.mxu0 %v302
      %v399 = vpop.f32.mrf.mxu0
      %v400 = vadd.f32 0.0, %v399
      %v401 = vpop.f32.mrf.mxu0
      %v402 = vadd.f32 0.0, %v401
      %403 = vmatmul.bf16.gmra.mxu0 %v303
      %v404 = vpop.f32.mrf.mxu0
      %v405 = vadd.f32 0.0, %v404
      %v406 = vpop.f32.mrf.mxu0
      %v407 = vadd.f32 0.0, %v406
      %408 = vmatmul.bf16.gmra.mxu0 %v304
      %v409 = vpop.f32.mrf.mxu0
      %v410 = vadd.f32 0.0, %v409
      %v411 = vpop.f32.mrf.mxu0
      %v412 = vadd.f32 0.0, %v411
      %413 = vmatmul.bf16.gmra.mxu0 %v305
      %v414 = vpop.f32.mrf.mxu0
      %v415 = vadd.f32 0.0, %v414
      %v416 = vpop.f32.mrf.mxu0
      %v417 = vadd.f32 0.0, %v416
      %418 = vdwg.mxu0
      %v419 = vld [vmem:[%s2] sm:$0x1]
      %v420 = vld [vmem:[%s3] sm:$0x1]
      %v422 = vperm.slane %v419, 0
      %v424 = vmul.f32 %v380, %v422
      %v425 = vmul.f32 %v382, %v422
      %v426 = vmul.f32 %v385, %v422
      %v427 = vmul.f32 %v387, %v422
      %v428 = vmul.f32 %v390, %v422
      %v429 = vmul.f32 %v392, %v422
      %v430 = vmul.f32 %v395, %v422
      %v431 = vmul.f32 %v397, %v422
      %v432 = vmul.f32 %v400, %v422
      %v433 = vmul.f32 %v402, %v422
      %v434 = vmul.f32 %v405, %v422
      %v435 = vmul.f32 %v407, %v422
      %v436 = vmul.f32 %v410, %v422
      %v437 = vmul.f32 %v412, %v422
      %v438 = vmul.f32 %v415, %v422
      %v439 = vmul.f32 %v417, %v422
      %vm440 = vcmask 130048
      %v441 = vsel %vm440, %v424, 0.0
      %442 = vadd.xlane.f32.xlu0 %v441
      %v443 = vpop.xlane.xlu0 %442
      %v444 = vsel %vm440, %v425, 0.0
      %445 = vadd.xlane.f32.xlu0 %v444
      %v446 = vpop.xlane.xlu0 %445
      %v447 = vsel %vm440, %v426, 0.0
      %448 = vadd.xlane.f32.xlu0 %v447
      %v449 = vpop.xlane.xlu0 %448
      %v450 = vsel %vm440, %v427, 0.0
      %451 = vadd.xlane.f32.xlu0 %v450
      %v452 = vpop.xlane.xlu0 %451
      %v453 = vsel %vm440, %v428, 0.0
      %454 = vadd.xlane.f32.xlu0 %v453
      %v455 = vpop.xlane.xlu0 %454
      %v456 = vsel %vm440, %v429, 0.0
      %457 = vadd.xlane.f32.xlu0 %v456
      %v458 = vpop.xlane.xlu0 %457
      %v459 = vsel %vm440, %v430, 0.0
      %460 = vadd.xlane.f32.xlu0 %v459
      %v461 = vpop.xlane.xlu0 %460
      %v462 = vsel %vm440, %v431, 0.0
      %463 = vadd.xlane.f32.xlu0 %v462
      %v464 = vpop.xlane.xlu0 %463
      %v465 = vsel %vm440, %v432, 0.0
      %466 = vadd.xlane.f32.xlu0 %v465
      %v467 = vpop.xlane.xlu0 %466
      %v468 = vsel %vm440, %v433, 0.0
      %469 = vadd.xlane.f32.xlu0 %v468
      %v470 = vpop.xlane.xlu0 %469
      %v471 = vsel %vm440, %v434, 0.0
      %472 = vadd.xlane.f32.xlu0 %v471
      %v473 = vpop.xlane.xlu0 %472
      %v474 = vsel %vm440, %v435, 0.0
      %475 = vadd.xlane.f32.xlu0 %v474
      %v476 = vpop.xlane.xlu0 %475
      %v477 = vsel %vm440, %v436, 0.0
      %478 = vadd.xlane.f32.xlu0 %v477
      %v479 = vpop.xlane.xlu0 %478
      %v480 = vsel %vm440, %v437, 0.0
      %481 = vadd.xlane.f32.xlu0 %v480
      %v482 = vpop.xlane.xlu0 %481
      %v483 = vsel %vm440, %v438, 0.0
      %484 = vadd.xlane.f32.xlu0 %v483
      %v485 = vpop.xlane.xlu0 %484
      %v486 = vsel %vm440, %v439, 0.0
      %487 = vadd.xlane.f32.xlu0 %v486
      %v488 = vpop.xlane.xlu0 %487
      %v490 = vperm.slane %v420, 0
      %v492 = vmul.f32 %v380, %v490
      %v493 = vmul.f32 %v382, %v490
      %v494 = vmul.f32 %v385, %v490
      %v495 = vmul.f32 %v387, %v490
      %v496 = vmul.f32 %v390, %v490
      %v497 = vmul.f32 %v392, %v490
      %v498 = vmul.f32 %v395, %v490
      %v499 = vmul.f32 %v397, %v490
      %v500 = vmul.f32 %v400, %v490
      %v501 = vmul.f32 %v402, %v490
      %v502 = vmul.f32 %v405, %v490
      %v503 = vmul.f32 %v407, %v490
      %v504 = vmul.f32 %v410, %v490
      %v505 = vmul.f32 %v412, %v490
      %v506 = vmul.f32 %v415, %v490
      %v507 = vmul.f32 %v417, %v490
      %v508 = vsel %vm440, %v492, 0.0
      %509 = vadd.xlane.f32.xlu0 %v508
      %v510 = vpop.xlane.xlu0 %509
      %v511 = vsel %vm440, %v493, 0.0
      %512 = vadd.xlane.f32.xlu0 %v511
      %v513 = vpop.xlane.xlu0 %512
      %v514 = vsel %vm440, %v494, 0.0
      %515 = vadd.xlane.f32.xlu0 %v514
      %v516 = vpop.xlane.xlu0 %515
      %v517 = vsel %vm440, %v495, 0.0
      %518 = vadd.xlane.f32.xlu0 %v517
      %v519 = vpop.xlane.xlu0 %518
      %v520 = vsel %vm440, %v496, 0.0
      %521 = vadd.xlane.f32.xlu0 %v520
      %v522 = vpop.xlane.xlu0 %521
      %v523 = vsel %vm440, %v497, 0.0
      %524 = vadd.xlane.f32.xlu0 %v523
      %v525 = vpop.xlane.xlu0 %524
      %v526 = vsel %vm440, %v498, 0.0
      %527 = vadd.xlane.f32.xlu0 %v526
      %v528 = vpop.xlane.xlu0 %527
      %v529 = vsel %vm440, %v499, 0.0
      %530 = vadd.xlane.f32.xlu0 %v529
      %v531 = vpop.xlane.xlu0 %530
      %v532 = vsel %vm440, %v500, 0.0
      %533 = vadd.xlane.f32.xlu0 %v532
      %v534 = vpop.xlane.xlu0 %533
      %v535 = vsel %vm440, %v501, 0.0
      %536 = vadd.xlane.f32.xlu0 %v535
      %v537 = vpop.xlane.xlu0 %536
      %v538 = vsel %vm440, %v502, 0.0
      %539 = vadd.xlane.f32.xlu0 %v538
      %v540 = vpop.xlane.xlu0 %539
      %v541 = vsel %vm440, %v503, 0.0
      %542 = vadd.xlane.f32.xlu0 %v541
      %v543 = vpop.xlane.xlu0 %542
      %v544 = vsel %vm440, %v504, 0.0
      %545 = vadd.xlane.f32.xlu0 %v544
      %v546 = vpop.xlane.xlu0 %545
      %v547 = vsel %vm440, %v505, 0.0
      %548 = vadd.xlane.f32.xlu0 %v547
      %v549 = vpop.xlane.xlu0 %548
      %v550 = vsel %vm440, %v506, 0.0
      %551 = vadd.xlane.f32.xlu0 %v550
      %v552 = vpop.xlane.xlu0 %551
      %v553 = vsel %vm440, %v507, 0.0
      %554 = vadd.xlane.f32.xlu0 %v553
      %v555 = vpop.xlane.xlu0 %554
      %vm556 = vcmask 7168
      %557 = vst.msk [vmem:[%s274] sm:$0xff] %vm556, %v443
      %558 = vst.msk [vmem:[%s274 + $0x8] sm:$0xff] %vm556, %v446
      %559 = vst.msk [vmem:[%s274 + $0x10] sm:$0xff] %vm556, %v449
      %560 = vst.msk [vmem:[%s274 + $0x18] sm:$0xff] %vm556, %v452
      %561 = vst.msk [vmem:[%s274 + $0x20] sm:$0xff] %vm556, %v455
      %562 = vst.msk [vmem:[%s274 + $0x28] sm:$0xff] %vm556, %v458
      %563 = vst.msk [vmem:[%s274 + $0x30] sm:$0xff] %vm556, %v461
      %564 = vst.msk [vmem:[%s274 + $0x38] sm:$0xff] %vm556, %v464
      %565 = vst.msk [vmem:[%s274 + $0x40] sm:$0xff] %vm556, %v467
      %566 = vst.msk [vmem:[%s274 + $0x48] sm:$0xff] %vm556, %v470
      %567 = vst.msk [vmem:[%s274 + $0x50] sm:$0xff] %vm556, %v473
      %568 = vst.msk [vmem:[%s274 + $0x58] sm:$0xff] %vm556, %v476
      %569 = vst.msk [vmem:[%s274 + $0x60] sm:$0xff] %vm556, %v479
      %570 = vst.msk [vmem:[%s274 + $0x68] sm:$0xff] %vm556, %v482
      %571 = vst.msk [vmem:[%s274 + $0x70] sm:$0xff] %vm556, %v485
      %572 = vst.msk [vmem:[%s274 + $0x78] sm:$0xff] %vm556, %v488
      %573 = vst.msk [vmem:[%s280] sm:$0xff] %vm556, %v510
      %574 = vst.msk [vmem:[%s280 + $0x8] sm:$0xff] %vm556, %v513
      %575 = vst.msk [vmem:[%s280 + $0x10] sm:$0xff] %vm556, %v516
      %576 = vst.msk [vmem:[%s280 + $0x18] sm:$0xff] %vm556, %v519
      %577 = vst.msk [vmem:[%s280 + $0x20] sm:$0xff] %vm556, %v522
      %578 = vst.msk [vmem:[%s280 + $0x28] sm:$0xff] %vm556, %v525
      %579 = vst.msk [vmem:[%s280 + $0x30] sm:$0xff] %vm556, %v528
      %580 = vst.msk [vmem:[%s280 + $0x38] sm:$0xff] %vm556, %v531
      %581 = vst.msk [vmem:[%s280 + $0x40] sm:$0xff] %vm556, %v534
      %582 = vst.msk [vmem:[%s280 + $0x48] sm:$0xff] %vm556, %v537
      %583 = vst.msk [vmem:[%s280 + $0x50] sm:$0xff] %vm556, %v540
      %584 = vst.msk [vmem:[%s280 + $0x58] sm:$0xff] %vm556, %v543
      %585 = vst.msk [vmem:[%s280 + $0x60] sm:$0xff] %vm556, %v546
      %586 = vst.msk [vmem:[%s280 + $0x68] sm:$0xff] %vm556, %v549
      %587 = vst.msk [vmem:[%s280 + $0x70] sm:$0xff] %vm556, %v552
      %588 = vst.msk [vmem:[%s280 + $0x78] sm:$0xff] %vm556, %v555
      %v589 = vpack.c.bf16 %v380, %v380
      %v590 = vpack.c.bf16 %v382, %v382
      %v591 = vpack.c.bf16 %v385, %v385
      %v592 = vpack.c.bf16 %v387, %v387
      %v593 = vpack.c.bf16 %v390, %v390
      %v594 = vpack.c.bf16 %v392, %v392
      %v595 = vpack.c.bf16 %v395, %v395
      %v596 = vpack.c.bf16 %v397, %v397
      %v597 = vpack.c.bf16 %v400, %v400
      %v598 = vpack.c.bf16 %v402, %v402
      %v599 = vpack.c.bf16 %v405, %v405
      %v600 = vpack.c.bf16 %v407, %v407
      %v601 = vpack.c.bf16 %v410, %v410
      %v602 = vpack.c.bf16 %v412, %v412
      %v603 = vpack.c.bf16 %v415, %v415
      %v604 = vpack.c.bf16 %v417, %v417
      %vm605 = vcmask 125952
      %606 = vst.msk [vmem:[%s268] sm:$0xf] %vm605, %v589
      %607 = vst.msk [vmem:[%s268 + $0x4] sm:$0xf] %vm605, %v590
      %608 = vst.msk [vmem:[%s268 + $0x8] sm:$0xf] %vm605, %v591
      %609 = vst.msk [vmem:[%s268 + $0xc] sm:$0xf] %vm605, %v592
      %610 = vst.msk [vmem:[%s268 + $0x10] sm:$0xf] %vm605, %v593
      %611 = vst.msk [vmem:[%s268 + $0x14] sm:$0xf] %vm605, %v594
      %612 = vst.msk [vmem:[%s268 + $0x18] sm:$0xf] %vm605, %v595
      %613 = vst.msk [vmem:[%s268 + $0x1c] sm:$0xf] %vm605, %v596
      %614 = vst.msk [vmem:[%s268 + $0x20] sm:$0xf] %vm605, %v597
      %615 = vst.msk [vmem:[%s268 + $0x24] sm:$0xf] %vm605, %v598
      %616 = vst.msk [vmem:[%s268 + $0x28] sm:$0xf] %vm605, %v599
      %617 = vst.msk [vmem:[%s268 + $0x2c] sm:$0xf] %vm605, %v600
      %618 = vst.msk [vmem:[%s268 + $0x30] sm:$0xf] %vm605, %v601
      %619 = vst.msk [vmem:[%s268 + $0x34] sm:$0xf] %vm605, %v602
      %620 = vst.msk [vmem:[%s268 + $0x38] sm:$0xf] %vm605, %v603
      %621 = vst.msk [vmem:[%s268 + $0x3c] sm:$0xf] %vm605, %v604
      %s622 = smul.u32 16, %s18
      %p623 = scmp.lt.s32.totalorder %s622, 31
      %s624 = scalar_select %p623, %s622, 31
      %s625 = smul.addr %s624, 4
      %s626 = scalar_lea.vmem %s4, %s625
      %s627 = smul.u32 16, %s18
      %p628 = scmp.lt.s32.totalorder %s627, 31
      %s629 = scalar_select %p628, %s627, 31
      %s630 = smul.addr %s629, 8
      %s631 = scalar_lea.vmem %s5, %s630
      %s632 = smul.u32 16, %s18
      %p633 = scmp.lt.s32.totalorder %s632, 31
      %s634 = scalar_select %p633, %s632, 31
      %s635 = smul.addr %s634, 8
      %s636 = scalar_lea.vmem %s6, %s635
      // Predicated region
      $region37: #{gat_forward.10} parent=35 // pred_check
        %p637 = pneg %p125
      $region38: #{gat_forward.10} parent=35 // pred_check_branch
        %639 = sbr.rel (%p637) target = $region40
      $region39: #{gat_forward.10} parent=35 // pred_region
        %s640 = smul.u32 16, %s18
      $region40: #{gat_forward.10} parent=35 // pred_fallthru
        _
      // Predicated region
      $region41: #{gat_forward.10} parent=35 // pred_check
        %p641 = pneg %p151
      $region42: #{gat_forward.10} parent=35 // pred_check_branch
        %643 = sbr.rel (%p641) target = $region44
      $region43: #{gat_forward.10} parent=35 // pred_region
        %s644 = smul.u32 16, %s18
      $region44: #{gat_forward.10} parent=35 // pred_fallthru
        _
      // Predicated region
      $region45: #{gat_forward.10} parent=35 // pred_check
        %p645 = pneg %p177
      $region46: #{gat_forward.10} parent=35 // pred_check_branch
        %647 = sbr.rel (%p645) target = $region48
      $region47: #{gat_forward.10} parent=35 // pred_region
        %s648 = smul.u32 16, %s18
      $region48: #{gat_forward.10} parent=35 // pred_fallthru
        _
    $region36: #{gat_forward.10} parent=5 // pred_fallthru
      _
    %p649 = scmp.le.s32.totalorder 2, %s13
    // Predicated region
    $region49: #{gat_forward.10} parent=5 // pred_check
      %p650 = pneg %p649
    $region50: #{gat_forward.10} parent=5 // pred_check_branch
      %652 = sbr.rel (%p650) target = $region52
    $region51: #{gat_forward.10} parent=5 // pred_region
      %s653 = ssub.s32 %s13, 2
      // Predicated region
      $region53: #{gat_forward.10} parent=51 // pred_check
        %p654 = pneg %p131
      $region54: #{gat_forward.10} parent=51 // pred_check_branch
        %656 = sbr.rel (%p654) target = $region56
      $region55: #{gat_forward.10} parent=51 // pred_region
        %s657 = smul.u32 16, %s19
        %p658 = scmp.lt.s32.totalorder %s657, 31
        %s659 = scalar_select %p658, %s657, 31
        %s660 = smul.addr %s659, 4
        %s661 = scalar_lea.vmem %s4, %s660
      $region56: #{gat_forward.10} parent=51 // pred_fallthru
        _
      // Predicated region
      $region57: #{gat_forward.10} parent=51 // pred_check
        %p662 = pneg %p157
      $region58: #{gat_forward.10} parent=51 // pred_check_branch
        %664 = sbr.rel (%p662) target = $region60
      $region59: #{gat_forward.10} parent=51 // pred_region
        %s665 = smul.u32 16, %s19
        %p666 = scmp.lt.s32.totalorder %s665, 31
        %s667 = scalar_select %p666, %s665, 31
        %s668 = smul.addr %s667, 8
        %s669 = scalar_lea.vmem %s5, %s668
      $region60: #{gat_forward.10} parent=51 // pred_fallthru
        _
      // Predicated region
      $region61: #{gat_forward.10} parent=51 // pred_check
        %p670 = pneg %p183
      $region62: #{gat_forward.10} parent=51 // pred_check_branch
        %672 = sbr.rel (%p670) target = $region64
      $region63: #{gat_forward.10} parent=51 // pred_region
        %s673 = smul.u32 16, %s19
        %p674 = scmp.lt.s32.totalorder %s673, 31
        %s675 = scalar_select %p674, %s673, 31
        %s676 = smul.addr %s675, 8
        %s677 = scalar_lea.vmem %s6, %s676
      $region64: #{gat_forward.10} parent=51 // pred_fallthru
        _
    $region52: #{gat_forward.10} parent=5 // pred_fallthru
      _
  $region6: #{gat_forward.10} parent=0 // loop_footer
    %s17 = sadd.s32 1, %s13
  $region7: #{gat_forward.10} parent=0 // loop_footer_branch
    %12 = sbr.rel target = $region3
  $region8: #{gat_forward.10} parent=0 // loop_exit
    _

// kernel: gat_forward.8
$region0: #{gat_forward.8}
  #allocation0 [shape = 'u32[]', space=smem, size = 0x4, offset = 0x4, fixed_abs, tag = 'smem constant byte address 0x4 - core index']
  #allocation1 [shape = 'u32[72,128]{1,0:T(1,128)}', space=vmem, size = 0x9000, scoped, tag = 'internal scratch']
  %s0 = inlined_call_operand.vmem [shape: f32[256,128], index: 0, kind: input, shape index: {}]
  %s1 = inlined_call_operand.vmem [shape: bf16[128,128], index: 1, kind: input, shape index: {}]
  %s2 = inlined_call_operand.vmem [shape: f32[4,32], index: 2, kind: input, shape index: {}]
  %s3 = inlined_call_operand.vmem [shape: f32[4,32], index: 3, kind: input, shape index: {}]
  %s4 = inlined_call_operand.vmem [shape: bf16[256,128], index: 4, kind: output, shape index: {0}]
  %s5 = inlined_call_operand.vmem [shape: f32[256,4], index: 5, kind: output, shape index: {1}]
  %s6 = inlined_call_operand.vmem [shape: f32[256,4], index: 6, kind: output, shape index: {2}]
  %7 = xla_tuple %s4, %s5, %s6
  %s8 = sld [smem:[#allocation0]]
  $region65: #{gat_forward.8} parent=0
    _
  %s10 = ssub.s32 1, %s8
  %s11 = scalar_select 0, %s10, %s8
  loop: start=0, step=1, limit=4
  $region2: #{gat_forward.8} parent=0 // loop_pre_header
    _
  $region3: #{gat_forward.8} parent=0 // loop_header
    %s13 = sphi 0, %s17
    %p14 = scmp.ge.s32.totalorder %s13, 4
    %s23 = sphi 0, %s25
    %s26 = sphi 0, %s23
    %s27 = sphi 0, %s26
    %s43 = sphi 0, %s27
    %s47 = sphi 0, %s47
    %s49 = sphi 0, %s47
    %s50 = sphi 0, %s49
    %s64 = sphi 0, %s50
    %s68 = sphi 0, %s68
    %s70 = sphi 0, %s68
    %s71 = sphi 0, %s70
    %s85 = sphi 0, %s71
    %s89 = sphi 0, %s89
    %s91 = sphi 0, %s89
    %s92 = sphi 0, %s91
    %s106 = sphi 0, %s92
    %s112 = sphi 0, %s114
    %s115 = sphi 0, %s112
    %s116 = sphi 0, %s115
    %s132 = sphi 0, %s116
    %s138 = sphi 0, %s140
    %s141 = sphi 0, %s138
    %s142 = sphi 0, %s141
    %s158 = sphi 0, %s142
    %s164 = sphi 0, %s166
    %s167 = sphi 0, %s164
    %s168 = sphi 0, %s167
    %s184 = sphi 0, %s168
  $region4: #{gat_forward.8} parent=0 // loop_header_branch
    %16 = sbr.rel (%p14) target = $region8
  $region5: #{gat_forward.8} parent=0 // loop_body
    %s18 = ssub.s32 %s13, 1
    %s19 = ssub.s32 %s13, 2
    %s20 = sadd.s32 %s13, 1
    %s21 = ssub.s32 %s13, %s20
    %p22 = scmp.eq.s32.totalorder %s21, 0
    %s24 = sadd.s32 %s23, 1
    %s25 = scalar_select %p22, %s23, %s24
    %p28 = pneg %p22
    %p29 = scmp.eq.s32.totalorder %s13, 1
    %p30 = por %p28, %p29
    %p31 = scmp.ne.s32.totalorder %s23, %s26
    %p32 = scmp.eq.s32.totalorder %s13, 0
    %p33 = por %p31, %p32
    %p34 = scmp.ne.s32.totalorder %s23, %s26
    %p35 = scmp.eq.s32.totalorder %s18, 1
    %p36 = por %p34, %p35
    %p37 = scmp.ne.s32.totalorder %s26, %s27
    %p38 = scmp.eq.s32.totalorder %s18, 0
    %p39 = por %p37, %p38
    %p40 = scmp.ne.s32.totalorder %s26, %s27
    %p41 = scmp.eq.s32.totalorder %s19, 1
    %p42 = por %p40, %p41
    %p44 = scmp.ne.s32.totalorder %s27, %s43
    %p45 = scmp.eq.s32.totalorder %s19, 0
    %p46 = por %p44, %p45
    %s48 = sadd.s32 %s47, 1
    %p51 = scmp.eq.s32.totalorder %s13, 1
    %p52 = scmp.ne.s32.totalorder %s47, %s49
    %p53 = scmp.eq.s32.totalorder %s13, 0
    %p54 = por %p52, %p53
    %p55 = scmp.ne.s32.totalorder %s47, %s49
    %p56 = scmp.eq.s32.totalorder %s18, 1
    %p57 = por %p55, %p56
    %p58 = scmp.ne.s32.totalorder %s49, %s50
    %p59 = scmp.eq.s32.totalorder %s18, 0
    %p60 = por %p58, %p59
    %p61 = scmp.ne.s32.totalorder %s49, %s50
    %p62 = scmp.eq.s32.totalorder %s19, 1
    %p63 = por %p61, %p62
    %p65 = scmp.ne.s32.totalorder %s50, %s64
    %p66 = scmp.eq.s32.totalorder %s19, 0
    %p67 = por %p65, %p66
    %s69 = sadd.s32 %s68, 1
    %p72 = scmp.eq.s32.totalorder %s13, 1
    %p73 = scmp.ne.s32.totalorder %s68, %s70
    %p74 = scmp.eq.s32.totalorder %s13, 0
    %p75 = por %p73, %p74
    %p76 = scmp.ne.s32.totalorder %s68, %s70
    %p77 = scmp.eq.s32.totalorder %s18, 1
    %p78 = por %p76, %p77
    %p79 = scmp.ne.s32.totalorder %s70, %s71
    %p80 = scmp.eq.s32.totalorder %s18, 0
    %p81 = por %p79, %p80
    %p82 = scmp.ne.s32.totalorder %s70, %s71
    %p83 = scmp.eq.s32.totalorder %s19, 1
    %p84 = por %p82, %p83
    %p86 = scmp.ne.s32.totalorder %s71, %s85
    %p87 = scmp.eq.s32.totalorder %s19, 0
    %p88 = por %p86, %p87
    %s90 = sadd.s32 %s89, 1
    %p93 = scmp.eq.s32.totalorder %s13, 1
    %p94 = scmp.ne.s32.totalorder %s89, %s91
    %p95 = scmp.eq.s32.totalorder %s13, 0
    %p96 = por %p94, %p95
    %p97 = scmp.ne.s32.totalorder %s89, %s91
    %p98 = scmp.eq.s32.totalorder %s18, 1
    %p99 = por %p97, %p98
    %p100 = scmp.ne.s32.totalorder %s91, %s92
    %p101 = scmp.eq.s32.totalorder %s18, 0
    %p102 = por %p100, %p101
    %p103 = scmp.ne.s32.totalorder %s91, %s92
    %p104 = scmp.eq.s32.totalorder %s19, 1
    %p105 = por %p103, %p104
    %p107 = scmp.ne.s32.totalorder %s92, %s106
    %p108 = scmp.eq.s32.totalorder %s19, 0
    %p109 = por %p107, %p108
    %s110 = ssub.s32 %s13, %s20
    %p111 = scmp.eq.s32.totalorder %s110, 0
    %s113 = sadd.s32 %s112, 1
    %s114 = scalar_select %p111, %s112, %s113
    %p117 = pneg %p111
    %p118 = scmp.eq.s32.totalorder %s13, 1
    %p119 = por %p117, %p118
    %p120 = scmp.ne.s32.totalorder %s112, %s115
    %p121 = scmp.eq.s32.totalorder %s13, 0
    %p122 = por %p120, %p121
    %p123 = scmp.ne.s32.totalorder %s112, %s115
    %p124 = scmp.eq.s32.totalorder %s18, 1
    %p125 = por %p123, %p124
    %p126 = scmp.ne.s32.totalorder %s115, %s116
    %p127 = scmp.eq.s32.totalorder %s18, 0
    %p128 = por %p126, %p127
    %p129 = scmp.ne.s32.totalorder %s115, %s116
    %p130 = scmp.eq.s32.totalorder %s19, 1
    %p131 = por %p129, %p130
    %p133 = scmp.ne.s32.totalorder %s116, %s132
    %p134 = scmp.eq.s32.totalorder %s19, 0
    %p135 = por %p133, %p134
    %s136 = ssub.s32 %s13, %s20
    %p137 = scmp.eq.s32.totalorder %s136, 0
    %s139 = sadd.s32 %s138, 1
    %s140 = scalar_select %p137, %s138, %s139
    %p143 = pneg %p137
    %p144 = scmp.eq.s32.totalorder %s13, 1
    %p145 = por %p143, %p144
    %p146 = scmp.ne.s32.totalorder %s138, %s141
    %p147 = scmp.eq.s32.totalorder %s13, 0
    %p148 = por %p146, %p147
    %p149 = scmp.ne.s32.totalorder %s138, %s141
    %p150 = scmp.eq.s32.totalorder %s18, 1
    %p151 = por %p149, %p150
    %p152 = scmp.ne.s32.totalorder %s141, %s142
    %p153 = scmp.eq.s32.totalorder %s18, 0
    %p154 = por %p152, %p153
    %p155 = scmp.ne.s32.totalorder %s141, %s142
    %p156 = scmp.eq.s32.totalorder %s19, 1
    %p157 = por %p155, %p156
    %p159 = scmp.ne.s32.totalorder %s142, %s158
    %p160 = scmp.eq.s32.totalorder %s19, 0
    %p161 = por %p159, %p160
    %s162 = ssub.s32 %s13, %s20
    %p163 = scmp.eq.s32.totalorder %s162, 0
    %s165 = sadd.s32 %s164, 1
    %s166 = scalar_select %p163, %s164, %s165
    %p169 = pneg %p163
    %p170 = scmp.eq.s32.totalorder %s13, 1
    %p171 = por %p169, %p170
    %p172 = scmp.ne.s32.totalorder %s164, %s167
    %p173 = scmp.eq.s32.totalorder %s13, 0
    %p174 = por %p172, %p173
    %p175 = scmp.ne.s32.totalorder %s164, %s167
    %p176 = scmp.eq.s32.totalorder %s18, 1
    %p177 = por %p175, %p176
    %p178 = scmp.ne.s32.totalorder %s167, %s168
    %p179 = scmp.eq.s32.totalorder %s18, 0
    %p180 = por %p178, %p179
    %p181 = scmp.ne.s32.totalorder %s167, %s168
    %p182 = scmp.eq.s32.totalorder %s19, 1
    %p183 = por %p181, %p182
    %p185 = scmp.ne.s32.totalorder %s168, %s184
    %p186 = scmp.eq.s32.totalorder %s19, 0
    %p187 = por %p185, %p186
    %p188 = scmp.le.s32.totalorder 1, %s13
    %p189 = scmp.lt.s32.totalorder %s13, 3
    %p190 = pnand %p188, %p189
    %p191 = pneg %p190
    // Predicated region
    $region9: #{gat_forward.8} parent=5 // pred_check
      _
    $region10: #{gat_forward.8} parent=5 // pred_check_branch
      %193 = sbr.rel (%p190) target = $region12
    $region11: #{gat_forward.8} parent=5 // pred_region
      %s194 = ssub.s32 %s13, 1
      // Predicated region
      $region13: #{gat_forward.8} parent=11 // pred_check
        %p195 = pneg %p60
      $region14: #{gat_forward.8} parent=11 // pred_check_branch
        %197 = sbr.rel (%p195) target = $region16
      $region15: #{gat_forward.8} parent=11 // pred_region
        _
      $region16: #{gat_forward.8} parent=11 // pred_fallthru
        _
      // Predicated region
      $region17: #{gat_forward.8} parent=11 // pred_check
        %p198 = pneg %p81
      $region18: #{gat_forward.8} parent=11 // pred_check_branch
        %200 = sbr.rel (%p198) target = $region20
      $region19: #{gat_forward.8} parent=11 // pred_region
        _
      $region20: #{gat_forward.8} parent=11 // pred_fallthru
        _
      // Predicated region
      $region21: #{gat_forward.8} parent=11 // pred_check
        %p201 = pneg %p102
      $region22: #{gat_forward.8} parent=11 // pred_check_branch
        %203 = sbr.rel (%p201) target = $region24
      $region23: #{gat_forward.8} parent=11 // pred_region
        _
      $region24: #{gat_forward.8} parent=11 // pred_fallthru
        _
    $region12: #{gat_forward.8} parent=5 // pred_fallthru
      _
    %p204 = scmp.lt.s32.totalorder %s13, 2
    // Predicated region
    $region25: #{gat_forward.8} parent=5 // pred_check
      %p205 = pneg %p204
    $region26: #{gat_forward.8} parent=5 // pred_check_branch
      %207 = sbr.rel (%p205) target = $region28
    $region27: #{gat_forward.8} parent=5 // pred_region
      // Predicated region
      $region29: #{gat_forward.8} parent=27 // pred_check
        %p208 = pneg %p33
      $region30: #{gat_forward.8} parent=27 // pred_check_branch
        %210 = sbr.rel (%p208) target = $region32
      $region31: #{gat_forward.8} parent=27 // pred_region
        %s211 = smul.u32 16, %s13
        %p212 = scmp.lt.s32.totalorder %s211, 31
        %s213 = scalar_select %p212, %s211, 31
        %s214 = smul.addr %s213, 8
        %s215 = scalar_lea.vmem %s0, %s214
        %s216 = smul.u32 16, %s13
      $region32: #{gat_forward.8} parent=27 // pred_fallthru
        _
    $region28: #{gat_forward.8} parent=5 // pred_fallthru
      _
    %p217 = scmp.le.s32.totalorder 1, %s13
    %p218 = scmp.lt.s32.totalorder %s13, 3
    %p219 = pnand %p217, %p218
    %p220 = pneg %p219
    // Predicated region
    $region33: #{gat_forward.8} parent=5 // pred_check
      _
    $region34: #{gat_forward.8} parent=5 // pred_check_branch
      %222 = sbr.rel (%p219) target = $region36
    $region35: #{gat_forward.8} parent=5 // pred_region
      %s223 = ssub.s32 %s13, 1
      %s224 = smul.u32 16, %s18
      %p225 = scmp.lt.s32.totalorder %s224, 31
      %s226 = scalar_select %p225, %s224, 31
      %s227 = smul.addr %s226, 8
      %s228 = scalar_lea.vmem %s0, %s227
      %p229 = pneg %p39
      %p230 = pneg %p36
      %p231 = pneg %p60
      %p232 = pneg %p57
      %p233 = pneg %p81
      %p234 = pneg %p78
      %p235 = pneg %p102
      %p236 = pneg %p99
      %p237 = pneg %p128
      %p238 = pneg %p125
      %s239 = smul.u32 16, %s18
      %p240 = scmp.lt.s32.totalorder %s239, 31
      %s241 = scalar_select %p240, %s239, 31
      %s242 = smul.addr %s241, 4
      %s243 = scalar_lea.vmem %s4, %s242
      %p244 = pneg %p154
      %p245 = pneg %p151
      %s246 = smul.u32 16, %s18
      %p247 = scmp.lt.s32.totalorder %s246, 31
      %s248 = scalar_select %p247, %s246, 31
      %s249 = smul.addr %s248, 8
      %s250 = scalar_lea.vmem %s5, %s249
      %p251 = pneg %p180
      %p252 = pneg %p177
      %s253 = smul.u32 16, %s18
      %p254 = scmp.lt.s32.totalorder %s253, 31
      %s255 = scalar_select %p254, %s253, 31
      %s256 = smul.addr %s255, 8
      %s257 = scalar_lea.vmem %s6, %s256
      %s258 = smul.u32 16, %s18
      %p259 = scmp.lt.s32.totalorder %s258, 31
      %s260 = scalar_select %p259, %s258, 31
      %s261 = smul.addr %s260, 8
      %s262 = scalar_lea.vmem %s0, %s261
      %s263 = smul.u32 16, %s18
      %s264 = smul.u32 16, %s18
      %p265 = scmp.lt.s32.totalorder %s264, 31
      %s266 = scalar_select %p265, %s264, 31
      %s267 = smul.addr %s266, 4
      %s268 = scalar_lea.vmem %s4, %s267
      %s269 = smul.u32 16, %s18
      %s270 = smul.u32 16, %s18
      %p271 = scmp.lt.s32.totalorder %s270, 31
      %s272 = scalar_select %p271, %s270, 31
      %s273 = smul.addr %s272, 8
      %s274 = scalar_lea.vmem %s5, %s273
      %s275 = smul.u32 16, %s18
      %s276 = smul.u32 16, %s18
      %p277 = scmp.lt.s32.totalorder %s276, 31
      %s278 = scalar_select %p277, %s276, 31
      %s279 = smul.addr %s278, 8
      %s280 = scalar_lea.vmem %s6, %s279
      %s281 = smul.u32 16, %s18
      %v282 = vld [vmem:[%s262] sm:$0xff]
      %v283 = vld [vmem:[%s262 + $0x8] sm:$0xff]
      %v284 = vld [vmem:[%s262 + $0x10] sm:$0xff]
      %v285 = vld [vmem:[%s262 + $0x18] sm:$0xff]
      %v286 = vld [vmem:[%s262 + $0x20] sm:$0xff]
      %v287 = vld [vmem:[%s262 + $0x28] sm:$0xff]
      %v288 = vld [vmem:[%s262 + $0x30] sm:$0xff]
      %v289 = vld [vmem:[%s262 + $0x38] sm:$0xff]
      %v290 = vld [vmem:[%s262 + $0x40] sm:$0xff]
      %v291 = vld [vmem:[%s262 + $0x48] sm:$0xff]
      %v292 = vld [vmem:[%s262 + $0x50] sm:$0xff]
      %v293 = vld [vmem:[%s262 + $0x58] sm:$0xff]
      %v294 = vld [vmem:[%s262 + $0x60] sm:$0xff]
      %v295 = vld [vmem:[%s262 + $0x68] sm:$0xff]
      %v296 = vld [vmem:[%s262 + $0x70] sm:$0xff]
      %v297 = vld [vmem:[%s262 + $0x78] sm:$0xff]
      %v298 = vpack.c.bf16 %v283, %v282
      %v299 = vpack.c.bf16 %v285, %v284
      %v300 = vpack.c.bf16 %v287, %v286
      %v301 = vpack.c.bf16 %v289, %v288
      %v302 = vpack.c.bf16 %v291, %v290
      %v303 = vpack.c.bf16 %v293, %v292
      %v304 = vpack.c.bf16 %v295, %v294
      %v305 = vpack.c.bf16 %v297, %v296
      %v306 = vld [vmem:[%s1] sm:$0xf]
      %v307 = vld [vmem:[%s1 + $0x4] sm:$0xf]
      %v308 = vld [vmem:[%s1 + $0x8] sm:$0xf]
      %v309 = vld [vmem:[%s1 + $0xc] sm:$0xf]
      %v310 = vld [vmem:[%s1 + $0x10] sm:$0xf]
      %v311 = vld [vmem:[%s1 + $0x14] sm:$0xf]
      %v312 = vld [vmem:[%s1 + $0x18] sm:$0xf]
      %v313 = vld [vmem:[%s1 + $0x1c] sm:$0xf]
      %v314 = vld [vmem:[%s1 + $0x20] sm:$0xf]
      %v315 = vld [vmem:[%s1 + $0x24] sm:$0xf]
      %v316 = vld [vmem:[%s1 + $0x28] sm:$0xf]
      %v317 = vld [vmem:[%s1 + $0x2c] sm:$0xf]
      %v318 = vld [vmem:[%s1 + $0x30] sm:$0xf]
      %v319 = vld [vmem:[%s1 + $0x34] sm:$0xf]
      %v320 = vld [vmem:[%s1 + $0x38] sm:$0xf]
      %v321 = vld [vmem:[%s1 + $0x3c] sm:$0xf]
      %v338 = vunpack.c.l.b16 %v306
      %v339 = vunpack.c.l.b16 %v307
      %v340 = vunpack.c.l.b16 %v308
      %v341 = vunpack.c.l.b16 %v309
      %v342 = vunpack.c.l.b16 %v310
      %v343 = vunpack.c.l.b16 %v311
      %v344 = vunpack.c.l.b16 %v312
      %v345 = vunpack.c.l.b16 %v313
      %v346 = vunpack.c.l.b16 %v314
      %v347 = vunpack.c.l.b16 %v315
      %v348 = vunpack.c.l.b16 %v316
      %v349 = vunpack.c.l.b16 %v317
      %v350 = vunpack.c.l.b16 %v318
      %v351 = vunpack.c.l.b16 %v319
      %v352 = vunpack.c.l.b16 %v320
      %v353 = vunpack.c.l.b16 %v321
      %v354 = vpack.c.b16 %v339, %v338
      %v355 = vpack.c.b16 %v341, %v340
      %v356 = vpack.c.b16 %v343, %v342
      %v357 = vpack.c.b16 %v345, %v344
      %v358 = vpack.c.b16 %v347, %v346
      %v359 = vpack.c.b16 %v349, %v348
      %v360 = vpack.c.b16 %v351, %v350
      %v361 = vpack.c.b16 %v353, %v352
      %370 = vmatpush.bf16.msra.mxu0 %v361
      %371 = vmatpush.bf16.msra.mxu0 %v360
      %372 = vmatpush.bf16.msra.mxu0 %v359
      %373 = vmatpush.bf16.msra.mxu0 %v358
      %374 = vmatpush.bf16.msra.mxu0 %v357
      %375 = vmatpush.bf16.msra.mxu0 %v356
      %376 = vmatpush.bf16.msra.mxu0 %v355
      %377 = vmatpush.bf16.msra.mxu0 %v354
      %378 = vmatmul.bf16.gmra.mxu0 %v298
      %v379 = vpop.f32.mrf.mxu0
      %v380 = vadd.f32 0.0, %v379
      %v381 = vpop.f32.mrf.mxu0
      %v382 = vadd.f32 0.0, %v381
      %383 = vmatmul.bf16.gmra.mxu0 %v299
      %v384 = vpop.f32.mrf.mxu0
      %v385 = vadd.f32 0.0, %v384
      %v386 = vpop.f32.mrf.mxu0
      %v387 = vadd.f32 0.0, %v386
      %388 = vmatmul.bf16.gmra.mxu0 %v300
      %v389 = vpop.f32.mrf.mxu0
      %v390 = vadd.f32 0.0, %v389
      %v391 = vpop.f32.mrf.mxu0
      %v392 = vadd.f32 0.0, %v391
      %393 = vmatmul.bf16.gmra.mxu0 %v301
      %v394 = vpop.f32.mrf.mxu0
      %v395 = vadd.f32 0.0, %v394
      %v396 = vpop.f32.mrf.mxu0
      %v397 = vadd.f32 0.0, %v396
      %398 = vmatmul.bf16.gmra.mxu0 %v302
      %v399 = vpop.f32.mrf.mxu0
      %v400 = vadd.f32 0.0, %v399
      %v401 = vpop.f32.mrf.mxu0
      %v402 = vadd.f32 0.0, %v401
      %403 = vmatmul.bf16.gmra.mxu0 %v303
      %v404 = vpop.f32.mrf.mxu0
      %v405 = vadd.f32 0.0, %v404
      %v406 = vpop.f32.mrf.mxu0
      %v407 = vadd.f32 0.0, %v406
      %408 = vmatmul.bf16.gmra.mxu0 %v304
      %v409 = vpop.f32.mrf.mxu0
      %v410 = vadd.f32 0.0, %v409
      %v411 = vpop.f32.mrf.mxu0
      %v412 = vadd.f32 0.0, %v411
      %413 = vmatmul.bf16.gmra.mxu0 %v305
      %v414 = vpop.f32.mrf.mxu0
      %v415 = vadd.f32 0.0, %v414
      %v416 = vpop.f32.mrf.mxu0
      %v417 = vadd.f32 0.0, %v416
      %418 = vdwg.mxu0
      %v419 = vld [vmem:[%s2] sm:$0xf]
      %v420 = vld [vmem:[%s3] sm:$0xf]
      %v421 = vperm.slane %v419, 0
      %v422 = vmul.f32 %v380, %v421
      %v423 = vmul.f32 %v382, %v421
      %v424 = vmul.f32 %v385, %v421
      %v425 = vmul.f32 %v387, %v421
      %v426 = vmul.f32 %v390, %v421
      %v427 = vmul.f32 %v392, %v421
      %v428 = vmul.f32 %v395, %v421
      %v429 = vmul.f32 %v397, %v421
      %v430 = vmul.f32 %v400, %v421
      %v431 = vmul.f32 %v402, %v421
      %v432 = vmul.f32 %v405, %v421
      %v433 = vmul.f32 %v407, %v421
      %v434 = vmul.f32 %v410, %v421
      %v435 = vmul.f32 %v412, %v421
      %v436 = vmul.f32 %v415, %v421
      %v437 = vmul.f32 %v417, %v421
      %vm438 = vcmask 261120
      %v439 = vsel %vm438, %v422, 0.0
      %440 = vadd.xlane.f32.xlu0 %v439
      %v441 = vpop.xlane.xlu0 %440
      %v442 = vsel %vm438, %v423, 0.0
      %443 = vadd.xlane.f32.xlu0 %v442
      %v444 = vpop.xlane.xlu0 %443
      %v445 = vsel %vm438, %v424, 0.0
      %446 = vadd.xlane.f32.xlu0 %v445
      %v447 = vpop.xlane.xlu0 %446
      %v448 = vsel %vm438, %v425, 0.0
      %449 = vadd.xlane.f32.xlu0 %v448
      %v450 = vpop.xlane.xlu0 %449
      %v451 = vsel %vm438, %v426, 0.0
      %452 = vadd.xlane.f32.xlu0 %v451
      %v453 = vpop.xlane.xlu0 %452
      %v454 = vsel %vm438, %v427, 0.0
      %455 = vadd.xlane.f32.xlu0 %v454
      %v456 = vpop.xlane.xlu0 %455
      %v457 = vsel %vm438, %v428, 0.0
      %458 = vadd.xlane.f32.xlu0 %v457
      %v459 = vpop.xlane.xlu0 %458
      %v460 = vsel %vm438, %v429, 0.0
      %461 = vadd.xlane.f32.xlu0 %v460
      %v462 = vpop.xlane.xlu0 %461
      %v463 = vsel %vm438, %v430, 0.0
      %464 = vadd.xlane.f32.xlu0 %v463
      %v465 = vpop.xlane.xlu0 %464
      %v466 = vsel %vm438, %v431, 0.0
      %467 = vadd.xlane.f32.xlu0 %v466
      %v468 = vpop.xlane.xlu0 %467
      %v469 = vsel %vm438, %v432, 0.0
      %470 = vadd.xlane.f32.xlu0 %v469
      %v471 = vpop.xlane.xlu0 %470
      %v472 = vsel %vm438, %v433, 0.0
      %473 = vadd.xlane.f32.xlu0 %v472
      %v474 = vpop.xlane.xlu0 %473
      %v475 = vsel %vm438, %v434, 0.0
      %476 = vadd.xlane.f32.xlu0 %v475
      %v477 = vpop.xlane.xlu0 %476
      %v478 = vsel %vm438, %v435, 0.0
      %479 = vadd.xlane.f32.xlu0 %v478
      %v480 = vpop.xlane.xlu0 %479
      %v481 = vsel %vm438, %v436, 0.0
      %482 = vadd.xlane.f32.xlu0 %v481
      %v483 = vpop.xlane.xlu0 %482
      %v484 = vsel %vm438, %v437, 0.0
      %485 = vadd.xlane.f32.xlu0 %v484
      %v486 = vpop.xlane.xlu0 %485
      %v487 = vperm.slane %v420, 0
      %v488 = vmul.f32 %v380, %v487
      %v489 = vmul.f32 %v382, %v487
      %v490 = vmul.f32 %v385, %v487
      %v491 = vmul.f32 %v387, %v487
      %v492 = vmul.f32 %v390, %v487
      %v493 = vmul.f32 %v392, %v487
      %v494 = vmul.f32 %v395, %v487
      %v495 = vmul.f32 %v397, %v487
      %v496 = vmul.f32 %v400, %v487
      %v497 = vmul.f32 %v402, %v487
      %v498 = vmul.f32 %v405, %v487
      %v499 = vmul.f32 %v407, %v487
      %v500 = vmul.f32 %v410, %v487
      %v501 = vmul.f32 %v412, %v487
      %v502 = vmul.f32 %v415, %v487
      %v503 = vmul.f32 %v417, %v487
      %v504 = vsel %vm438, %v488, 0.0
      %505 = vadd.xlane.f32.xlu0 %v504
      %v506 = vpop.xlane.xlu0 %505
      %v507 = vsel %vm438, %v489, 0.0
      %508 = vadd.xlane.f32.xlu0 %v507
      %v509 = vpop.xlane.xlu0 %508
      %v510 = vsel %vm438, %v490, 0.0
      %511 = vadd.xlane.f32.xlu0 %v510
      %v512 = vpop.xlane.xlu0 %511
      %v513 = vsel %vm438, %v491, 0.0
      %514 = vadd.xlane.f32.xlu0 %v513
      %v515 = vpop.xlane.xlu0 %514
      %v516 = vsel %vm438, %v492, 0.0
      %517 = vadd.xlane.f32.xlu0 %v516
      %v518 = vpop.xlane.xlu0 %517
      %v519 = vsel %vm438, %v493, 0.0
      %520 = vadd.xlane.f32.xlu0 %v519
      %v521 = vpop.xlane.xlu0 %520
      %v522 = vsel %vm438, %v494, 0.0
      %523 = vadd.xlane.f32.xlu0 %v522
      %v524 = vpop.xlane.xlu0 %523
      %v525 = vsel %vm438, %v495, 0.0
      %526 = vadd.xlane.f32.xlu0 %v525
      %v527 = vpop.xlane.xlu0 %526
      %v528 = vsel %vm438, %v496, 0.0
      %529 = vadd.xlane.f32.xlu0 %v528
      %v530 = vpop.xlane.xlu0 %529
      %v531 = vsel %vm438, %v497, 0.0
      %532 = vadd.xlane.f32.xlu0 %v531
      %v533 = vpop.xlane.xlu0 %532
      %v534 = vsel %vm438, %v498, 0.0
      %535 = vadd.xlane.f32.xlu0 %v534
      %v536 = vpop.xlane.xlu0 %535
      %v537 = vsel %vm438, %v499, 0.0
      %538 = vadd.xlane.f32.xlu0 %v537
      %v539 = vpop.xlane.xlu0 %538
      %v540 = vsel %vm438, %v500, 0.0
      %541 = vadd.xlane.f32.xlu0 %v540
      %v542 = vpop.xlane.xlu0 %541
      %v543 = vsel %vm438, %v501, 0.0
      %544 = vadd.xlane.f32.xlu0 %v543
      %v545 = vpop.xlane.xlu0 %544
      %v546 = vsel %vm438, %v502, 0.0
      %547 = vadd.xlane.f32.xlu0 %v546
      %v548 = vpop.xlane.xlu0 %547
      %v549 = vsel %vm438, %v503, 0.0
      %550 = vadd.xlane.f32.xlu0 %v549
      %v551 = vpop.xlane.xlu0 %550
      %v552 = vperm.slane %v419, 1
      %554 = vrot.lane.b32.xlu0 %v552, 32
      %v555 = vpop.permute.xlu0 %554
      %v557 = vmul.f32 %v380, %v555
      %v558 = vmul.f32 %v382, %v555
      %v559 = vmul.f32 %v385, %v555
      %v560 = vmul.f32 %v387, %v555
      %v561 = vmul.f32 %v390, %v555
      %v562 = vmul.f32 %v392, %v555
      %v563 = vmul.f32 %v395, %v555
      %v564 = vmul.f32 %v397, %v555
      %v565 = vmul.f32 %v400, %v555
      %v566 = vmul.f32 %v402, %v555
      %v567 = vmul.f32 %v405, %v555
      %v568 = vmul.f32 %v407, %v555
      %v569 = vmul.f32 %v410, %v555
      %v570 = vmul.f32 %v412, %v555
      %v571 = vmul.f32 %v415, %v555
      %v572 = vmul.f32 %v417, %v555
      %589 = vrot.lane.b32.xlu0 %v557, 96
      %v590 = vpop.permute.xlu0 %589
      %591 = vrot.lane.b32.xlu0 %v558, 96
      %v592 = vpop.permute.xlu0 %591
      %593 = vrot.lane.b32.xlu0 %v559, 96
      %v594 = vpop.permute.xlu0 %593
      %595 = vrot.lane.b32.xlu0 %v560, 96
      %v596 = vpop.permute.xlu0 %595
      %597 = vrot.lane.b32.xlu0 %v561, 96
      %v598 = vpop.permute.xlu0 %597
      %599 = vrot.lane.b32.xlu0 %v562, 96
      %v600 = vpop.permute.xlu0 %599
      %601 = vrot.lane.b32.xlu0 %v563, 96
      %v602 = vpop.permute.xlu0 %601
      %603 = vrot.lane.b32.xlu0 %v564, 96
      %v604 = vpop.permute.xlu0 %603
      %605 = vrot.lane.b32.xlu0 %v565, 96
      %v606 = vpop.permute.xlu0 %605
      %607 = vrot.lane.b32.xlu0 %v566, 96
      %v608 = vpop.permute.xlu0 %607
      %609 = vrot.lane.b32.xlu0 %v567, 96
      %v610 = vpop.permute.xlu0 %609
      %611 = vrot.lane.b32.xlu0 %v568, 96
      %v612 = vpop.permute.xlu0 %611
      %613 = vrot.lane.b32.xlu0 %v569, 96
      %v614 = vpop.permute.xlu0 %613
      %615 = vrot.lane.b32.xlu0 %v570, 96
      %v616 = vpop.permute.xlu0 %615
      %617 = vrot.lane.b32.xlu0 %v571, 96
      %v618 = vpop.permute.xlu0 %617
      %619 = vrot.lane.b32.xlu0 %v572, 96
      %v620 = vpop.permute.xlu0 %619
      %v637 = vsel %vm438, %v590, 0.0
      %638 = vadd.xlane.f32.xlu0 %v637
      %v639 = vpop.xlane.xlu0 %638
      %v640 = vsel %vm438, %v592, 0.0
      %641 = vadd.xlane.f32.xlu0 %v640
      %v642 = vpop.xlane.xlu0 %641
      %v643 = vsel %vm438, %v594, 0.0
      %644 = vadd.xlane.f32.xlu0 %v643
      %v645 = vpop.xlane.xlu0 %644
      %v646 = vsel %vm438, %v596, 0.0
      %647 = vadd.xlane.f32.xlu0 %v646
      %v648 = vpop.xlane.xlu0 %647
      %v649 = vsel %vm438, %v598, 0.0
      %650 = vadd.xlane.f32.xlu0 %v649
      %v651 = vpop.xlane.xlu0 %650
      %v652 = vsel %vm438, %v600, 0.0
      %653 = vadd.xlane.f32.xlu0 %v652
      %v654 = vpop.xlane.xlu0 %653
      %v655 = vsel %vm438, %v602, 0.0
      %656 = vadd.xlane.f32.xlu0 %v655
      %v657 = vpop.xlane.xlu0 %656
      %v658 = vsel %vm438, %v604, 0.0
      %659 = vadd.xlane.f32.xlu0 %v658
      %v660 = vpop.xlane.xlu0 %659
      %v661 = vsel %vm438, %v606, 0.0
      %662 = vadd.xlane.f32.xlu0 %v661
      %v663 = vpop.xlane.xlu0 %662
      %v664 = vsel %vm438, %v608, 0.0
      %665 = vadd.xlane.f32.xlu0 %v664
      %v666 = vpop.xlane.xlu0 %665
      %v667 = vsel %vm438, %v610, 0.0
      %668 = vadd.xlane.f32.xlu0 %v667
      %v669 = vpop.xlane.xlu0 %668
      %v670 = vsel %vm438, %v612, 0.0
      %671 = vadd.xlane.f32.xlu0 %v670
      %v672 = vpop.xlane.xlu0 %671
      %v673 = vsel %vm438, %v614, 0.0
      %674 = vadd.xlane.f32.xlu0 %v673
      %v675 = vpop.xlane.xlu0 %674
      %v676 = vsel %vm438, %v616, 0.0
      %677 = vadd.xlane.f32.xlu0 %v676
      %v678 = vpop.xlane.xlu0 %677
      %v679 = vsel %vm438, %v618, 0.0
      %680 = vadd.xlane.f32.xlu0 %v679
      %v681 = vpop.xlane.xlu0 %680
      %v682 = vsel %vm438, %v620, 0.0
      %683 = vadd.xlane.f32.xlu0 %v682
      %v684 = vpop.xlane.xlu0 %683
      %v685 = vperm.slane %v420, 1
      %687 = vrot.lane.b32.xlu0 %v685, 32
      %v688 = vpop.permute.xlu0 %687
      %v690 = vmul.f32 %v380, %v688
      %v691 = vmul.f32 %v382, %v688
      %v692 = vmul.f32 %v385, %v688
      %v693 = vmul.f32 %v387, %v688
      %v694 = vmul.f32 %v390, %v688
      %v695 = vmul.f32 %v392, %v688
      %v696 = vmul.f32 %v395, %v688
      %v697 = vmul.f32 %v397, %v688
      %v698 = vmul.f32 %v400, %v688
      %v699 = vmul.f32 %v402, %v688
      %v700 = vmul.f32 %v405, %v688
      %v701 = vmul.f32 %v407, %v688
      %v702 = vmul.f32 %v410, %v688
      %v703 = vmul.f32 %v412, %v688
      %v704 = vmul.f32 %v415, %v688
      %v705 = vmul.f32 %v417, %v688
      %722 = vrot.lane.b32.xlu0 %v690, 96
      %v723 = vpop.permute.xlu0 %722
      %724 = vrot.lane.b32.xlu0 %v691, 96
      %v725 = vpop.permute.xlu0 %724
      %726 = vrot.lane.b32.xlu0 %v692, 96
      %v727 = vpop.permute.xlu0 %726
      %728 = vrot.lane.b32.xlu0 %v693, 96
      %v729 = vpop.permute.xlu0 %728
      %730 = vrot.lane.b32.xlu0 %v694, 96
      %v731 = vpop.permute.xlu0 %730
      %732 = vrot.lane.b32.xlu0 %v695, 96
      %v733 = vpop.permute.xlu0 %732
      %734 = vrot.lane.b32.xlu0 %v696, 96
      %v735 = vpop.permute.xlu0 %734
      %736 = vrot.lane.b32.xlu0 %v697, 96
      %v737 = vpop.permute.xlu0 %736
      %738 = vrot.lane.b32.xlu0 %v698, 96
      %v739 = vpop.permute.xlu0 %738
      %740 = vrot.lane.b32.xlu0 %v699, 96
      %v741 = vpop.permute.xlu0 %740
      %742 = vrot.lane.b32.xlu0 %v700, 96
      %v743 = vpop.permute.xlu0 %742
      %744 = vrot.lane.b32.xlu0 %v701, 96
      %v745 = vpop.permute.xlu0 %744
      %746 = vrot.lane.b32.xlu0 %v702, 96
      %v747 = vpop.permute.xlu0 %746
      %748 = vrot.lane.b32.xlu0 %v703, 96
      %v749 = vpop.permute.xlu0 %748
      %750 = vrot.lane.b32.xlu0 %v704, 96
      %v751 = vpop.permute.xlu0 %750
      %752 = vrot.lane.b32.xlu0 %v705, 96
      %v753 = vpop.permute.xlu0 %752
      %v770 = vsel %vm438, %v723, 0.0
      %771 = vadd.xlane.f32.xlu0 %v770
      %v772 = vpop.xlane.xlu0 %771
      %v773 = vsel %vm438, %v725, 0.0
      %774 = vadd.xlane.f32.xlu0 %v773
      %v775 = vpop.xlane.xlu0 %774
      %v776 = vsel %vm438, %v727, 0.0
      %777 = vadd.xlane.f32.xlu0 %v776
      %v778 = vpop.xlane.xlu0 %777
      %v779 = vsel %vm438, %v729, 0.0
      %780 = vadd.xlane.f32.xlu0 %v779
      %v781 = vpop.xlane.xlu0 %780
      %v782 = vsel %vm438, %v731, 0.0
      %783 = vadd.xlane.f32.xlu0 %v782
      %v784 = vpop.xlane.xlu0 %783
      %v785 = vsel %vm438, %v733, 0.0
      %786 = vadd.xlane.f32.xlu0 %v785
      %v787 = vpop.xlane.xlu0 %786
      %v788 = vsel %vm438, %v735, 0.0
      %789 = vadd.xlane.f32.xlu0 %v788
      %v790 = vpop.xlane.xlu0 %789
      %v791 = vsel %vm438, %v737, 0.0
      %792 = vadd.xlane.f32.xlu0 %v791
      %v793 = vpop.xlane.xlu0 %792
      %v794 = vsel %vm438, %v739, 0.0
      %795 = vadd.xlane.f32.xlu0 %v794
      %v796 = vpop.xlane.xlu0 %795
      %v797 = vsel %vm438, %v741, 0.0
      %798 = vadd.xlane.f32.xlu0 %v797
      %v799 = vpop.xlane.xlu0 %798
      %v800 = vsel %vm438, %v743, 0.0
      %801 = vadd.xlane.f32.xlu0 %v800
      %v802 = vpop.xlane.xlu0 %801
      %v803 = vsel %vm438, %v745, 0.0
      %804 = vadd.xlane.f32.xlu0 %v803
      %v805 = vpop.xlane.xlu0 %804
      %v806 = vsel %vm438, %v747, 0.0
      %807 = vadd.xlane.f32.xlu0 %v806
      %v808 = vpop.xlane.xlu0 %807
      %v809 = vsel %vm438, %v749, 0.0
      %810 = vadd.xlane.f32.xlu0 %v809
      %v811 = vpop.xlane.xlu0 %810
      %v812 = vsel %vm438, %v751, 0.0
      %813 = vadd.xlane.f32.xlu0 %v812
      %v814 = vpop.xlane.xlu0 %813
      %v815 = vsel %vm438, %v753, 0.0
      %816 = vadd.xlane.f32.xlu0 %v815
      %v817 = vpop.xlane.xlu0 %816
      %v818 = vperm.slane %v419, 2
      %820 = vrot.lane.b32.xlu0 %v818, 64
      %v821 = vpop.permute.xlu0 %820
      %v823 = vmul.f32 %v380, %v821
      %v824 = vmul.f32 %v382, %v821
      %v825 = vmul.f32 %v385, %v821
      %v826 = vmul.f32 %v387, %v821
      %v827 = vmul.f32 %v390, %v821
      %v828 = vmul.f32 %v392, %v821
      %v829 = vmul.f32 %v395, %v821
      %v830 = vmul.f32 %v397, %v821
      %v831 = vmul.f32 %v400, %v821
      %v832 = vmul.f32 %v402, %v821
      %v833 = vmul.f32 %v405, %v821
      %v834 = vmul.f32 %v407, %v821
      %v835 = vmul.f32 %v410, %v821
      %v836 = vmul.f32 %v412, %v821
      %v837 = vmul.f32 %v415, %v821
      %v838 = vmul.f32 %v417, %v821
      %855 = vrot.lane.b32.xlu0 %v823, 64
      %v856 = vpop.permute.xlu0 %855
      %857 = vrot.lane.b32.xlu0 %v824, 64
      %v858 = vpop.permute.xlu0 %857
      %859 = vrot.lane.b32.xlu0 %v825, 64
      %v860 = vpop.permute.xlu0 %859
      %861 = vrot.lane.b32.xlu0 %v826, 64
      %v862 = vpop.permute.xlu0 %861
      %863 = vrot.lane.b32.xlu0 %v827, 64
      %v864 = vpop.permute.xlu0 %863
      %865 = vrot.lane.b32.xlu0 %v828, 64
      %v866 = vpop.permute.xlu0 %865
      %867 = vrot.lane.b32.xlu0 %v829, 64
      %v868 = vpop.permute.xlu0 %867
      %869 = vrot.lane.b32.xlu0 %v830, 64
      %v870 = vpop.permute.xlu0 %869
      %871 = vrot.lane.b32.xlu0 %v831, 64
      %v872 = vpop.permute.xlu0 %871
      %873 = vrot.lane.b32.xlu0 %v832, 64
      %v874 = vpop.permute.xlu0 %873
      %875 = vrot.lane.b32.xlu0 %v833, 64
      %v876 = vpop.permute.xlu0 %875
      %877 = vrot.lane.b32.xlu0 %v834, 64
      %v878 = vpop.permute.xlu0 %877
      %879 = vrot.lane.b32.xlu0 %v835, 64
      %v880 = vpop.permute.xlu0 %879
      %881 = vrot.lane.b32.xlu0 %v836, 64
      %v882 = vpop.permute.xlu0 %881
      %883 = vrot.lane.b32.xlu0 %v837, 64
      %v884 = vpop.permute.xlu0 %883
      %885 = vrot.lane.b32.xlu0 %v838, 64
      %v886 = vpop.permute.xlu0 %885
      %v903 = vsel %vm438, %v856, 0.0
      %904 = vadd.xlane.f32.xlu0 %v903
      %v905 = vpop.xlane.xlu0 %904
      %v906 = vsel %vm438, %v858, 0.0
      %907 = vadd.xlane.f32.xlu0 %v906
      %v908 = vpop.xlane.xlu0 %907
      %v909 = vsel %vm438, %v860, 0.0
      %910 = vadd.xlane.f32.xlu0 %v909
      %v911 = vpop.xlane.xlu0 %910
      %v912 = vsel %vm438, %v862, 0.0
      %913 = vadd.xlane.f32.xlu0 %v912
      %v914 = vpop.xlane.xlu0 %913
      %v915 = vsel %vm438, %v864, 0.0
      %916 = vadd.xlane.f32.xlu0 %v915
      %v917 = vpop.xlane.xlu0 %916
      %v918 = vsel %vm438, %v866, 0.0
      %919 = vadd.xlane.f32.xlu0 %v918
      %v920 = vpop.xlane.xlu0 %919
      %v921 = vsel %vm438, %v868, 0.0
      %922 = vadd.xlane.f32.xlu0 %v921
      %v923 = vpop.xlane.xlu0 %922
      %v924 = vsel %vm438, %v870, 0.0
      %925 = vadd.xlane.f32.xlu0 %v924
      %v926 = vpop.xlane.xlu0 %925
      %v927 = vsel %vm438, %v872, 0.0
      %928 = vadd.xlane.f32.xlu0 %v927
      %v929 = vpop.xlane.xlu0 %928
      %v930 = vsel %vm438, %v874, 0.0
      %931 = vadd.xlane.f32.xlu0 %v930
      %v932 = vpop.xlane.xlu0 %931
      %v933 = vsel %vm438, %v876, 0.0
      %934 = vadd.xlane.f32.xlu0 %v933
      %v935 = vpop.xlane.xlu0 %934
      %v936 = vsel %vm438, %v878, 0.0
      %937 = vadd.xlane.f32.xlu0 %v936
      %v938 = vpop.xlane.xlu0 %937
      %v939 = vsel %vm438, %v880, 0.0
      %940 = vadd.xlane.f32.xlu0 %v939
      %v941 = vpop.xlane.xlu0 %940
      %v942 = vsel %vm438, %v882, 0.0
      %943 = vadd.xlane.f32.xlu0 %v942
      %v944 = vpop.xlane.xlu0 %943
      %v945 = vsel %vm438, %v884, 0.0
      %946 = vadd.xlane.f32.xlu0 %v945
      %v947 = vpop.xlane.xlu0 %946
      %v948 = vsel %vm438, %v886, 0.0
      %949 = vadd.xlane.f32.xlu0 %v948
      %v950 = vpop.xlane.xlu0 %949
      %v951 = vperm.slane %v420, 2
      %953 = vrot.lane.b32.xlu0 %v951, 64
      %v954 = vpop.permute.xlu0 %953
      %v956 = vmul.f32 %v380, %v954
      %v957 = vmul.f32 %v382, %v954
      %v958 = vmul.f32 %v385, %v954
      %v959 = vmul.f32 %v387, %v954
      %v960 = vmul.f32 %v390, %v954
      %v961 = vmul.f32 %v392, %v954
      %v962 = vmul.f32 %v395, %v954
      %v963 = vmul.f32 %v397, %v954
      %v964 = vmul.f32 %v400, %v954
      %v965 = vmul.f32 %v402, %v954
      %v966 = vmul.f32 %v405, %v954
      %v967 = vmul.f32 %v407, %v954
      %v968 = vmul.f32 %v410, %v954
      %v969 = vmul.f32 %v412, %v954
      %v970 = vmul.f32 %v415, %v954
      %v971 = vmul.f32 %v417, %v954
      %988 = vrot.lane.b32.xlu0 %v956, 64
      %v989 = vpop.permute.xlu0 %988
      %990 = vrot.lane.b32.xlu0 %v957, 64
      %v991 = vpop.permute.xlu0 %990
      %992 = vrot.lane.b32.xlu0 %v958, 64
      %v993 = vpop.permute.xlu0 %992
      %994 = vrot.lane.b32.xlu0 %v959, 64
      %v995 = vpop.permute.xlu0 %994
      %996 = vrot.lane.b32.xlu0 %v960, 64
      %v997 = vpop.permute.xlu0 %996
      %998 = vrot.lane.b32.xlu0 %v961, 64
      %v999 = vpop.permute.xlu0 %998
      %1000 = vrot.lane.b32.xlu0 %v962, 64
      %v1001 = vpop.permute.xlu0 %1000
      %1002 = vrot.lane.b32.xlu0 %v963, 64
      %v1003 = vpop.permute.xlu0 %1002
      %1004 = vrot.lane.b32.xlu0 %v964, 64
      %v1005 = vpop.permute.xlu0 %1004
      %1006 = vrot.lane.b32.xlu0 %v965, 64
      %v1007 = vpop.permute.xlu0 %1006
      %1008 = vrot.lane.b32.xlu0 %v966, 64
      %v1009 = vpop.permute.xlu0 %1008
      %1010 = vrot.lane.b32.xlu0 %v967, 64
      %v1011 = vpop.permute.xlu0 %1010
      %1012 = vrot.lane.b32.xlu0 %v968, 64
      %v1013 = vpop.permute.xlu0 %1012
      %1014 = vrot.lane.b32.xlu0 %v969, 64
      %v1015 = vpop.permute.xlu0 %1014
      %1016 = vrot.lane.b32.xlu0 %v970, 64
      %v1017 = vpop.permute.xlu0 %1016
      %1018 = vrot.lane.b32.xlu0 %v971, 64
      %v1019 = vpop.permute.xlu0 %1018
      %v1036 = vsel %vm438, %v989, 0.0
      %1037 = vadd.xlane.f32.xlu0 %v1036
      %v1038 = vpop.xlane.xlu0 %1037
      %v1039 = vsel %vm438, %v991, 0.0
      %1040 = vadd.xlane.f32.xlu0 %v1039
      %v1041 = vpop.xlane.xlu0 %1040
      %v1042 = vsel %vm438, %v993, 0.0
      %1043 = vadd.xlane.f32.xlu0 %v1042
      %v1044 = vpop.xlane.xlu0 %1043
      %v1045 = vsel %vm438, %v995, 0.0
      %1046 = vadd.xlane.f32.xlu0 %v1045
      %v1047 = vpop.xlane.xlu0 %1046
      %v1048 = vsel %vm438, %v997, 0.0
      %1049 = vadd.xlane.f32.xlu0 %v1048
      %v1050 = vpop.xlane.xlu0 %1049
      %v1051 = vsel %vm438, %v999, 0.0
      %1052 = vadd.xlane.f32.xlu0 %v1051
      %v1053 = vpop.xlane.xlu0 %1052
      %v1054 = vsel %vm438, %v1001, 0.0
      %1055 = vadd.xlane.f32.xlu0 %v1054
      %v1056 = vpop.xlane.xlu0 %1055
      %v1057 = vsel %vm438, %v1003, 0.0
      %1058 = vadd.xlane.f32.xlu0 %v1057
      %v1059 = vpop.xlane.xlu0 %1058
      %v1060 = vsel %vm438, %v1005, 0.0
      %1061 = vadd.xlane.f32.xlu0 %v1060
      %v1062 = vpop.xlane.xlu0 %1061
      %v1063 = vsel %vm438, %v1007, 0.0
      %1064 = vadd.xlane.f32.xlu0 %v1063
      %v1065 = vpop.xlane.xlu0 %1064
      %v1066 = vsel %vm438, %v1009, 0.0
      %1067 = vadd.xlane.f32.xlu0 %v1066
      %v1068 = vpop.xlane.xlu0 %1067
      %v1069 = vsel %vm438, %v1011, 0.0
      %1070 = vadd.xlane.f32.xlu0 %v1069
      %v1071 = vpop.xlane.xlu0 %1070
      %v1072 = vsel %vm438, %v1013, 0.0
      %1073 = vadd.xlane.f32.xlu0 %v1072
      %v1074 = vpop.xlane.xlu0 %1073
      %v1075 = vsel %vm438, %v1015, 0.0
      %1076 = vadd.xlane.f32.xlu0 %v1075
      %v1077 = vpop.xlane.xlu0 %1076
      %v1078 = vsel %vm438, %v1017, 0.0
      %1079 = vadd.xlane.f32.xlu0 %v1078
      %v1080 = vpop.xlane.xlu0 %1079
      %v1081 = vsel %vm438, %v1019, 0.0
      %1082 = vadd.xlane.f32.xlu0 %v1081
      %v1083 = vpop.xlane.xlu0 %1082
      %v1084 = vperm.slane %v419, 3
      %1086 = vrot.lane.b32.xlu0 %v1084, 96
      %v1087 = vpop.permute.xlu0 %1086
      %v1089 = vmul.f32 %v380, %v1087
      %v1090 = vmul.f32 %v382, %v1087
      %v1091 = vmul.f32 %v385, %v1087
      %v1092 = vmul.f32 %v387, %v1087
      %v1093 = vmul.f32 %v390, %v1087
      %v1094 = vmul.f32 %v392, %v1087
      %v1095 = vmul.f32 %v395, %v1087
      %v1096 = vmul.f32 %v397, %v1087
      %v1097 = vmul.f32 %v400, %v1087
      %v1098 = vmul.f32 %v402, %v1087
      %v1099 = vmul.f32 %v405, %v1087
      %v1100 = vmul.f32 %v407, %v1087
      %v1101 = vmul.f32 %v410, %v1087
      %v1102 = vmul.f32 %v412, %v1087
      %v1103 = vmul.f32 %v415, %v1087
      %v1104 = vmul.f32 %v417, %v1087
      %1121 = vrot.lane.b32.xlu0 %v1089, 32
      %v1122 = vpop.permute.xlu0 %1121
      %1123 = vrot.lane.b32.xlu0 %v1090, 32
      %v1124 = vpop.permute.xlu0 %1123
      %1125 = vrot.lane.b32.xlu0 %v1091, 32
      %v1126 = vpop.permute.xlu0 %1125
      %1127 = vrot.lane.b32.xlu0 %v1092, 32
      %v1128 = vpop.permute.xlu0 %1127
      %1129 = vrot.lane.b32.xlu0 %v1093, 32
      %v1130 = vpop.permute.xlu0 %1129
      %1131 = vrot.lane.b32.xlu0 %v1094, 32
      %v1132 = vpop.permute.xlu0 %1131
      %1133 = vrot.lane.b32.xlu0 %v1095, 32
      %v1134 = vpop.permute.xlu0 %1133
      %1135 = vrot.lane.b32.xlu0 %v1096, 32
      %v1136 = vpop.permute.xlu0 %1135
      %1137 = vrot.lane.b32.xlu0 %v1097, 32
      %v1138 = vpop.permute.xlu0 %1137
      %1139 = vrot.lane.b32.xlu0 %v1098, 32
      %v1140 = vpop.permute.xlu0 %1139
      %1141 = vrot.lane.b32.xlu0 %v1099, 32
      %v1142 = vpop.permute.xlu0 %1141
      %1143 = vrot.lane.b32.xlu0 %v1100, 32
      %v1144 = vpop.permute.xlu0 %1143
      %1145 = vrot.lane.b32.xlu0 %v1101, 32
      %v1146 = vpop.permute.xlu0 %1145
      %1147 = vrot.lane.b32.xlu0 %v1102, 32
      %v1148 = vpop.permute.xlu0 %1147
      %1149 = vrot.lane.b32.xlu0 %v1103, 32
      %v1150 = vpop.permute.xlu0 %1149
      %1151 = vrot.lane.b32.xlu0 %v1104, 32
      %v1152 = vpop.permute.xlu0 %1151
      %v1169 = vsel %vm438, %v1122, 0.0
      %1170 = vadd.xlane.f32.xlu0 %v1169
      %v1171 = vpop.xlane.xlu0 %1170
      %v1172 = vsel %vm438, %v1124, 0.0
      %1173 = vadd.xlane.f32.xlu0 %v1172
      %v1174 = vpop.xlane.xlu0 %1173
      %v1175 = vsel %vm438, %v1126, 0.0
      %1176 = vadd.xlane.f32.xlu0 %v1175
      %v1177 = vpop.xlane.xlu0 %1176
      %v1178 = vsel %vm438, %v1128, 0.0
      %1179 = vadd.xlane.f32.xlu0 %v1178
      %v1180 = vpop.xlane.xlu0 %1179
      %v1181 = vsel %vm438, %v1130, 0.0
      %1182 = vadd.xlane.f32.xlu0 %v1181
      %v1183 = vpop.xlane.xlu0 %1182
      %v1184 = vsel %vm438, %v1132, 0.0
      %1185 = vadd.xlane.f32.xlu0 %v1184
      %v1186 = vpop.xlane.xlu0 %1185
      %v1187 = vsel %vm438, %v1134, 0.0
      %1188 = vadd.xlane.f32.xlu0 %v1187
      %v1189 = vpop.xlane.xlu0 %1188
      %v1190 = vsel %vm438, %v1136, 0.0
      %1191 = vadd.xlane.f32.xlu0 %v1190
      %v1192 = vpop.xlane.xlu0 %1191
      %v1193 = vsel %vm438, %v1138, 0.0
      %1194 = vadd.xlane.f32.xlu0 %v1193
      %v1195 = vpop.xlane.xlu0 %1194
      %v1196 = vsel %vm438, %v1140, 0.0
      %1197 = vadd.xlane.f32.xlu0 %v1196
      %v1198 = vpop.xlane.xlu0 %1197
      %v1199 = vsel %vm438, %v1142, 0.0
      %1200 = vadd.xlane.f32.xlu0 %v1199
      %v1201 = vpop.xlane.xlu0 %1200
      %v1202 = vsel %vm438, %v1144, 0.0
      %1203 = vadd.xlane.f32.xlu0 %v1202
      %v1204 = vpop.xlane.xlu0 %1203
      %v1205 = vsel %vm438, %v1146, 0.0
      %1206 = vadd.xlane.f32.xlu0 %v1205
      %v1207 = vpop.xlane.xlu0 %1206
      %v1208 = vsel %vm438, %v1148, 0.0
      %1209 = vadd.xlane.f32.xlu0 %v1208
      %v1210 = vpop.xlane.xlu0 %1209
      %v1211 = vsel %vm438, %v1150, 0.0
      %1212 = vadd.xlane.f32.xlu0 %v1211
      %v1213 = vpop.xlane.xlu0 %1212
      %v1214 = vsel %vm438, %v1152, 0.0
      %1215 = vadd.xlane.f32.xlu0 %v1214
      %v1216 = vpop.xlane.xlu0 %1215
      %v1217 = vperm.slane %v420, 3
      %1219 = vrot.lane.b32.xlu0 %v1217, 96
      %v1220 = vpop.permute.xlu0 %1219
      %v1222 = vmul.f32 %v380, %v1220
      %v1223 = vmul.f32 %v382, %v1220
      %v1224 = vmul.f32 %v385, %v1220
      %v1225 = vmul.f32 %v387, %v1220
      %v1226 = vmul.f32 %v390, %v1220
      %v1227 = vmul.f32 %v392, %v1220
      %v1228 = vmul.f32 %v395, %v1220
      %v1229 = vmul.f32 %v397, %v1220
      %v1230 = vmul.f32 %v400, %v1220
      %v1231 = vmul.f32 %v402, %v1220
      %v1232 = vmul.f32 %v405, %v1220
      %v1233 = vmul.f32 %v407, %v1220
      %v1234 = vmul.f32 %v410, %v1220
      %v1235 = vmul.f32 %v412, %v1220
      %v1236 = vmul.f32 %v415, %v1220
      %v1237 = vmul.f32 %v417, %v1220
      %1254 = vrot.lane.b32.xlu0 %v1222, 32
      %v1255 = vpop.permute.xlu0 %1254
      %1256 = vrot.lane.b32.xlu0 %v1223, 32
      %v1257 = vpop.permute.xlu0 %1256
      %1258 = vrot.lane.b32.xlu0 %v1224, 32
      %v1259 = vpop.permute.xlu0 %1258
      %1260 = vrot.lane.b32.xlu0 %v1225, 32
      %v1261 = vpop.permute.xlu0 %1260
      %1262 = vrot.lane.b32.xlu0 %v1226, 32
      %v1263 = vpop.permute.xlu0 %1262
      %1264 = vrot.lane.b32.xlu0 %v1227, 32
      %v1265 = vpop.permute.xlu0 %1264
      %1266 = vrot.lane.b32.xlu0 %v1228, 32
      %v1267 = vpop.permute.xlu0 %1266
      %1268 = vrot.lane.b32.xlu0 %v1229, 32
      %v1269 = vpop.permute.xlu0 %1268
      %1270 = vrot.lane.b32.xlu0 %v1230, 32
      %v1271 = vpop.permute.xlu0 %1270
      %1272 = vrot.lane.b32.xlu0 %v1231, 32
      %v1273 = vpop.permute.xlu0 %1272
      %1274 = vrot.lane.b32.xlu0 %v1232, 32
      %v1275 = vpop.permute.xlu0 %1274
      %1276 = vrot.lane.b32.xlu0 %v1233, 32
      %v1277 = vpop.permute.xlu0 %1276
      %1278 = vrot.lane.b32.xlu0 %v1234, 32
      %v1279 = vpop.permute.xlu0 %1278
      %1280 = vrot.lane.b32.xlu0 %v1235, 32
      %v1281 = vpop.permute.xlu0 %1280
      %1282 = vrot.lane.b32.xlu0 %v1236, 32
      %v1283 = vpop.permute.xlu0 %1282
      %1284 = vrot.lane.b32.xlu0 %v1237, 32
      %v1285 = vpop.permute.xlu0 %1284
      %v1302 = vsel %vm438, %v1255, 0.0
      %1303 = vadd.xlane.f32.xlu0 %v1302
      %v1304 = vpop.xlane.xlu0 %1303
      %v1305 = vsel %vm438, %v1257, 0.0
      %1306 = vadd.xlane.f32.xlu0 %v1305
      %v1307 = vpop.xlane.xlu0 %1306
      %v1308 = vsel %vm438, %v1259, 0.0
      %1309 = vadd.xlane.f32.xlu0 %v1308
      %v1310 = vpop.xlane.xlu0 %1309
      %v1311 = vsel %vm438, %v1261, 0.0
      %1312 = vadd.xlane.f32.xlu0 %v1311
      %v1313 = vpop.xlane.xlu0 %1312
      %v1314 = vsel %vm438, %v1263, 0.0
      %1315 = vadd.xlane.f32.xlu0 %v1314
      %v1316 = vpop.xlane.xlu0 %1315
      %v1317 = vsel %vm438, %v1265, 0.0
      %1318 = vadd.xlane.f32.xlu0 %v1317
      %v1319 = vpop.xlane.xlu0 %1318
      %v1320 = vsel %vm438, %v1267, 0.0
      %1321 = vadd.xlane.f32.xlu0 %v1320
      %v1322 = vpop.xlane.xlu0 %1321
      %v1323 = vsel %vm438, %v1269, 0.0
      %1324 = vadd.xlane.f32.xlu0 %v1323
      %v1325 = vpop.xlane.xlu0 %1324
      %v1326 = vsel %vm438, %v1271, 0.0
      %1327 = vadd.xlane.f32.xlu0 %v1326
      %v1328 = vpop.xlane.xlu0 %1327
      %v1329 = vsel %vm438, %v1273, 0.0
      %1330 = vadd.xlane.f32.xlu0 %v1329
      %v1331 = vpop.xlane.xlu0 %1330
      %v1332 = vsel %vm438, %v1275, 0.0
      %1333 = vadd.xlane.f32.xlu0 %v1332
      %v1334 = vpop.xlane.xlu0 %1333
      %v1335 = vsel %vm438, %v1277, 0.0
      %1336 = vadd.xlane.f32.xlu0 %v1335
      %v1337 = vpop.xlane.xlu0 %1336
      %v1338 = vsel %vm438, %v1279, 0.0
      %1339 = vadd.xlane.f32.xlu0 %v1338
      %v1340 = vpop.xlane.xlu0 %1339
      %v1341 = vsel %vm438, %v1281, 0.0
      %1342 = vadd.xlane.f32.xlu0 %v1341
      %v1343 = vpop.xlane.xlu0 %1342
      %v1344 = vsel %vm438, %v1283, 0.0
      %1345 = vadd.xlane.f32.xlu0 %v1344
      %v1346 = vpop.xlane.xlu0 %1345
      %v1347 = vsel %vm438, %v1285, 0.0
      %1348 = vadd.xlane.f32.xlu0 %v1347
      %v1349 = vpop.xlane.xlu0 %1348
      %vm1350 = vcmask 7168
      %v1351 = vsel %vm1350, %v441, %v639
      %v1352 = vsel %vm1350, %v444, %v642
      %v1353 = vsel %vm1350, %v447, %v645
      %v1354 = vsel %vm1350, %v450, %v648
      %v1355 = vsel %vm1350, %v453, %v651
      %v1356 = vsel %vm1350, %v456, %v654
      %v1357 = vsel %vm1350, %v459, %v657
      %v1358 = vsel %vm1350, %v462, %v660
      %v1359 = vsel %vm1350, %v465, %v663
      %v1360 = vsel %vm1350, %v468, %v666
      %v1361 = vsel %vm1350, %v471, %v669
      %v1362 = vsel %vm1350, %v474, %v672
      %v1363 = vsel %vm1350, %v477, %v675
      %v1364 = vsel %vm1350, %v480, %v678
      %v1365 = vsel %vm1350, %v483, %v681
      %v1366 = vsel %vm1350, %v486, %v684
      %vm1367 = vcmask 15360
      %v1368 = vsel %vm1367, %v1351, %v905
      %v1369 = vsel %vm1367, %v1352, %v908
      %v1370 = vsel %vm1367, %v1353, %v911
      %v1371 = vsel %vm1367, %v1354, %v914
      %v1372 = vsel %vm1367, %v1355, %v917
      %v1373 = vsel %vm1367, %v1356, %v920
      %v1374 = vsel %vm1367, %v1357, %v923
      %v1375 = vsel %vm1367, %v1358, %v926
      %v1376 = vsel %vm1367, %v1359, %v929
      %v1377 = vsel %vm1367, %v1360, %v932
      %v1378 = vsel %vm1367, %v1361, %v935
      %v1379 = vsel %vm1367, %v1362, %v938
      %v1380 = vsel %vm1367, %v1363, %v941
      %v1381 = vsel %vm1367, %v1364, %v944
      %v1382 = vsel %vm1367, %v1365, %v947
      %v1383 = vsel %vm1367, %v1366, %v950
      %vm1384 = vcmask 23552
      %v1385 = vsel %vm1384, %v1368, %v1171
      %v1386 = vsel %vm1384, %v1369, %v1174
      %v1387 = vsel %vm1384, %v1370, %v1177
      %v1388 = vsel %vm1384, %v1371, %v1180
      %v1389 = vsel %vm1384, %v1372, %v1183
      %v1390 = vsel %vm1384, %v1373, %v1186
      %v1391 = vsel %vm1384, %v1374, %v1189
      %v1392 = vsel %vm1384, %v1375, %v1192
      %v1393 = vsel %vm1384, %v1376, %v1195
      %v1394 = vsel %vm1384, %v1377, %v1198
      %v1395 = vsel %vm1384, %v1378, %v1201
      %v1396 = vsel %vm1384, %v1379, %v1204
      %v1397 = vsel %vm1384, %v1380, %v1207
      %v1398 = vsel %vm1384, %v1381, %v1210
      %v1399 = vsel %vm1384, %v1382, %v1213
      %v1400 = vsel %vm1384, %v1383, %v1216
      %vm1401 = vcmask 31744
      %1402 = vst.msk [vmem:[%s274] sm:$0xff] %vm1401, %v1385
      %1403 = vst.msk [vmem:[%s274 + $0x8] sm:$0xff] %vm1401, %v1386
      %1404 = vst.msk [vmem:[%s274 + $0x10] sm:$0xff] %vm1401, %v1387
      %1405 = vst.msk [vmem:[%s274 + $0x18] sm:$0xff] %vm1401, %v1388
      %1406 = vst.msk [vmem:[%s274 + $0x20] sm:$0xff] %vm1401, %v1389
      %1407 = vst.msk [vmem:[%s274 + $0x28] sm:$0xff] %vm1401, %v1390
      %1408 = vst.msk [vmem:[%s274 + $0x30] sm:$0xff] %vm1401, %v1391
      %1409 = vst.msk [vmem:[%s274 + $0x38] sm:$0xff] %vm1401, %v1392
      %1410 = vst.msk [vmem:[%s274 + $0x40] sm:$0xff] %vm1401, %v1393
      %1411 = vst.msk [vmem:[%s274 + $0x48] sm:$0xff] %vm1401, %v1394
      %1412 = vst.msk [vmem:[%s274 + $0x50] sm:$0xff] %vm1401, %v1395
      %1413 = vst.msk [vmem:[%s274 + $0x58] sm:$0xff] %vm1401, %v1396
      %1414 = vst.msk [vmem:[%s274 + $0x60] sm:$0xff] %vm1401, %v1397
      %1415 = vst.msk [vmem:[%s274 + $0x68] sm:$0xff] %vm1401, %v1398
      %1416 = vst.msk [vmem:[%s274 + $0x70] sm:$0xff] %vm1401, %v1399
      %1417 = vst.msk [vmem:[%s274 + $0x78] sm:$0xff] %vm1401, %v1400
      %v1418 = vsel %vm1350, %v506, %v772
      %v1419 = vsel %vm1350, %v509, %v775
      %v1420 = vsel %vm1350, %v512, %v778
      %v1421 = vsel %vm1350, %v515, %v781
      %v1422 = vsel %vm1350, %v518, %v784
      %v1423 = vsel %vm1350, %v521, %v787
      %v1424 = vsel %vm1350, %v524, %v790
      %v1425 = vsel %vm1350, %v527, %v793
      %v1426 = vsel %vm1350, %v530, %v796
      %v1427 = vsel %vm1350, %v533, %v799
      %v1428 = vsel %vm1350, %v536, %v802
      %v1429 = vsel %vm1350, %v539, %v805
      %v1430 = vsel %vm1350, %v542, %v808
      %v1431 = vsel %vm1350, %v545, %v811
      %v1432 = vsel %vm1350, %v548, %v814
      %v1433 = vsel %vm1350, %v551, %v817
      %v1434 = vsel %vm1367, %v1418, %v1038
      %v1435 = vsel %vm1367, %v1419, %v1041
      %v1436 = vsel %vm1367, %v1420, %v1044
      %v1437 = vsel %vm1367, %v1421, %v1047
      %v1438 = vsel %vm1367, %v1422, %v1050
      %v1439 = vsel %vm1367, %v1423, %v1053
      %v1440 = vsel %vm1367, %v1424, %v1056
      %v1441 = vsel %vm1367, %v1425, %v1059
      %v1442 = vsel %vm1367, %v1426, %v1062
      %v1443 = vsel %vm1367, %v1427, %v1065
      %v1444 = vsel %vm1367, %v1428, %v1068
      %v1445 = vsel %vm1367, %v1429, %v1071
      %v1446 = vsel %vm1367, %v1430, %v1074
      %v1447 = vsel %vm1367, %v1431, %v1077
      %v1448 = vsel %vm1367, %v1432, %v1080
      %v1449 = vsel %vm1367, %v1433, %v1083
      %v1450 = vsel %vm1384, %v1434, %v1304
      %v1451 = vsel %vm1384, %v1435, %v1307
      %v1452 = vsel %vm1384, %v1436, %v1310
      %v1453 = vsel %vm1384, %v1437, %v1313
      %v1454 = vsel %vm1384, %v1438, %v1316
      %v1455 = vsel %vm1384, %v1439, %v1319
      %v1456 = vsel %vm1384, %v1440, %v1322
      %v1457 = vsel %vm1384, %v1441, %v1325
      %v1458 = vsel %vm1384, %v1442, %v1328
      %v1459 = vsel %vm1384, %v1443, %v1331
      %v1460 = vsel %vm1384, %v1444, %v1334
      %v1461 = vsel %vm1384, %v1445, %v1337
      %v1462 = vsel %vm1384, %v1446, %v1340
      %v1463 = vsel %vm1384, %v1447, %v1343
      %v1464 = vsel %vm1384, %v1448, %v1346
      %v1465 = vsel %vm1384, %v1449, %v1349
      %1466 = vst.msk [vmem:[%s280] sm:$0xff] %vm1401, %v1450
      %1467 = vst.msk [vmem:[%s280 + $0x8] sm:$0xff] %vm1401, %v1451
      %1468 = vst.msk [vmem:[%s280 + $0x10] sm:$0xff] %vm1401, %v1452
      %1469 = vst.msk [vmem:[%s280 + $0x18] sm:$0xff] %vm1401, %v1453
      %1470 = vst.msk [vmem:[%s280 + $0x20] sm:$0xff] %vm1401, %v1454
      %1471 = vst.msk [vmem:[%s280 + $0x28] sm:$0xff] %vm1401, %v1455
      %1472 = vst.msk [vmem:[%s280 + $0x30] sm:$0xff] %vm1401, %v1456
      %1473 = vst.msk [vmem:[%s280 + $0x38] sm:$0xff] %vm1401, %v1457
      %1474 = vst.msk [vmem:[%s280 + $0x40] sm:$0xff] %vm1401, %v1458
      %1475 = vst.msk [vmem:[%s280 + $0x48] sm:$0xff] %vm1401, %v1459
      %1476 = vst.msk [vmem:[%s280 + $0x50] sm:$0xff] %vm1401, %v1460
      %1477 = vst.msk [vmem:[%s280 + $0x58] sm:$0xff] %vm1401, %v1461
      %1478 = vst.msk [vmem:[%s280 + $0x60] sm:$0xff] %vm1401, %v1462
      %1479 = vst.msk [vmem:[%s280 + $0x68] sm:$0xff] %vm1401, %v1463
      %1480 = vst.msk [vmem:[%s280 + $0x70] sm:$0xff] %vm1401, %v1464
      %1481 = vst.msk [vmem:[%s280 + $0x78] sm:$0xff] %vm1401, %v1465
      %v1482 = vpack.c.bf16 %v380, %v380
      %v1483 = vpack.c.bf16 %v382, %v382
      %v1484 = vpack.c.bf16 %v385, %v385
      %v1485 = vpack.c.bf16 %v387, %v387
      %v1486 = vpack.c.bf16 %v390, %v390
      %v1487 = vpack.c.bf16 %v392, %v392
      %v1488 = vpack.c.bf16 %v395, %v395
      %v1489 = vpack.c.bf16 %v397, %v397
      %v1490 = vpack.c.bf16 %v400, %v400
      %v1491 = vpack.c.bf16 %v402, %v402
      %v1492 = vpack.c.bf16 %v405, %v405
      %v1493 = vpack.c.bf16 %v407, %v407
      %v1494 = vpack.c.bf16 %v410, %v410
      %v1495 = vpack.c.bf16 %v412, %v412
      %v1496 = vpack.c.bf16 %v415, %v415
      %v1497 = vpack.c.bf16 %v417, %v417
      %1498 = vst [vmem:[%s268] sm:$0xf] %v1482
      %1499 = vst [vmem:[%s268 + $0x4] sm:$0xf] %v1483
      %1500 = vst [vmem:[%s268 + $0x8] sm:$0xf] %v1484
      %1501 = vst [vmem:[%s268 + $0xc] sm:$0xf] %v1485
      %1502 = vst [vmem:[%s268 + $0x10] sm:$0xf] %v1486
      %1503 = vst [vmem:[%s268 + $0x14] sm:$0xf] %v1487
      %1504 = vst [vmem:[%s268 + $0x18] sm:$0xf] %v1488
      %1505 = vst [vmem:[%s268 + $0x1c] sm:$0xf] %v1489
      %1506 = vst [vmem:[%s268 + $0x20] sm:$0xf] %v1490
      %1507 = vst [vmem:[%s268 + $0x24] sm:$0xf] %v1491
      %1508 = vst [vmem:[%s268 + $0x28] sm:$0xf] %v1492
      %1509 = vst [vmem:[%s268 + $0x2c] sm:$0xf] %v1493
      %1510 = vst [vmem:[%s268 + $0x30] sm:$0xf] %v1494
      %1511 = vst [vmem:[%s268 + $0x34] sm:$0xf] %v1495
      %1512 = vst [vmem:[%s268 + $0x38] sm:$0xf] %v1496
      %1513 = vst [vmem:[%s268 + $0x3c] sm:$0xf] %v1497
      %s1514 = smul.u32 16, %s18
      %p1515 = scmp.lt.s32.totalorder %s1514, 31
      %s1516 = scalar_select %p1515, %s1514, 31
      %s1517 = smul.addr %s1516, 4
      %s1518 = scalar_lea.vmem %s4, %s1517
      %s1519 = smul.u32 16, %s18
      %p1520 = scmp.lt.s32.totalorder %s1519, 31
      %s1521 = scalar_select %p1520, %s1519, 31
      %s1522 = smul.addr %s1521, 8
      %s1523 = scalar_lea.vmem %s5, %s1522
      %s1524 = smul.u32 16, %s18
      %p1525 = scmp.lt.s32.totalorder %s1524, 31
      %s1526 = scalar_select %p1525, %s1524, 31
      %s1527 = smul.addr %s1526, 8
      %s1528 = scalar_lea.vmem %s6, %s1527
      // Predicated region
      $region37: #{gat_forward.8} parent=35 // pred_check
        %p1529 = pneg %p125
      $region38: #{gat_forward.8} parent=35 // pred_check_branch
        %1531 = sbr.rel (%p1529) target = $region40
      $region39: #{gat_forward.8} parent=35 // pred_region
        %s1532 = smul.u32 16, %s18
      $region40: #{gat_forward.8} parent=35 // pred_fallthru
        _
      // Predicated region
      $region41: #{gat_forward.8} parent=35 // pred_check
        %p1533 = pneg %p151
      $region42: #{gat_forward.8} parent=35 // pred_check_branch
        %1535 = sbr.rel (%p1533) target = $region44
      $region43: #{gat_forward.8} parent=35 // pred_region
        %s1536 = smul.u32 16, %s18
      $region44: #{gat_forward.8} parent=35 // pred_fallthru
        _
      // Predicated region
      $region45: #{gat_forward.8} parent=35 // pred_check
        %p1537 = pneg %p177
      $region46: #{gat_forward.8} parent=35 // pred_check_branch
        %1539 = sbr.rel (%p1537) target = $region48
      $region47: #{gat_forward.8} parent=35 // pred_region
        %s1540 = smul.u32 16, %s18
      $region48: #{gat_forward.8} parent=35 // pred_fallthru
        _
    $region36: #{gat_forward.8} parent=5 // pred_fallthru
      _
    %p1541 = scmp.le.s32.totalorder 2, %s13
    // Predicated region
    $region49: #{gat_forward.8} parent=5 // pred_check
      %p1542 = pneg %p1541
    $region50: #{gat_forward.8} parent=5 // pred_check_branch
      %1544 = sbr.rel (%p1542) target = $region52
    $region51: #{gat_forward.8} parent=5 // pred_region
      %s1545 = ssub.s32 %s13, 2
      // Predicated region
      $region53: #{gat_forward.8} parent=51 // pred_check
        %p1546 = pneg %p131
      $region54: #{gat_forward.8} parent=51 // pred_check_branch
        %1548 = sbr.rel (%p1546) target = $region56
      $region55: #{gat_forward.8} parent=51 // pred_region
        %s1549 = smul.u32 16, %s19
        %p1550 = scmp.lt.s32.totalorder %s1549, 31
        %s1551 = scalar_select %p1550, %s1549, 31
        %s1552 = smul.addr %s1551, 4
        %s1553 = scalar_lea.vmem %s4, %s1552
      $region56: #{gat_forward.8} parent=51 // pred_fallthru
        _
      // Predicated region
      $region57: #{gat_forward.8} parent=51 // pred_check
        %p1554 = pneg %p157
      $region58: #{gat_forward.8} parent=51 // pred_check_branch
        %1556 = sbr.rel (%p1554) target = $region60
      $region59: #{gat_forward.8} parent=51 // pred_region
        %s1557 = smul.u32 16, %s19
        %p1558 = scmp.lt.s32.totalorder %s1557, 31
        %s1559 = scalar_select %p1558, %s1557, 31
        %s1560 = smul.addr %s1559, 8
        %s1561 = scalar_lea.vmem %s5, %s1560
      $region60: #{gat_forward.8} parent=51 // pred_fallthru
        _
      // Predicated region
      $region61: #{gat_forward.8} parent=51 // pred_check
        %p1562 = pneg %p183
      $region62: #{gat_forward.8} parent=51 // pred_check_branch
        %1564 = sbr.rel (%p1562) target = $region64
      $region63: #{gat_forward.8} parent=51 // pred_region
        %s1565 = smul.u32 16, %s19
        %p1566 = scmp.lt.s32.totalorder %s1565, 31
        %s1567 = scalar_select %p1566, %s1565, 31
        %s1568 = smul.addr %s1567, 8
        %s1569 = scalar_lea.vmem %s6, %s1568
      $region64: #{gat_forward.8} parent=51 // pred_fallthru
        _
    $region52: #{gat_forward.8} parent=5 // pred_fallthru
      _
  $region6: #{gat_forward.8} parent=0 // loop_footer
    %s17 = sadd.s32 1, %s13
  $region7: #{gat_forward.8} parent=0 // loop_footer_branch
    %12 = sbr.rel target = $region3
  $region8: #{gat_forward.8} parent=0 // loop_exit
    _

// kernel: gat_forward.6
$region0: #{gat_forward.6}
  #allocation0 [shape = 'u32[]', space=smem, size = 0x4, offset = 0x4, fixed_abs, tag = 'smem constant byte address 0x4 - core index']
  #allocation1 [shape = 'u32[72,128]{1,0:T(1,128)}', space=vmem, size = 0x9000, scoped, tag = 'internal scratch']
  %s0 = inlined_call_operand.vmem [shape: f32[256,64], index: 0, kind: input, shape index: {}]
  %s1 = inlined_call_operand.hbm [shape: bf16[64,128], index: 1, kind: input, shape index: {}]
  %s2 = inlined_call_operand.hbm [shape: f32[4,32], index: 2, kind: input, shape index: {}]
  %s3 = inlined_call_operand.hbm [shape: f32[4,32], index: 3, kind: input, shape index: {}]
  %s4 = inlined_call_operand.vmem [shape: bf16[256,128], index: 4, kind: output, shape index: {0}]
  %s5 = inlined_call_operand.vmem [shape: f32[256,4], index: 5, kind: output, shape index: {1}]
  %s6 = inlined_call_operand.vmem [shape: f32[256,4], index: 6, kind: output, shape index: {2}]
  %7 = xla_tuple %s4, %s5, %s6
  %s8 = sld [smem:[#allocation0]]
  $region77: #{gat_forward.6} parent=0
    _
  %s10 = ssub.s32 1, %s8
  %s11 = scalar_select 0, %s10, %s8
  $region1: #{gat_forward.6} parent=0
    #allocation2 [shape = 'u8[16384]{0}', space=vmem, size = 0x4000, scoped, tag = 'input window, operand 1, single buffered']
    #allocation3 [shape = 's32[2]{0}', space=sflag, size = 0x8, scoped, tag = 'scoped memory for gat_forward.6']
    #allocation4 [shape = 'u8[2048]{0}', space=vmem, size = 0x800, scoped, tag = 'input window, operand 2, single buffered']
    #allocation5 [shape = 's32[1]{0}', space=sflag, size = 0x4, scoped, tag = 'scoped memory for gat_forward.6']
    #allocation6 [shape = 'u8[2048]{0}', space=vmem, size = 0x800, scoped, tag = 'input window, operand 3, single buffered']
    %12 = vsyncpa [#allocation3], 0
    %13 = vsyncpa [#allocation5], 0
    loop: start=0, step=1, limit=4
    $region2: #{gat_forward.6} parent=1 // loop_pre_header
      _
    $region3: #{gat_forward.6} parent=1 // loop_header
      %s15 = sphi 0, %s19
      %p16 = scmp.ge.s32.totalorder %s15, 4
      %s25 = sphi 0, %s27
      %s28 = sphi 0, %s25
      %s29 = sphi 0, %s28
      %s45 = sphi 0, %s29
      %s49 = sphi 0, %s49
      %s51 = sphi 0, %s49
      %s52 = sphi 0, %s51
      %s66 = sphi 0, %s52
      %s70 = sphi 0, %s70
      %s72 = sphi 0, %s70
      %s73 = sphi 0, %s72
      %s87 = sphi 0, %s73
      %s91 = sphi 0, %s91
      %s93 = sphi 0, %s91
      %s94 = sphi 0, %s93
      %s108 = sphi 0, %s94
      %s114 = sphi 0, %s116
      %s117 = sphi 0, %s114
      %s118 = sphi 0, %s117
      %s134 = sphi 0, %s118
      %s140 = sphi 0, %s142
      %s143 = sphi 0, %s140
      %s144 = sphi 0, %s143
      %s160 = sphi 0, %s144
      %s166 = sphi 0, %s168
      %s169 = sphi 0, %s166
      %s170 = sphi 0, %s169
      %s186 = sphi 0, %s170
    $region4: #{gat_forward.6} parent=1 // loop_header_branch
      %18 = sbr.rel (%p16) target = $region8
    $region5: #{gat_forward.6} parent=1 // loop_body
      %s20 = ssub.s32 %s15, 1
      %s21 = ssub.s32 %s15, 2
      %s22 = sadd.s32 %s15, 1
      %s23 = ssub.s32 %s15, %s22
      %p24 = scmp.eq.s32.totalorder %s23, 0
      %s26 = sadd.s32 %s25, 1
      %s27 = scalar_select %p24, %s25, %s26
      %p30 = pneg %p24
      %p31 = scmp.eq.s32.totalorder %s15, 1
      %p32 = por %p30, %p31
      %p33 = scmp.ne.s32.totalorder %s25, %s28
      %p34 = scmp.eq.s32.totalorder %s15, 0
      %p35 = por %p33, %p34
      %p36 = scmp.ne.s32.totalorder %s25, %s28
      %p37 = scmp.eq.s32.totalorder %s20, 1
      %p38 = por %p36, %p37
      %p39 = scmp.ne.s32.totalorder %s28, %s29
      %p40 = scmp.eq.s32.totalorder %s20, 0
      %p41 = por %p39, %p40
      %p42 = scmp.ne.s32.totalorder %s28, %s29
      %p43 = scmp.eq.s32.totalorder %s21, 1
      %p44 = por %p42, %p43
      %p46 = scmp.ne.s32.totalorder %s29, %s45
      %p47 = scmp.eq.s32.totalorder %s21, 0
      %p48 = por %p46, %p47
      %s50 = sadd.s32 %s49, 1
      %p53 = scmp.eq.s32.totalorder %s15, 1
      %p54 = scmp.ne.s32.totalorder %s49, %s51
      %p55 = scmp.eq.s32.totalorder %s15, 0
      %p56 = por %p54, %p55
      %p57 = scmp.ne.s32.totalorder %s49, %s51
      %p58 = scmp.eq.s32.totalorder %s20, 1
      %p59 = por %p57, %p58
      %p60 = scmp.ne.s32.totalorder %s51, %s52
      %p61 = scmp.eq.s32.totalorder %s20, 0
      %p62 = por %p60, %p61
      %p63 = scmp.ne.s32.totalorder %s51, %s52
      %p64 = scmp.eq.s32.totalorder %s21, 1
      %p65 = por %p63, %p64
      %p67 = scmp.ne.s32.totalorder %s52, %s66
      %p68 = scmp.eq.s32.totalorder %s21, 0
      %p69 = por %p67, %p68
      %s71 = sadd.s32 %s70, 1
      %p74 = scmp.eq.s32.totalorder %s15, 1
      %p75 = scmp.ne.s32.totalorder %s70, %s72
      %p76 = scmp.eq.s32.totalorder %s15, 0
      %p77 = por %p75, %p76
      %p78 = scmp.ne.s32.totalorder %s70, %s72
      %p79 = scmp.eq.s32.totalorder %s20, 1
      %p80 = por %p78, %p79
      %p81 = scmp.ne.s32.totalorder %s72, %s73
      %p82 = scmp.eq.s32.totalorder %s20, 0
      %p83 = por %p81, %p82
      %p84 = scmp.ne.s32.totalorder %s72, %s73
      %p85 = scmp.eq.s32.totalorder %s21, 1
      %p86 = por %p84, %p85
      %p88 = scmp.ne.s32.totalorder %s73, %s87
      %p89 = scmp.eq.s32.totalorder %s21, 0
      %p90 = por %p88, %p89
      %s92 = sadd.s32 %s91, 1
      %p95 = scmp.eq.s32.totalorder %s15, 1
      %p96 = scmp.ne.s32.totalorder %s91, %s93
      %p97 = scmp.eq.s32.totalorder %s15, 0
      %p98 = por %p96, %p97
      %p99 = scmp.ne.s32.totalorder %s91, %s93
      %p100 = scmp.eq.s32.totalorder %s20, 1
      %p101 = por %p99, %p100
      %p102 = scmp.ne.s32.totalorder %s93, %s94
      %p103 = scmp.eq.s32.totalorder %s20, 0
      %p104 = por %p102, %p103
      %p105 = scmp.ne.s32.totalorder %s93, %s94
      %p106 = scmp.eq.s32.totalorder %s21, 1
      %p107 = por %p105, %p106
      %p109 = scmp.ne.s32.totalorder %s94, %s108
      %p110 = scmp.eq.s32.totalorder %s21, 0
      %p111 = por %p109, %p110
      %s112 = ssub.s32 %s15, %s22
      %p113 = scmp.eq.s32.totalorder %s112, 0
      %s115 = sadd.s32 %s114, 1
      %s116 = scalar_select %p113, %s114, %s115
      %p119 = pneg %p113
      %p120 = scmp.eq.s32.totalorder %s15, 1
      %p121 = por %p119, %p120
      %p122 = scmp.ne.s32.totalorder %s114, %s117
      %p123 = scmp.eq.s32.totalorder %s15, 0
      %p124 = por %p122, %p123
      %p125 = scmp.ne.s32.totalorder %s114, %s117
      %p126 = scmp.eq.s32.totalorder %s20, 1
      %p127 = por %p125, %p126
      %p128 = scmp.ne.s32.totalorder %s117, %s118
      %p129 = scmp.eq.s32.totalorder %s20, 0
      %p130 = por %p128, %p129
      %p131 = scmp.ne.s32.totalorder %s117, %s118
      %p132 = scmp.eq.s32.totalorder %s21, 1
      %p133 = por %p131, %p132
      %p135 = scmp.ne.s32.totalorder %s118, %s134
      %p136 = scmp.eq.s32.totalorder %s21, 0
      %p137 = por %p135, %p136
      %s138 = ssub.s32 %s15, %s22
      %p139 = scmp.eq.s32.totalorder %s138, 0
      %s141 = sadd.s32 %s140, 1
      %s142 = scalar_select %p139, %s140, %s141
      %p145 = pneg %p139
      %p146 = scmp.eq.s32.totalorder %s15, 1
      %p147 = por %p145, %p146
      %p148 = scmp.ne.s32.totalorder %s140, %s143
      %p149 = scmp.eq.s32.totalorder %s15, 0
      %p150 = por %p148, %p149
      %p151 = scmp.ne.s32.totalorder %s140, %s143
      %p152 = scmp.eq.s32.totalorder %s20, 1
      %p153 = por %p151, %p152
      %p154 = scmp.ne.s32.totalorder %s143, %s144
      %p155 = scmp.eq.s32.totalorder %s20, 0
      %p156 = por %p154, %p155
      %p157 = scmp.ne.s32.totalorder %s143, %s144
      %p158 = scmp.eq.s32.totalorder %s21, 1
      %p159 = por %p157, %p158
      %p161 = scmp.ne.s32.totalorder %s144, %s160
      %p162 = scmp.eq.s32.totalorder %s21, 0
      %p163 = por %p161, %p162
      %s164 = ssub.s32 %s15, %s22
      %p165 = scmp.eq.s32.totalorder %s164, 0
      %s167 = sadd.s32 %s166, 1
      %s168 = scalar_select %p165, %s166, %s167
      %p171 = pneg %p165
      %p172 = scmp.eq.s32.totalorder %s15, 1
      %p173 = por %p171, %p172
      %p174 = scmp.ne.s32.totalorder %s166, %s169
      %p175 = scmp.eq.s32.totalorder %s15, 0
      %p176 = por %p174, %p175
      %p177 = scmp.ne.s32.totalorder %s166, %s169
      %p178 = scmp.eq.s32.totalorder %s20, 1
      %p179 = por %p177, %p178
      %p180 = scmp.ne.s32.totalorder %s169, %s170
      %p181 = scmp.eq.s32.totalorder %s20, 0
      %p182 = por %p180, %p181
      %p183 = scmp.ne.s32.totalorder %s169, %s170
      %p184 = scmp.eq.s32.totalorder %s21, 1
      %p185 = por %p183, %p184
      %p187 = scmp.ne.s32.totalorder %s170, %s186
      %p188 = scmp.eq.s32.totalorder %s21, 0
      %p189 = por %p187, %p188
      %p190 = scmp.le.s32.totalorder 1, %s15
      %p191 = scmp.lt.s32.totalorder %s15, 3
      %p192 = pnand %p190, %p191
      %p193 = pneg %p192
      // Predicated region
      $region9: #{gat_forward.6} parent=5 // pred_check
        _
      $region10: #{gat_forward.6} parent=5 // pred_check_branch
        %195 = sbr.rel (%p192) target = $region12
      $region11: #{gat_forward.6} parent=5 // pred_region
        %s196 = ssub.s32 %s15, 1
        // Predicated region
        $region13: #{gat_forward.6} parent=11 // pred_check
          %p197 = pneg %p62
        $region14: #{gat_forward.6} parent=11 // pred_check_branch
          %199 = sbr.rel (%p197) target = $region16
        $region15: #{gat_forward.6} parent=11 // pred_region
          %201 = vsyncadd [#allocation3], 0
          %s202 = sshll.u32 %s1, 4
          %s203 = int_to_ptr.hbm [resolvable:$true] %s202
          %s204 = sshll.u32 [#allocation2], 4
          %s205 = int_to_ptr.vmem [resolvable:$true] %s204
          %210 = dma.hbm_to_vmem [thread:$0]  %s203, 512, %s205, [#allocation3], 64, 64, 4
        $region16: #{gat_forward.6} parent=11 // pred_fallthru
          _
        // Predicated region
        $region17: #{gat_forward.6} parent=11 // pred_check
          %p211 = pneg %p83
        $region18: #{gat_forward.6} parent=11 // pred_check_branch
          %213 = sbr.rel (%p211) target = $region20
        $region19: #{gat_forward.6} parent=11 // pred_region
          %215 = vsyncadd [#allocation5], 0
          %s217 = sshll.u32 %s2, 4
          %s218 = int_to_ptr.hbm [resolvable:$true] %s217
          %s219 = sshll.u32 [#allocation4], 4
          %s220 = int_to_ptr.vmem [resolvable:$true] %s219
          %222 = dma.hbm_to_vmem [thread:$0]  %s218, 64, %s220, [#allocation5]
        $region20: #{gat_forward.6} parent=11 // pred_fallthru
          _
        // Predicated region
        $region21: #{gat_forward.6} parent=11 // pred_check
          %p223 = pneg %p104
        $region22: #{gat_forward.6} parent=11 // pred_check_branch
          %225 = sbr.rel (%p223) target = $region24
        $region23: #{gat_forward.6} parent=11 // pred_region
          %227 = vsyncadd [#allocation5], 0
          %s229 = sshll.u32 %s3, 4
          %s230 = int_to_ptr.hbm [resolvable:$true] %s229
          %s231 = sshll.u32 [#allocation6], 4
          %s232 = int_to_ptr.vmem [resolvable:$true] %s231
          %234 = dma.hbm_to_vmem [thread:$0]  %s230, 64, %s232, [#allocation5]
        $region24: #{gat_forward.6} parent=11 // pred_fallthru
          _
      $region12: #{gat_forward.6} parent=5 // pred_fallthru
        _
      %p235 = scmp.lt.s32.totalorder %s15, 2
      // Predicated region
      $region25: #{gat_forward.6} parent=5 // pred_check
        %p236 = pneg %p235
      $region26: #{gat_forward.6} parent=5 // pred_check_branch
        %238 = sbr.rel (%p236) target = $region28
      $region27: #{gat_forward.6} parent=5 // pred_region
        // Predicated region
        $region29: #{gat_forward.6} parent=27 // pred_check
          %p239 = pneg %p35
        $region30: #{gat_forward.6} parent=27 // pred_check_branch
          %241 = sbr.rel (%p239) target = $region32
        $region31: #{gat_forward.6} parent=27 // pred_region
          %s242 = smul.u32 16, %s15
          %p243 = scmp.lt.s32.totalorder %s242, 31
          %s244 = scalar_select %p243, %s242, 31
          %s245 = smul.addr %s244, 8
          %s246 = scalar_lea.vmem %s0, %s245
          %s247 = smul.u32 16, %s15
        $region32: #{gat_forward.6} parent=27 // pred_fallthru
          _
      $region28: #{gat_forward.6} parent=5 // pred_fallthru
        _
      %p248 = scmp.le.s32.totalorder 1, %s15
      %p249 = scmp.lt.s32.totalorder %s15, 3
      %p250 = pnand %p248, %p249
      %p251 = pneg %p250
      // Predicated region
      $region33: #{gat_forward.6} parent=5 // pred_check
        _
      $region34: #{gat_forward.6} parent=5 // pred_check_branch
        %253 = sbr.rel (%p250) target = $region36
      $region35: #{gat_forward.6} parent=5 // pred_region
        %s254 = ssub.s32 %s15, 1
        // Predicated region
        $region37: #{gat_forward.6} parent=35 // pred_check
          %p255 = pneg %p62
        $region38: #{gat_forward.6} parent=35 // pred_check_branch
          %257 = sbr.rel (%p255) target = $region40
        $region39: #{gat_forward.6} parent=35 // pred_region
          %259 = dma.done [#allocation3], 512
        $region40: #{gat_forward.6} parent=35 // pred_fallthru
          _
        // Predicated region
        $region41: #{gat_forward.6} parent=35 // pred_check
          %p260 = pneg %p83
        $region42: #{gat_forward.6} parent=35 // pred_check_branch
          %262 = sbr.rel (%p260) target = $region44
        $region43: #{gat_forward.6} parent=35 // pred_region
          %264 = dma.done [#allocation5], 64
        $region44: #{gat_forward.6} parent=35 // pred_fallthru
          _
        // Predicated region
        $region45: #{gat_forward.6} parent=35 // pred_check
          %p265 = pneg %p104
        $region46: #{gat_forward.6} parent=35 // pred_check_branch
          %267 = sbr.rel (%p265) target = $region48
        $region47: #{gat_forward.6} parent=35 // pred_region
          %269 = dma.done [#allocation5], 64
        $region48: #{gat_forward.6} parent=35 // pred_fallthru
          _
        %s270 = smul.u32 16, %s20
        %p271 = scmp.lt.s32.totalorder %s270, 31
        %s272 = scalar_select %p271, %s270, 31
        %s273 = smul.addr %s272, 8
        %s274 = scalar_lea.vmem %s0, %s273
        %p275 = pneg %p41
        %p276 = pneg %p38
        %p277 = pneg %p62
        %p278 = pneg %p59
        %p279 = pneg %p83
        %p280 = pneg %p80
        %p281 = pneg %p104
        %p282 = pneg %p101
        %p283 = pneg %p130
        %p284 = pneg %p127
        %s285 = smul.u32 16, %s20
        %p286 = scmp.lt.s32.totalorder %s285, 31
        %s287 = scalar_select %p286, %s285, 31
        %s288 = smul.addr %s287, 4
        %s289 = scalar_lea.vmem %s4, %s288
        %p290 = pneg %p156
        %p291 = pneg %p153
        %s292 = smul.u32 16, %s20
        %p293 = scmp.lt.s32.totalorder %s292, 31
        %s294 = scalar_select %p293, %s292, 31
        %s295 = smul.addr %s294, 8
        %s296 = scalar_lea.vmem %s5, %s295
        %p297 = pneg %p182
        %p298 = pneg %p179
        %s299 = smul.u32 16, %s20
        %p300 = scmp.lt.s32.totalorder %s299, 31
        %s301 = scalar_select %p300, %s299, 31
        %s302 = smul.addr %s301, 8
        %s303 = scalar_lea.vmem %s6, %s302
        %s304 = smul.u32 16, %s20
        %p305 = scmp.lt.s32.totalorder %s304, 31
        %s306 = scalar_select %p305, %s304, 31
        %s307 = smul.addr %s306, 8
        %s308 = scalar_lea.vmem %s0, %s307
        %s309 = smul.u32 16, %s20
        %s310 = smul.u32 16, %s20
        %p311 = scmp.lt.s32.totalorder %s310, 31
        %s312 = scalar_select %p311, %s310, 31
        %s313 = smul.addr %s312, 4
        %s314 = scalar_lea.vmem %s4, %s313
        %s315 = smul.u32 16, %s20
        %s316 = smul.u32 16, %s20
        %p317 = scmp.lt.s32.totalorder %s316, 31
        %s318 = scalar_select %p317, %s316, 31
        %s319 = smul.addr %s318, 8
        %s320 = scalar_lea.vmem %s5, %s319
        %s321 = smul.u32 16, %s20
        %s322 = smul.u32 16, %s20
        %p323 = scmp.lt.s32.totalorder %s322, 31
        %s324 = scalar_select %p323, %s322, 31
        %s325 = smul.addr %s324, 8
        %s326 = scalar_lea.vmem %s6, %s325
        %s327 = smul.u32 16, %s20
        %v329 = vld [vmem:[%s308] sm:$0xff]
        %v330 = vld [vmem:[%s308 + $0x8] sm:$0xff]
        %v331 = vld [vmem:[%s308 + $0x10] sm:$0xff]
        %v332 = vld [vmem:[%s308 + $0x18] sm:$0xff]
        %v333 = vld [vmem:[%s308 + $0x20] sm:$0xff]
        %v334 = vld [vmem:[%s308 + $0x28] sm:$0xff]
        %v335 = vld [vmem:[%s308 + $0x30] sm:$0xff]
        %v336 = vld [vmem:[%s308 + $0x38] sm:$0xff]
        %v337 = vld [vmem:[%s308 + $0x40] sm:$0xff]
        %v338 = vld [vmem:[%s308 + $0x48] sm:$0xff]
        %v339 = vld [vmem:[%s308 + $0x50] sm:$0xff]
        %v340 = vld [vmem:[%s308 + $0x58] sm:$0xff]
        %v341 = vld [vmem:[%s308 + $0x60] sm:$0xff]
        %v342 = vld [vmem:[%s308 + $0x68] sm:$0xff]
        %v343 = vld [vmem:[%s308 + $0x70] sm:$0xff]
        %v344 = vld [vmem:[%s308 + $0x78] sm:$0xff]
        %v345 = vpack.c.bf16 %v330, %v329
        %v346 = vpack.c.bf16 %v332, %v331
        %v347 = vpack.c.bf16 %v334, %v333
        %v348 = vpack.c.bf16 %v336, %v335
        %v349 = vpack.c.bf16 %v338, %v337
        %v350 = vpack.c.bf16 %v340, %v339
        %v351 = vpack.c.bf16 %v342, %v341
        %v352 = vpack.c.bf16 %v344, %v343
        %v353 = vld [vmem:[#allocation2] sm:$0xf]
        %v354 = vld [vmem:[#allocation2 + $0x4] sm:$0xf]
        %v355 = vld [vmem:[#allocation2 + $0x8] sm:$0xf]
        %v356 = vld [vmem:[#allocation2 + $0xc] sm:$0xf]
        %v357 = vld [vmem:[#allocation2 + $0x10] sm:$0xf]
        %v358 = vld [vmem:[#allocation2 + $0x14] sm:$0xf]
        %v359 = vld [vmem:[#allocation2 + $0x18] sm:$0xf]
        %v360 = vld [vmem:[#allocation2 + $0x1c] sm:$0xf]
        %v369 = vunpack.c.l.b16 %v353
        %v370 = vunpack.c.l.b16 %v354
        %v371 = vunpack.c.l.b16 %v355
        %v372 = vunpack.c.l.b16 %v356
        %v373 = vunpack.c.l.b16 %v357
        %v374 = vunpack.c.l.b16 %v358
        %v375 = vunpack.c.l.b16 %v359
        %v376 = vunpack.c.l.b16 %v360
        %v377 = vpack.c.b16 %v370, %v369
        %v378 = vpack.c.b16 %v372, %v371
        %v379 = vpack.c.b16 %v374, %v373
        %v380 = vpack.c.b16 %v376, %v375
        %vm385 = vcmask 523264
        %v387 = vsel %vm385, %v345, 0
        %v390 = vsel %vm385, %v346, 0
        %v393 = vsel %vm385, %v347, 0
        %v396 = vsel %vm385, %v348, 0
        %v399 = vsel %vm385, %v349, 0
        %v402 = vsel %vm385, %v350, 0
        %v405 = vsel %vm385, %v351, 0
        %v408 = vsel %vm385, %v352, 0
        %410 = vmatpush.bf16.msra.mxu0 0
        %411 = vmatpush.bf16.msra.mxu0 0
        %412 = vmatpush.bf16.msra.mxu0 0
        %413 = vmatpush.bf16.msra.mxu0 0
        %414 = vmatpush.bf16.msra.mxu0 %v380
        %415 = vmatpush.bf16.msra.mxu0 %v379
        %416 = vmatpush.bf16.msra.mxu0 %v378
        %417 = vmatpush.bf16.msra.mxu0 %v377
        %418 = vmatmul.bf16.gmra.mxu0 %v387
        %v419 = vpop.f32.mrf.mxu0
        %v420 = vadd.f32 0.0, %v419
        %v421 = vpop.f32.mrf.mxu0
        %v422 = vadd.f32 0.0, %v421
        %423 = vmatmul.bf16.gmra.mxu0 %v390
        %v424 = vpop.f32.mrf.mxu0
        %v425 = vadd.f32 0.0, %v424
        %v426 = vpop.f32.mrf.mxu0
        %v427 = vadd.f32 0.0, %v426
        %428 = vmatmul.bf16.gmra.mxu0 %v393
        %v429 = vpop.f32.mrf.mxu0
        %v430 = vadd.f32 0.0, %v429
        %v431 = vpop.f32.mrf.mxu0
        %v432 = vadd.f32 0.0, %v431
        %433 = vmatmul.bf16.gmra.mxu0 %v396
        %v434 = vpop.f32.mrf.mxu0
        %v435 = vadd.f32 0.0, %v434
        %v436 = vpop.f32.mrf.mxu0
        %v437 = vadd.f32 0.0, %v436
        %438 = vmatmul.bf16.gmra.mxu0 %v399
        %v439 = vpop.f32.mrf.mxu0
        %v440 = vadd.f32 0.0, %v439
        %v441 = vpop.f32.mrf.mxu0
        %v442 = vadd.f32 0.0, %v441
        %443 = vmatmul.bf16.gmra.mxu0 %v402
        %v444 = vpop.f32.mrf.mxu0
        %v445 = vadd.f32 0.0, %v444
        %v446 = vpop.f32.mrf.mxu0
        %v447 = vadd.f32 0.0, %v446
        %448 = vmatmul.bf16.gmra.mxu0 %v405
        %v449 = vpop.f32.mrf.mxu0
        %v450 = vadd.f32 0.0, %v449
        %v451 = vpop.f32.mrf.mxu0
        %v452 = vadd.f32 0.0, %v451
        %453 = vmatmul.bf16.gmra.mxu0 %v408
        %v454 = vpop.f32.mrf.mxu0
        %v455 = vadd.f32 0.0, %v454
        %v456 = vpop.f32.mrf.mxu0
        %v457 = vadd.f32 0.0, %v456
        %458 = vdwg.mxu0
        %v459 = vld [vmem:[#allocation4] sm:$0xf]
        %v460 = vld [vmem:[#allocation6] sm:$0xf]
        %v461 = vperm.slane %v459, 0
        %v462 = vmul.f32 %v420, %v461
        %v463 = vmul.f32 %v422, %v461
        %v464 = vmul.f32 %v425, %v461
        %v465 = vmul.f32 %v427, %v461
        %v466 = vmul.f32 %v430, %v461
        %v467 = vmul.f32 %v432, %v461
        %v468 = vmul.f32 %v435, %v461
        %v469 = vmul.f32 %v437, %v461
        %v470 = vmul.f32 %v440, %v461
        %v471 = vmul.f32 %v442, %v461
        %v472 = vmul.f32 %v445, %v461
        %v473 = vmul.f32 %v447, %v461
        %v474 = vmul.f32 %v450, %v461
        %v475 = vmul.f32 %v452, %v461
        %v476 = vmul.f32 %v455, %v461
        %v477 = vmul.f32 %v457, %v461
        %vm478 = vcmask 261120
        %v479 = vsel %vm478, %v462, 0.0
        %480 = vadd.xlane.f32.xlu0 %v479
        %v481 = vpop.xlane.xlu0 %480
        %v482 = vsel %vm478, %v463, 0.0
        %483 = vadd.xlane.f32.xlu0 %v482
        %v484 = vpop.xlane.xlu0 %483
        %v485 = vsel %vm478, %v464, 0.0
        %486 = vadd.xlane.f32.xlu0 %v485
        %v487 = vpop.xlane.xlu0 %486
        %v488 = vsel %vm478, %v465, 0.0
        %489 = vadd.xlane.f32.xlu0 %v488
        %v490 = vpop.xlane.xlu0 %489
        %v491 = vsel %vm478, %v466, 0.0
        %492 = vadd.xlane.f32.xlu0 %v491
        %v493 = vpop.xlane.xlu0 %492
        %v494 = vsel %vm478, %v467, 0.0
        %495 = vadd.xlane.f32.xlu0 %v494
        %v496 = vpop.xlane.xlu0 %495
        %v497 = vsel %vm478, %v468, 0.0
        %498 = vadd.xlane.f32.xlu0 %v497
        %v499 = vpop.xlane.xlu0 %498
        %v500 = vsel %vm478, %v469, 0.0
        %501 = vadd.xlane.f32.xlu0 %v500
        %v502 = vpop.xlane.xlu0 %501
        %v503 = vsel %vm478, %v470, 0.0
        %504 = vadd.xlane.f32.xlu0 %v503
        %v505 = vpop.xlane.xlu0 %504
        %v506 = vsel %vm478, %v471, 0.0
        %507 = vadd.xlane.f32.xlu0 %v506
        %v508 = vpop.xlane.xlu0 %507
        %v509 = vsel %vm478, %v472, 0.0
        %510 = vadd.xlane.f32.xlu0 %v509
        %v511 = vpop.xlane.xlu0 %510
        %v512 = vsel %vm478, %v473, 0.0
        %513 = vadd.xlane.f32.xlu0 %v512
        %v514 = vpop.xlane.xlu0 %513
        %v515 = vsel %vm478, %v474, 0.0
        %516 = vadd.xlane.f32.xlu0 %v515
        %v517 = vpop.xlane.xlu0 %516
        %v518 = vsel %vm478, %v475, 0.0
        %519 = vadd.xlane.f32.xlu0 %v518
        %v520 = vpop.xlane.xlu0 %519
        %v521 = vsel %vm478, %v476, 0.0
        %522 = vadd.xlane.f32.xlu0 %v521
        %v523 = vpop.xlane.xlu0 %522
        %v524 = vsel %vm478, %v477, 0.0
        %525 = vadd.xlane.f32.xlu0 %v524
        %v526 = vpop.xlane.xlu0 %525
        %v527 = vperm.slane %v460, 0
        %v528 = vmul.f32 %v420, %v527
        %v529 = vmul.f32 %v422, %v527
        %v530 = vmul.f32 %v425, %v527
        %v531 = vmul.f32 %v427, %v527
        %v532 = vmul.f32 %v430, %v527
        %v533 = vmul.f32 %v432, %v527
        %v534 = vmul.f32 %v435, %v527
        %v535 = vmul.f32 %v437, %v527
        %v536 = vmul.f32 %v440, %v527
        %v537 = vmul.f32 %v442, %v527
        %v538 = vmul.f32 %v445, %v527
        %v539 = vmul.f32 %v447, %v527
        %v540 = vmul.f32 %v450, %v527
        %v541 = vmul.f32 %v452, %v527
        %v542 = vmul.f32 %v455, %v527
        %v543 = vmul.f32 %v457, %v527
        %v544 = vsel %vm478, %v528, 0.0
        %545 = vadd.xlane.f32.xlu0 %v544
        %v546 = vpop.xlane.xlu0 %545
        %v547 = vsel %vm478, %v529, 0.0
        %548 = vadd.xlane.f32.xlu0 %v547
        %v549 = vpop.xlane.xlu0 %548
        %v550 = vsel %vm478, %v530, 0.0
        %551 = vadd.xlane.f32.xlu0 %v550
        %v552 = vpop.xlane.xlu0 %551
        %v553 = vsel %vm478, %v531, 0.0
        %554 = vadd.xlane.f32.xlu0 %v553
        %v555 = vpop.xlane.xlu0 %554
        %v556 = vsel %vm478, %v532, 0.0
        %557 = vadd.xlane.f32.xlu0 %v556
        %v558 = vpop.xlane.xlu0 %557
        %v559 = vsel %vm478, %v533, 0.0
        %560 = vadd.xlane.f32.xlu0 %v559
        %v561 = vpop.xlane.xlu0 %560
        %v562 = vsel %vm478, %v534, 0.0
        %563 = vadd.xlane.f32.xlu0 %v562
        %v564 = vpop.xlane.xlu0 %563
        %v565 = vsel %vm478, %v535, 0.0
        %566 = vadd.xlane.f32.xlu0 %v565
        %v567 = vpop.xlane.xlu0 %566
        %v568 = vsel %vm478, %v536, 0.0
        %569 = vadd.xlane.f32.xlu0 %v568
        %v570 = vpop.xlane.xlu0 %569
        %v571 = vsel %vm478, %v537, 0.0
        %572 = vadd.xlane.f32.xlu0 %v571
        %v573 = vpop.xlane.xlu0 %572
        %v574 = vsel %vm478, %v538, 0.0
        %575 = vadd.xlane.f32.xlu0 %v574
        %v576 = vpop.xlane.xlu0 %575
        %v577 = vsel %vm478, %v539, 0.0
        %578 = vadd.xlane.f32.xlu0 %v577
        %v579 = vpop.xlane.xlu0 %578
        %v580 = vsel %vm478, %v540, 0.0
        %581 = vadd.xlane.f32.xlu0 %v580
        %v582 = vpop.xlane.xlu0 %581
        %v583 = vsel %vm478, %v541, 0.0
        %584 = vadd.xlane.f32.xlu0 %v583
        %v585 = vpop.xlane.xlu0 %584
        %v586 = vsel %vm478, %v542, 0.0
        %587 = vadd.xlane.f32.xlu0 %v586
        %v588 = vpop.xlane.xlu0 %587
        %v589 = vsel %vm478, %v543, 0.0
        %590 = vadd.xlane.f32.xlu0 %v589
        %v591 = vpop.xlane.xlu0 %590
        %v592 = vperm.slane %v459, 1
        %594 = vrot.lane.b32.xlu0 %v592, 32
        %v595 = vpop.permute.xlu0 %594
        %v597 = vmul.f32 %v420, %v595
        %v598 = vmul.f32 %v422, %v595
        %v599 = vmul.f32 %v425, %v595
        %v600 = vmul.f32 %v427, %v595
        %v601 = vmul.f32 %v430, %v595
        %v602 = vmul.f32 %v432, %v595
        %v603 = vmul.f32 %v435, %v595
        %v604 = vmul.f32 %v437, %v595
        %v605 = vmul.f32 %v440, %v595
        %v606 = vmul.f32 %v442, %v595
        %v607 = vmul.f32 %v445, %v595
        %v608 = vmul.f32 %v447, %v595
        %v609 = vmul.f32 %v450, %v595
        %v610 = vmul.f32 %v452, %v595
        %v611 = vmul.f32 %v455, %v595
        %v612 = vmul.f32 %v457, %v595
        %629 = vrot.lane.b32.xlu0 %v597, 96
        %v630 = vpop.permute.xlu0 %629
        %631 = vrot.lane.b32.xlu0 %v598, 96
        %v632 = vpop.permute.xlu0 %631
        %633 = vrot.lane.b32.xlu0 %v599, 96
        %v634 = vpop.permute.xlu0 %633
        %635 = vrot.lane.b32.xlu0 %v600, 96
        %v636 = vpop.permute.xlu0 %635
        %637 = vrot.lane.b32.xlu0 %v601, 96
        %v638 = vpop.permute.xlu0 %637
        %639 = vrot.lane.b32.xlu0 %v602, 96
        %v640 = vpop.permute.xlu0 %639
        %641 = vrot.lane.b32.xlu0 %v603, 96
        %v642 = vpop.permute.xlu0 %641
        %643 = vrot.lane.b32.xlu0 %v604, 96
        %v644 = vpop.permute.xlu0 %643
        %645 = vrot.lane.b32.xlu0 %v605, 96
        %v646 = vpop.permute.xlu0 %645
        %647 = vrot.lane.b32.xlu0 %v606, 96
        %v648 = vpop.permute.xlu0 %647
        %649 = vrot.lane.b32.xlu0 %v607, 96
        %v650 = vpop.permute.xlu0 %649
        %651 = vrot.lane.b32.xlu0 %v608, 96
        %v652 = vpop.permute.xlu0 %651
        %653 = vrot.lane.b32.xlu0 %v609, 96
        %v654 = vpop.permute.xlu0 %653
        %655 = vrot.lane.b32.xlu0 %v610, 96
        %v656 = vpop.permute.xlu0 %655
        %657 = vrot.lane.b32.xlu0 %v611, 96
        %v658 = vpop.permute.xlu0 %657
        %659 = vrot.lane.b32.xlu0 %v612, 96
        %v660 = vpop.permute.xlu0 %659
        %v677 = vsel %vm478, %v630, 0.0
        %678 = vadd.xlane.f32.xlu0 %v677
        %v679 = vpop.xlane.xlu0 %678
        %v680 = vsel %vm478, %v632, 0.0
        %681 = vadd.xlane.f32.xlu0 %v680
        %v682 = vpop.xlane.xlu0 %681
        %v683 = vsel %vm478, %v634, 0.0
        %684 = vadd.xlane.f32.xlu0 %v683
        %v685 = vpop.xlane.xlu0 %684
        %v686 = vsel %vm478, %v636, 0.0
        %687 = vadd.xlane.f32.xlu0 %v686
        %v688 = vpop.xlane.xlu0 %687
        %v689 = vsel %vm478, %v638, 0.0
        %690 = vadd.xlane.f32.xlu0 %v689
        %v691 = vpop.xlane.xlu0 %690
        %v692 = vsel %vm478, %v640, 0.0
        %693 = vadd.xlane.f32.xlu0 %v692
        %v694 = vpop.xlane.xlu0 %693
        %v695 = vsel %vm478, %v642, 0.0
        %696 = vadd.xlane.f32.xlu0 %v695
        %v697 = vpop.xlane.xlu0 %696
        %v698 = vsel %vm478, %v644, 0.0
        %699 = vadd.xlane.f32.xlu0 %v698
        %v700 = vpop.xlane.xlu0 %699
        %v701 = vsel %vm478, %v646, 0.0
        %702 = vadd.xlane.f32.xlu0 %v701
        %v703 = vpop.xlane.xlu0 %702
        %v704 = vsel %vm478, %v648, 0.0
        %705 = vadd.xlane.f32.xlu0 %v704
        %v706 = vpop.xlane.xlu0 %705
        %v707 = vsel %vm478, %v650, 0.0
        %708 = vadd.xlane.f32.xlu0 %v707
        %v709 = vpop.xlane.xlu0 %708
        %v710 = vsel %vm478, %v652, 0.0
        %711 = vadd.xlane.f32.xlu0 %v710
        %v712 = vpop.xlane.xlu0 %711
        %v713 = vsel %vm478, %v654, 0.0
        %714 = vadd.xlane.f32.xlu0 %v713
        %v715 = vpop.xlane.xlu0 %714
        %v716 = vsel %vm478, %v656, 0.0
        %717 = vadd.xlane.f32.xlu0 %v716
        %v718 = vpop.xlane.xlu0 %717
        %v719 = vsel %vm478, %v658, 0.0
        %720 = vadd.xlane.f32.xlu0 %v719
        %v721 = vpop.xlane.xlu0 %720
        %v722 = vsel %vm478, %v660, 0.0
        %723 = vadd.xlane.f32.xlu0 %v722
        %v724 = vpop.xlane.xlu0 %723
        %v725 = vperm.slane %v460, 1
        %727 = vrot.lane.b32.xlu0 %v725, 32
        %v728 = vpop.permute.xlu0 %727
        %v730 = vmul.f32 %v420, %v728
        %v731 = vmul.f32 %v422, %v728
        %v732 = vmul.f32 %v425, %v728
        %v733 = vmul.f32 %v427, %v728
        %v734 = vmul.f32 %v430, %v728
        %v735 = vmul.f32 %v432, %v728
        %v736 = vmul.f32 %v435, %v728
        %v737 = vmul.f32 %v437, %v728
        %v738 = vmul.f32 %v440, %v728
        %v739 = vmul.f32 %v442, %v728
        %v740 = vmul.f32 %v445, %v728
        %v741 = vmul.f32 %v447, %v728
        %v742 = vmul.f32 %v450, %v728
        %v743 = vmul.f32 %v452, %v728
        %v744 = vmul.f32 %v455, %v728
        %v745 = vmul.f32 %v457, %v728
        %762 = vrot.lane.b32.xlu0 %v730, 96
        %v763 = vpop.permute.xlu0 %762
        %764 = vrot.lane.b32.xlu0 %v731, 96
        %v765 = vpop.permute.xlu0 %764
        %766 = vrot.lane.b32.xlu0 %v732, 96
        %v767 = vpop.permute.xlu0 %766
        %768 = vrot.lane.b32.xlu0 %v733, 96
        %v769 = vpop.permute.xlu0 %768
        %770 = vrot.lane.b32.xlu0 %v734, 96
        %v771 = vpop.permute.xlu0 %770
        %772 = vrot.lane.b32.xlu0 %v735, 96
        %v773 = vpop.permute.xlu0 %772
        %774 = vrot.lane.b32.xlu0 %v736, 96
        %v775 = vpop.permute.xlu0 %774
        %776 = vrot.lane.b32.xlu0 %v737, 96
        %v777 = vpop.permute.xlu0 %776
        %778 = vrot.lane.b32.xlu0 %v738, 96
        %v779 = vpop.permute.xlu0 %778
        %780 = vrot.lane.b32.xlu0 %v739, 96
        %v781 = vpop.permute.xlu0 %780
        %782 = vrot.lane.b32.xlu0 %v740, 96
        %v783 = vpop.permute.xlu0 %782
        %784 = vrot.lane.b32.xlu0 %v741, 96
        %v785 = vpop.permute.xlu0 %784
        %786 = vrot.lane.b32.xlu0 %v742, 96
        %v787 = vpop.permute.xlu0 %786
        %788 = vrot.lane.b32.xlu0 %v743, 96
        %v789 = vpop.permute.xlu0 %788
        %790 = vrot.lane.b32.xlu0 %v744, 96
        %v791 = vpop.permute.xlu0 %790
        %792 = vrot.lane.b32.xlu0 %v745, 96
        %v793 = vpop.permute.xlu0 %792
        %v810 = vsel %vm478, %v763, 0.0
        %811 = vadd.xlane.f32.xlu0 %v810
        %v812 = vpop.xlane.xlu0 %811
        %v813 = vsel %vm478, %v765, 0.0
        %814 = vadd.xlane.f32.xlu0 %v813
        %v815 = vpop.xlane.xlu0 %814
        %v816 = vsel %vm478, %v767, 0.0
        %817 = vadd.xlane.f32.xlu0 %v816
        %v818 = vpop.xlane.xlu0 %817
        %v819 = vsel %vm478, %v769, 0.0
        %820 = vadd.xlane.f32.xlu0 %v819
        %v821 = vpop.xlane.xlu0 %820
        %v822 = vsel %vm478, %v771, 0.0
        %823 = vadd.xlane.f32.xlu0 %v822
        %v824 = vpop.xlane.xlu0 %823
        %v825 = vsel %vm478, %v773, 0.0
        %826 = vadd.xlane.f32.xlu0 %v825
        %v827 = vpop.xlane.xlu0 %826
        %v828 = vsel %vm478, %v775, 0.0
        %829 = vadd.xlane.f32.xlu0 %v828
        %v830 = vpop.xlane.xlu0 %829
        %v831 = vsel %vm478, %v777, 0.0
        %832 = vadd.xlane.f32.xlu0 %v831
        %v833 = vpop.xlane.xlu0 %832
        %v834 = vsel %vm478, %v779, 0.0
        %835 = vadd.xlane.f32.xlu0 %v834
        %v836 = vpop.xlane.xlu0 %835
        %v837 = vsel %vm478, %v781, 0.0
        %838 = vadd.xlane.f32.xlu0 %v837
        %v839 = vpop.xlane.xlu0 %838
        %v840 = vsel %vm478, %v783, 0.0
        %841 = vadd.xlane.f32.xlu0 %v840
        %v842 = vpop.xlane.xlu0 %841
        %v843 = vsel %vm478, %v785, 0.0
        %844 = vadd.xlane.f32.xlu0 %v843
        %v845 = vpop.xlane.xlu0 %844
        %v846 = vsel %vm478, %v787, 0.0
        %847 = vadd.xlane.f32.xlu0 %v846
        %v848 = vpop.xlane.xlu0 %847
        %v849 = vsel %vm478, %v789, 0.0
        %850 = vadd.xlane.f32.xlu0 %v849
        %v851 = vpop.xlane.xlu0 %850
        %v852 = vsel %vm478, %v791, 0.0
        %853 = vadd.xlane.f32.xlu0 %v852
        %v854 = vpop.xlane.xlu0 %853
        %v855 = vsel %vm478, %v793, 0.0
        %856 = vadd.xlane.f32.xlu0 %v855
        %v857 = vpop.xlane.xlu0 %856
        %v858 = vperm.slane %v459, 2
        %860 = vrot.lane.b32.xlu0 %v858, 64
        %v861 = vpop.permute.xlu0 %860
        %v863 = vmul.f32 %v420, %v861
        %v864 = vmul.f32 %v422, %v861
        %v865 = vmul.f32 %v425, %v861
        %v866 = vmul.f32 %v427, %v861
        %v867 = vmul.f32 %v430, %v861
        %v868 = vmul.f32 %v432, %v861
        %v869 = vmul.f32 %v435, %v861
        %v870 = vmul.f32 %v437, %v861
        %v871 = vmul.f32 %v440, %v861
        %v872 = vmul.f32 %v442, %v861
        %v873 = vmul.f32 %v445, %v861
        %v874 = vmul.f32 %v447, %v861
        %v875 = vmul.f32 %v450, %v861
        %v876 = vmul.f32 %v452, %v861
        %v877 = vmul.f32 %v455, %v861
        %v878 = vmul.f32 %v457, %v861
        %895 = vrot.lane.b32.xlu0 %v863, 64
        %v896 = vpop.permute.xlu0 %895
        %897 = vrot.lane.b32.xlu0 %v864, 64
        %v898 = vpop.permute.xlu0 %897
        %899 = vrot.lane.b32.xlu0 %v865, 64
        %v900 = vpop.permute.xlu0 %899
        %901 = vrot.lane.b32.xlu0 %v866, 64
        %v902 = vpop.permute.xlu0 %901
        %903 = vrot.lane.b32.xlu0 %v867, 64
        %v904 = vpop.permute.xlu0 %903
        %905 = vrot.lane.b32.xlu0 %v868, 64
        %v906 = vpop.permute.xlu0 %905
        %907 = vrot.lane.b32.xlu0 %v869, 64
        %v908 = vpop.permute.xlu0 %907
        %909 = vrot.lane.b32.xlu0 %v870, 64
        %v910 = vpop.permute.xlu0 %909
        %911 = vrot.lane.b32.xlu0 %v871, 64
        %v912 = vpop.permute.xlu0 %911
        %913 = vrot.lane.b32.xlu0 %v872, 64
        %v914 = vpop.permute.xlu0 %913
        %915 = vrot.lane.b32.xlu0 %v873, 64
        %v916 = vpop.permute.xlu0 %915
        %917 = vrot.lane.b32.xlu0 %v874, 64
        %v918 = vpop.permute.xlu0 %917
        %919 = vrot.lane.b32.xlu0 %v875, 64
        %v920 = vpop.permute.xlu0 %919
        %921 = vrot.lane.b32.xlu0 %v876, 64
        %v922 = vpop.permute.xlu0 %921
        %923 = vrot.lane.b32.xlu0 %v877, 64
        %v924 = vpop.permute.xlu0 %923
        %925 = vrot.lane.b32.xlu0 %v878, 64
        %v926 = vpop.permute.xlu0 %925
        %v943 = vsel %vm478, %v896, 0.0
        %944 = vadd.xlane.f32.xlu0 %v943
        %v945 = vpop.xlane.xlu0 %944
        %v946 = vsel %vm478, %v898, 0.0
        %947 = vadd.xlane.f32.xlu0 %v946
        %v948 = vpop.xlane.xlu0 %947
        %v949 = vsel %vm478, %v900, 0.0
        %950 = vadd.xlane.f32.xlu0 %v949
        %v951 = vpop.xlane.xlu0 %950
        %v952 = vsel %vm478, %v902, 0.0
        %953 = vadd.xlane.f32.xlu0 %v952
        %v954 = vpop.xlane.xlu0 %953
        %v955 = vsel %vm478, %v904, 0.0
        %956 = vadd.xlane.f32.xlu0 %v955
        %v957 = vpop.xlane.xlu0 %956
        %v958 = vsel %vm478, %v906, 0.0
        %959 = vadd.xlane.f32.xlu0 %v958
        %v960 = vpop.xlane.xlu0 %959
        %v961 = vsel %vm478, %v908, 0.0
        %962 = vadd.xlane.f32.xlu0 %v961
        %v963 = vpop.xlane.xlu0 %962
        %v964 = vsel %vm478, %v910, 0.0
        %965 = vadd.xlane.f32.xlu0 %v964
        %v966 = vpop.xlane.xlu0 %965
        %v967 = vsel %vm478, %v912, 0.0
        %968 = vadd.xlane.f32.xlu0 %v967
        %v969 = vpop.xlane.xlu0 %968
        %v970 = vsel %vm478, %v914, 0.0
        %971 = vadd.xlane.f32.xlu0 %v970
        %v972 = vpop.xlane.xlu0 %971
        %v973 = vsel %vm478, %v916, 0.0
        %974 = vadd.xlane.f32.xlu0 %v973
        %v975 = vpop.xlane.xlu0 %974
        %v976 = vsel %vm478, %v918, 0.0
        %977 = vadd.xlane.f32.xlu0 %v976
        %v978 = vpop.xlane.xlu0 %977
        %v979 = vsel %vm478, %v920, 0.0
        %980 = vadd.xlane.f32.xlu0 %v979
        %v981 = vpop.xlane.xlu0 %980
        %v982 = vsel %vm478, %v922, 0.0
        %983 = vadd.xlane.f32.xlu0 %v982
        %v984 = vpop.xlane.xlu0 %983
        %v985 = vsel %vm478, %v924, 0.0
        %986 = vadd.xlane.f32.xlu0 %v985
        %v987 = vpop.xlane.xlu0 %986
        %v988 = vsel %vm478, %v926, 0.0
        %989 = vadd.xlane.f32.xlu0 %v988
        %v990 = vpop.xlane.xlu0 %989
        %v991 = vperm.slane %v460, 2
        %993 = vrot.lane.b32.xlu0 %v991, 64
        %v994 = vpop.permute.xlu0 %993
        %v996 = vmul.f32 %v420, %v994
        %v997 = vmul.f32 %v422, %v994
        %v998 = vmul.f32 %v425, %v994
        %v999 = vmul.f32 %v427, %v994
        %v1000 = vmul.f32 %v430, %v994
        %v1001 = vmul.f32 %v432, %v994
        %v1002 = vmul.f32 %v435, %v994
        %v1003 = vmul.f32 %v437, %v994
        %v1004 = vmul.f32 %v440, %v994
        %v1005 = vmul.f32 %v442, %v994
        %v1006 = vmul.f32 %v445, %v994
        %v1007 = vmul.f32 %v447, %v994
        %v1008 = vmul.f32 %v450, %v994
        %v1009 = vmul.f32 %v452, %v994
        %v1010 = vmul.f32 %v455, %v994
        %v1011 = vmul.f32 %v457, %v994
        %1028 = vrot.lane.b32.xlu0 %v996, 64
        %v1029 = vpop.permute.xlu0 %1028
        %1030 = vrot.lane.b32.xlu0 %v997, 64
        %v1031 = vpop.permute.xlu0 %1030
        %1032 = vrot.lane.b32.xlu0 %v998, 64
        %v1033 = vpop.permute.xlu0 %1032
        %1034 = vrot.lane.b32.xlu0 %v999, 64
        %v1035 = vpop.permute.xlu0 %1034
        %1036 = vrot.lane.b32.xlu0 %v1000, 64
        %v1037 = vpop.permute.xlu0 %1036
        %1038 = vrot.lane.b32.xlu0 %v1001, 64
        %v1039 = vpop.permute.xlu0 %1038
        %1040 = vrot.lane.b32.xlu0 %v1002, 64
        %v1041 = vpop.permute.xlu0 %1040
        %1042 = vrot.lane.b32.xlu0 %v1003, 64
        %v1043 = vpop.permute.xlu0 %1042
        %1044 = vrot.lane.b32.xlu0 %v1004, 64
        %v1045 = vpop.permute.xlu0 %1044
        %1046 = vrot.lane.b32.xlu0 %v1005, 64
        %v1047 = vpop.permute.xlu0 %1046
        %1048 = vrot.lane.b32.xlu0 %v1006, 64
        %v1049 = vpop.permute.xlu0 %1048
        %1050 = vrot.lane.b32.xlu0 %v1007, 64
        %v1051 = vpop.permute.xlu0 %1050
        %1052 = vrot.lane.b32.xlu0 %v1008, 64
        %v1053 = vpop.permute.xlu0 %1052
        %1054 = vrot.lane.b32.xlu0 %v1009, 64
        %v1055 = vpop.permute.xlu0 %1054
        %1056 = vrot.lane.b32.xlu0 %v1010, 64
        %v1057 = vpop.permute.xlu0 %1056
        %1058 = vrot.lane.b32.xlu0 %v1011, 64
        %v1059 = vpop.permute.xlu0 %1058
        %v1076 = vsel %vm478, %v1029, 0.0
        %1077 = vadd.xlane.f32.xlu0 %v1076
        %v1078 = vpop.xlane.xlu0 %1077
        %v1079 = vsel %vm478, %v1031, 0.0
        %1080 = vadd.xlane.f32.xlu0 %v1079
        %v1081 = vpop.xlane.xlu0 %1080
        %v1082 = vsel %vm478, %v1033, 0.0
        %1083 = vadd.xlane.f32.xlu0 %v1082
        %v1084 = vpop.xlane.xlu0 %1083
        %v1085 = vsel %vm478, %v1035, 0.0
        %1086 = vadd.xlane.f32.xlu0 %v1085
        %v1087 = vpop.xlane.xlu0 %1086
        %v1088 = vsel %vm478, %v1037, 0.0
        %1089 = vadd.xlane.f32.xlu0 %v1088
        %v1090 = vpop.xlane.xlu0 %1089
        %v1091 = vsel %vm478, %v1039, 0.0
        %1092 = vadd.xlane.f32.xlu0 %v1091
        %v1093 = vpop.xlane.xlu0 %1092
        %v1094 = vsel %vm478, %v1041, 0.0
        %1095 = vadd.xlane.f32.xlu0 %v1094
        %v1096 = vpop.xlane.xlu0 %1095
        %v1097 = vsel %vm478, %v1043, 0.0
        %1098 = vadd.xlane.f32.xlu0 %v1097
        %v1099 = vpop.xlane.xlu0 %1098
        %v1100 = vsel %vm478, %v1045, 0.0
        %1101 = vadd.xlane.f32.xlu0 %v1100
        %v1102 = vpop.xlane.xlu0 %1101
        %v1103 = vsel %vm478, %v1047, 0.0
        %1104 = vadd.xlane.f32.xlu0 %v1103
        %v1105 = vpop.xlane.xlu0 %1104
        %v1106 = vsel %vm478, %v1049, 0.0
        %1107 = vadd.xlane.f32.xlu0 %v1106
        %v1108 = vpop.xlane.xlu0 %1107
        %v1109 = vsel %vm478, %v1051, 0.0
        %1110 = vadd.xlane.f32.xlu0 %v1109
        %v1111 = vpop.xlane.xlu0 %1110
        %v1112 = vsel %vm478, %v1053, 0.0
        %1113 = vadd.xlane.f32.xlu0 %v1112
        %v1114 = vpop.xlane.xlu0 %1113
        %v1115 = vsel %vm478, %v1055, 0.0
        %1116 = vadd.xlane.f32.xlu0 %v1115
        %v1117 = vpop.xlane.xlu0 %1116
        %v1118 = vsel %vm478, %v1057, 0.0
        %1119 = vadd.xlane.f32.xlu0 %v1118
        %v1120 = vpop.xlane.xlu0 %1119
        %v1121 = vsel %vm478, %v1059, 0.0
        %1122 = vadd.xlane.f32.xlu0 %v1121
        %v1123 = vpop.xlane.xlu0 %1122
        %v1124 = vperm.slane %v459, 3
        %1126 = vrot.lane.b32.xlu0 %v1124, 96
        %v1127 = vpop.permute.xlu0 %1126
        %v1129 = vmul.f32 %v420, %v1127
        %v1130 = vmul.f32 %v422, %v1127
        %v1131 = vmul.f32 %v425, %v1127
        %v1132 = vmul.f32 %v427, %v1127
        %v1133 = vmul.f32 %v430, %v1127
        %v1134 = vmul.f32 %v432, %v1127
        %v1135 = vmul.f32 %v435, %v1127
        %v1136 = vmul.f32 %v437, %v1127
        %v1137 = vmul.f32 %v440, %v1127
        %v1138 = vmul.f32 %v442, %v1127
        %v1139 = vmul.f32 %v445, %v1127
        %v1140 = vmul.f32 %v447, %v1127
        %v1141 = vmul.f32 %v450, %v1127
        %v1142 = vmul.f32 %v452, %v1127
        %v1143 = vmul.f32 %v455, %v1127
        %v1144 = vmul.f32 %v457, %v1127
        %1161 = vrot.lane.b32.xlu0 %v1129, 32
        %v1162 = vpop.permute.xlu0 %1161
        %1163 = vrot.lane.b32.xlu0 %v1130, 32
        %v1164 = vpop.permute.xlu0 %1163
        %1165 = vrot.lane.b32.xlu0 %v1131, 32
        %v1166 = vpop.permute.xlu0 %1165
        %1167 = vrot.lane.b32.xlu0 %v1132, 32
        %v1168 = vpop.permute.xlu0 %1167
        %1169 = vrot.lane.b32.xlu0 %v1133, 32
        %v1170 = vpop.permute.xlu0 %1169
        %1171 = vrot.lane.b32.xlu0 %v1134, 32
        %v1172 = vpop.permute.xlu0 %1171
        %1173 = vrot.lane.b32.xlu0 %v1135, 32
        %v1174 = vpop.permute.xlu0 %1173
        %1175 = vrot.lane.b32.xlu0 %v1136, 32
        %v1176 = vpop.permute.xlu0 %1175
        %1177 = vrot.lane.b32.xlu0 %v1137, 32
        %v1178 = vpop.permute.xlu0 %1177
        %1179 = vrot.lane.b32.xlu0 %v1138, 32
        %v1180 = vpop.permute.xlu0 %1179
        %1181 = vrot.lane.b32.xlu0 %v1139, 32
        %v1182 = vpop.permute.xlu0 %1181
        %1183 = vrot.lane.b32.xlu0 %v1140, 32
        %v1184 = vpop.permute.xlu0 %1183
        %1185 = vrot.lane.b32.xlu0 %v1141, 32
        %v1186 = vpop.permute.xlu0 %1185
        %1187 = vrot.lane.b32.xlu0 %v1142, 32
        %v1188 = vpop.permute.xlu0 %1187
        %1189 = vrot.lane.b32.xlu0 %v1143, 32
        %v1190 = vpop.permute.xlu0 %1189
        %1191 = vrot.lane.b32.xlu0 %v1144, 32
        %v1192 = vpop.permute.xlu0 %1191
        %v1209 = vsel %vm478, %v1162, 0.0
        %1210 = vadd.xlane.f32.xlu0 %v1209
        %v1211 = vpop.xlane.xlu0 %1210
        %v1212 = vsel %vm478, %v1164, 0.0
        %1213 = vadd.xlane.f32.xlu0 %v1212
        %v1214 = vpop.xlane.xlu0 %1213
        %v1215 = vsel %vm478, %v1166, 0.0
        %1216 = vadd.xlane.f32.xlu0 %v1215
        %v1217 = vpop.xlane.xlu0 %1216
        %v1218 = vsel %vm478, %v1168, 0.0
        %1219 = vadd.xlane.f32.xlu0 %v1218
        %v1220 = vpop.xlane.xlu0 %1219
        %v1221 = vsel %vm478, %v1170, 0.0
        %1222 = vadd.xlane.f32.xlu0 %v1221
        %v1223 = vpop.xlane.xlu0 %1222
        %v1224 = vsel %vm478, %v1172, 0.0
        %1225 = vadd.xlane.f32.xlu0 %v1224
        %v1226 = vpop.xlane.xlu0 %1225
        %v1227 = vsel %vm478, %v1174, 0.0
        %1228 = vadd.xlane.f32.xlu0 %v1227
        %v1229 = vpop.xlane.xlu0 %1228
        %v1230 = vsel %vm478, %v1176, 0.0
        %1231 = vadd.xlane.f32.xlu0 %v1230
        %v1232 = vpop.xlane.xlu0 %1231
        %v1233 = vsel %vm478, %v1178, 0.0
        %1234 = vadd.xlane.f32.xlu0 %v1233
        %v1235 = vpop.xlane.xlu0 %1234
        %v1236 = vsel %vm478, %v1180, 0.0
        %1237 = vadd.xlane.f32.xlu0 %v1236
        %v1238 = vpop.xlane.xlu0 %1237
        %v1239 = vsel %vm478, %v1182, 0.0
        %1240 = vadd.xlane.f32.xlu0 %v1239
        %v1241 = vpop.xlane.xlu0 %1240
        %v1242 = vsel %vm478, %v1184, 0.0
        %1243 = vadd.xlane.f32.xlu0 %v1242
        %v1244 = vpop.xlane.xlu0 %1243
        %v1245 = vsel %vm478, %v1186, 0.0
        %1246 = vadd.xlane.f32.xlu0 %v1245
        %v1247 = vpop.xlane.xlu0 %1246
        %v1248 = vsel %vm478, %v1188, 0.0
        %1249 = vadd.xlane.f32.xlu0 %v1248
        %v1250 = vpop.xlane.xlu0 %1249
        %v1251 = vsel %vm478, %v1190, 0.0
        %1252 = vadd.xlane.f32.xlu0 %v1251
        %v1253 = vpop.xlane.xlu0 %1252
        %v1254 = vsel %vm478, %v1192, 0.0
        %1255 = vadd.xlane.f32.xlu0 %v1254
        %v1256 = vpop.xlane.xlu0 %1255
        %v1257 = vperm.slane %v460, 3
        %1259 = vrot.lane.b32.xlu0 %v1257, 96
        %v1260 = vpop.permute.xlu0 %1259
        %v1262 = vmul.f32 %v420, %v1260
        %v1263 = vmul.f32 %v422, %v1260
        %v1264 = vmul.f32 %v425, %v1260
        %v1265 = vmul.f32 %v427, %v1260
        %v1266 = vmul.f32 %v430, %v1260
        %v1267 = vmul.f32 %v432, %v1260
        %v1268 = vmul.f32 %v435, %v1260
        %v1269 = vmul.f32 %v437, %v1260
        %v1270 = vmul.f32 %v440, %v1260
        %v1271 = vmul.f32 %v442, %v1260
        %v1272 = vmul.f32 %v445, %v1260
        %v1273 = vmul.f32 %v447, %v1260
        %v1274 = vmul.f32 %v450, %v1260
        %v1275 = vmul.f32 %v452, %v1260
        %v1276 = vmul.f32 %v455, %v1260
        %v1277 = vmul.f32 %v457, %v1260
        %1294 = vrot.lane.b32.xlu0 %v1262, 32
        %v1295 = vpop.permute.xlu0 %1294
        %1296 = vrot.lane.b32.xlu0 %v1263, 32
        %v1297 = vpop.permute.xlu0 %1296
        %1298 = vrot.lane.b32.xlu0 %v1264, 32
        %v1299 = vpop.permute.xlu0 %1298
        %1300 = vrot.lane.b32.xlu0 %v1265, 32
        %v1301 = vpop.permute.xlu0 %1300
        %1302 = vrot.lane.b32.xlu0 %v1266, 32
        %v1303 = vpop.permute.xlu0 %1302
        %1304 = vrot.lane.b32.xlu0 %v1267, 32
        %v1305 = vpop.permute.xlu0 %1304
        %1306 = vrot.lane.b32.xlu0 %v1268, 32
        %v1307 = vpop.permute.xlu0 %1306
        %1308 = vrot.lane.b32.xlu0 %v1269, 32
        %v1309 = vpop.permute.xlu0 %1308
        %1310 = vrot.lane.b32.xlu0 %v1270, 32
        %v1311 = vpop.permute.xlu0 %1310
        %1312 = vrot.lane.b32.xlu0 %v1271, 32
        %v1313 = vpop.permute.xlu0 %1312
        %1314 = vrot.lane.b32.xlu0 %v1272, 32
        %v1315 = vpop.permute.xlu0 %1314
        %1316 = vrot.lane.b32.xlu0 %v1273, 32
        %v1317 = vpop.permute.xlu0 %1316
        %1318 = vrot.lane.b32.xlu0 %v1274, 32
        %v1319 = vpop.permute.xlu0 %1318
        %1320 = vrot.lane.b32.xlu0 %v1275, 32
        %v1321 = vpop.permute.xlu0 %1320
        %1322 = vrot.lane.b32.xlu0 %v1276, 32
        %v1323 = vpop.permute.xlu0 %1322
        %1324 = vrot.lane.b32.xlu0 %v1277, 32
        %v1325 = vpop.permute.xlu0 %1324
        %v1342 = vsel %vm478, %v1295, 0.0
        %1343 = vadd.xlane.f32.xlu0 %v1342
        %v1344 = vpop.xlane.xlu0 %1343
        %v1345 = vsel %vm478, %v1297, 0.0
        %1346 = vadd.xlane.f32.xlu0 %v1345
        %v1347 = vpop.xlane.xlu0 %1346
        %v1348 = vsel %vm478, %v1299, 0.0
        %1349 = vadd.xlane.f32.xlu0 %v1348
        %v1350 = vpop.xlane.xlu0 %1349
        %v1351 = vsel %vm478, %v1301, 0.0
        %1352 = vadd.xlane.f32.xlu0 %v1351
        %v1353 = vpop.xlane.xlu0 %1352
        %v1354 = vsel %vm478, %v1303, 0.0
        %1355 = vadd.xlane.f32.xlu0 %v1354
        %v1356 = vpop.xlane.xlu0 %1355
        %v1357 = vsel %vm478, %v1305, 0.0
        %1358 = vadd.xlane.f32.xlu0 %v1357
        %v1359 = vpop.xlane.xlu0 %1358
        %v1360 = vsel %vm478, %v1307, 0.0
        %1361 = vadd.xlane.f32.xlu0 %v1360
        %v1362 = vpop.xlane.xlu0 %1361
        %v1363 = vsel %vm478, %v1309, 0.0
        %1364 = vadd.xlane.f32.xlu0 %v1363
        %v1365 = vpop.xlane.xlu0 %1364
        %v1366 = vsel %vm478, %v1311, 0.0
        %1367 = vadd.xlane.f32.xlu0 %v1366
        %v1368 = vpop.xlane.xlu0 %1367
        %v1369 = vsel %vm478, %v1313, 0.0
        %1370 = vadd.xlane.f32.xlu0 %v1369
        %v1371 = vpop.xlane.xlu0 %1370
        %v1372 = vsel %vm478, %v1315, 0.0
        %1373 = vadd.xlane.f32.xlu0 %v1372
        %v1374 = vpop.xlane.xlu0 %1373
        %v1375 = vsel %vm478, %v1317, 0.0
        %1376 = vadd.xlane.f32.xlu0 %v1375
        %v1377 = vpop.xlane.xlu0 %1376
        %v1378 = vsel %vm478, %v1319, 0.0
        %1379 = vadd.xlane.f32.xlu0 %v1378
        %v1380 = vpop.xlane.xlu0 %1379
        %v1381 = vsel %vm478, %v1321, 0.0
        %1382 = vadd.xlane.f32.xlu0 %v1381
        %v1383 = vpop.xlane.xlu0 %1382
        %v1384 = vsel %vm478, %v1323, 0.0
        %1385 = vadd.xlane.f32.xlu0 %v1384
        %v1386 = vpop.xlane.xlu0 %1385
        %v1387 = vsel %vm478, %v1325, 0.0
        %1388 = vadd.xlane.f32.xlu0 %v1387
        %v1389 = vpop.xlane.xlu0 %1388
        %vm1390 = vcmask 7168
        %v1391 = vsel %vm1390, %v481, %v679
        %v1392 = vsel %vm1390, %v484, %v682
        %v1393 = vsel %vm1390, %v487, %v685
        %v1394 = vsel %vm1390, %v490, %v688
        %v1395 = vsel %vm1390, %v493, %v691
        %v1396 = vsel %vm1390, %v496, %v694
        %v1397 = vsel %vm1390, %v499, %v697
        %v1398 = vsel %vm1390, %v502, %v700
        %v1399 = vsel %vm1390, %v505, %v703
        %v1400 = vsel %vm1390, %v508, %v706
        %v1401 = vsel %vm1390, %v511, %v709
        %v1402 = vsel %vm1390, %v514, %v712
        %v1403 = vsel %vm1390, %v517, %v715
        %v1404 = vsel %vm1390, %v520, %v718
        %v1405 = vsel %vm1390, %v523, %v721
        %v1406 = vsel %vm1390, %v526, %v724
        %vm1407 = vcmask 15360
        %v1408 = vsel %vm1407, %v1391, %v945
        %v1409 = vsel %vm1407, %v1392, %v948
        %v1410 = vsel %vm1407, %v1393, %v951
        %v1411 = vsel %vm1407, %v1394, %v954
        %v1412 = vsel %vm1407, %v1395, %v957
        %v1413 = vsel %vm1407, %v1396, %v960
        %v1414 = vsel %vm1407, %v1397, %v963
        %v1415 = vsel %vm1407, %v1398, %v966
        %v1416 = vsel %vm1407, %v1399, %v969
        %v1417 = vsel %vm1407, %v1400, %v972
        %v1418 = vsel %vm1407, %v1401, %v975
        %v1419 = vsel %vm1407, %v1402, %v978
        %v1420 = vsel %vm1407, %v1403, %v981
        %v1421 = vsel %vm1407, %v1404, %v984
        %v1422 = vsel %vm1407, %v1405, %v987
        %v1423 = vsel %vm1407, %v1406, %v990
        %vm1424 = vcmask 23552
        %v1425 = vsel %vm1424, %v1408, %v1211
        %v1426 = vsel %vm1424, %v1409, %v1214
        %v1427 = vsel %vm1424, %v1410, %v1217
        %v1428 = vsel %vm1424, %v1411, %v1220
        %v1429 = vsel %vm1424, %v1412, %v1223
        %v1430 = vsel %vm1424, %v1413, %v1226
        %v1431 = vsel %vm1424, %v1414, %v1229
        %v1432 = vsel %vm1424, %v1415, %v1232
        %v1433 = vsel %vm1424, %v1416, %v1235
        %v1434 = vsel %vm1424, %v1417, %v1238
        %v1435 = vsel %vm1424, %v1418, %v1241
        %v1436 = vsel %vm1424, %v1419, %v1244
        %v1437 = vsel %vm1424, %v1420, %v1247
        %v1438 = vsel %vm1424, %v1421, %v1250
        %v1439 = vsel %vm1424, %v1422, %v1253
        %v1440 = vsel %vm1424, %v1423, %v1256
        %vm1441 = vcmask 31744
        %1442 = vst.msk [vmem:[%s320] sm:$0xff] %vm1441, %v1425
        %1443 = vst.msk [vmem:[%s320 + $0x8] sm:$0xff] %vm1441, %v1426
        %1444 = vst.msk [vmem:[%s320 + $0x10] sm:$0xff] %vm1441, %v1427
        %1445 = vst.msk [vmem:[%s320 + $0x18] sm:$0xff] %vm1441, %v1428
        %1446 = vst.msk [vmem:[%s320 + $0x20] sm:$0xff] %vm1441, %v1429
        %1447 = vst.msk [vmem:[%s320 + $0x28] sm:$0xff] %vm1441, %v1430
        %1448 = vst.msk [vmem:[%s320 + $0x30] sm:$0xff] %vm1441, %v1431
        %1449 = vst.msk [vmem:[%s320 + $0x38] sm:$0xff] %vm1441, %v1432
        %1450 = vst.msk [vmem:[%s320 + $0x40] sm:$0xff] %vm1441, %v1433
        %1451 = vst.msk [vmem:[%s320 + $0x48] sm:$0xff] %vm1441, %v1434
        %1452 = vst.msk [vmem:[%s320 + $0x50] sm:$0xff] %vm1441, %v1435
        %1453 = vst.msk [vmem:[%s320 + $0x58] sm:$0xff] %vm1441, %v1436
        %1454 = vst.msk [vmem:[%s320 + $0x60] sm:$0xff] %vm1441, %v1437
        %1455 = vst.msk [vmem:[%s320 + $0x68] sm:$0xff] %vm1441, %v1438
        %1456 = vst.msk [vmem:[%s320 + $0x70] sm:$0xff] %vm1441, %v1439
        %1457 = vst.msk [vmem:[%s320 + $0x78] sm:$0xff] %vm1441, %v1440
        %v1458 = vsel %vm1390, %v546, %v812
        %v1459 = vsel %vm1390, %v549, %v815
        %v1460 = vsel %vm1390, %v552, %v818
        %v1461 = vsel %vm1390, %v555, %v821
        %v1462 = vsel %vm1390, %v558, %v824
        %v1463 = vsel %vm1390, %v561, %v827
        %v1464 = vsel %vm1390, %v564, %v830
        %v1465 = vsel %vm1390, %v567, %v833
        %v1466 = vsel %vm1390, %v570, %v836
        %v1467 = vsel %vm1390, %v573, %v839
        %v1468 = vsel %vm1390, %v576, %v842
        %v1469 = vsel %vm1390, %v579, %v845
        %v1470 = vsel %vm1390, %v582, %v848
        %v1471 = vsel %vm1390, %v585, %v851
        %v1472 = vsel %vm1390, %v588, %v854
        %v1473 = vsel %vm1390, %v591, %v857
        %v1474 = vsel %vm1407, %v1458, %v1078
        %v1475 = vsel %vm1407, %v1459, %v1081
        %v1476 = vsel %vm1407, %v1460, %v1084
        %v1477 = vsel %vm1407, %v1461, %v1087
        %v1478 = vsel %vm1407, %v1462, %v1090
        %v1479 = vsel %vm1407, %v1463, %v1093
        %v1480 = vsel %vm1407, %v1464, %v1096
        %v1481 = vsel %vm1407, %v1465, %v1099
        %v1482 = vsel %vm1407, %v1466, %v1102
        %v1483 = vsel %vm1407, %v1467, %v1105
        %v1484 = vsel %vm1407, %v1468, %v1108
        %v1485 = vsel %vm1407, %v1469, %v1111
        %v1486 = vsel %vm1407, %v1470, %v1114
        %v1487 = vsel %vm1407, %v1471, %v1117
        %v1488 = vsel %vm1407, %v1472, %v1120
        %v1489 = vsel %vm1407, %v1473, %v1123
        %v1490 = vsel %vm1424, %v1474, %v1344
        %v1491 = vsel %vm1424, %v1475, %v1347
        %v1492 = vsel %vm1424, %v1476, %v1350
        %v1493 = vsel %vm1424, %v1477, %v1353
        %v1494 = vsel %vm1424, %v1478, %v1356
        %v1495 = vsel %vm1424, %v1479, %v1359
        %v1496 = vsel %vm1424, %v1480, %v1362
        %v1497 = vsel %vm1424, %v1481, %v1365
        %v1498 = vsel %vm1424, %v1482, %v1368
        %v1499 = vsel %vm1424, %v1483, %v1371
        %v1500 = vsel %vm1424, %v1484, %v1374
        %v1501 = vsel %vm1424, %v1485, %v1377
        %v1502 = vsel %vm1424, %v1486, %v1380
        %v1503 = vsel %vm1424, %v1487, %v1383
        %v1504 = vsel %vm1424, %v1488, %v1386
        %v1505 = vsel %vm1424, %v1489, %v1389
        %1506 = vst.msk [vmem:[%s326] sm:$0xff] %vm1441, %v1490
        %1507 = vst.msk [vmem:[%s326 + $0x8] sm:$0xff] %vm1441, %v1491
        %1508 = vst.msk [vmem:[%s326 + $0x10] sm:$0xff] %vm1441, %v1492
        %1509 = vst.msk [vmem:[%s326 + $0x18] sm:$0xff] %vm1441, %v1493
        %1510 = vst.msk [vmem:[%s326 + $0x20] sm:$0xff] %vm1441, %v1494
        %1511 = vst.msk [vmem:[%s326 + $0x28] sm:$0xff] %vm1441, %v1495
        %1512 = vst.msk [vmem:[%s326 + $0x30] sm:$0xff] %vm1441, %v1496
        %1513 = vst.msk [vmem:[%s326 + $0x38] sm:$0xff] %vm1441, %v1497
        %1514 = vst.msk [vmem:[%s326 + $0x40] sm:$0xff] %vm1441, %v1498
        %1515 = vst.msk [vmem:[%s326 + $0x48] sm:$0xff] %vm1441, %v1499
        %1516 = vst.msk [vmem:[%s326 + $0x50] sm:$0xff] %vm1441, %v1500
        %1517 = vst.msk [vmem:[%s326 + $0x58] sm:$0xff] %vm1441, %v1501
        %1518 = vst.msk [vmem:[%s326 + $0x60] sm:$0xff] %vm1441, %v1502
        %1519 = vst.msk [vmem:[%s326 + $0x68] sm:$0xff] %vm1441, %v1503
        %1520 = vst.msk [vmem:[%s326 + $0x70] sm:$0xff] %vm1441, %v1504
        %1521 = vst.msk [vmem:[%s326 + $0x78] sm:$0xff] %vm1441, %v1505
        %v1522 = vpack.c.bf16 %v420, %v420
        %v1523 = vpack.c.bf16 %v422, %v422
        %v1524 = vpack.c.bf16 %v425, %v425
        %v1525 = vpack.c.bf16 %v427, %v427
        %v1526 = vpack.c.bf16 %v430, %v430
        %v1527 = vpack.c.bf16 %v432, %v432
        %v1528 = vpack.c.bf16 %v435, %v435
        %v1529 = vpack.c.bf16 %v437, %v437
        %v1530 = vpack.c.bf16 %v440, %v440
        %v1531 = vpack.c.bf16 %v442, %v442
        %v1532 = vpack.c.bf16 %v445, %v445
        %v1533 = vpack.c.bf16 %v447, %v447
        %v1534 = vpack.c.bf16 %v450, %v450
        %v1535 = vpack.c.bf16 %v452, %v452
        %v1536 = vpack.c.bf16 %v455, %v455
        %v1537 = vpack.c.bf16 %v457, %v457
        %1538 = vst [vmem:[%s314] sm:$0xf] %v1522
        %1539 = vst [vmem:[%s314 + $0x4] sm:$0xf] %v1523
        %1540 = vst [vmem:[%s314 + $0x8] sm:$0xf] %v1524
        %1541 = vst [vmem:[%s314 + $0xc] sm:$0xf] %v1525
        %1542 = vst [vmem:[%s314 + $0x10] sm:$0xf] %v1526
        %1543 = vst [vmem:[%s314 + $0x14] sm:$0xf] %v1527
        %1544 = vst [vmem:[%s314 + $0x18] sm:$0xf] %v1528
        %1545 = vst [vmem:[%s314 + $0x1c] sm:$0xf] %v1529
        %1546 = vst [vmem:[%s314 + $0x20] sm:$0xf] %v1530
        %1547 = vst [vmem:[%s314 + $0x24] sm:$0xf] %v1531
        %1548 = vst [vmem:[%s314 + $0x28] sm:$0xf] %v1532
        %1549 = vst [vmem:[%s314 + $0x2c] sm:$0xf] %v1533
        %1550 = vst [vmem:[%s314 + $0x30] sm:$0xf] %v1534
        %1551 = vst [vmem:[%s314 + $0x34] sm:$0xf] %v1535
        %1552 = vst [vmem:[%s314 + $0x38] sm:$0xf] %v1536
        %1553 = vst [vmem:[%s314 + $0x3c] sm:$0xf] %v1537
        %s1554 = smul.u32 16, %s20
        %p1555 = scmp.lt.s32.totalorder %s1554, 31
        %s1556 = scalar_select %p1555, %s1554, 31
        %s1557 = smul.addr %s1556, 4
        %s1558 = scalar_lea.vmem %s4, %s1557
        %s1559 = smul.u32 16, %s20
        %p1560 = scmp.lt.s32.totalorder %s1559, 31
        %s1561 = scalar_select %p1560, %s1559, 31
        %s1562 = smul.addr %s1561, 8
        %s1563 = scalar_lea.vmem %s5, %s1562
        %s1564 = smul.u32 16, %s20
        %p1565 = scmp.lt.s32.totalorder %s1564, 31
        %s1566 = scalar_select %p1565, %s1564, 31
        %s1567 = smul.addr %s1566, 8
        %s1568 = scalar_lea.vmem %s6, %s1567
        // Predicated region
        $region49: #{gat_forward.6} parent=35 // pred_check
          %p1569 = pneg %p127
        $region50: #{gat_forward.6} parent=35 // pred_check_branch
          %1571 = sbr.rel (%p1569) target = $region52
        $region51: #{gat_forward.6} parent=35 // pred_region
          %s1572 = smul.u32 16, %s20
        $region52: #{gat_forward.6} parent=35 // pred_fallthru
          _
        // Predicated region
        $region53: #{gat_forward.6} parent=35 // pred_check
          %p1573 = pneg %p153
        $region54: #{gat_forward.6} parent=35 // pred_check_branch
          %1575 = sbr.rel (%p1573) target = $region56
        $region55: #{gat_forward.6} parent=35 // pred_region
          %s1576 = smul.u32 16, %s20
        $region56: #{gat_forward.6} parent=35 // pred_fallthru
          _
        // Predicated region
        $region57: #{gat_forward.6} parent=35 // pred_check
          %p1577 = pneg %p179
        $region58: #{gat_forward.6} parent=35 // pred_check_branch
          %1579 = sbr.rel (%p1577) target = $region60
        $region59: #{gat_forward.6} parent=35 // pred_region
          %s1580 = smul.u32 16, %s20
        $region60: #{gat_forward.6} parent=35 // pred_fallthru
          _
      $region36: #{gat_forward.6} parent=5 // pred_fallthru
        _
      %p1581 = scmp.le.s32.totalorder 2, %s15
      // Predicated region
      $region61: #{gat_forward.6} parent=5 // pred_check
        %p1582 = pneg %p1581
      $region62: #{gat_forward.6} parent=5 // pred_check_branch
        %1584 = sbr.rel (%p1582) target = $region64
      $region63: #{gat_forward.6} parent=5 // pred_region
        %s1585 = ssub.s32 %s15, 2
        // Predicated region
        $region65: #{gat_forward.6} parent=63 // pred_check
          %p1586 = pneg %p133
        $region66: #{gat_forward.6} parent=63 // pred_check_branch
          %1588 = sbr.rel (%p1586) target = $region68
        $region67: #{gat_forward.6} parent=63 // pred_region
          %s1589 = smul.u32 16, %s21
          %p1590 = scmp.lt.s32.totalorder %s1589, 31
          %s1591 = scalar_select %p1590, %s1589, 31
          %s1592 = smul.addr %s1591, 4
          %s1593 = scalar_lea.vmem %s4, %s1592
        $region68: #{gat_forward.6} parent=63 // pred_fallthru
          _
        // Predicated region
        $region69: #{gat_forward.6} parent=63 // pred_check
          %p1594 = pneg %p159
        $region70: #{gat_forward.6} parent=63 // pred_check_branch
          %1596 = sbr.rel (%p1594) target = $region72
        $region71: #{gat_forward.6} parent=63 // pred_region
          %s1597 = smul.u32 16, %s21
          %p1598 = scmp.lt.s32.totalorder %s1597, 31
          %s1599 = scalar_select %p1598, %s1597, 31
          %s1600 = smul.addr %s1599, 8
          %s1601 = scalar_lea.vmem %s5, %s1600
        $region72: #{gat_forward.6} parent=63 // pred_fallthru
          _
        // Predicated region
        $region73: #{gat_forward.6} parent=63 // pred_check
          %p1602 = pneg %p185
        $region74: #{gat_forward.6} parent=63 // pred_check_branch
          %1604 = sbr.rel (%p1602) target = $region76
        $region75: #{gat_forward.6} parent=63 // pred_region
          %s1605 = smul.u32 16, %s21
          %p1606 = scmp.lt.s32.totalorder %s1605, 31
          %s1607 = scalar_select %p1606, %s1605, 31
          %s1608 = smul.addr %s1607, 8
          %s1609 = scalar_lea.vmem %s6, %s1608
        $region76: #{gat_forward.6} parent=63 // pred_fallthru
          _
      $region64: #{gat_forward.6} parent=5 // pred_fallthru
        _
    $region6: #{gat_forward.6} parent=1 // loop_footer
      %s19 = sadd.s32 1, %s15
    $region7: #{gat_forward.6} parent=1 // loop_footer_branch
      %14 = sbr.rel target = $region3
    $region8: #{gat_forward.6} parent=1 // loop_exit
      _
    %1610 = vsyncpa [#allocation3], 1
    %s1611 = scalar_lea.sflag [#allocation3], 1
    %1612 = vsyncpa %s1611, 1
    %1613 = vsyncpa [#allocation5], 1

// kernel: gat_forward.7
$region0: #{gat_forward.7}
  #allocation0 [shape = 'u32[]', space=smem, size = 0x4, offset = 0x4, fixed_abs, tag = 'smem constant byte address 0x4 - core index']
  #allocation1 [shape = 'u32[72,128]{1,0:T(1,128)}', space=vmem, size = 0x9000, scoped, tag = 'internal scratch']
  %s0 = inlined_call_operand.vmem [shape: f32[256,256], index: 0, kind: input, shape index: {}]
  %s1 = inlined_call_operand.vmem [shape: f32[256,4], index: 1, kind: input, shape index: {}]
  %s2 = inlined_call_operand.vmem [shape: f32[4,256], index: 2, kind: input, shape index: {}]
  %s3 = inlined_call_operand.vmem [shape: bf16[256,128], index: 3, kind: input, shape index: {}]
  %s4 = inlined_call_operand.vmem [shape: f32[256,128], index: 4, kind: output, shape index: {}]
  %s5 = sld [smem:[#allocation0]]
  $region49: #{gat_forward.7} parent=0
    _
  %s7 = ssub.s32 1, %s5
  %s8 = scalar_select 0, %s7, %s5
  loop: start=0, step=1, limit=4
  $region2: #{gat_forward.7} parent=0 // loop_pre_header
    _
  $region3: #{gat_forward.7} parent=0 // loop_header
    %s10 = sphi 0, %s14
    %p11 = scmp.ge.s32.totalorder %s10, 4
    %s20 = sphi 0, %s22
    %s23 = sphi 0, %s20
    %s24 = sphi 0, %s23
    %s40 = sphi 0, %s24
    %s46 = sphi 0, %s48
    %s49 = sphi 0, %s46
    %s50 = sphi 0, %s49
    %s66 = sphi 0, %s50
    %s70 = sphi 0, %s70
    %s72 = sphi 0, %s70
    %s73 = sphi 0, %s72
    %s87 = sphi 0, %s73
    %s91 = sphi 0, %s91
    %s93 = sphi 0, %s91
    %s94 = sphi 0, %s93
    %s108 = sphi 0, %s94
    %s114 = sphi 0, %s116
    %s117 = sphi 0, %s114
    %s118 = sphi 0, %s117
    %s134 = sphi 0, %s118
  $region4: #{gat_forward.7} parent=0 // loop_header_branch
    %13 = sbr.rel (%p11) target = $region8
  $region5: #{gat_forward.7} parent=0 // loop_body
    %s15 = ssub.s32 %s10, 1
    %s16 = ssub.s32 %s10, 2
    %s17 = sadd.s32 %s10, 1
    %s18 = ssub.s32 %s10, %s17
    %p19 = scmp.eq.s32.totalorder %s18, 0
    %s21 = sadd.s32 %s20, 1
    %s22 = scalar_select %p19, %s20, %s21
    %p25 = pneg %p19
    %p26 = scmp.eq.s32.totalorder %s10, 1
    %p27 = por %p25, %p26
    %p28 = scmp.ne.s32.totalorder %s20, %s23
    %p29 = scmp.eq.s32.totalorder %s10, 0
    %p30 = por %p28, %p29
    %p31 = scmp.ne.s32.totalorder %s20, %s23
    %p32 = scmp.eq.s32.totalorder %s15, 1
    %p33 = por %p31, %p32
    %p34 = scmp.ne.s32.totalorder %s23, %s24
    %p35 = scmp.eq.s32.totalorder %s15, 0
    %p36 = por %p34, %p35
    %p37 = scmp.ne.s32.totalorder %s23, %s24
    %p38 = scmp.eq.s32.totalorder %s16, 1
    %p39 = por %p37, %p38
    %p41 = scmp.ne.s32.totalorder %s24, %s40
    %p42 = scmp.eq.s32.totalorder %s16, 0
    %p43 = por %p41, %p42
    %s44 = ssub.s32 %s10, %s17
    %p45 = scmp.eq.s32.totalorder %s44, 0
    %s47 = sadd.s32 %s46, 1
    %s48 = scalar_select %p45, %s46, %s47
    %p51 = pneg %p45
    %p52 = scmp.eq.s32.totalorder %s10, 1
    %p53 = por %p51, %p52
    %p54 = scmp.ne.s32.totalorder %s46, %s49
    %p55 = scmp.eq.s32.totalorder %s10, 0
    %p56 = por %p54, %p55
    %p57 = scmp.ne.s32.totalorder %s46, %s49
    %p58 = scmp.eq.s32.totalorder %s15, 1
    %p59 = por %p57, %p58
    %p60 = scmp.ne.s32.totalorder %s49, %s50
    %p61 = scmp.eq.s32.totalorder %s15, 0
    %p62 = por %p60, %p61
    %p63 = scmp.ne.s32.totalorder %s49, %s50
    %p64 = scmp.eq.s32.totalorder %s16, 1
    %p65 = por %p63, %p64
    %p67 = scmp.ne.s32.totalorder %s50, %s66
    %p68 = scmp.eq.s32.totalorder %s16, 0
    %p69 = por %p67, %p68
    %s71 = sadd.s32 %s70, 1
    %p74 = scmp.eq.s32.totalorder %s10, 1
    %p75 = scmp.ne.s32.totalorder %s70, %s72
    %p76 = scmp.eq.s32.totalorder %s10, 0
    %p77 = por %p75, %p76
    %p78 = scmp.ne.s32.totalorder %s70, %s72
    %p79 = scmp.eq.s32.totalorder %s15, 1
    %p80 = por %p78, %p79
    %p81 = scmp.ne.s32.totalorder %s72, %s73
    %p82 = scmp.eq.s32.totalorder %s15, 0
    %p83 = por %p81, %p82
    %p84 = scmp.ne.s32.totalorder %s72, %s73
    %p85 = scmp.eq.s32.totalorder %s16, 1
    %p86 = por %p84, %p85
    %p88 = scmp.ne.s32.totalorder %s73, %s87
    %p89 = scmp.eq.s32.totalorder %s16, 0
    %p90 = por %p88, %p89
    %s92 = sadd.s32 %s91, 1
    %p95 = scmp.eq.s32.totalorder %s10, 1
    %p96 = scmp.ne.s32.totalorder %s91, %s93
    %p97 = scmp.eq.s32.totalorder %s10, 0
    %p98 = por %p96, %p97
    %p99 = scmp.ne.s32.totalorder %s91, %s93
    %p100 = scmp.eq.s32.totalorder %s15, 1
    %p101 = por %p99, %p100
    %p102 = scmp.ne.s32.totalorder %s93, %s94
    %p103 = scmp.eq.s32.totalorder %s15, 0
    %p104 = por %p102, %p103
    %p105 = scmp.ne.s32.totalorder %s93, %s94
    %p106 = scmp.eq.s32.totalorder %s16, 1
    %p107 = por %p105, %p106
    %p109 = scmp.ne.s32.totalorder %s94, %s108
    %p110 = scmp.eq.s32.totalorder %s16, 0
    %p111 = por %p109, %p110
    %s112 = ssub.s32 %s10, %s17
    %p113 = scmp.eq.s32.totalorder %s112, 0
    %s115 = sadd.s32 %s114, 1
    %s116 = scalar_select %p113, %s114, %s115
    %p119 = pneg %p113
    %p120 = scmp.eq.s32.totalorder %s10, 1
    %p121 = por %p119, %p120
    %p122 = scmp.ne.s32.totalorder %s114, %s117
    %p123 = scmp.eq.s32.totalorder %s10, 0
    %p124 = por %p122, %p123
    %p125 = scmp.ne.s32.totalorder %s114, %s117
    %p126 = scmp.eq.s32.totalorder %s15, 1
    %p127 = por %p125, %p126
    %p128 = scmp.ne.s32.totalorder %s117, %s118
    %p129 = scmp.eq.s32.totalorder %s15, 0
    %p130 = por %p128, %p129
    %p131 = scmp.ne.s32.totalorder %s117, %s118
    %p132 = scmp.eq.s32.totalorder %s16, 1
    %p133 = por %p131, %p132
    %p135 = scmp.ne.s32.totalorder %s118, %s134
    %p136 = scmp.eq.s32.totalorder %s16, 0
    %p137 = por %p135, %p136
    %p138 = scmp.le.s32.totalorder 1, %s10
    %p139 = scmp.lt.s32.totalorder %s10, 3
    %p140 = pnand %p138, %p139
    %p141 = pneg %p140
    // Predicated region
    $region9: #{gat_forward.7} parent=5 // pred_check
      _
    $region10: #{gat_forward.7} parent=5 // pred_check_branch
      %143 = sbr.rel (%p140) target = $region12
    $region11: #{gat_forward.7} parent=5 // pred_region
      %s144 = ssub.s32 %s10, 1
      // Predicated region
      $region13: #{gat_forward.7} parent=11 // pred_check
        %p145 = pneg %p83
      $region14: #{gat_forward.7} parent=11 // pred_check_branch
        %147 = sbr.rel (%p145) target = $region16
      $region15: #{gat_forward.7} parent=11 // pred_region
        _
      $region16: #{gat_forward.7} parent=11 // pred_fallthru
        _
      // Predicated region
      $region17: #{gat_forward.7} parent=11 // pred_check
        %p148 = pneg %p104
      $region18: #{gat_forward.7} parent=11 // pred_check_branch
        %150 = sbr.rel (%p148) target = $region20
      $region19: #{gat_forward.7} parent=11 // pred_region
        _
      $region20: #{gat_forward.7} parent=11 // pred_fallthru
        _
    $region12: #{gat_forward.7} parent=5 // pred_fallthru
      _
    %p151 = scmp.lt.s32.totalorder %s10, 2
    // Predicated region
    $region21: #{gat_forward.7} parent=5 // pred_check
      %p152 = pneg %p151
    $region22: #{gat_forward.7} parent=5 // pred_check_branch
      %154 = sbr.rel (%p152) target = $region24
    $region23: #{gat_forward.7} parent=5 // pred_region
      // Predicated region
      $region25: #{gat_forward.7} parent=23 // pred_check
        %p155 = pneg %p30
      $region26: #{gat_forward.7} parent=23 // pred_check_branch
        %157 = sbr.rel (%p155) target = $region28
      $region27: #{gat_forward.7} parent=23 // pred_region
        %s158 = smul.u32 16, %s10
        %p159 = scmp.lt.s32.totalorder %s158, 31
        %s160 = scalar_select %p159, %s158, 31
        %s161 = smul.addr %s160, 2
        %s162 = smul.addr %s161, 8
        %s163 = scalar_lea.vmem %s0, %s162
        %s164 = smul.u32 16, %s10
      $region28: #{gat_forward.7} parent=23 // pred_fallthru
        _
      // Predicated region
      $region29: #{gat_forward.7} parent=23 // pred_check
        %p165 = pneg %p56
      $region30: #{gat_forward.7} parent=23 // pred_check_branch
        %167 = sbr.rel (%p165) target = $region32
      $region31: #{gat_forward.7} parent=23 // pred_region
        %s168 = smul.u32 16, %s10
        %p169 = scmp.lt.s32.totalorder %s168, 31
        %s170 = scalar_select %p169, %s168, 31
        %s171 = smul.addr %s170, 8
        %s172 = scalar_lea.vmem %s1, %s171
        %s173 = smul.u32 16, %s10
      $region32: #{gat_forward.7} parent=23 // pred_fallthru
        _
    $region24: #{gat_forward.7} parent=5 // pred_fallthru
      _
    %p174 = scmp.le.s32.totalorder 1, %s10
    %p175 = scmp.lt.s32.totalorder %s10, 3
    %p176 = pnand %p174, %p175
    %p177 = pneg %p176
    // Predicated region
    $region33: #{gat_forward.7} parent=5 // pred_check
      _
    $region34: #{gat_forward.7} parent=5 // pred_check_branch
      %179 = sbr.rel (%p176) target = $region36
    $region35: #{gat_forward.7} parent=5 // pred_region
      %s180 = ssub.s32 %s10, 1
      %s181 = smul.u32 16, %s15
      %p182 = scmp.lt.s32.totalorder %s181, 31
      %s183 = scalar_select %p182, %s181, 31
      %s184 = smul.addr %s183, 2
      %s185 = smul.addr %s184, 8
      %s186 = scalar_lea.vmem %s0, %s185
      %p187 = pneg %p36
      %p188 = pneg %p33
      %s189 = smul.u32 16, %s15
      %p190 = scmp.lt.s32.totalorder %s189, 31
      %s191 = scalar_select %p190, %s189, 31
      %s192 = smul.addr %s191, 8
      %s193 = scalar_lea.vmem %s1, %s192
      %p194 = pneg %p62
      %p195 = pneg %p59
      %p196 = pneg %p83
      %p197 = pneg %p80
      %p198 = pneg %p104
      %p199 = pneg %p101
      %p200 = pneg %p130
      %p201 = pneg %p127
      %s202 = smul.u32 16, %s15
      %p203 = scmp.lt.s32.totalorder %s202, 31
      %s204 = scalar_select %p203, %s202, 31
      %s205 = smul.addr %s204, 8
      %s206 = scalar_lea.vmem %s4, %s205
      %s207 = smul.u32 16, %s15
      %p208 = scmp.lt.s32.totalorder %s207, 31
      %s209 = scalar_select %p208, %s207, 31
      %s210 = smul.addr %s209, 2
      %s211 = smul.addr %s210, 8
      %s212 = scalar_lea.vmem %s0, %s211
      %s213 = smul.u32 16, %s15
      %s214 = smul.u32 16, %s15
      %p215 = scmp.lt.s32.totalorder %s214, 31
      %s216 = scalar_select %p215, %s214, 31
      %s217 = smul.addr %s216, 8
      %s218 = scalar_lea.vmem %s1, %s217
      %s219 = smul.u32 16, %s15
      %s220 = smul.u32 16, %s15
      %p221 = scmp.lt.s32.totalorder %s220, 31
      %s222 = scalar_select %p221, %s220, 31
      %s223 = smul.addr %s222, 8
      %s224 = scalar_lea.vmem %s4, %s223
      %s225 = smul.u32 16, %s15
      %v226 = vld [vmem:[%s212] sm:$0xff]
      %v227 = vld [vmem:[%s212 + $0x8] sm:$0xff]
      %v228 = vld [vmem:[%s212 + $0x10] sm:$0xff]
      %v229 = vld [vmem:[%s212 + $0x18] sm:$0xff]
      %v230 = vld [vmem:[%s212 + $0x20] sm:$0xff]
      %v231 = vld [vmem:[%s212 + $0x28] sm:$0xff]
      %v232 = vld [vmem:[%s212 + $0x30] sm:$0xff]
      %v233 = vld [vmem:[%s212 + $0x38] sm:$0xff]
      %v234 = vld [vmem:[%s212 + $0x40] sm:$0xff]
      %v235 = vld [vmem:[%s212 + $0x48] sm:$0xff]
      %v236 = vld [vmem:[%s212 + $0x50] sm:$0xff]
      %v237 = vld [vmem:[%s212 + $0x58] sm:$0xff]
      %v238 = vld [vmem:[%s212 + $0x60] sm:$0xff]
      %v239 = vld [vmem:[%s212 + $0x68] sm:$0xff]
      %v240 = vld [vmem:[%s212 + $0x70] sm:$0xff]
      %v241 = vld [vmem:[%s212 + $0x78] sm:$0xff]
      %v242 = vld [vmem:[%s212 + $0x80] sm:$0xff]
      %v243 = vld [vmem:[%s212 + $0x88] sm:$0xff]
      %v244 = vld [vmem:[%s212 + $0x90] sm:$0xff]
      %v245 = vld [vmem:[%s212 + $0x98] sm:$0xff]
      %v246 = vld [vmem:[%s212 + $0xa0] sm:$0xff]
      %v247 = vld [vmem:[%s212 + $0xa8] sm:$0xff]
      %v248 = vld [vmem:[%s212 + $0xb0] sm:$0xff]
      %v249 = vld [vmem:[%s212 + $0xb8] sm:$0xff]
      %v250 = vld [vmem:[%s212 + $0xc0] sm:$0xff]
      %v251 = vld [vmem:[%s212 + $0xc8] sm:$0xff]
      %v252 = vld [vmem:[%s212 + $0xd0] sm:$0xff]
      %v253 = vld [vmem:[%s212 + $0xd8] sm:$0xff]
      %v254 = vld [vmem:[%s212 + $0xe0] sm:$0xff]
      %v255 = vld [vmem:[%s212 + $0xe8] sm:$0xff]
      %v256 = vld [vmem:[%s212 + $0xf0] sm:$0xff]
      %v257 = vld [vmem:[%s212 + $0xf8] sm:$0xff]
      %vm258 = vcmp.gt.f32.partialorder %v226, 0.0
      %vm259 = vcmp.gt.f32.partialorder %v227, 0.0
      %vm260 = vcmp.gt.f32.partialorder %v228, 0.0
      %vm261 = vcmp.gt.f32.partialorder %v229, 0.0
      %vm262 = vcmp.gt.f32.partialorder %v230, 0.0
      %vm263 = vcmp.gt.f32.partialorder %v231, 0.0
      %vm264 = vcmp.gt.f32.partialorder %v232, 0.0
      %vm265 = vcmp.gt.f32.partialorder %v233, 0.0
      %vm266 = vcmp.gt.f32.partialorder %v234, 0.0
      %vm267 = vcmp.gt.f32.partialorder %v235, 0.0
      %vm268 = vcmp.gt.f32.partialorder %v236, 0.0
      %vm269 = vcmp.gt.f32.partialorder %v237, 0.0
      %vm270 = vcmp.gt.f32.partialorder %v238, 0.0
      %vm271 = vcmp.gt.f32.partialorder %v239, 0.0
      %vm272 = vcmp.gt.f32.partialorder %v240, 0.0
      %vm273 = vcmp.gt.f32.partialorder %v241, 0.0
      %vm274 = vcmp.gt.f32.partialorder %v242, 0.0
      %vm275 = vcmp.gt.f32.partialorder %v243, 0.0
      %vm276 = vcmp.gt.f32.partialorder %v244, 0.0
      %vm277 = vcmp.gt.f32.partialorder %v245, 0.0
      %vm278 = vcmp.gt.f32.partialorder %v246, 0.0
      %vm279 = vcmp.gt.f32.partialorder %v247, 0.0
      %vm280 = vcmp.gt.f32.partialorder %v248, 0.0
      %vm281 = vcmp.gt.f32.partialorder %v249, 0.0
      %vm282 = vcmp.gt.f32.partialorder %v250, 0.0
      %vm283 = vcmp.gt.f32.partialorder %v251, 0.0
      %vm284 = vcmp.gt.f32.partialorder %v252, 0.0
      %vm285 = vcmp.gt.f32.partialorder %v253, 0.0
      %vm286 = vcmp.gt.f32.partialorder %v254, 0.0
      %vm287 = vcmp.gt.f32.partialorder %v255, 0.0
      %vm288 = vcmp.gt.f32.partialorder %v256, 0.0
      %vm289 = vcmp.gt.f32.partialorder %v257, 0.0
      %v290 = vld [vmem:[%s218] sm:$0xff]
      %v291 = vld [vmem:[%s218 + $0x8] sm:$0xff]
      %v292 = vld [vmem:[%s218 + $0x10] sm:$0xff]
      %v293 = vld [vmem:[%s218 + $0x18] sm:$0xff]
      %v294 = vld [vmem:[%s218 + $0x20] sm:$0xff]
      %v295 = vld [vmem:[%s218 + $0x28] sm:$0xff]
      %v296 = vld [vmem:[%s218 + $0x30] sm:$0xff]
      %v297 = vld [vmem:[%s218 + $0x38] sm:$0xff]
      %v298 = vld [vmem:[%s218 + $0x40] sm:$0xff]
      %v299 = vld [vmem:[%s218 + $0x48] sm:$0xff]
      %v300 = vld [vmem:[%s218 + $0x50] sm:$0xff]
      %v301 = vld [vmem:[%s218 + $0x58] sm:$0xff]
      %v302 = vld [vmem:[%s218 + $0x60] sm:$0xff]
      %v303 = vld [vmem:[%s218 + $0x68] sm:$0xff]
      %v304 = vld [vmem:[%s218 + $0x70] sm:$0xff]
      %v305 = vld [vmem:[%s218 + $0x78] sm:$0xff]
      %v306 = vld [vmem:[%s2] sm:$0xff]
      %v307 = vld [vmem:[%s3] sm:$0xf]
      %v308 = vld [vmem:[%s3 + $0x4] sm:$0xf]
      %v309 = vld [vmem:[%s3 + $0x8] sm:$0xf]
      %v310 = vld [vmem:[%s3 + $0xc] sm:$0xf]
      %v311 = vld [vmem:[%s3 + $0x10] sm:$0xf]
      %v312 = vld [vmem:[%s3 + $0x14] sm:$0xf]
      %v313 = vld [vmem:[%s3 + $0x18] sm:$0xf]
      %v314 = vld [vmem:[%s3 + $0x1c] sm:$0xf]
      %v315 = vld [vmem:[%s3 + $0x20] sm:$0xf]
      %v316 = vld [vmem:[%s3 + $0x24] sm:$0xf]
      %v317 = vld [vmem:[%s3 + $0x28] sm:$0xf]
      %v318 = vld [vmem:[%s3 + $0x2c] sm:$0xf]
      %v319 = vld [vmem:[%s3 + $0x30] sm:$0xf]
      %v320 = vld [vmem:[%s3 + $0x34] sm:$0xf]
      %v321 = vld [vmem:[%s3 + $0x38] sm:$0xf]
      %v322 = vld [vmem:[%s3 + $0x3c] sm:$0xf]
      %v323 = vld [vmem:[%s3 + $0x40] sm:$0xf]
      %v324 = vld [vmem:[%s3 + $0x44] sm:$0xf]
      %v325 = vld [vmem:[%s3 + $0x48] sm:$0xf]
      %v326 = vld [vmem:[%s3 + $0x4c] sm:$0xf]
      %v327 = vld [vmem:[%s3 + $0x50] sm:$0xf]
      %v328 = vld [vmem:[%s3 + $0x54] sm:$0xf]
      %v329 = vld [vmem:[%s3 + $0x58] sm:$0xf]
      %v330 = vld [vmem:[%s3 + $0x5c] sm:$0xf]
      %v331 = vld [vmem:[%s3 + $0x60] sm:$0xf]
      %v332 = vld [vmem:[%s3 + $0x64] sm:$0xf]
      %v333 = vld [vmem:[%s3 + $0x68] sm:$0xf]
      %v334 = vld [vmem:[%s3 + $0x6c] sm:$0xf]
      %v335 = vld [vmem:[%s3 + $0x70] sm:$0xf]
      %v336 = vld [vmem:[%s3 + $0x74] sm:$0xf]
      %v337 = vld [vmem:[%s3 + $0x78] sm:$0xf]
      %v338 = vld [vmem:[%s3 + $0x7c] sm:$0xf]
      %340 = vset.pattern.permute.xlu0 0
      %341 = vperm.xlu0 %340, %v290
      %v342 = vpop.permute.xlu0 %341
      %345 = vset.pattern.permute.xlu0 0
      %346 = vperm.xlu0 %345, %v291
      %v347 = vpop.permute.xlu0 %346
      %350 = vset.pattern.permute.xlu0 0
      %351 = vperm.xlu0 %350, %v292
      %v352 = vpop.permute.xlu0 %351
      %355 = vset.pattern.permute.xlu0 0
      %356 = vperm.xlu0 %355, %v293
      %v357 = vpop.permute.xlu0 %356
      %360 = vset.pattern.permute.xlu0 0
      %361 = vperm.xlu0 %360, %v294
      %v362 = vpop.permute.xlu0 %361
      %365 = vset.pattern.permute.xlu0 0
      %366 = vperm.xlu0 %365, %v295
      %v367 = vpop.permute.xlu0 %366
      %370 = vset.pattern.permute.xlu0 0
      %371 = vperm.xlu0 %370, %v296
      %v372 = vpop.permute.xlu0 %371
      %375 = vset.pattern.permute.xlu0 0
      %376 = vperm.xlu0 %375, %v297
      %v377 = vpop.permute.xlu0 %376
      %380 = vset.pattern.permute.xlu0 0
      %381 = vperm.xlu0 %380, %v298
      %v382 = vpop.permute.xlu0 %381
      %385 = vset.pattern.permute.xlu0 0
      %386 = vperm.xlu0 %385, %v299
      %v387 = vpop.permute.xlu0 %386
      %390 = vset.pattern.permute.xlu0 0
      %391 = vperm.xlu0 %390, %v300
      %v392 = vpop.permute.xlu0 %391
      %395 = vset.pattern.permute.xlu0 0
      %396 = vperm.xlu0 %395, %v301
      %v397 = vpop.permute.xlu0 %396
      %400 = vset.pattern.permute.xlu0 0
      %401 = vperm.xlu0 %400, %v302
      %v402 = vpop.permute.xlu0 %401
      %405 = vset.pattern.permute.xlu0 0
      %406 = vperm.xlu0 %405, %v303
      %v407 = vpop.permute.xlu0 %406
      %410 = vset.pattern.permute.xlu0 0
      %411 = vperm.xlu0 %410, %v304
      %v412 = vpop.permute.xlu0 %411
      %415 = vset.pattern.permute.xlu0 0
      %416 = vperm.xlu0 %415, %v305
      %v417 = vpop.permute.xlu0 %416
      %v420 = vperm.slane %v306, 0
      %v421 = vperm.slane %v306, 4
      %v424 = vperm.slane %v420, 0
      %v425 = vperm.slane %v421, 0
      %v426 = vadd.f32 %v342, %v424
      %v427 = vadd.f32 %v342, %v425
      %v428 = vadd.f32 %v347, %v424
      %v429 = vadd.f32 %v347, %v425
      %v430 = vadd.f32 %v352, %v424
      %v431 = vadd.f32 %v352, %v425
      %v432 = vadd.f32 %v357, %v424
      %v433 = vadd.f32 %v357, %v425
      %v434 = vadd.f32 %v362, %v424
      %v435 = vadd.f32 %v362, %v425
      %v436 = vadd.f32 %v367, %v424
      %v437 = vadd.f32 %v367, %v425
      %v438 = vadd.f32 %v372, %v424
      %v439 = vadd.f32 %v372, %v425
      %v440 = vadd.f32 %v377, %v424
      %v441 = vadd.f32 %v377, %v425
      %v442 = vadd.f32 %v382, %v424
      %v443 = vadd.f32 %v382, %v425
      %v444 = vadd.f32 %v387, %v424
      %v445 = vadd.f32 %v387, %v425
      %v446 = vadd.f32 %v392, %v424
      %v447 = vadd.f32 %v392, %v425
      %v448 = vadd.f32 %v397, %v424
      %v449 = vadd.f32 %v397, %v425
      %v450 = vadd.f32 %v402, %v424
      %v451 = vadd.f32 %v402, %v425
      %v452 = vadd.f32 %v407, %v424
      %v453 = vadd.f32 %v407, %v425
      %v454 = vadd.f32 %v412, %v424
      %v455 = vadd.f32 %v412, %v425
      %v456 = vadd.f32 %v417, %v424
      %v457 = vadd.f32 %v417, %v425
      %vm458 = vcmp.gt.f32.partialorder %v426, 0.0
      %vm459 = vcmp.gt.f32.partialorder %v427, 0.0
      %vm460 = vcmp.gt.f32.partialorder %v428, 0.0
      %vm461 = vcmp.gt.f32.partialorder %v429, 0.0
      %vm462 = vcmp.gt.f32.partialorder %v430, 0.0
      %vm463 = vcmp.gt.f32.partialorder %v431, 0.0
      %vm464 = vcmp.gt.f32.partialorder %v432, 0.0
      %vm465 = vcmp.gt.f32.partialorder %v433, 0.0
      %vm466 = vcmp.gt.f32.partialorder %v434, 0.0
      %vm467 = vcmp.gt.f32.partialorder %v435, 0.0
      %vm468 = vcmp.gt.f32.partialorder %v436, 0.0
      %vm469 = vcmp.gt.f32.partialorder %v437, 0.0
      %vm470 = vcmp.gt.f32.partialorder %v438, 0.0
      %vm471 = vcmp.gt.f32.partialorder %v439, 0.0
      %vm472 = vcmp.gt.f32.partialorder %v440, 0.0
      %vm473 = vcmp.gt.f32.partialorder %v441, 0.0
      %vm474 = vcmp.gt.f32.partialorder %v442, 0.0
      %vm475 = vcmp.gt.f32.partialorder %v443, 0.0
      %vm476 = vcmp.gt.f32.partialorder %v444, 0.0
      %vm477 = vcmp.gt.f32.partialorder %v445, 0.0
      %vm478 = vcmp.gt.f32.partialorder %v446, 0.0
      %vm479 = vcmp.gt.f32.partialorder %v447, 0.0
      %vm480 = vcmp.gt.f32.partialorder %v448, 0.0
      %vm481 = vcmp.gt.f32.partialorder %v449, 0.0
      %vm482 = vcmp.gt.f32.partialorder %v450, 0.0
      %vm483 = vcmp.gt.f32.partialorder %v451, 0.0
      %vm484 = vcmp.gt.f32.partialorder %v452, 0.0
      %vm485 = vcmp.gt.f32.partialorder %v453, 0.0
      %vm486 = vcmp.gt.f32.partialorder %v454, 0.0
      %vm487 = vcmp.gt.f32.partialorder %v455, 0.0
      %vm488 = vcmp.gt.f32.partialorder %v456, 0.0
      %vm489 = vcmp.gt.f32.partialorder %v457, 0.0
      %v490 = vmul.f32 %v426, 0.2
      %v491 = vmul.f32 %v427, 0.2
      %v492 = vmul.f32 %v428, 0.2
      %v493 = vmul.f32 %v429, 0.2
      %v494 = vmul.f32 %v430, 0.2
      %v495 = vmul.f32 %v431, 0.2
      %v496 = vmul.f32 %v432, 0.2
      %v497 = vmul.f32 %v433, 0.2
      %v498 = vmul.f32 %v434, 0.2
      %v499 = vmul.f32 %v435, 0.2
      %v500 = vmul.f32 %v436, 0.2
      %v501 = vmul.f32 %v437, 0.2
      %v502 = vmul.f32 %v438, 0.2
      %v503 = vmul.f32 %v439, 0.2
      %v504 = vmul.f32 %v440, 0.2
      %v505 = vmul.f32 %v441, 0.2
      %v506 = vmul.f32 %v442, 0.2
      %v507 = vmul.f32 %v443, 0.2
      %v508 = vmul.f32 %v444, 0.2
      %v509 = vmul.f32 %v445, 0.2
      %v510 = vmul.f32 %v446, 0.2
      %v511 = vmul.f32 %v447, 0.2
      %v512 = vmul.f32 %v448, 0.2
      %v513 = vmul.f32 %v449, 0.2
      %v514 = vmul.f32 %v450, 0.2
      %v515 = vmul.f32 %v451, 0.2
      %v516 = vmul.f32 %v452, 0.2
      %v517 = vmul.f32 %v453, 0.2
      %v518 = vmul.f32 %v454, 0.2
      %v519 = vmul.f32 %v455, 0.2
      %v520 = vmul.f32 %v456, 0.2
      %v521 = vmul.f32 %v457, 0.2
      %v522 = vsel %vm458, %v426, %v490
      %v523 = vsel %vm459, %v427, %v491
      %v524 = vsel %vm460, %v428, %v492
      %v525 = vsel %vm461, %v429, %v493
      %v526 = vsel %vm462, %v430, %v494
      %v527 = vsel %vm463, %v431, %v495
      %v528 = vsel %vm464, %v432, %v496
      %v529 = vsel %vm465, %v433, %v497
      %v530 = vsel %vm466, %v434, %v498
      %v531 = vsel %vm467, %v435, %v499
      %v532 = vsel %vm468, %v436, %v500
      %v533 = vsel %vm469, %v437, %v501
      %v534 = vsel %vm470, %v438, %v502
      %v535 = vsel %vm471, %v439, %v503
      %v536 = vsel %vm472, %v440, %v504
      %v537 = vsel %vm473, %v441, %v505
      %v538 = vsel %vm474, %v442, %v506
      %v539 = vsel %vm475, %v443, %v507
      %v540 = vsel %vm476, %v444, %v508
      %v541 = vsel %vm477, %v445, %v509
      %v542 = vsel %vm478, %v446, %v510
      %v543 = vsel %vm479, %v447, %v511
      %v544 = vsel %vm480, %v448, %v512
      %v545 = vsel %vm481, %v449, %v513
      %v546 = vsel %vm482, %v450, %v514
      %v547 = vsel %vm483, %v451, %v515
      %v548 = vsel %vm484, %v452, %v516
      %v549 = vsel %vm485, %v453, %v517
      %v550 = vsel %vm486, %v454, %v518
      %v551 = vsel %vm487, %v455, %v519
      %v552 = vsel %vm488, %v456, %v520
      %v553 = vsel %vm489, %v457, %v521
      %v554 = vsel %vm258, %v522, -9e+15
      %v555 = vsel %vm259, %v523, -9e+15
      %v556 = vsel %vm260, %v524, -9e+15
      %v557 = vsel %vm261, %v525, -9e+15
      %v558 = vsel %vm262, %v526, -9e+15
      %v559 = vsel %vm263, %v527, -9e+15
      %v560 = vsel %vm264, %v528, -9e+15
      %v561 = vsel %vm265, %v529, -9e+15
      %v562 = vsel %vm266, %v530, -9e+15
      %v563 = vsel %vm267, %v531, -9e+15
      %v564 = vsel %vm268, %v532, -9e+15
      %v565 = vsel %vm269, %v533, -9e+15
      %v566 = vsel %vm270, %v534, -9e+15
      %v567 = vsel %vm271, %v535, -9e+15
      %v568 = vsel %vm272, %v536, -9e+15
      %v569 = vsel %vm273, %v537, -9e+15
      %v570 = vsel %vm274, %v538, -9e+15
      %v571 = vsel %vm275, %v539, -9e+15
      %v572 = vsel %vm276, %v540, -9e+15
      %v573 = vsel %vm277, %v541, -9e+15
      %v574 = vsel %vm278, %v542, -9e+15
      %v575 = vsel %vm279, %v543, -9e+15
      %v576 = vsel %vm280, %v544, -9e+15
      %v577 = vsel %vm281, %v545, -9e+15
      %v578 = vsel %vm282, %v546, -9e+15
      %v579 = vsel %vm283, %v547, -9e+15
      %v580 = vsel %vm284, %v548, -9e+15
      %v581 = vsel %vm285, %v549, -9e+15
      %v582 = vsel %vm286, %v550, -9e+15
      %v583 = vsel %vm287, %v551, -9e+15
      %v584 = vsel %vm288, %v552, -9e+15
      %v585 = vsel %vm289, %v553, -9e+15
      %v586 = vmax.f32 %v554, %v555
      %587 = vmax.xlane.f32.xlu0 %v586
      %v588 = vpop.xlane.xlu0 %587
      %v589 = vmax.f32 %v556, %v557
      %590 = vmax.xlane.f32.xlu0 %v589
      %v591 = vpop.xlane.xlu0 %590
      %v592 = vmax.f32 %v558, %v559
      %593 = vmax.xlane.f32.xlu0 %v592
      %v594 = vpop.xlane.xlu0 %593
      %v595 = vmax.f32 %v560, %v561
      %596 = vmax.xlane.f32.xlu0 %v595
      %v597 = vpop.xlane.xlu0 %596
      %v598 = vmax.f32 %v562, %v563
      %599 = vmax.xlane.f32.xlu0 %v598
      %v600 = vpop.xlane.xlu0 %599
      %v601 = vmax.f32 %v564, %v565
      %602 = vmax.xlane.f32.xlu0 %v601
      %v603 = vpop.xlane.xlu0 %602
      %v604 = vmax.f32 %v566, %v567
      %605 = vmax.xlane.f32.xlu0 %v604
      %v606 = vpop.xlane.xlu0 %605
      %v607 = vmax.f32 %v568, %v569
      %608 = vmax.xlane.f32.xlu0 %v607
      %v609 = vpop.xlane.xlu0 %608
      %v610 = vmax.f32 %v570, %v571
      %611 = vmax.xlane.f32.xlu0 %v610
      %v612 = vpop.xlane.xlu0 %611
      %v613 = vmax.f32 %v572, %v573
      %614 = vmax.xlane.f32.xlu0 %v613
      %v615 = vpop.xlane.xlu0 %614
      %v616 = vmax.f32 %v574, %v575
      %617 = vmax.xlane.f32.xlu0 %v616
      %v618 = vpop.xlane.xlu0 %617
      %v619 = vmax.f32 %v576, %v577
      %620 = vmax.xlane.f32.xlu0 %v619
      %v621 = vpop.xlane.xlu0 %620
      %v622 = vmax.f32 %v578, %v579
      %623 = vmax.xlane.f32.xlu0 %v622
      %v624 = vpop.xlane.xlu0 %623
      %v625 = vmax.f32 %v580, %v581
      %626 = vmax.xlane.f32.xlu0 %v625
      %v627 = vpop.xlane.xlu0 %626
      %v628 = vmax.f32 %v582, %v583
      %629 = vmax.xlane.f32.xlu0 %v628
      %v630 = vpop.xlane.xlu0 %629
      %v631 = vmax.f32 %v584, %v585
      %632 = vmax.xlane.f32.xlu0 %v631
      %v633 = vpop.xlane.xlu0 %632
      %v634 = vsub.f32 %v554, %v588
      %v635 = vsub.f32 %v555, %v588
      %v636 = vsub.f32 %v556, %v591
      %v637 = vsub.f32 %v557, %v591
      %v638 = vsub.f32 %v558, %v594
      %v639 = vsub.f32 %v559, %v594
      %v640 = vsub.f32 %v560, %v597
      %v641 = vsub.f32 %v561, %v597
      %v642 = vsub.f32 %v562, %v600
      %v643 = vsub.f32 %v563, %v600
      %v644 = vsub.f32 %v564, %v603
      %v645 = vsub.f32 %v565, %v603
      %v646 = vsub.f32 %v566, %v606
      %v647 = vsub.f32 %v567, %v606
      %v648 = vsub.f32 %v568, %v609
      %v649 = vsub.f32 %v569, %v609
      %v650 = vsub.f32 %v570, %v612
      %v651 = vsub.f32 %v571, %v612
      %v652 = vsub.f32 %v572, %v615
      %v653 = vsub.f32 %v573, %v615
      %v654 = vsub.f32 %v574, %v618
      %v655 = vsub.f32 %v575, %v618
      %v656 = vsub.f32 %v576, %v621
      %v657 = vsub.f32 %v577, %v621
      %v658 = vsub.f32 %v578, %v624
      %v659 = vsub.f32 %v579, %v624
      %v660 = vsub.f32 %v580, %v627
      %v661 = vsub.f32 %v581, %v627
      %v662 = vsub.f32 %v582, %v630
      %v663 = vsub.f32 %v583, %v630
      %v664 = vsub.f32 %v584, %v633
      %v665 = vsub.f32 %v585, %v633
      %v666 = vmul.f32 %v634, 1.442695
      %v667 = vpow.pop %v666
      %v668 = vmul.f32 %v635, 1.442695
      %v669 = vpow.pop %v668
      %v670 = vmul.f32 %v636, 1.442695
      %v671 = vpow.pop %v670
      %v672 = vmul.f32 %v637, 1.442695
      %v673 = vpow.pop %v672
      %v674 = vmul.f32 %v638, 1.442695
      %v675 = vpow.pop %v674
      %v676 = vmul.f32 %v639, 1.442695
      %v677 = vpow.pop %v676
      %v678 = vmul.f32 %v640, 1.442695
      %v679 = vpow.pop %v678
      %v680 = vmul.f32 %v641, 1.442695
      %v681 = vpow.pop %v680
      %v682 = vmul.f32 %v642, 1.442695
      %v683 = vpow.pop %v682
      %v684 = vmul.f32 %v643, 1.442695
      %v685 = vpow.pop %v684
      %v686 = vmul.f32 %v644, 1.442695
      %v687 = vpow.pop %v686
      %v688 = vmul.f32 %v645, 1.442695
      %v689 = vpow.pop %v688
      %v690 = vmul.f32 %v646, 1.442695
      %v691 = vpow.pop %v690
      %v692 = vmul.f32 %v647, 1.442695
      %v693 = vpow.pop %v692
      %v694 = vmul.f32 %v648, 1.442695
      %v695 = vpow.pop %v694
      %v696 = vmul.f32 %v649, 1.442695
      %v697 = vpow.pop %v696
      %v698 = vmul.f32 %v650, 1.442695
      %v699 = vpow.pop %v698
      %v700 = vmul.f32 %v651, 1.442695
      %v701 = vpow.pop %v700
      %v702 = vmul.f32 %v652, 1.442695
      %v703 = vpow.pop %v702
      %v704 = vmul.f32 %v653, 1.442695
      %v705 = vpow.pop %v704
      %v706 = vmul.f32 %v654, 1.442695
      %v707 = vpow.pop %v706
      %v708 = vmul.f32 %v655, 1.442695
      %v709 = vpow.pop %v708
      %v710 = vmul.f32 %v656, 1.442695
      %v711 = vpow.pop %v710
      %v712 = vmul.f32 %v657, 1.442695
      %v713 = vpow.pop %v712
      %v714 = vmul.f32 %v658, 1.442695
      %v715 = vpow.pop %v714
      %v716 = vmul.f32 %v659, 1.442695
      %v717 = vpow.pop %v716
      %v718 = vmul.f32 %v660, 1.442695
      %v719 = vpow.pop %v718
      %v720 = vmul.f32 %v661, 1.442695
      %v721 = vpow.pop %v720
      %v722 = vmul.f32 %v662, 1.442695
      %v723 = vpow.pop %v722
      %v724 = vmul.f32 %v663, 1.442695
      %v725 = vpow.pop %v724
      %v726 = vmul.f32 %v664, 1.442695
      %v727 = vpow.pop %v726
      %v728 = vmul.f32 %v665, 1.442695
      %v729 = vpow.pop %v728
      %v730 = vadd.f32 %v667, %v669
      %731 = vadd.xlane.f32.xlu0 %v730
      %v732 = vpop.xlane.xlu0 %731
      %v733 = vadd.f32 %v671, %v673
      %734 = vadd.xlane.f32.xlu0 %v733
      %v735 = vpop.xlane.xlu0 %734
      %v736 = vadd.f32 %v675, %v677
      %737 = vadd.xlane.f32.xlu0 %v736
      %v738 = vpop.xlane.xlu0 %737
      %v739 = vadd.f32 %v679, %v681
      %740 = vadd.xlane.f32.xlu0 %v739
      %v741 = vpop.xlane.xlu0 %740
      %v742 = vadd.f32 %v683, %v685
      %743 = vadd.xlane.f32.xlu0 %v742
      %v744 = vpop.xlane.xlu0 %743
      %v745 = vadd.f32 %v687, %v689
      %746 = vadd.xlane.f32.xlu0 %v745
      %v747 = vpop.xlane.xlu0 %746
      %v748 = vadd.f32 %v691, %v693
      %749 = vadd.xlane.f32.xlu0 %v748
      %v750 = vpop.xlane.xlu0 %749
      %v751 = vadd.f32 %v695, %v697
      %752 = vadd.xlane.f32.xlu0 %v751
      %v753 = vpop.xlane.xlu0 %752
      %v754 = vadd.f32 %v699, %v701
      %755 = vadd.xlane.f32.xlu0 %v754
      %v756 = vpop.xlane.xlu0 %755
      %v757 = vadd.f32 %v703, %v705
      %758 = vadd.xlane.f32.xlu0 %v757
      %v759 = vpop.xlane.xlu0 %758
      %v760 = vadd.f32 %v707, %v709
      %761 = vadd.xlane.f32.xlu0 %v760
      %v762 = vpop.xlane.xlu0 %761
      %v763 = vadd.f32 %v711, %v713
      %764 = vadd.xlane.f32.xlu0 %v763
      %v765 = vpop.xlane.xlu0 %764
      %v766 = vadd.f32 %v715, %v717
      %767 = vadd.xlane.f32.xlu0 %v766
      %v768 = vpop.xlane.xlu0 %767
      %v769 = vadd.f32 %v719, %v721
      %770 = vadd.xlane.f32.xlu0 %v769
      %v771 = vpop.xlane.xlu0 %770
      %v772 = vadd.f32 %v723, %v725
      %773 = vadd.xlane.f32.xlu0 %v772
      %v774 = vpop.xlane.xlu0 %773
      %v775 = vadd.f32 %v727, %v729
      %776 = vadd.xlane.f32.xlu0 %v775
      %v777 = vpop.xlane.xlu0 %776
      %v778 = vrcp.pop %v732
      %v779 = vrcp.pop %v735
      %v780 = vrcp.pop %v738
      %v781 = vrcp.pop %v741
      %v782 = vrcp.pop %v744
      %v783 = vrcp.pop %v747
      %v784 = vrcp.pop %v750
      %v785 = vrcp.pop %v753
      %v786 = vrcp.pop %v756
      %v787 = vrcp.pop %v759
      %v788 = vrcp.pop %v762
      %v789 = vrcp.pop %v765
      %v790 = vrcp.pop %v768
      %v791 = vrcp.pop %v771
      %v792 = vrcp.pop %v774
      %v793 = vrcp.pop %v777
      %v794 = vmul.f32 %v667, %v778
      %v795 = vmul.f32 %v669, %v778
      %v796 = vmul.f32 %v671, %v779
      %v797 = vmul.f32 %v673, %v779
      %v798 = vmul.f32 %v675, %v780
      %v799 = vmul.f32 %v677, %v780
      %v800 = vmul.f32 %v679, %v781
      %v801 = vmul.f32 %v681, %v781
      %v802 = vmul.f32 %v683, %v782
      %v803 = vmul.f32 %v685, %v782
      %v804 = vmul.f32 %v687, %v783
      %v805 = vmul.f32 %v689, %v783
      %v806 = vmul.f32 %v691, %v784
      %v807 = vmul.f32 %v693, %v784
      %v808 = vmul.f32 %v695, %v785
      %v809 = vmul.f32 %v697, %v785
      %v810 = vmul.f32 %v699, %v786
      %v811 = vmul.f32 %v701, %v786
      %v812 = vmul.f32 %v703, %v787
      %v813 = vmul.f32 %v705, %v787
      %v814 = vmul.f32 %v707, %v788
      %v815 = vmul.f32 %v709, %v788
      %v816 = vmul.f32 %v711, %v789
      %v817 = vmul.f32 %v713, %v789
      %v818 = vmul.f32 %v715, %v790
      %v819 = vmul.f32 %v717, %v790
      %v820 = vmul.f32 %v719, %v791
      %v821 = vmul.f32 %v721, %v791
      %v822 = vmul.f32 %v723, %v792
      %v823 = vmul.f32 %v725, %v792
      %v824 = vmul.f32 %v727, %v793
      %v825 = vmul.f32 %v729, %v793
      %v826 = vpack.c.bf16 %v796, %v794
      %v827 = vpack.c.bf16 %v797, %v795
      %v828 = vpack.c.bf16 %v800, %v798
      %v829 = vpack.c.bf16 %v801, %v799
      %v830 = vpack.c.bf16 %v804, %v802
      %v831 = vpack.c.bf16 %v805, %v803
      %v832 = vpack.c.bf16 %v808, %v806
      %v833 = vpack.c.bf16 %v809, %v807
      %v834 = vpack.c.bf16 %v812, %v810
      %v835 = vpack.c.bf16 %v813, %v811
      %v836 = vpack.c.bf16 %v816, %v814
      %v837 = vpack.c.bf16 %v817, %v815
      %v838 = vpack.c.bf16 %v820, %v818
      %v839 = vpack.c.bf16 %v821, %v819
      %v840 = vpack.c.bf16 %v824, %v822
      %v841 = vpack.c.bf16 %v825, %v823
      %v874 = vunpack.c.l.b16 %v307
      %v875 = vunpack.c.l.b16 %v308
      %v876 = vunpack.c.l.b16 %v309
      %v877 = vunpack.c.l.b16 %v310
      %v878 = vunpack.c.l.b16 %v311
      %v879 = vunpack.c.l.b16 %v312
      %v880 = vunpack.c.l.b16 %v313
      %v881 = vunpack.c.l.b16 %v314
      %v882 = vunpack.c.l.b16 %v315
      %v883 = vunpack.c.l.b16 %v316
      %v884 = vunpack.c.l.b16 %v317
      %v885 = vunpack.c.l.b16 %v318
      %v886 = vunpack.c.l.b16 %v319
      %v887 = vunpack.c.l.b16 %v320
      %v888 = vunpack.c.l.b16 %v321
      %v889 = vunpack.c.l.b16 %v322
      %v890 = vunpack.c.l.b16 %v323
      %v891 = vunpack.c.l.b16 %v324
      %v892 = vunpack.c.l.b16 %v325
      %v893 = vunpack.c.l.b16 %v326
      %v894 = vunpack.c.l.b16 %v327
      %v895 = vunpack.c.l.b16 %v328
      %v896 = vunpack.c.l.b16 %v329
      %v897 = vunpack.c.l.b16 %v330
      %v898 = vunpack.c.l.b16 %v331
      %v899 = vunpack.c.l.b16 %v332
      %v900 = vunpack.c.l.b16 %v333
      %v901 = vunpack.c.l.b16 %v334
      %v902 = vunpack.c.l.b16 %v335
      %v903 = vunpack.c.l.b16 %v336
      %v904 = vunpack.c.l.b16 %v337
      %v905 = vunpack.c.l.b16 %v338
      %v906 = vpack.c.b16 %v875, %v874
      %v907 = vpack.c.b16 %v877, %v876
      %v908 = vpack.c.b16 %v879, %v878
      %v909 = vpack.c.b16 %v881, %v880
      %v910 = vpack.c.b16 %v883, %v882
      %v911 = vpack.c.b16 %v885, %v884
      %v912 = vpack.c.b16 %v887, %v886
      %v913 = vpack.c.b16 %v889, %v888
      %v914 = vpack.c.b16 %v891, %v890
      %v915 = vpack.c.b16 %v893, %v892
      %v916 = vpack.c.b16 %v895, %v894
      %v917 = vpack.c.b16 %v897, %v896
      %v918 = vpack.c.b16 %v899, %v898
      %v919 = vpack.c.b16 %v901, %v900
      %v920 = vpack.c.b16 %v903, %v902
      %v921 = vpack.c.b16 %v905, %v904
      %938 = vmatpush.bf16.msra.mxu0 %v913
      %939 = vmatpush.bf16.msra.mxu0 %v912
      %940 = vmatpush.bf16.msra.mxu0 %v911
      %941 = vmatpush.bf16.msra.mxu0 %v910
      %942 = vmatpush.bf16.msra.mxu0 %v909
      %943 = vmatpush.bf16.msra.mxu0 %v908
      %944 = vmatpush.bf16.msra.mxu0 %v907
      %945 = vmatpush.bf16.msra.mxu0 %v906
      %946 = vmatmul.bf16.gmra.mxu0 %v826
      %v947 = vpop.f32.mrf.mxu0
      %v948 = vadd.f32 0.0, %v947
      %v949 = vpop.f32.mrf.mxu0
      %v950 = vadd.f32 0.0, %v949
      %951 = vmatmul.bf16.gmra.mxu0 %v828
      %v952 = vpop.f32.mrf.mxu0
      %v953 = vadd.f32 0.0, %v952
      %v954 = vpop.f32.mrf.mxu0
      %v955 = vadd.f32 0.0, %v954
      %956 = vmatmul.bf16.gmra.mxu0 %v830
      %v957 = vpop.f32.mrf.mxu0
      %v958 = vadd.f32 0.0, %v957
      %v959 = vpop.f32.mrf.mxu0
      %v960 = vadd.f32 0.0, %v959
      %961 = vmatmul.bf16.gmra.mxu0 %v832
      %v962 = vpop.f32.mrf.mxu0
      %v963 = vadd.f32 0.0, %v962
      %v964 = vpop.f32.mrf.mxu0
      %v965 = vadd.f32 0.0, %v964
      %966 = vmatmul.bf16.gmra.mxu0 %v834
      %v967 = vpop.f32.mrf.mxu0
      %v968 = vadd.f32 0.0, %v967
      %v969 = vpop.f32.mrf.mxu0
      %v970 = vadd.f32 0.0, %v969
      %971 = vmatmul.bf16.gmra.mxu0 %v836
      %v972 = vpop.f32.mrf.mxu0
      %v973 = vadd.f32 0.0, %v972
      %v974 = vpop.f32.mrf.mxu0
      %v975 = vadd.f32 0.0, %v974
      %976 = vmatmul.bf16.gmra.mxu0 %v838
      %v977 = vpop.f32.mrf.mxu0
      %v978 = vadd.f32 0.0, %v977
      %v979 = vpop.f32.mrf.mxu0
      %v980 = vadd.f32 0.0, %v979
      %981 = vmatmul.bf16.gmra.mxu0 %v840
      %v982 = vpop.f32.mrf.mxu0
      %v983 = vadd.f32 0.0, %v982
      %v984 = vpop.f32.mrf.mxu0
      %v985 = vadd.f32 0.0, %v984
      %986 = vdwg.mxu0
      %987 = vmatpush.bf16.msra.mxu0 %v921
      %988 = vmatpush.bf16.msra.mxu0 %v920
      %989 = vmatpush.bf16.msra.mxu0 %v919
      %990 = vmatpush.bf16.msra.mxu0 %v918
      %991 = vmatpush.bf16.msra.mxu0 %v917
      %992 = vmatpush.bf16.msra.mxu0 %v916
      %993 = vmatpush.bf16.msra.mxu0 %v915
      %994 = vmatpush.bf16.msra.mxu0 %v914
      %995 = vmatmul.bf16.gmra.mxu0 %v827
      %v996 = vpop.f32.mrf.mxu0
      %v997 = vadd.f32 %v948, %v996
      %v998 = vpop.f32.mrf.mxu0
      %v999 = vadd.f32 %v950, %v998
      %1000 = vmatmul.bf16.gmra.mxu0 %v829
      %v1001 = vpop.f32.mrf.mxu0
      %v1002 = vadd.f32 %v953, %v1001
      %v1003 = vpop.f32.mrf.mxu0
      %v1004 = vadd.f32 %v955, %v1003
      %1005 = vmatmul.bf16.gmra.mxu0 %v831
      %v1006 = vpop.f32.mrf.mxu0
      %v1007 = vadd.f32 %v958, %v1006
      %v1008 = vpop.f32.mrf.mxu0
      %v1009 = vadd.f32 %v960, %v1008
      %1010 = vmatmul.bf16.gmra.mxu0 %v833
      %v1011 = vpop.f32.mrf.mxu0
      %v1012 = vadd.f32 %v963, %v1011
      %v1013 = vpop.f32.mrf.mxu0
      %v1014 = vadd.f32 %v965, %v1013
      %1015 = vmatmul.bf16.gmra.mxu0 %v835
      %v1016 = vpop.f32.mrf.mxu0
      %v1017 = vadd.f32 %v968, %v1016
      %v1018 = vpop.f32.mrf.mxu0
      %v1019 = vadd.f32 %v970, %v1018
      %1020 = vmatmul.bf16.gmra.mxu0 %v837
      %v1021 = vpop.f32.mrf.mxu0
      %v1022 = vadd.f32 %v973, %v1021
      %v1023 = vpop.f32.mrf.mxu0
      %v1024 = vadd.f32 %v975, %v1023
      %1025 = vmatmul.bf16.gmra.mxu0 %v839
      %v1026 = vpop.f32.mrf.mxu0
      %v1027 = vadd.f32 %v978, %v1026
      %v1028 = vpop.f32.mrf.mxu0
      %v1029 = vadd.f32 %v980, %v1028
      %1030 = vmatmul.bf16.gmra.mxu0 %v841
      %v1031 = vpop.f32.mrf.mxu0
      %v1032 = vadd.f32 %v983, %v1031
      %v1033 = vpop.f32.mrf.mxu0
      %v1034 = vadd.f32 %v985, %v1033
      %1035 = vdwg.mxu0
      %vm1036 = vcmp.gt.f32.partialorder %v997, 0.0
      %vm1037 = vcmp.gt.f32.partialorder %v999, 0.0
      %vm1038 = vcmp.gt.f32.partialorder %v1002, 0.0
      %vm1039 = vcmp.gt.f32.partialorder %v1004, 0.0
      %vm1040 = vcmp.gt.f32.partialorder %v1007, 0.0
      %vm1041 = vcmp.gt.f32.partialorder %v1009, 0.0
      %vm1042 = vcmp.gt.f32.partialorder %v1012, 0.0
      %vm1043 = vcmp.gt.f32.partialorder %v1014, 0.0
      %vm1044 = vcmp.gt.f32.partialorder %v1017, 0.0
      %vm1045 = vcmp.gt.f32.partialorder %v1019, 0.0
      %vm1046 = vcmp.gt.f32.partialorder %v1022, 0.0
      %vm1047 = vcmp.gt.f32.partialorder %v1024, 0.0
      %vm1048 = vcmp.gt.f32.partialorder %v1027, 0.0
      %vm1049 = vcmp.gt.f32.partialorder %v1029, 0.0
      %vm1050 = vcmp.gt.f32.partialorder %v1032, 0.0
      %vm1051 = vcmp.gt.f32.partialorder %v1034, 0.0
      %v1052 = vmin.f32 %v997, 0.0
      %v1053 = vmin.f32 %v999, 0.0
      %v1054 = vmin.f32 %v1002, 0.0
      %v1055 = vmin.f32 %v1004, 0.0
      %v1056 = vmin.f32 %v1007, 0.0
      %v1057 = vmin.f32 %v1009, 0.0
      %v1058 = vmin.f32 %v1012, 0.0
      %v1059 = vmin.f32 %v1014, 0.0
      %v1060 = vmin.f32 %v1017, 0.0
      %v1061 = vmin.f32 %v1019, 0.0
      %v1062 = vmin.f32 %v1022, 0.0
      %v1063 = vmin.f32 %v1024, 0.0
      %v1064 = vmin.f32 %v1027, 0.0
      %v1065 = vmin.f32 %v1029, 0.0
      %v1066 = vmin.f32 %v1032, 0.0
      %v1067 = vmin.f32 %v1034, 0.0
      %v1068 = vmul.f32 %v1052, 1.442695
      %v1069 = vpow.pop %v1068
      %v1070 = vmul.f32 %v1053, 1.442695
      %v1071 = vpow.pop %v1070
      %v1072 = vmul.f32 %v1054, 1.442695
      %v1073 = vpow.pop %v1072
      %v1074 = vmul.f32 %v1055, 1.442695
      %v1075 = vpow.pop %v1074
      %v1076 = vmul.f32 %v1056, 1.442695
      %v1077 = vpow.pop %v1076
      %v1078 = vmul.f32 %v1057, 1.442695
      %v1079 = vpow.pop %v1078
      %v1080 = vmul.f32 %v1058, 1.442695
      %v1081 = vpow.pop %v1080
      %v1082 = vmul.f32 %v1059, 1.442695
      %v1083 = vpow.pop %v1082
      %v1084 = vmul.f32 %v1060, 1.442695
      %v1085 = vpow.pop %v1084
      %v1086 = vmul.f32 %v1061, 1.442695
      %v1087 = vpow.pop %v1086
      %v1088 = vmul.f32 %v1062, 1.442695
      %v1089 = vpow.pop %v1088
      %v1090 = vmul.f32 %v1063, 1.442695
      %v1091 = vpow.pop %v1090
      %v1092 = vmul.f32 %v1064, 1.442695
      %v1093 = vpow.pop %v1092
      %v1094 = vmul.f32 %v1065, 1.442695
      %v1095 = vpow.pop %v1094
      %v1096 = vmul.f32 %v1066, 1.442695
      %v1097 = vpow.pop %v1096
      %v1098 = vmul.f32 %v1067, 1.442695
      %v1099 = vpow.pop %v1098
      %v1100 = vsub.f32 %v1069, 1.0
      %v1101 = vsub.f32 %v1071, 1.0
      %v1102 = vsub.f32 %v1073, 1.0
      %v1103 = vsub.f32 %v1075, 1.0
      %v1104 = vsub.f32 %v1077, 1.0
      %v1105 = vsub.f32 %v1079, 1.0
      %v1106 = vsub.f32 %v1081, 1.0
      %v1107 = vsub.f32 %v1083, 1.0
      %v1108 = vsub.f32 %v1085, 1.0
      %v1109 = vsub.f32 %v1087, 1.0
      %v1110 = vsub.f32 %v1089, 1.0
      %v1111 = vsub.f32 %v1091, 1.0
      %v1112 = vsub.f32 %v1093, 1.0
      %v1113 = vsub.f32 %v1095, 1.0
      %v1114 = vsub.f32 %v1097, 1.0
      %v1115 = vsub.f32 %v1099, 1.0
      %v1116 = vsel %vm1036, %v997, %v1100
      %v1117 = vsel %vm1037, %v999, %v1101
      %v1118 = vsel %vm1038, %v1002, %v1102
      %v1119 = vsel %vm1039, %v1004, %v1103
      %v1120 = vsel %vm1040, %v1007, %v1104
      %v1121 = vsel %vm1041, %v1009, %v1105
      %v1122 = vsel %vm1042, %v1012, %v1106
      %v1123 = vsel %vm1043, %v1014, %v1107
      %v1124 = vsel %vm1044, %v1017, %v1108
      %v1125 = vsel %vm1045, %v1019, %v1109
      %v1126 = vsel %vm1046, %v1022, %v1110
      %v1127 = vsel %vm1047, %v1024, %v1111
      %v1128 = vsel %vm1048, %v1027, %v1112
      %v1129 = vsel %vm1049, %v1029, %v1113
      %v1130 = vsel %vm1050, %v1032, %v1114
      %v1131 = vsel %vm1051, %v1034, %v1115
      %1132 = vset.pattern.permute.xlu0 1
      %1133 = vperm.xlu0 %1132, %v290
      %v1134 = vpop.permute.xlu0 %1133
      %1136 = vset.pattern.permute.xlu0 1
      %1137 = vperm.xlu0 %1136, %v291
      %v1138 = vpop.permute.xlu0 %1137
      %1140 = vset.pattern.permute.xlu0 1
      %1141 = vperm.xlu0 %1140, %v292
      %v1142 = vpop.permute.xlu0 %1141
      %1144 = vset.pattern.permute.xlu0 1
      %1145 = vperm.xlu0 %1144, %v293
      %v1146 = vpop.permute.xlu0 %1145
      %1148 = vset.pattern.permute.xlu0 1
      %1149 = vperm.xlu0 %1148, %v294
      %v1150 = vpop.permute.xlu0 %1149
      %1152 = vset.pattern.permute.xlu0 1
      %1153 = vperm.xlu0 %1152, %v295
      %v1154 = vpop.permute.xlu0 %1153
      %1156 = vset.pattern.permute.xlu0 1
      %1157 = vperm.xlu0 %1156, %v296
      %v1158 = vpop.permute.xlu0 %1157
      %1160 = vset.pattern.permute.xlu0 1
      %1161 = vperm.xlu0 %1160, %v297
      %v1162 = vpop.permute.xlu0 %1161
      %1164 = vset.pattern.permute.xlu0 1
      %1165 = vperm.xlu0 %1164, %v298
      %v1166 = vpop.permute.xlu0 %1165
      %1168 = vset.pattern.permute.xlu0 1
      %1169 = vperm.xlu0 %1168, %v299
      %v1170 = vpop.permute.xlu0 %1169
      %1172 = vset.pattern.permute.xlu0 1
      %1173 = vperm.xlu0 %1172, %v300
      %v1174 = vpop.permute.xlu0 %1173
      %1176 = vset.pattern.permute.xlu0 1
      %1177 = vperm.xlu0 %1176, %v301
      %v1178 = vpop.permute.xlu0 %1177
      %1180 = vset.pattern.permute.xlu0 1
      %1181 = vperm.xlu0 %1180, %v302
      %v1182 = vpop.permute.xlu0 %1181
      %1184 = vset.pattern.permute.xlu0 1
      %1185 = vperm.xlu0 %1184, %v303
      %v1186 = vpop.permute.xlu0 %1185
      %1188 = vset.pattern.permute.xlu0 1
      %1189 = vperm.xlu0 %1188, %v304
      %v1190 = vpop.permute.xlu0 %1189
      %1192 = vset.pattern.permute.xlu0 1
      %1193 = vperm.xlu0 %1192, %v305
      %v1194 = vpop.permute.xlu0 %1193
      %v1196 = vperm.slane %v306, 1
      %v1197 = vperm.slane %v306, 5
      %v1200 = vperm.slane %v1196, 1
      %v1201 = vperm.slane %v1197, 1
      %v1202 = vadd.f32 %v1134, %v1200
      %v1203 = vadd.f32 %v1134, %v1201
      %v1204 = vadd.f32 %v1138, %v1200
      %v1205 = vadd.f32 %v1138, %v1201
      %v1206 = vadd.f32 %v1142, %v1200
      %v1207 = vadd.f32 %v1142, %v1201
      %v1208 = vadd.f32 %v1146, %v1200
      %v1209 = vadd.f32 %v1146, %v1201
      %v1210 = vadd.f32 %v1150, %v1200
      %v1211 = vadd.f32 %v1150, %v1201
      %v1212 = vadd.f32 %v1154, %v1200
      %v1213 = vadd.f32 %v1154, %v1201
      %v1214 = vadd.f32 %v1158, %v1200
      %v1215 = vadd.f32 %v1158, %v1201
      %v1216 = vadd.f32 %v1162, %v1200
      %v1217 = vadd.f32 %v1162, %v1201
      %v1218 = vadd.f32 %v1166, %v1200
      %v1219 = vadd.f32 %v1166, %v1201
      %v1220 = vadd.f32 %v1170, %v1200
      %v1221 = vadd.f32 %v1170, %v1201
      %v1222 = vadd.f32 %v1174, %v1200
      %v1223 = vadd.f32 %v1174, %v1201
      %v1224 = vadd.f32 %v1178, %v1200
      %v1225 = vadd.f32 %v1178, %v1201
      %v1226 = vadd.f32 %v1182, %v1200
      %v1227 = vadd.f32 %v1182, %v1201
      %v1228 = vadd.f32 %v1186, %v1200
      %v1229 = vadd.f32 %v1186, %v1201
      %v1230 = vadd.f32 %v1190, %v1200
      %v1231 = vadd.f32 %v1190, %v1201
      %v1232 = vadd.f32 %v1194, %v1200
      %v1233 = vadd.f32 %v1194, %v1201
      %vm1234 = vcmp.gt.f32.partialorder %v1202, 0.0
      %vm1235 = vcmp.gt.f32.partialorder %v1203, 0.0
      %vm1236 = vcmp.gt.f32.partialorder %v1204, 0.0
      %vm1237 = vcmp.gt.f32.partialorder %v1205, 0.0
      %vm1238 = vcmp.gt.f32.partialorder %v1206, 0.0
      %vm1239 = vcmp.gt.f32.partialorder %v1207, 0.0
      %vm1240 = vcmp.gt.f32.partialorder %v1208, 0.0
      %vm1241 = vcmp.gt.f32.partialorder %v1209, 0.0
      %vm1242 = vcmp.gt.f32.partialorder %v1210, 0.0
      %vm1243 = vcmp.gt.f32.partialorder %v1211, 0.0
      %vm1244 = vcmp.gt.f32.partialorder %v1212, 0.0
      %vm1245 = vcmp.gt.f32.partialorder %v1213, 0.0
      %vm1246 = vcmp.gt.f32.partialorder %v1214, 0.0
      %vm1247 = vcmp.gt.f32.partialorder %v1215, 0.0
      %vm1248 = vcmp.gt.f32.partialorder %v1216, 0.0
      %vm1249 = vcmp.gt.f32.partialorder %v1217, 0.0
      %vm1250 = vcmp.gt.f32.partialorder %v1218, 0.0
      %vm1251 = vcmp.gt.f32.partialorder %v1219, 0.0
      %vm1252 = vcmp.gt.f32.partialorder %v1220, 0.0
      %vm1253 = vcmp.gt.f32.partialorder %v1221, 0.0
      %vm1254 = vcmp.gt.f32.partialorder %v1222, 0.0
      %vm1255 = vcmp.gt.f32.partialorder %v1223, 0.0
      %vm1256 = vcmp.gt.f32.partialorder %v1224, 0.0
      %vm1257 = vcmp.gt.f32.partialorder %v1225, 0.0
      %vm1258 = vcmp.gt.f32.partialorder %v1226, 0.0
      %vm1259 = vcmp.gt.f32.partialorder %v1227, 0.0
      %vm1260 = vcmp.gt.f32.partialorder %v1228, 0.0
      %vm1261 = vcmp.gt.f32.partialorder %v1229, 0.0
      %vm1262 = vcmp.gt.f32.partialorder %v1230, 0.0
      %vm1263 = vcmp.gt.f32.partialorder %v1231, 0.0
      %vm1264 = vcmp.gt.f32.partialorder %v1232, 0.0
      %vm1265 = vcmp.gt.f32.partialorder %v1233, 0.0
      %v1266 = vmul.f32 %v1202, 0.2
      %v1267 = vmul.f32 %v1203, 0.2
      %v1268 = vmul.f32 %v1204, 0.2
      %v1269 = vmul.f32 %v1205, 0.2
      %v1270 = vmul.f32 %v1206, 0.2
      %v1271 = vmul.f32 %v1207, 0.2
      %v1272 = vmul.f32 %v1208, 0.2
      %v1273 = vmul.f32 %v1209, 0.2
      %v1274 = vmul.f32 %v1210, 0.2
      %v1275 = vmul.f32 %v1211, 0.2
      %v1276 = vmul.f32 %v1212, 0.2
      %v1277 = vmul.f32 %v1213, 0.2
      %v1278 = vmul.f32 %v1214, 0.2
      %v1279 = vmul.f32 %v1215, 0.2
      %v1280 = vmul.f32 %v1216, 0.2
      %v1281 = vmul.f32 %v1217, 0.2
      %v1282 = vmul.f32 %v1218, 0.2
      %v1283 = vmul.f32 %v1219, 0.2
      %v1284 = vmul.f32 %v1220, 0.2
      %v1285 = vmul.f32 %v1221, 0.2
      %v1286 = vmul.f32 %v1222, 0.2
      %v1287 = vmul.f32 %v1223, 0.2
      %v1288 = vmul.f32 %v1224, 0.2
      %v1289 = vmul.f32 %v1225, 0.2
      %v1290 = vmul.f32 %v1226, 0.2
      %v1291 = vmul.f32 %v1227, 0.2
      %v1292 = vmul.f32 %v1228, 0.2
      %v1293 = vmul.f32 %v1229, 0.2
      %v1294 = vmul.f32 %v1230, 0.2
      %v1295 = vmul.f32 %v1231, 0.2
      %v1296 = vmul.f32 %v1232, 0.2
      %v1297 = vmul.f32 %v1233, 0.2
      %v1298 = vsel %vm1234, %v1202, %v1266
      %v1299 = vsel %vm1235, %v1203, %v1267
      %v1300 = vsel %vm1236, %v1204, %v1268
      %v1301 = vsel %vm1237, %v1205, %v1269
      %v1302 = vsel %vm1238, %v1206, %v1270
      %v1303 = vsel %vm1239, %v1207, %v1271
      %v1304 = vsel %vm1240, %v1208, %v1272
      %v1305 = vsel %vm1241, %v1209, %v1273
      %v1306 = vsel %vm1242, %v1210, %v1274
      %v1307 = vsel %vm1243, %v1211, %v1275
      %v1308 = vsel %vm1244, %v1212, %v1276
      %v1309 = vsel %vm1245, %v1213, %v1277
      %v1310 = vsel %vm1246, %v1214, %v1278
      %v1311 = vsel %vm1247, %v1215, %v1279
      %v1312 = vsel %vm1248, %v1216, %v1280
      %v1313 = vsel %vm1249, %v1217, %v1281
      %v1314 = vsel %vm1250, %v1218, %v1282
      %v1315 = vsel %vm1251, %v1219, %v1283
      %v1316 = vsel %vm1252, %v1220, %v1284
      %v1317 = vsel %vm1253, %v1221, %v1285
      %v1318 = vsel %vm1254, %v1222, %v1286
      %v1319 = vsel %vm1255, %v1223, %v1287
      %v1320 = vsel %vm1256, %v1224, %v1288
      %v1321 = vsel %vm1257, %v1225, %v1289
      %v1322 = vsel %vm1258, %v1226, %v1290
      %v1323 = vsel %vm1259, %v1227, %v1291
      %v1324 = vsel %vm1260, %v1228, %v1292
      %v1325 = vsel %vm1261, %v1229, %v1293
      %v1326 = vsel %vm1262, %v1230, %v1294
      %v1327 = vsel %vm1263, %v1231, %v1295
      %v1328 = vsel %vm1264, %v1232, %v1296
      %v1329 = vsel %vm1265, %v1233, %v1297
      %v1330 = vsel %vm258, %v1298, -9e+15
      %v1331 = vsel %vm259, %v1299, -9e+15
      %v1332 = vsel %vm260, %v1300, -9e+15
      %v1333 = vsel %vm261, %v1301, -9e+15
      %v1334 = vsel %vm262, %v1302, -9e+15
      %v1335 = vsel %vm263, %v1303, -9e+15
      %v1336 = vsel %vm264, %v1304, -9e+15
      %v1337 = vsel %vm265, %v1305, -9e+15
      %v1338 = vsel %vm266, %v1306, -9e+15
      %v1339 = vsel %vm267, %v1307, -9e+15
      %v1340 = vsel %vm268, %v1308, -9e+15
      %v1341 = vsel %vm269, %v1309, -9e+15
      %v1342 = vsel %vm270, %v1310, -9e+15
      %v1343 = vsel %vm271, %v1311, -9e+15
      %v1344 = vsel %vm272, %v1312, -9e+15
      %v1345 = vsel %vm273, %v1313, -9e+15
      %v1346 = vsel %vm274, %v1314, -9e+15
      %v1347 = vsel %vm275, %v1315, -9e+15
      %v1348 = vsel %vm276, %v1316, -9e+15
      %v1349 = vsel %vm277, %v1317, -9e+15
      %v1350 = vsel %vm278, %v1318, -9e+15
      %v1351 = vsel %vm279, %v1319, -9e+15
      %v1352 = vsel %vm280, %v1320, -9e+15
      %v1353 = vsel %vm281, %v1321, -9e+15
      %v1354 = vsel %vm282, %v1322, -9e+15
      %v1355 = vsel %vm283, %v1323, -9e+15
      %v1356 = vsel %vm284, %v1324, -9e+15
      %v1357 = vsel %vm285, %v1325, -9e+15
      %v1358 = vsel %vm286, %v1326, -9e+15
      %v1359 = vsel %vm287, %v1327, -9e+15
      %v1360 = vsel %vm288, %v1328, -9e+15
      %v1361 = vsel %vm289, %v1329, -9e+15
      %v1362 = vmax.f32 %v1330, %v1331
      %1363 = vmax.xlane.f32.xlu0 %v1362
      %v1364 = vpop.xlane.xlu0 %1363
      %v1365 = vmax.f32 %v1332, %v1333
      %1366 = vmax.xlane.f32.xlu0 %v1365
      %v1367 = vpop.xlane.xlu0 %1366
      %v1368 = vmax.f32 %v1334, %v1335
      %1369 = vmax.xlane.f32.xlu0 %v1368
      %v1370 = vpop.xlane.xlu0 %1369
      %v1371 = vmax.f32 %v1336, %v1337
      %1372 = vmax.xlane.f32.xlu0 %v1371
      %v1373 = vpop.xlane.xlu0 %1372
      %v1374 = vmax.f32 %v1338, %v1339
      %1375 = vmax.xlane.f32.xlu0 %v1374
      %v1376 = vpop.xlane.xlu0 %1375
      %v1377 = vmax.f32 %v1340, %v1341
      %1378 = vmax.xlane.f32.xlu0 %v1377
      %v1379 = vpop.xlane.xlu0 %1378
      %v1380 = vmax.f32 %v1342, %v1343
      %1381 = vmax.xlane.f32.xlu0 %v1380
      %v1382 = vpop.xlane.xlu0 %1381
      %v1383 = vmax.f32 %v1344, %v1345
      %1384 = vmax.xlane.f32.xlu0 %v1383
      %v1385 = vpop.xlane.xlu0 %1384
      %v1386 = vmax.f32 %v1346, %v1347
      %1387 = vmax.xlane.f32.xlu0 %v1386
      %v1388 = vpop.xlane.xlu0 %1387
      %v1389 = vmax.f32 %v1348, %v1349
      %1390 = vmax.xlane.f32.xlu0 %v1389
      %v1391 = vpop.xlane.xlu0 %1390
      %v1392 = vmax.f32 %v1350, %v1351
      %1393 = vmax.xlane.f32.xlu0 %v1392
      %v1394 = vpop.xlane.xlu0 %1393
      %v1395 = vmax.f32 %v1352, %v1353
      %1396 = vmax.xlane.f32.xlu0 %v1395
      %v1397 = vpop.xlane.xlu0 %1396
      %v1398 = vmax.f32 %v1354, %v1355
      %1399 = vmax.xlane.f32.xlu0 %v1398
      %v1400 = vpop.xlane.xlu0 %1399
      %v1401 = vmax.f32 %v1356, %v1357
      %1402 = vmax.xlane.f32.xlu0 %v1401
      %v1403 = vpop.xlane.xlu0 %1402
      %v1404 = vmax.f32 %v1358, %v1359
      %1405 = vmax.xlane.f32.xlu0 %v1404
      %v1406 = vpop.xlane.xlu0 %1405
      %v1407 = vmax.f32 %v1360, %v1361
      %1408 = vmax.xlane.f32.xlu0 %v1407
      %v1409 = vpop.xlane.xlu0 %1408
      %v1410 = vsub.f32 %v1330, %v1364
      %v1411 = vsub.f32 %v1331, %v1364
      %v1412 = vsub.f32 %v1332, %v1367
      %v1413 = vsub.f32 %v1333, %v1367
      %v1414 = vsub.f32 %v1334, %v1370
      %v1415 = vsub.f32 %v1335, %v1370
      %v1416 = vsub.f32 %v1336, %v1373
      %v1417 = vsub.f32 %v1337, %v1373
      %v1418 = vsub.f32 %v1338, %v1376
      %v1419 = vsub.f32 %v1339, %v1376
      %v1420 = vsub.f32 %v1340, %v1379
      %v1421 = vsub.f32 %v1341, %v1379
      %v1422 = vsub.f32 %v1342, %v1382
      %v1423 = vsub.f32 %v1343, %v1382
      %v1424 = vsub.f32 %v1344, %v1385
      %v1425 = vsub.f32 %v1345, %v1385
      %v1426 = vsub.f32 %v1346, %v1388
      %v1427 = vsub.f32 %v1347, %v1388
      %v1428 = vsub.f32 %v1348, %v1391
      %v1429 = vsub.f32 %v1349, %v1391
      %v1430 = vsub.f32 %v1350, %v1394
      %v1431 = vsub.f32 %v1351, %v1394
      %v1432 = vsub.f32 %v1352, %v1397
      %v1433 = vsub.f32 %v1353, %v1397
      %v1434 = vsub.f32 %v1354, %v1400
      %v1435 = vsub.f32 %v1355, %v1400
      %v1436 = vsub.f32 %v1356, %v1403
      %v1437 = vsub.f32 %v1357, %v1403
      %v1438 = vsub.f32 %v1358, %v1406
      %v1439 = vsub.f32 %v1359, %v1406
      %v1440 = vsub.f32 %v1360, %v1409
      %v1441 = vsub.f32 %v1361, %v1409
      %v1442 = vmul.f32 %v1410, 1.442695
      %v1443 = vpow.pop %v1442
      %v1444 = vmul.f32 %v1411, 1.442695
      %v1445 = vpow.pop %v1444
      %v1446 = vmul.f32 %v1412, 1.442695
      %v1447 = vpow.pop %v1446
      %v1448 = vmul.f32 %v1413, 1.442695
      %v1449 = vpow.pop %v1448
      %v1450 = vmul.f32 %v1414, 1.442695
      %v1451 = vpow.pop %v1450
      %v1452 = vmul.f32 %v1415, 1.442695
      %v1453 = vpow.pop %v1452
      %v1454 = vmul.f32 %v1416, 1.442695
      %v1455 = vpow.pop %v1454
      %v1456 = vmul.f32 %v1417, 1.442695
      %v1457 = vpow.pop %v1456
      %v1458 = vmul.f32 %v1418, 1.442695
      %v1459 = vpow.pop %v1458
      %v1460 = vmul.f32 %v1419, 1.442695
      %v1461 = vpow.pop %v1460
      %v1462 = vmul.f32 %v1420, 1.442695
      %v1463 = vpow.pop %v1462
      %v1464 = vmul.f32 %v1421, 1.442695
      %v1465 = vpow.pop %v1464
      %v1466 = vmul.f32 %v1422, 1.442695
      %v1467 = vpow.pop %v1466
      %v1468 = vmul.f32 %v1423, 1.442695
      %v1469 = vpow.pop %v1468
      %v1470 = vmul.f32 %v1424, 1.442695
      %v1471 = vpow.pop %v1470
      %v1472 = vmul.f32 %v1425, 1.442695
      %v1473 = vpow.pop %v1472
      %v1474 = vmul.f32 %v1426, 1.442695
      %v1475 = vpow.pop %v1474
      %v1476 = vmul.f32 %v1427, 1.442695
      %v1477 = vpow.pop %v1476
      %v1478 = vmul.f32 %v1428, 1.442695
      %v1479 = vpow.pop %v1478
      %v1480 = vmul.f32 %v1429, 1.442695
      %v1481 = vpow.pop %v1480
      %v1482 = vmul.f32 %v1430, 1.442695
      %v1483 = vpow.pop %v1482
      %v1484 = vmul.f32 %v1431, 1.442695
      %v1485 = vpow.pop %v1484
      %v1486 = vmul.f32 %v1432, 1.442695
      %v1487 = vpow.pop %v1486
      %v1488 = vmul.f32 %v1433, 1.442695
      %v1489 = vpow.pop %v1488
      %v1490 = vmul.f32 %v1434, 1.442695
      %v1491 = vpow.pop %v1490
      %v1492 = vmul.f32 %v1435, 1.442695
      %v1493 = vpow.pop %v1492
      %v1494 = vmul.f32 %v1436, 1.442695
      %v1495 = vpow.pop %v1494
      %v1496 = vmul.f32 %v1437, 1.442695
      %v1497 = vpow.pop %v1496
      %v1498 = vmul.f32 %v1438, 1.442695
      %v1499 = vpow.pop %v1498
      %v1500 = vmul.f32 %v1439, 1.442695
      %v1501 = vpow.pop %v1500
      %v1502 = vmul.f32 %v1440, 1.442695
      %v1503 = vpow.pop %v1502
      %v1504 = vmul.f32 %v1441, 1.442695
      %v1505 = vpow.pop %v1504
      %v1506 = vadd.f32 %v1443, %v1445
      %1507 = vadd.xlane.f32.xlu0 %v1506
      %v1508 = vpop.xlane.xlu0 %1507
      %v1509 = vadd.f32 %v1447, %v1449
      %1510 = vadd.xlane.f32.xlu0 %v1509
      %v1511 = vpop.xlane.xlu0 %1510
      %v1512 = vadd.f32 %v1451, %v1453
      %1513 = vadd.xlane.f32.xlu0 %v1512
      %v1514 = vpop.xlane.xlu0 %1513
      %v1515 = vadd.f32 %v1455, %v1457
      %1516 = vadd.xlane.f32.xlu0 %v1515
      %v1517 = vpop.xlane.xlu0 %1516
      %v1518 = vadd.f32 %v1459, %v1461
      %1519 = vadd.xlane.f32.xlu0 %v1518
      %v1520 = vpop.xlane.xlu0 %1519
      %v1521 = vadd.f32 %v1463, %v1465
      %1522 = vadd.xlane.f32.xlu0 %v1521
      %v1523 = vpop.xlane.xlu0 %1522
      %v1524 = vadd.f32 %v1467, %v1469
      %1525 = vadd.xlane.f32.xlu0 %v1524
      %v1526 = vpop.xlane.xlu0 %1525
      %v1527 = vadd.f32 %v1471, %v1473
      %1528 = vadd.xlane.f32.xlu0 %v1527
      %v1529 = vpop.xlane.xlu0 %1528
      %v1530 = vadd.f32 %v1475, %v1477
      %1531 = vadd.xlane.f32.xlu0 %v1530
      %v1532 = vpop.xlane.xlu0 %1531
      %v1533 = vadd.f32 %v1479, %v1481
      %1534 = vadd.xlane.f32.xlu0 %v1533
      %v1535 = vpop.xlane.xlu0 %1534
      %v1536 = vadd.f32 %v1483, %v1485
      %1537 = vadd.xlane.f32.xlu0 %v1536
      %v1538 = vpop.xlane.xlu0 %1537
      %v1539 = vadd.f32 %v1487, %v1489
      %1540 = vadd.xlane.f32.xlu0 %v1539
      %v1541 = vpop.xlane.xlu0 %1540
      %v1542 = vadd.f32 %v1491, %v1493
      %1543 = vadd.xlane.f32.xlu0 %v1542
      %v1544 = vpop.xlane.xlu0 %1543
      %v1545 = vadd.f32 %v1495, %v1497
      %1546 = vadd.xlane.f32.xlu0 %v1545
      %v1547 = vpop.xlane.xlu0 %1546
      %v1548 = vadd.f32 %v1499, %v1501
      %1549 = vadd.xlane.f32.xlu0 %v1548
      %v1550 = vpop.xlane.xlu0 %1549
      %v1551 = vadd.f32 %v1503, %v1505
      %1552 = vadd.xlane.f32.xlu0 %v1551
      %v1553 = vpop.xlane.xlu0 %1552
      %v1554 = vrcp.pop %v1508
      %v1555 = vrcp.pop %v1511
      %v1556 = vrcp.pop %v1514
      %v1557 = vrcp.pop %v1517
      %v1558 = vrcp.pop %v1520
      %v1559 = vrcp.pop %v1523
      %v1560 = vrcp.pop %v1526
      %v1561 = vrcp.pop %v1529
      %v1562 = vrcp.pop %v1532
      %v1563 = vrcp.pop %v1535
      %v1564 = vrcp.pop %v1538
      %v1565 = vrcp.pop %v1541
      %v1566 = vrcp.pop %v1544
      %v1567 = vrcp.pop %v1547
      %v1568 = vrcp.pop %v1550
      %v1569 = vrcp.pop %v1553
      %v1570 = vmul.f32 %v1443, %v1554
      %v1571 = vmul.f32 %v1445, %v1554
      %v1572 = vmul.f32 %v1447, %v1555
      %v1573 = vmul.f32 %v1449, %v1555
      %v1574 = vmul.f32 %v1451, %v1556
      %v1575 = vmul.f32 %v1453, %v1556
      %v1576 = vmul.f32 %v1455, %v1557
      %v1577 = vmul.f32 %v1457, %v1557
      %v1578 = vmul.f32 %v1459, %v1558
      %v1579 = vmul.f32 %v1461, %v1558
      %v1580 = vmul.f32 %v1463, %v1559
      %v1581 = vmul.f32 %v1465, %v1559
      %v1582 = vmul.f32 %v1467, %v1560
      %v1583 = vmul.f32 %v1469, %v1560
      %v1584 = vmul.f32 %v1471, %v1561
      %v1585 = vmul.f32 %v1473, %v1561
      %v1586 = vmul.f32 %v1475, %v1562
      %v1587 = vmul.f32 %v1477, %v1562
      %v1588 = vmul.f32 %v1479, %v1563
      %v1589 = vmul.f32 %v1481, %v1563
      %v1590 = vmul.f32 %v1483, %v1564
      %v1591 = vmul.f32 %v1485, %v1564
      %v1592 = vmul.f32 %v1487, %v1565
      %v1593 = vmul.f32 %v1489, %v1565
      %v1594 = vmul.f32 %v1491, %v1566
      %v1595 = vmul.f32 %v1493, %v1566
      %v1596 = vmul.f32 %v1495, %v1567
      %v1597 = vmul.f32 %v1497, %v1567
      %v1598 = vmul.f32 %v1499, %v1568
      %v1599 = vmul.f32 %v1501, %v1568
      %v1600 = vmul.f32 %v1503, %v1569
      %v1601 = vmul.f32 %v1505, %v1569
      %v1602 = vpack.c.bf16 %v1572, %v1570
      %v1603 = vpack.c.bf16 %v1573, %v1571
      %v1604 = vpack.c.bf16 %v1576, %v1574
      %v1605 = vpack.c.bf16 %v1577, %v1575
      %v1606 = vpack.c.bf16 %v1580, %v1578
      %v1607 = vpack.c.bf16 %v1581, %v1579
      %v1608 = vpack.c.bf16 %v1584, %v1582
      %v1609 = vpack.c.bf16 %v1585, %v1583
      %v1610 = vpack.c.bf16 %v1588, %v1586
      %v1611 = vpack.c.bf16 %v1589, %v1587
      %v1612 = vpack.c.bf16 %v1592, %v1590
      %v1613 = vpack.c.bf16 %v1593, %v1591
      %v1614 = vpack.c.bf16 %v1596, %v1594
      %v1615 = vpack.c.bf16 %v1597, %v1595
      %v1616 = vpack.c.bf16 %v1600, %v1598
      %v1617 = vpack.c.bf16 %v1601, %v1599
      %1618 = vrot.lane.b32.xlu0 %v906, 96
      %v1619 = vpop.permute.xlu0 %1618
      %1620 = vrot.lane.b32.xlu0 %v907, 96
      %v1621 = vpop.permute.xlu0 %1620
      %1622 = vrot.lane.b32.xlu0 %v908, 96
      %v1623 = vpop.permute.xlu0 %1622
      %1624 = vrot.lane.b32.xlu0 %v909, 96
      %v1625 = vpop.permute.xlu0 %1624
      %1626 = vrot.lane.b32.xlu0 %v910, 96
      %v1627 = vpop.permute.xlu0 %1626
      %1628 = vrot.lane.b32.xlu0 %v911, 96
      %v1629 = vpop.permute.xlu0 %1628
      %1630 = vrot.lane.b32.xlu0 %v912, 96
      %v1631 = vpop.permute.xlu0 %1630
      %1632 = vrot.lane.b32.xlu0 %v913, 96
      %v1633 = vpop.permute.xlu0 %1632
      %1634 = vrot.lane.b32.xlu0 %v914, 96
      %v1635 = vpop.permute.xlu0 %1634
      %1636 = vrot.lane.b32.xlu0 %v915, 96
      %v1637 = vpop.permute.xlu0 %1636
      %1638 = vrot.lane.b32.xlu0 %v916, 96
      %v1639 = vpop.permute.xlu0 %1638
      %1640 = vrot.lane.b32.xlu0 %v917, 96
      %v1641 = vpop.permute.xlu0 %1640
      %1642 = vrot.lane.b32.xlu0 %v918, 96
      %v1643 = vpop.permute.xlu0 %1642
      %1644 = vrot.lane.b32.xlu0 %v919, 96
      %v1645 = vpop.permute.xlu0 %1644
      %1646 = vrot.lane.b32.xlu0 %v920, 96
      %v1647 = vpop.permute.xlu0 %1646
      %1648 = vrot.lane.b32.xlu0 %v921, 96
      %v1649 = vpop.permute.xlu0 %1648
      %1666 = vmatpush.bf16.msra.mxu0 %v1633
      %1667 = vmatpush.bf16.msra.mxu0 %v1631
      %1668 = vmatpush.bf16.msra.mxu0 %v1629
      %1669 = vmatpush.bf16.msra.mxu0 %v1627
      %1670 = vmatpush.bf16.msra.mxu0 %v1625
      %1671 = vmatpush.bf16.msra.mxu0 %v1623
      %1672 = vmatpush.bf16.msra.mxu0 %v1621
      %1673 = vmatpush.bf16.msra.mxu0 %v1619
      %1674 = vmatmul.bf16.gmra.mxu0 %v1602
      %v1675 = vpop.f32.mrf.mxu0
      %v1676 = vadd.f32 0.0, %v1675
      %v1677 = vpop.f32.mrf.mxu0
      %v1678 = vadd.f32 0.0, %v1677
      %1679 = vmatmul.bf16.gmra.mxu0 %v1604
      %v1680 = vpop.f32.mrf.mxu0
      %v1681 = vadd.f32 0.0, %v1680
      %v1682 = vpop.f32.mrf.mxu0
      %v1683 = vadd.f32 0.0, %v1682
      %1684 = vmatmul.bf16.gmra.mxu0 %v1606
      %v1685 = vpop.f32.mrf.mxu0
      %v1686 = vadd.f32 0.0, %v1685
      %v1687 = vpop.f32.mrf.mxu0
      %v1688 = vadd.f32 0.0, %v1687
      %1689 = vmatmul.bf16.gmra.mxu0 %v1608
      %v1690 = vpop.f32.mrf.mxu0
      %v1691 = vadd.f32 0.0, %v1690
      %v1692 = vpop.f32.mrf.mxu0
      %v1693 = vadd.f32 0.0, %v1692
      %1694 = vmatmul.bf16.gmra.mxu0 %v1610
      %v1695 = vpop.f32.mrf.mxu0
      %v1696 = vadd.f32 0.0, %v1695
      %v1697 = vpop.f32.mrf.mxu0
      %v1698 = vadd.f32 0.0, %v1697
      %1699 = vmatmul.bf16.gmra.mxu0 %v1612
      %v1700 = vpop.f32.mrf.mxu0
      %v1701 = vadd.f32 0.0, %v1700
      %v1702 = vpop.f32.mrf.mxu0
      %v1703 = vadd.f32 0.0, %v1702
      %1704 = vmatmul.bf16.gmra.mxu0 %v1614
      %v1705 = vpop.f32.mrf.mxu0
      %v1706 = vadd.f32 0.0, %v1705
      %v1707 = vpop.f32.mrf.mxu0
      %v1708 = vadd.f32 0.0, %v1707
      %1709 = vmatmul.bf16.gmra.mxu0 %v1616
      %v1710 = vpop.f32.mrf.mxu0
      %v1711 = vadd.f32 0.0, %v1710
      %v1712 = vpop.f32.mrf.mxu0
      %v1713 = vadd.f32 0.0, %v1712
      %1714 = vdwg.mxu0
      %1715 = vmatpush.bf16.msra.mxu0 %v1649
      %1716 = vmatpush.bf16.msra.mxu0 %v1647
      %1717 = vmatpush.bf16.msra.mxu0 %v1645
      %1718 = vmatpush.bf16.msra.mxu0 %v1643
      %1719 = vmatpush.bf16.msra.mxu0 %v1641
      %1720 = vmatpush.bf16.msra.mxu0 %v1639
      %1721 = vmatpush.bf16.msra.mxu0 %v1637
      %1722 = vmatpush.bf16.msra.mxu0 %v1635
      %1723 = vmatmul.bf16.gmra.mxu0 %v1603
      %v1724 = vpop.f32.mrf.mxu0
      %v1725 = vadd.f32 %v1676, %v1724
      %v1726 = vpop.f32.mrf.mxu0
      %v1727 = vadd.f32 %v1678, %v1726
      %1728 = vmatmul.bf16.gmra.mxu0 %v1605
      %v1729 = vpop.f32.mrf.mxu0
      %v1730 = vadd.f32 %v1681, %v1729
      %v1731 = vpop.f32.mrf.mxu0
      %v1732 = vadd.f32 %v1683, %v1731
      %1733 = vmatmul.bf16.gmra.mxu0 %v1607
      %v1734 = vpop.f32.mrf.mxu0
      %v1735 = vadd.f32 %v1686, %v1734
      %v1736 = vpop.f32.mrf.mxu0
      %v1737 = vadd.f32 %v1688, %v1736
      %1738 = vmatmul.bf16.gmra.mxu0 %v1609
      %v1739 = vpop.f32.mrf.mxu0
      %v1740 = vadd.f32 %v1691, %v1739
      %v1741 = vpop.f32.mrf.mxu0
      %v1742 = vadd.f32 %v1693, %v1741
      %1743 = vmatmul.bf16.gmra.mxu0 %v1611
      %v1744 = vpop.f32.mrf.mxu0
      %v1745 = vadd.f32 %v1696, %v1744
      %v1746 = vpop.f32.mrf.mxu0
      %v1747 = vadd.f32 %v1698, %v1746
      %1748 = vmatmul.bf16.gmra.mxu0 %v1613
      %v1749 = vpop.f32.mrf.mxu0
      %v1750 = vadd.f32 %v1701, %v1749
      %v1751 = vpop.f32.mrf.mxu0
      %v1752 = vadd.f32 %v1703, %v1751
      %1753 = vmatmul.bf16.gmra.mxu0 %v1615
      %v1754 = vpop.f32.mrf.mxu0
      %v1755 = vadd.f32 %v1706, %v1754
      %v1756 = vpop.f32.mrf.mxu0
      %v1757 = vadd.f32 %v1708, %v1756
      %1758 = vmatmul.bf16.gmra.mxu0 %v1617
      %v1759 = vpop.f32.mrf.mxu0
      %v1760 = vadd.f32 %v1711, %v1759
      %v1761 = vpop.f32.mrf.mxu0
      %v1762 = vadd.f32 %v1713, %v1761
      %1763 = vdwg.mxu0
      %vm1764 = vcmp.gt.f32.partialorder %v1725, 0.0
      %vm1765 = vcmp.gt.f32.partialorder %v1727, 0.0
      %vm1766 = vcmp.gt.f32.partialorder %v1730, 0.0
      %vm1767 = vcmp.gt.f32.partialorder %v1732, 0.0
      %vm1768 = vcmp.gt.f32.partialorder %v1735, 0.0
      %vm1769 = vcmp.gt.f32.partialorder %v1737, 0.0
      %vm1770 = vcmp.gt.f32.partialorder %v1740, 0.0
      %vm1771 = vcmp.gt.f32.partialorder %v1742, 0.0
      %vm1772 = vcmp.gt.f32.partialorder %v1745, 0.0
      %vm1773 = vcmp.gt.f32.partialorder %v1747, 0.0
      %vm1774 = vcmp.gt.f32.partialorder %v1750, 0.0
      %vm1775 = vcmp.gt.f32.partialorder %v1752, 0.0
      %vm1776 = vcmp.gt.f32.partialorder %v1755, 0.0
      %vm1777 = vcmp.gt.f32.partialorder %v1757, 0.0
      %vm1778 = vcmp.gt.f32.partialorder %v1760, 0.0
      %vm1779 = vcmp.gt.f32.partialorder %v1762, 0.0
      %v1780 = vmin.f32 %v1725, 0.0
      %v1781 = vmin.f32 %v1727, 0.0
      %v1782 = vmin.f32 %v1730, 0.0
      %v1783 = vmin.f32 %v1732, 0.0
      %v1784 = vmin.f32 %v1735, 0.0
      %v1785 = vmin.f32 %v1737, 0.0
      %v1786 = vmin.f32 %v1740, 0.0
      %v1787 = vmin.f32 %v1742, 0.0
      %v1788 = vmin.f32 %v1745, 0.0
      %v1789 = vmin.f32 %v1747, 0.0
      %v1790 = vmin.f32 %v1750, 0.0
      %v1791 = vmin.f32 %v1752, 0.0
      %v1792 = vmin.f32 %v1755, 0.0
      %v1793 = vmin.f32 %v1757, 0.0
      %v1794 = vmin.f32 %v1760, 0.0
      %v1795 = vmin.f32 %v1762, 0.0
      %v1796 = vmul.f32 %v1780, 1.442695
      %v1797 = vpow.pop %v1796
      %v1798 = vmul.f32 %v1781, 1.442695
      %v1799 = vpow.pop %v1798
      %v1800 = vmul.f32 %v1782, 1.442695
      %v1801 = vpow.pop %v1800
      %v1802 = vmul.f32 %v1783, 1.442695
      %v1803 = vpow.pop %v1802
      %v1804 = vmul.f32 %v1784, 1.442695
      %v1805 = vpow.pop %v1804
      %v1806 = vmul.f32 %v1785, 1.442695
      %v1807 = vpow.pop %v1806
      %v1808 = vmul.f32 %v1786, 1.442695
      %v1809 = vpow.pop %v1808
      %v1810 = vmul.f32 %v1787, 1.442695
      %v1811 = vpow.pop %v1810
      %v1812 = vmul.f32 %v1788, 1.442695
      %v1813 = vpow.pop %v1812
      %v1814 = vmul.f32 %v1789, 1.442695
      %v1815 = vpow.pop %v1814
      %v1816 = vmul.f32 %v1790, 1.442695
      %v1817 = vpow.pop %v1816
      %v1818 = vmul.f32 %v1791, 1.442695
      %v1819 = vpow.pop %v1818
      %v1820 = vmul.f32 %v1792, 1.442695
      %v1821 = vpow.pop %v1820
      %v1822 = vmul.f32 %v1793, 1.442695
      %v1823 = vpow.pop %v1822
      %v1824 = vmul.f32 %v1794, 1.442695
      %v1825 = vpow.pop %v1824
      %v1826 = vmul.f32 %v1795, 1.442695
      %v1827 = vpow.pop %v1826
      %v1828 = vsub.f32 %v1797, 1.0
      %v1829 = vsub.f32 %v1799, 1.0
      %v1830 = vsub.f32 %v1801, 1.0
      %v1831 = vsub.f32 %v1803, 1.0
      %v1832 = vsub.f32 %v1805, 1.0
      %v1833 = vsub.f32 %v1807, 1.0
      %v1834 = vsub.f32 %v1809, 1.0
      %v1835 = vsub.f32 %v1811, 1.0
      %v1836 = vsub.f32 %v1813, 1.0
      %v1837 = vsub.f32 %v1815, 1.0
      %v1838 = vsub.f32 %v1817, 1.0
      %v1839 = vsub.f32 %v1819, 1.0
      %v1840 = vsub.f32 %v1821, 1.0
      %v1841 = vsub.f32 %v1823, 1.0
      %v1842 = vsub.f32 %v1825, 1.0
      %v1843 = vsub.f32 %v1827, 1.0
      %v1844 = vsel %vm1764, %v1725, %v1828
      %v1845 = vsel %vm1765, %v1727, %v1829
      %v1846 = vsel %vm1766, %v1730, %v1830
      %v1847 = vsel %vm1767, %v1732, %v1831
      %v1848 = vsel %vm1768, %v1735, %v1832
      %v1849 = vsel %vm1769, %v1737, %v1833
      %v1850 = vsel %vm1770, %v1740, %v1834
      %v1851 = vsel %vm1771, %v1742, %v1835
      %v1852 = vsel %vm1772, %v1745, %v1836
      %v1853 = vsel %vm1773, %v1747, %v1837
      %v1854 = vsel %vm1774, %v1750, %v1838
      %v1855 = vsel %vm1775, %v1752, %v1839
      %v1856 = vsel %vm1776, %v1755, %v1840
      %v1857 = vsel %vm1777, %v1757, %v1841
      %v1858 = vsel %vm1778, %v1760, %v1842
      %v1859 = vsel %vm1779, %v1762, %v1843
      %1860 = vset.pattern.permute.xlu0 2
      %1861 = vperm.xlu0 %1860, %v290
      %v1862 = vpop.permute.xlu0 %1861
      %1864 = vset.pattern.permute.xlu0 2
      %1865 = vperm.xlu0 %1864, %v291
      %v1866 = vpop.permute.xlu0 %1865
      %1868 = vset.pattern.permute.xlu0 2
      %1869 = vperm.xlu0 %1868, %v292
      %v1870 = vpop.permute.xlu0 %1869
      %1872 = vset.pattern.permute.xlu0 2
      %1873 = vperm.xlu0 %1872, %v293
      %v1874 = vpop.permute.xlu0 %1873
      %1876 = vset.pattern.permute.xlu0 2
      %1877 = vperm.xlu0 %1876, %v294
      %v1878 = vpop.permute.xlu0 %1877
      %1880 = vset.pattern.permute.xlu0 2
      %1881 = vperm.xlu0 %1880, %v295
      %v1882 = vpop.permute.xlu0 %1881
      %1884 = vset.pattern.permute.xlu0 2
      %1885 = vperm.xlu0 %1884, %v296
      %v1886 = vpop.permute.xlu0 %1885
      %1888 = vset.pattern.permute.xlu0 2
      %1889 = vperm.xlu0 %1888, %v297
      %v1890 = vpop.permute.xlu0 %1889
      %1892 = vset.pattern.permute.xlu0 2
      %1893 = vperm.xlu0 %1892, %v298
      %v1894 = vpop.permute.xlu0 %1893
      %1896 = vset.pattern.permute.xlu0 2
      %1897 = vperm.xlu0 %1896, %v299
      %v1898 = vpop.permute.xlu0 %1897
      %1900 = vset.pattern.permute.xlu0 2
      %1901 = vperm.xlu0 %1900, %v300
      %v1902 = vpop.permute.xlu0 %1901
      %1904 = vset.pattern.permute.xlu0 2
      %1905 = vperm.xlu0 %1904, %v301
      %v1906 = vpop.permute.xlu0 %1905
      %1908 = vset.pattern.permute.xlu0 2
      %1909 = vperm.xlu0 %1908, %v302
      %v1910 = vpop.permute.xlu0 %1909
      %1912 = vset.pattern.permute.xlu0 2
      %1913 = vperm.xlu0 %1912, %v303
      %v1914 = vpop.permute.xlu0 %1913
      %1916 = vset.pattern.permute.xlu0 2
      %1917 = vperm.xlu0 %1916, %v304
      %v1918 = vpop.permute.xlu0 %1917
      %1920 = vset.pattern.permute.xlu0 2
      %1921 = vperm.xlu0 %1920, %v305
      %v1922 = vpop.permute.xlu0 %1921
      %v1924 = vperm.slane %v306, 2
      %v1925 = vperm.slane %v306, 6
      %v1928 = vperm.slane %v1924, 2
      %v1929 = vperm.slane %v1925, 2
      %v1930 = vadd.f32 %v1862, %v1928
      %v1931 = vadd.f32 %v1862, %v1929
      %v1932 = vadd.f32 %v1866, %v1928
      %v1933 = vadd.f32 %v1866, %v1929
      %v1934 = vadd.f32 %v1870, %v1928
      %v1935 = vadd.f32 %v1870, %v1929
      %v1936 = vadd.f32 %v1874, %v1928
      %v1937 = vadd.f32 %v1874, %v1929
      %v1938 = vadd.f32 %v1878, %v1928
      %v1939 = vadd.f32 %v1878, %v1929
      %v1940 = vadd.f32 %v1882, %v1928
      %v1941 = vadd.f32 %v1882, %v1929
      %v1942 = vadd.f32 %v1886, %v1928
      %v1943 = vadd.f32 %v1886, %v1929
      %v1944 = vadd.f32 %v1890, %v1928
      %v1945 = vadd.f32 %v1890, %v1929
      %v1946 = vadd.f32 %v1894, %v1928
      %v1947 = vadd.f32 %v1894, %v1929
      %v1948 = vadd.f32 %v1898, %v1928
      %v1949 = vadd.f32 %v1898, %v1929
      %v1950 = vadd.f32 %v1902, %v1928
      %v1951 = vadd.f32 %v1902, %v1929
      %v1952 = vadd.f32 %v1906, %v1928
      %v1953 = vadd.f32 %v1906, %v1929
      %v1954 = vadd.f32 %v1910, %v1928
      %v1955 = vadd.f32 %v1910, %v1929
      %v1956 = vadd.f32 %v1914, %v1928
      %v1957 = vadd.f32 %v1914, %v1929
      %v1958 = vadd.f32 %v1918, %v1928
      %v1959 = vadd.f32 %v1918, %v1929
      %v1960 = vadd.f32 %v1922, %v1928
      %v1961 = vadd.f32 %v1922, %v1929
      %vm1962 = vcmp.gt.f32.partialorder %v1930, 0.0
      %vm1963 = vcmp.gt.f32.partialorder %v1931, 0.0
      %vm1964 = vcmp.gt.f32.partialorder %v1932, 0.0
      %vm1965 = vcmp.gt.f32.partialorder %v1933, 0.0
      %vm1966 = vcmp.gt.f32.partialorder %v1934, 0.0
      %vm1967 = vcmp.gt.f32.partialorder %v1935, 0.0
      %vm1968 = vcmp.gt.f32.partialorder %v1936, 0.0
      %vm1969 = vcmp.gt.f32.partialorder %v1937, 0.0
      %vm1970 = vcmp.gt.f32.partialorder %v1938, 0.0
      %vm1971 = vcmp.gt.f32.partialorder %v1939, 0.0
      %vm1972 = vcmp.gt.f32.partialorder %v1940, 0.0
      %vm1973 = vcmp.gt.f32.partialorder %v1941, 0.0
      %vm1974 = vcmp.gt.f32.partialorder %v1942, 0.0
      %vm1975 = vcmp.gt.f32.partialorder %v1943, 0.0
      %vm1976 = vcmp.gt.f32.partialorder %v1944, 0.0
      %vm1977 = vcmp.gt.f32.partialorder %v1945, 0.0
      %vm1978 = vcmp.gt.f32.partialorder %v1946, 0.0
      %vm1979 = vcmp.gt.f32.partialorder %v1947, 0.0
      %vm1980 = vcmp.gt.f32.partialorder %v1948, 0.0
      %vm1981 = vcmp.gt.f32.partialorder %v1949, 0.0
      %vm1982 = vcmp.gt.f32.partialorder %v1950, 0.0
      %vm1983 = vcmp.gt.f32.partialorder %v1951, 0.0
      %vm1984 = vcmp.gt.f32.partialorder %v1952, 0.0
      %vm1985 = vcmp.gt.f32.partialorder %v1953, 0.0
      %vm1986 = vcmp.gt.f32.partialorder %v1954, 0.0
      %vm1987 = vcmp.gt.f32.partialorder %v1955, 0.0
      %vm1988 = vcmp.gt.f32.partialorder %v1956, 0.0
      %vm1989 = vcmp.gt.f32.partialorder %v1957, 0.0
      %vm1990 = vcmp.gt.f32.partialorder %v1958, 0.0
      %vm1991 = vcmp.gt.f32.partialorder %v1959, 0.0
      %vm1992 = vcmp.gt.f32.partialorder %v1960, 0.0
      %vm1993 = vcmp.gt.f32.partialorder %v1961, 0.0
      %v1994 = vmul.f32 %v1930, 0.2
      %v1995 = vmul.f32 %v1931, 0.2
      %v1996 = vmul.f32 %v1932, 0.2
      %v1997 = vmul.f32 %v1933, 0.2
      %v1998 = vmul.f32 %v1934, 0.2
      %v1999 = vmul.f32 %v1935, 0.2
      %v2000 = vmul.f32 %v1936, 0.2
      %v2001 = vmul.f32 %v1937, 0.2
      %v2002 = vmul.f32 %v1938, 0.2
      %v2003 = vmul.f32 %v1939, 0.2
      %v2004 = vmul.f32 %v1940, 0.2
      %v2005 = vmul.f32 %v1941, 0.2
      %v2006 = vmul.f32 %v1942, 0.2
      %v2007 = vmul.f32 %v1943, 0.2
      %v2008 = vmul.f32 %v1944, 0.2
      %v2009 = vmul.f32 %v1945, 0.2
      %v2010 = vmul.f32 %v1946, 0.2
      %v2011 = vmul.f32 %v1947, 0.2
      %v2012 = vmul.f32 %v1948, 0.2
      %v2013 = vmul.f32 %v1949, 0.2
      %v2014 = vmul.f32 %v1950, 0.2
      %v2015 = vmul.f32 %v1951, 0.2
      %v2016 = vmul.f32 %v1952, 0.2
      %v2017 = vmul.f32 %v1953, 0.2
      %v2018 = vmul.f32 %v1954, 0.2
      %v2019 = vmul.f32 %v1955, 0.2
      %v2020 = vmul.f32 %v1956, 0.2
      %v2021 = vmul.f32 %v1957, 0.2
      %v2022 = vmul.f32 %v1958, 0.2
      %v2023 = vmul.f32 %v1959, 0.2
      %v2024 = vmul.f32 %v1960, 0.2
      %v2025 = vmul.f32 %v1961, 0.2
      %v2026 = vsel %vm1962, %v1930, %v1994
      %v2027 = vsel %vm1963, %v1931, %v1995
      %v2028 = vsel %vm1964, %v1932, %v1996
      %v2029 = vsel %vm1965, %v1933, %v1997
      %v2030 = vsel %vm1966, %v1934, %v1998
      %v2031 = vsel %vm1967, %v1935, %v1999
      %v2032 = vsel %vm1968, %v1936, %v2000
      %v2033 = vsel %vm1969, %v1937, %v2001
      %v2034 = vsel %vm1970, %v1938, %v2002
      %v2035 = vsel %vm1971, %v1939, %v2003
      %v2036 = vsel %vm1972, %v1940, %v2004
      %v2037 = vsel %vm1973, %v1941, %v2005
      %v2038 = vsel %vm1974, %v1942, %v2006
      %v2039 = vsel %vm1975, %v1943, %v2007
      %v2040 = vsel %vm1976, %v1944, %v2008
      %v2041 = vsel %vm1977, %v1945, %v2009
      %v2042 = vsel %vm1978, %v1946, %v2010
      %v2043 = vsel %vm1979, %v1947, %v2011
      %v2044 = vsel %vm1980, %v1948, %v2012
      %v2045 = vsel %vm1981, %v1949, %v2013
      %v2046 = vsel %vm1982, %v1950, %v2014
      %v2047 = vsel %vm1983, %v1951, %v2015
      %v2048 = vsel %vm1984, %v1952, %v2016
      %v2049 = vsel %vm1985, %v1953, %v2017
      %v2050 = vsel %vm1986, %v1954, %v2018
      %v2051 = vsel %vm1987, %v1955, %v2019
      %v2052 = vsel %vm1988, %v1956, %v2020
      %v2053 = vsel %vm1989, %v1957, %v2021
      %v2054 = vsel %vm1990, %v1958, %v2022
      %v2055 = vsel %vm1991, %v1959, %v2023
      %v2056 = vsel %vm1992, %v1960, %v2024
      %v2057 = vsel %vm1993, %v1961, %v2025
      %v2058 = vsel %vm258, %v2026, -9e+15
      %v2059 = vsel %vm259, %v2027, -9e+15
      %v2060 = vsel %vm260, %v2028, -9e+15
      %v2061 = vsel %vm261, %v2029, -9e+15
      %v2062 = vsel %vm262, %v2030, -9e+15
      %v2063 = vsel %vm263, %v2031, -9e+15
      %v2064 = vsel %vm264, %v2032, -9e+15
      %v2065 = vsel %vm265, %v2033, -9e+15
      %v2066 = vsel %vm266, %v2034, -9e+15
      %v2067 = vsel %vm267, %v2035, -9e+15
      %v2068 = vsel %vm268, %v2036, -9e+15
      %v2069 = vsel %vm269, %v2037, -9e+15
      %v2070 = vsel %vm270, %v2038, -9e+15
      %v2071 = vsel %vm271, %v2039, -9e+15
      %v2072 = vsel %vm272, %v2040, -9e+15
      %v2073 = vsel %vm273, %v2041, -9e+15
      %v2074 = vsel %vm274, %v2042, -9e+15
      %v2075 = vsel %vm275, %v2043, -9e+15
      %v2076 = vsel %vm276, %v2044, -9e+15
      %v2077 = vsel %vm277, %v2045, -9e+15
      %v2078 = vsel %vm278, %v2046, -9e+15
      %v2079 = vsel %vm279, %v2047, -9e+15
      %v2080 = vsel %vm280, %v2048, -9e+15
      %v2081 = vsel %vm281, %v2049, -9e+15
      %v2082 = vsel %vm282, %v2050, -9e+15
      %v2083 = vsel %vm283, %v2051, -9e+15
      %v2084 = vsel %vm284, %v2052, -9e+15
      %v2085 = vsel %vm285, %v2053, -9e+15
      %v2086 = vsel %vm286, %v2054, -9e+15
      %v2087 = vsel %vm287, %v2055, -9e+15
      %v2088 = vsel %vm288, %v2056, -9e+15
      %v2089 = vsel %vm289, %v2057, -9e+15
      %v2090 = vmax.f32 %v2058, %v2059
      %2091 = vmax.xlane.f32.xlu0 %v2090
      %v2092 = vpop.xlane.xlu0 %2091
      %v2093 = vmax.f32 %v2060, %v2061
      %2094 = vmax.xlane.f32.xlu0 %v2093
      %v2095 = vpop.xlane.xlu0 %2094
      %v2096 = vmax.f32 %v2062, %v2063
      %2097 = vmax.xlane.f32.xlu0 %v2096
      %v2098 = vpop.xlane.xlu0 %2097
      %v2099 = vmax.f32 %v2064, %v2065
      %2100 = vmax.xlane.f32.xlu0 %v2099
      %v2101 = vpop.xlane.xlu0 %2100
      %v2102 = vmax.f32 %v2066, %v2067
      %2103 = vmax.xlane.f32.xlu0 %v2102
      %v2104 = vpop.xlane.xlu0 %2103
      %v2105 = vmax.f32 %v2068, %v2069
      %2106 = vmax.xlane.f32.xlu0 %v2105
      %v2107 = vpop.xlane.xlu0 %2106
      %v2108 = vmax.f32 %v2070, %v2071
      %2109 = vmax.xlane.f32.xlu0 %v2108
      %v2110 = vpop.xlane.xlu0 %2109
      %v2111 = vmax.f32 %v2072, %v2073
      %2112 = vmax.xlane.f32.xlu0 %v2111
      %v2113 = vpop.xlane.xlu0 %2112
      %v2114 = vmax.f32 %v2074, %v2075
      %2115 = vmax.xlane.f32.xlu0 %v2114
      %v2116 = vpop.xlane.xlu0 %2115
      %v2117 = vmax.f32 %v2076, %v2077
      %2118 = vmax.xlane.f32.xlu0 %v2117
      %v2119 = vpop.xlane.xlu0 %2118
      %v2120 = vmax.f32 %v2078, %v2079
      %2121 = vmax.xlane.f32.xlu0 %v2120
      %v2122 = vpop.xlane.xlu0 %2121
      %v2123 = vmax.f32 %v2080, %v2081
      %2124 = vmax.xlane.f32.xlu0 %v2123
      %v2125 = vpop.xlane.xlu0 %2124
      %v2126 = vmax.f32 %v2082, %v2083
      %2127 = vmax.xlane.f32.xlu0 %v2126
      %v2128 = vpop.xlane.xlu0 %2127
      %v2129 = vmax.f32 %v2084, %v2085
      %2130 = vmax.xlane.f32.xlu0 %v2129
      %v2131 = vpop.xlane.xlu0 %2130
      %v2132 = vmax.f32 %v2086, %v2087
      %2133 = vmax.xlane.f32.xlu0 %v2132
      %v2134 = vpop.xlane.xlu0 %2133
      %v2135 = vmax.f32 %v2088, %v2089
      %2136 = vmax.xlane.f32.xlu0 %v2135
      %v2137 = vpop.xlane.xlu0 %2136
      %v2138 = vsub.f32 %v2058, %v2092
      %v2139 = vsub.f32 %v2059, %v2092
      %v2140 = vsub.f32 %v2060, %v2095
      %v2141 = vsub.f32 %v2061, %v2095
      %v2142 = vsub.f32 %v2062, %v2098
      %v2143 = vsub.f32 %v2063, %v2098
      %v2144 = vsub.f32 %v2064, %v2101
      %v2145 = vsub.f32 %v2065, %v2101
      %v2146 = vsub.f32 %v2066, %v2104
      %v2147 = vsub.f32 %v2067, %v2104
      %v2148 = vsub.f32 %v2068, %v2107
      %v2149 = vsub.f32 %v2069, %v2107
      %v2150 = vsub.f32 %v2070, %v2110
      %v2151 = vsub.f32 %v2071, %v2110
      %v2152 = vsub.f32 %v2072, %v2113
      %v2153 = vsub.f32 %v2073, %v2113
      %v2154 = vsub.f32 %v2074, %v2116
      %v2155 = vsub.f32 %v2075, %v2116
      %v2156 = vsub.f32 %v2076, %v2119
      %v2157 = vsub.f32 %v2077, %v2119
      %v2158 = vsub.f32 %v2078, %v2122
      %v2159 = vsub.f32 %v2079, %v2122
      %v2160 = vsub.f32 %v2080, %v2125
      %v2161 = vsub.f32 %v2081, %v2125
      %v2162 = vsub.f32 %v2082, %v2128
      %v2163 = vsub.f32 %v2083, %v2128
      %v2164 = vsub.f32 %v2084, %v2131
      %v2165 = vsub.f32 %v2085, %v2131
      %v2166 = vsub.f32 %v2086, %v2134
      %v2167 = vsub.f32 %v2087, %v2134
      %v2168 = vsub.f32 %v2088, %v2137
      %v2169 = vsub.f32 %v2089, %v2137
      %v2170 = vmul.f32 %v2138, 1.442695
      %v2171 = vpow.pop %v2170
      %v2172 = vmul.f32 %v2139, 1.442695
      %v2173 = vpow.pop %v2172
      %v2174 = vmul.f32 %v2140, 1.442695
      %v2175 = vpow.pop %v2174
      %v2176 = vmul.f32 %v2141, 1.442695
      %v2177 = vpow.pop %v2176
      %v2178 = vmul.f32 %v2142, 1.442695
      %v2179 = vpow.pop %v2178
      %v2180 = vmul.f32 %v2143, 1.442695
      %v2181 = vpow.pop %v2180
      %v2182 = vmul.f32 %v2144, 1.442695
      %v2183 = vpow.pop %v2182
      %v2184 = vmul.f32 %v2145, 1.442695
      %v2185 = vpow.pop %v2184
      %v2186 = vmul.f32 %v2146, 1.442695
      %v2187 = vpow.pop %v2186
      %v2188 = vmul.f32 %v2147, 1.442695
      %v2189 = vpow.pop %v2188
      %v2190 = vmul.f32 %v2148, 1.442695
      %v2191 = vpow.pop %v2190
      %v2192 = vmul.f32 %v2149, 1.442695
      %v2193 = vpow.pop %v2192
      %v2194 = vmul.f32 %v2150, 1.442695
      %v2195 = vpow.pop %v2194
      %v2196 = vmul.f32 %v2151, 1.442695
      %v2197 = vpow.pop %v2196
      %v2198 = vmul.f32 %v2152, 1.442695
      %v2199 = vpow.pop %v2198
      %v2200 = vmul.f32 %v2153, 1.442695
      %v2201 = vpow.pop %v2200
      %v2202 = vmul.f32 %v2154, 1.442695
      %v2203 = vpow.pop %v2202
      %v2204 = vmul.f32 %v2155, 1.442695
      %v2205 = vpow.pop %v2204
      %v2206 = vmul.f32 %v2156, 1.442695
      %v2207 = vpow.pop %v2206
      %v2208 = vmul.f32 %v2157, 1.442695
      %v2209 = vpow.pop %v2208
      %v2210 = vmul.f32 %v2158, 1.442695
      %v2211 = vpow.pop %v2210
      %v2212 = vmul.f32 %v2159, 1.442695
      %v2213 = vpow.pop %v2212
      %v2214 = vmul.f32 %v2160, 1.442695
      %v2215 = vpow.pop %v2214
      %v2216 = vmul.f32 %v2161, 1.442695
      %v2217 = vpow.pop %v2216
      %v2218 = vmul.f32 %v2162, 1.442695
      %v2219 = vpow.pop %v2218
      %v2220 = vmul.f32 %v2163, 1.442695
      %v2221 = vpow.pop %v2220
      %v2222 = vmul.f32 %v2164, 1.442695
      %v2223 = vpow.pop %v2222
      %v2224 = vmul.f32 %v2165, 1.442695
      %v2225 = vpow.pop %v2224
      %v2226 = vmul.f32 %v2166, 1.442695
      %v2227 = vpow.pop %v2226
      %v2228 = vmul.f32 %v2167, 1.442695
      %v2229 = vpow.pop %v2228
      %v2230 = vmul.f32 %v2168, 1.442695
      %v2231 = vpow.pop %v2230
      %v2232 = vmul.f32 %v2169, 1.442695
      %v2233 = vpow.pop %v2232
      %v2234 = vadd.f32 %v2171, %v2173
      %2235 = vadd.xlane.f32.xlu0 %v2234
      %v2236 = vpop.xlane.xlu0 %2235
      %v2237 = vadd.f32 %v2175, %v2177
      %2238 = vadd.xlane.f32.xlu0 %v2237
      %v2239 = vpop.xlane.xlu0 %2238
      %v2240 = vadd.f32 %v2179, %v2181
      %2241 = vadd.xlane.f32.xlu0 %v2240
      %v2242 = vpop.xlane.xlu0 %2241
      %v2243 = vadd.f32 %v2183, %v2185
      %2244 = vadd.xlane.f32.xlu0 %v2243
      %v2245 = vpop.xlane.xlu0 %2244
      %v2246 = vadd.f32 %v2187, %v2189
      %2247 = vadd.xlane.f32.xlu0 %v2246
      %v2248 = vpop.xlane.xlu0 %2247
      %v2249 = vadd.f32 %v2191, %v2193
      %2250 = vadd.xlane.f32.xlu0 %v2249
      %v2251 = vpop.xlane.xlu0 %2250
      %v2252 = vadd.f32 %v2195, %v2197
      %2253 = vadd.xlane.f32.xlu0 %v2252
      %v2254 = vpop.xlane.xlu0 %2253
      %v2255 = vadd.f32 %v2199, %v2201
      %2256 = vadd.xlane.f32.xlu0 %v2255
      %v2257 = vpop.xlane.xlu0 %2256
      %v2258 = vadd.f32 %v2203, %v2205
      %2259 = vadd.xlane.f32.xlu0 %v2258
      %v2260 = vpop.xlane.xlu0 %2259
      %v2261 = vadd.f32 %v2207, %v2209
      %2262 = vadd.xlane.f32.xlu0 %v2261
      %v2263 = vpop.xlane.xlu0 %2262
      %v2264 = vadd.f32 %v2211, %v2213
      %2265 = vadd.xlane.f32.xlu0 %v2264
      %v2266 = vpop.xlane.xlu0 %2265
      %v2267 = vadd.f32 %v2215, %v2217
      %2268 = vadd.xlane.f32.xlu0 %v2267
      %v2269 = vpop.xlane.xlu0 %2268
      %v2270 = vadd.f32 %v2219, %v2221
      %2271 = vadd.xlane.f32.xlu0 %v2270
      %v2272 = vpop.xlane.xlu0 %2271
      %v2273 = vadd.f32 %v2223, %v2225
      %2274 = vadd.xlane.f32.xlu0 %v2273
      %v2275 = vpop.xlane.xlu0 %2274
      %v2276 = vadd.f32 %v2227, %v2229
      %2277 = vadd.xlane.f32.xlu0 %v2276
      %v2278 = vpop.xlane.xlu0 %2277
      %v2279 = vadd.f32 %v2231, %v2233
      %2280 = vadd.xlane.f32.xlu0 %v2279
      %v2281 = vpop.xlane.xlu0 %2280
      %v2282 = vrcp.pop %v2236
      %v2283 = vrcp.pop %v2239
      %v2284 = vrcp.pop %v2242
      %v2285 = vrcp.pop %v2245
      %v2286 = vrcp.pop %v2248
      %v2287 = vrcp.pop %v2251
      %v2288 = vrcp.pop %v2254
      %v2289 = vrcp.pop %v2257
      %v2290 = vrcp.pop %v2260
      %v2291 = vrcp.pop %v2263
      %v2292 = vrcp.pop %v2266
      %v2293 = vrcp.pop %v2269
      %v2294 = vrcp.pop %v2272
      %v2295 = vrcp.pop %v2275
      %v2296 = vrcp.pop %v2278
      %v2297 = vrcp.pop %v2281
      %v2298 = vmul.f32 %v2171, %v2282
      %v2299 = vmul.f32 %v2173, %v2282
      %v2300 = vmul.f32 %v2175, %v2283
      %v2301 = vmul.f32 %v2177, %v2283
      %v2302 = vmul.f32 %v2179, %v2284
      %v2303 = vmul.f32 %v2181, %v2284
      %v2304 = vmul.f32 %v2183, %v2285
      %v2305 = vmul.f32 %v2185, %v2285
      %v2306 = vmul.f32 %v2187, %v2286
      %v2307 = vmul.f32 %v2189, %v2286
      %v2308 = vmul.f32 %v2191, %v2287
      %v2309 = vmul.f32 %v2193, %v2287
      %v2310 = vmul.f32 %v2195, %v2288
      %v2311 = vmul.f32 %v2197, %v2288
      %v2312 = vmul.f32 %v2199, %v2289
      %v2313 = vmul.f32 %v2201, %v2289
      %v2314 = vmul.f32 %v2203, %v2290
      %v2315 = vmul.f32 %v2205, %v2290
      %v2316 = vmul.f32 %v2207, %v2291
      %v2317 = vmul.f32 %v2209, %v2291
      %v2318 = vmul.f32 %v2211, %v2292
      %v2319 = vmul.f32 %v2213, %v2292
      %v2320 = vmul.f32 %v2215, %v2293
      %v2321 = vmul.f32 %v2217, %v2293
      %v2322 = vmul.f32 %v2219, %v2294
      %v2323 = vmul.f32 %v2221, %v2294
      %v2324 = vmul.f32 %v2223, %v2295
      %v2325 = vmul.f32 %v2225, %v2295
      %v2326 = vmul.f32 %v2227, %v2296
      %v2327 = vmul.f32 %v2229, %v2296
      %v2328 = vmul.f32 %v2231, %v2297
      %v2329 = vmul.f32 %v2233, %v2297
      %v2330 = vpack.c.bf16 %v2300, %v2298
      %v2331 = vpack.c.bf16 %v2301, %v2299
      %v2332 = vpack.c.bf16 %v2304, %v2302
      %v2333 = vpack.c.bf16 %v2305, %v2303
      %v2334 = vpack.c.bf16 %v2308, %v2306
      %v2335 = vpack.c.bf16 %v2309, %v2307
      %v2336 = vpack.c.bf16 %v2312, %v2310
      %v2337 = vpack.c.bf16 %v2313, %v2311
      %v2338 = vpack.c.bf16 %v2316, %v2314
      %v2339 = vpack.c.bf16 %v2317, %v2315
      %v2340 = vpack.c.bf16 %v2320, %v2318
      %v2341 = vpack.c.bf16 %v2321, %v2319
      %v2342 = vpack.c.bf16 %v2324, %v2322
      %v2343 = vpack.c.bf16 %v2325, %v2323
      %v2344 = vpack.c.bf16 %v2328, %v2326
      %v2345 = vpack.c.bf16 %v2329, %v2327
      %2346 = vrot.lane.b32.xlu0 %v906, 64
      %v2347 = vpop.permute.xlu0 %2346
      %2348 = vrot.lane.b32.xlu0 %v907, 64
      %v2349 = vpop.permute.xlu0 %2348
      %2350 = vrot.lane.b32.xlu0 %v908, 64
      %v2351 = vpop.permute.xlu0 %2350
      %2352 = vrot.lane.b32.xlu0 %v909, 64
      %v2353 = vpop.permute.xlu0 %2352
      %2354 = vrot.lane.b32.xlu0 %v910, 64
      %v2355 = vpop.permute.xlu0 %2354
      %2356 = vrot.lane.b32.xlu0 %v911, 64
      %v2357 = vpop.permute.xlu0 %2356
      %2358 = vrot.lane.b32.xlu0 %v912, 64
      %v2359 = vpop.permute.xlu0 %2358
      %2360 = vrot.lane.b32.xlu0 %v913, 64
      %v2361 = vpop.permute.xlu0 %2360
      %2362 = vrot.lane.b32.xlu0 %v914, 64
      %v2363 = vpop.permute.xlu0 %2362
      %2364 = vrot.lane.b32.xlu0 %v915, 64
      %v2365 = vpop.permute.xlu0 %2364
      %2366 = vrot.lane.b32.xlu0 %v916, 64
      %v2367 = vpop.permute.xlu0 %2366
      %2368 = vrot.lane.b32.xlu0 %v917, 64
      %v2369 = vpop.permute.xlu0 %2368
      %2370 = vrot.lane.b32.xlu0 %v918, 64
      %v2371 = vpop.permute.xlu0 %2370
      %2372 = vrot.lane.b32.xlu0 %v919, 64
      %v2373 = vpop.permute.xlu0 %2372
      %2374 = vrot.lane.b32.xlu0 %v920, 64
      %v2375 = vpop.permute.xlu0 %2374
      %2376 = vrot.lane.b32.xlu0 %v921, 64
      %v2377 = vpop.permute.xlu0 %2376
      %2394 = vmatpush.bf16.msra.mxu0 %v2361
      %2395 = vmatpush.bf16.msra.mxu0 %v2359
      %2396 = vmatpush.bf16.msra.mxu0 %v2357
      %2397 = vmatpush.bf16.msra.mxu0 %v2355
      %2398 = vmatpush.bf16.msra.mxu0 %v2353
      %2399 = vmatpush.bf16.msra.mxu0 %v2351
      %2400 = vmatpush.bf16.msra.mxu0 %v2349
      %2401 = vmatpush.bf16.msra.mxu0 %v2347
      %2402 = vmatmul.bf16.gmra.mxu0 %v2330
      %v2403 = vpop.f32.mrf.mxu0
      %v2404 = vadd.f32 0.0, %v2403
      %v2405 = vpop.f32.mrf.mxu0
      %v2406 = vadd.f32 0.0, %v2405
      %2407 = vmatmul.bf16.gmra.mxu0 %v2332
      %v2408 = vpop.f32.mrf.mxu0
      %v2409 = vadd.f32 0.0, %v2408
      %v2410 = vpop.f32.mrf.mxu0
      %v2411 = vadd.f32 0.0, %v2410
      %2412 = vmatmul.bf16.gmra.mxu0 %v2334
      %v2413 = vpop.f32.mrf.mxu0
      %v2414 = vadd.f32 0.0, %v2413
      %v2415 = vpop.f32.mrf.mxu0
      %v2416 = vadd.f32 0.0, %v2415
      %2417 = vmatmul.bf16.gmra.mxu0 %v2336
      %v2418 = vpop.f32.mrf.mxu0
      %v2419 = vadd.f32 0.0, %v2418
      %v2420 = vpop.f32.mrf.mxu0
      %v2421 = vadd.f32 0.0, %v2420
      %2422 = vmatmul.bf16.gmra.mxu0 %v2338
      %v2423 = vpop.f32.mrf.mxu0
      %v2424 = vadd.f32 0.0, %v2423
      %v2425 = vpop.f32.mrf.mxu0
      %v2426 = vadd.f32 0.0, %v2425
      %2427 = vmatmul.bf16.gmra.mxu0 %v2340
      %v2428 = vpop.f32.mrf.mxu0
      %v2429 = vadd.f32 0.0, %v2428
      %v2430 = vpop.f32.mrf.mxu0
      %v2431 = vadd.f32 0.0, %v2430
      %2432 = vmatmul.bf16.gmra.mxu0 %v2342
      %v2433 = vpop.f32.mrf.mxu0
      %v2434 = vadd.f32 0.0, %v2433
      %v2435 = vpop.f32.mrf.mxu0
      %v2436 = vadd.f32 0.0, %v2435
      %2437 = vmatmul.bf16.gmra.mxu0 %v2344
      %v2438 = vpop.f32.mrf.mxu0
      %v2439 = vadd.f32 0.0, %v2438
      %v2440 = vpop.f32.mrf.mxu0
      %v2441 = vadd.f32 0.0, %v2440
      %2442 = vdwg.mxu0
      %2443 = vmatpush.bf16.msra.mxu0 %v2377
      %2444 = vmatpush.bf16.msra.mxu0 %v2375
      %2445 = vmatpush.bf16.msra.mxu0 %v2373
      %2446 = vmatpush.bf16.msra.mxu0 %v2371
      %2447 = vmatpush.bf16.msra.mxu0 %v2369
      %2448 = vmatpush.bf16.msra.mxu0 %v2367
      %2449 = vmatpush.bf16.msra.mxu0 %v2365
      %2450 = vmatpush.bf16.msra.mxu0 %v2363
      %2451 = vmatmul.bf16.gmra.mxu0 %v2331
      %v2452 = vpop.f32.mrf.mxu0
      %v2453 = vadd.f32 %v2404, %v2452
      %v2454 = vpop.f32.mrf.mxu0
      %v2455 = vadd.f32 %v2406, %v2454
      %2456 = vmatmul.bf16.gmra.mxu0 %v2333
      %v2457 = vpop.f32.mrf.mxu0
      %v2458 = vadd.f32 %v2409, %v2457
      %v2459 = vpop.f32.mrf.mxu0
      %v2460 = vadd.f32 %v2411, %v2459
      %2461 = vmatmul.bf16.gmra.mxu0 %v2335
      %v2462 = vpop.f32.mrf.mxu0
      %v2463 = vadd.f32 %v2414, %v2462
      %v2464 = vpop.f32.mrf.mxu0
      %v2465 = vadd.f32 %v2416, %v2464
      %2466 = vmatmul.bf16.gmra.mxu0 %v2337
      %v2467 = vpop.f32.mrf.mxu0
      %v2468 = vadd.f32 %v2419, %v2467
      %v2469 = vpop.f32.mrf.mxu0
      %v2470 = vadd.f32 %v2421, %v2469
      %2471 = vmatmul.bf16.gmra.mxu0 %v2339
      %v2472 = vpop.f32.mrf.mxu0
      %v2473 = vadd.f32 %v2424, %v2472
      %v2474 = vpop.f32.mrf.mxu0
      %v2475 = vadd.f32 %v2426, %v2474
      %2476 = vmatmul.bf16.gmra.mxu0 %v2341
      %v2477 = vpop.f32.mrf.mxu0
      %v2478 = vadd.f32 %v2429, %v2477
      %v2479 = vpop.f32.mrf.mxu0
      %v2480 = vadd.f32 %v2431, %v2479
      %2481 = vmatmul.bf16.gmra.mxu0 %v2343
      %v2482 = vpop.f32.mrf.mxu0
      %v2483 = vadd.f32 %v2434, %v2482
      %v2484 = vpop.f32.mrf.mxu0
      %v2485 = vadd.f32 %v2436, %v2484
      %2486 = vmatmul.bf16.gmra.mxu0 %v2345
      %v2487 = vpop.f32.mrf.mxu0
      %v2488 = vadd.f32 %v2439, %v2487
      %v2489 = vpop.f32.mrf.mxu0
      %v2490 = vadd.f32 %v2441, %v2489
      %2491 = vdwg.mxu0
      %vm2492 = vcmp.gt.f32.partialorder %v2453, 0.0
      %vm2493 = vcmp.gt.f32.partialorder %v2455, 0.0
      %vm2494 = vcmp.gt.f32.partialorder %v2458, 0.0
      %vm2495 = vcmp.gt.f32.partialorder %v2460, 0.0
      %vm2496 = vcmp.gt.f32.partialorder %v2463, 0.0
      %vm2497 = vcmp.gt.f32.partialorder %v2465, 0.0
      %vm2498 = vcmp.gt.f32.partialorder %v2468, 0.0
      %vm2499 = vcmp.gt.f32.partialorder %v2470, 0.0
      %vm2500 = vcmp.gt.f32.partialorder %v2473, 0.0
      %vm2501 = vcmp.gt.f32.partialorder %v2475, 0.0
      %vm2502 = vcmp.gt.f32.partialorder %v2478, 0.0
      %vm2503 = vcmp.gt.f32.partialorder %v2480, 0.0
      %vm2504 = vcmp.gt.f32.partialorder %v2483, 0.0
      %vm2505 = vcmp.gt.f32.partialorder %v2485, 0.0
      %vm2506 = vcmp.gt.f32.partialorder %v2488, 0.0
      %vm2507 = vcmp.gt.f32.partialorder %v2490, 0.0
      %v2508 = vmin.f32 %v2453, 0.0
      %v2509 = vmin.f32 %v2455, 0.0
      %v2510 = vmin.f32 %v2458, 0.0
      %v2511 = vmin.f32 %v2460, 0.0
      %v2512 = vmin.f32 %v2463, 0.0
      %v2513 = vmin.f32 %v2465, 0.0
      %v2514 = vmin.f32 %v2468, 0.0
      %v2515 = vmin.f32 %v2470, 0.0
      %v2516 = vmin.f32 %v2473, 0.0
      %v2517 = vmin.f32 %v2475, 0.0
      %v2518 = vmin.f32 %v2478, 0.0
      %v2519 = vmin.f32 %v2480, 0.0
      %v2520 = vmin.f32 %v2483, 0.0
      %v2521 = vmin.f32 %v2485, 0.0
      %v2522 = vmin.f32 %v2488, 0.0
      %v2523 = vmin.f32 %v2490, 0.0
      %v2524 = vmul.f32 %v2508, 1.442695
      %v2525 = vpow.pop %v2524
      %v2526 = vmul.f32 %v2509, 1.442695
      %v2527 = vpow.pop %v2526
      %v2528 = vmul.f32 %v2510, 1.442695
      %v2529 = vpow.pop %v2528
      %v2530 = vmul.f32 %v2511, 1.442695
      %v2531 = vpow.pop %v2530
      %v2532 = vmul.f32 %v2512, 1.442695
      %v2533 = vpow.pop %v2532
      %v2534 = vmul.f32 %v2513, 1.442695
      %v2535 = vpow.pop %v2534
      %v2536 = vmul.f32 %v2514, 1.442695
      %v2537 = vpow.pop %v2536
      %v2538 = vmul.f32 %v2515, 1.442695
      %v2539 = vpow.pop %v2538
      %v2540 = vmul.f32 %v2516, 1.442695
      %v2541 = vpow.pop %v2540
      %v2542 = vmul.f32 %v2517, 1.442695
      %v2543 = vpow.pop %v2542
      %v2544 = vmul.f32 %v2518, 1.442695
      %v2545 = vpow.pop %v2544
      %v2546 = vmul.f32 %v2519, 1.442695
      %v2547 = vpow.pop %v2546
      %v2548 = vmul.f32 %v2520, 1.442695
      %v2549 = vpow.pop %v2548
      %v2550 = vmul.f32 %v2521, 1.442695
      %v2551 = vpow.pop %v2550
      %v2552 = vmul.f32 %v2522, 1.442695
      %v2553 = vpow.pop %v2552
      %v2554 = vmul.f32 %v2523, 1.442695
      %v2555 = vpow.pop %v2554
      %v2556 = vsub.f32 %v2525, 1.0
      %v2557 = vsub.f32 %v2527, 1.0
      %v2558 = vsub.f32 %v2529, 1.0
      %v2559 = vsub.f32 %v2531, 1.0
      %v2560 = vsub.f32 %v2533, 1.0
      %v2561 = vsub.f32 %v2535, 1.0
      %v2562 = vsub.f32 %v2537, 1.0
      %v2563 = vsub.f32 %v2539, 1.0
      %v2564 = vsub.f32 %v2541, 1.0
      %v2565 = vsub.f32 %v2543, 1.0
      %v2566 = vsub.f32 %v2545, 1.0
      %v2567 = vsub.f32 %v2547, 1.0
      %v2568 = vsub.f32 %v2549, 1.0
      %v2569 = vsub.f32 %v2551, 1.0
      %v2570 = vsub.f32 %v2553, 1.0
      %v2571 = vsub.f32 %v2555, 1.0
      %v2572 = vsel %vm2492, %v2453, %v2556
      %v2573 = vsel %vm2493, %v2455, %v2557
      %v2574 = vsel %vm2494, %v2458, %v2558
      %v2575 = vsel %vm2495, %v2460, %v2559
      %v2576 = vsel %vm2496, %v2463, %v2560
      %v2577 = vsel %vm2497, %v2465, %v2561
      %v2578 = vsel %vm2498, %v2468, %v2562
      %v2579 = vsel %vm2499, %v2470, %v2563
      %v2580 = vsel %vm2500, %v2473, %v2564
      %v2581 = vsel %vm2501, %v2475, %v2565
      %v2582 = vsel %vm2502, %v2478, %v2566
      %v2583 = vsel %vm2503, %v2480, %v2567
      %v2584 = vsel %vm2504, %v2483, %v2568
      %v2585 = vsel %vm2505, %v2485, %v2569
      %v2586 = vsel %vm2506, %v2488, %v2570
      %v2587 = vsel %vm2507, %v2490, %v2571
      %2588 = vset.pattern.permute.xlu0 3
      %2589 = vperm.xlu0 %2588, %v290
      %v2590 = vpop.permute.xlu0 %2589
      %2592 = vset.pattern.permute.xlu0 3
      %2593 = vperm.xlu0 %2592, %v291
      %v2594 = vpop.permute.xlu0 %2593
      %2596 = vset.pattern.permute.xlu0 3
      %2597 = vperm.xlu0 %2596, %v292
      %v2598 = vpop.permute.xlu0 %2597
      %2600 = vset.pattern.permute.xlu0 3
      %2601 = vperm.xlu0 %2600, %v293
      %v2602 = vpop.permute.xlu0 %2601
      %2604 = vset.pattern.permute.xlu0 3
      %2605 = vperm.xlu0 %2604, %v294
      %v2606 = vpop.permute.xlu0 %2605
      %2608 = vset.pattern.permute.xlu0 3
      %2609 = vperm.xlu0 %2608, %v295
      %v2610 = vpop.permute.xlu0 %2609
      %2612 = vset.pattern.permute.xlu0 3
      %2613 = vperm.xlu0 %2612, %v296
      %v2614 = vpop.permute.xlu0 %2613
      %2616 = vset.pattern.permute.xlu0 3
      %2617 = vperm.xlu0 %2616, %v297
      %v2618 = vpop.permute.xlu0 %2617
      %2620 = vset.pattern.permute.xlu0 3
      %2621 = vperm.xlu0 %2620, %v298
      %v2622 = vpop.permute.xlu0 %2621
      %2624 = vset.pattern.permute.xlu0 3
      %2625 = vperm.xlu0 %2624, %v299
      %v2626 = vpop.permute.xlu0 %2625
      %2628 = vset.pattern.permute.xlu0 3
      %2629 = vperm.xlu0 %2628, %v300
      %v2630 = vpop.permute.xlu0 %2629
      %2632 = vset.pattern.permute.xlu0 3
      %2633 = vperm.xlu0 %2632, %v301
      %v2634 = vpop.permute.xlu0 %2633
      %2636 = vset.pattern.permute.xlu0 3
      %2637 = vperm.xlu0 %2636, %v302
      %v2638 = vpop.permute.xlu0 %2637
      %2640 = vset.pattern.permute.xlu0 3
      %2641 = vperm.xlu0 %2640, %v303
      %v2642 = vpop.permute.xlu0 %2641
      %2644 = vset.pattern.permute.xlu0 3
      %2645 = vperm.xlu0 %2644, %v304
      %v2646 = vpop.permute.xlu0 %2645
      %2648 = vset.pattern.permute.xlu0 3
      %2649 = vperm.xlu0 %2648, %v305
      %v2650 = vpop.permute.xlu0 %2649
      %v2652 = vperm.slane %v306, 3
      %v2653 = vperm.slane %v306, 7
      %v2656 = vperm.slane %v2652, 3
      %v2657 = vperm.slane %v2653, 3
      %v2658 = vadd.f32 %v2590, %v2656
      %v2659 = vadd.f32 %v2590, %v2657
      %v2660 = vadd.f32 %v2594, %v2656
      %v2661 = vadd.f32 %v2594, %v2657
      %v2662 = vadd.f32 %v2598, %v2656
      %v2663 = vadd.f32 %v2598, %v2657
      %v2664 = vadd.f32 %v2602, %v2656
      %v2665 = vadd.f32 %v2602, %v2657
      %v2666 = vadd.f32 %v2606, %v2656
      %v2667 = vadd.f32 %v2606, %v2657
      %v2668 = vadd.f32 %v2610, %v2656
      %v2669 = vadd.f32 %v2610, %v2657
      %v2670 = vadd.f32 %v2614, %v2656
      %v2671 = vadd.f32 %v2614, %v2657
      %v2672 = vadd.f32 %v2618, %v2656
      %v2673 = vadd.f32 %v2618, %v2657
      %v2674 = vadd.f32 %v2622, %v2656
      %v2675 = vadd.f32 %v2622, %v2657
      %v2676 = vadd.f32 %v2626, %v2656
      %v2677 = vadd.f32 %v2626, %v2657
      %v2678 = vadd.f32 %v2630, %v2656
      %v2679 = vadd.f32 %v2630, %v2657
      %v2680 = vadd.f32 %v2634, %v2656
      %v2681 = vadd.f32 %v2634, %v2657
      %v2682 = vadd.f32 %v2638, %v2656
      %v2683 = vadd.f32 %v2638, %v2657
      %v2684 = vadd.f32 %v2642, %v2656
      %v2685 = vadd.f32 %v2642, %v2657
      %v2686 = vadd.f32 %v2646, %v2656
      %v2687 = vadd.f32 %v2646, %v2657
      %v2688 = vadd.f32 %v2650, %v2656
      %v2689 = vadd.f32 %v2650, %v2657
      %vm2690 = vcmp.gt.f32.partialorder %v2658, 0.0
      %vm2691 = vcmp.gt.f32.partialorder %v2659, 0.0
      %vm2692 = vcmp.gt.f32.partialorder %v2660, 0.0
      %vm2693 = vcmp.gt.f32.partialorder %v2661, 0.0
      %vm2694 = vcmp.gt.f32.partialorder %v2662, 0.0
      %vm2695 = vcmp.gt.f32.partialorder %v2663, 0.0
      %vm2696 = vcmp.gt.f32.partialorder %v2664, 0.0
      %vm2697 = vcmp.gt.f32.partialorder %v2665, 0.0
      %vm2698 = vcmp.gt.f32.partialorder %v2666, 0.0
      %vm2699 = vcmp.gt.f32.partialorder %v2667, 0.0
      %vm2700 = vcmp.gt.f32.partialorder %v2668, 0.0
      %vm2701 = vcmp.gt.f32.partialorder %v2669, 0.0
      %vm2702 = vcmp.gt.f32.partialorder %v2670, 0.0
      %vm2703 = vcmp.gt.f32.partialorder %v2671, 0.0
      %vm2704 = vcmp.gt.f32.partialorder %v2672, 0.0
      %vm2705 = vcmp.gt.f32.partialorder %v2673, 0.0
      %vm2706 = vcmp.gt.f32.partialorder %v2674, 0.0
      %vm2707 = vcmp.gt.f32.partialorder %v2675, 0.0
      %vm2708 = vcmp.gt.f32.partialorder %v2676, 0.0
      %vm2709 = vcmp.gt.f32.partialorder %v2677, 0.0
      %vm2710 = vcmp.gt.f32.partialorder %v2678, 0.0
      %vm2711 = vcmp.gt.f32.partialorder %v2679, 0.0
      %vm2712 = vcmp.gt.f32.partialorder %v2680, 0.0
      %vm2713 = vcmp.gt.f32.partialorder %v2681, 0.0
      %vm2714 = vcmp.gt.f32.partialorder %v2682, 0.0
      %vm2715 = vcmp.gt.f32.partialorder %v2683, 0.0
      %vm2716 = vcmp.gt.f32.partialorder %v2684, 0.0
      %vm2717 = vcmp.gt.f32.partialorder %v2685, 0.0
      %vm2718 = vcmp.gt.f32.partialorder %v2686, 0.0
      %vm2719 = vcmp.gt.f32.partialorder %v2687, 0.0
      %vm2720 = vcmp.gt.f32.partialorder %v2688, 0.0
      %vm2721 = vcmp.gt.f32.partialorder %v2689, 0.0
      %v2722 = vmul.f32 %v2658, 0.2
      %v2723 = vmul.f32 %v2659, 0.2
      %v2724 = vmul.f32 %v2660, 0.2
      %v2725 = vmul.f32 %v2661, 0.2
      %v2726 = vmul.f32 %v2662, 0.2
      %v2727 = vmul.f32 %v2663, 0.2
      %v2728 = vmul.f32 %v2664, 0.2
      %v2729 = vmul.f32 %v2665, 0.2
      %v2730 = vmul.f32 %v2666, 0.2
      %v2731 = vmul.f32 %v2667, 0.2
      %v2732 = vmul.f32 %v2668, 0.2
      %v2733 = vmul.f32 %v2669, 0.2
      %v2734 = vmul.f32 %v2670, 0.2
      %v2735 = vmul.f32 %v2671, 0.2
      %v2736 = vmul.f32 %v2672, 0.2
      %v2737 = vmul.f32 %v2673, 0.2
      %v2738 = vmul.f32 %v2674, 0.2
      %v2739 = vmul.f32 %v2675, 0.2
      %v2740 = vmul.f32 %v2676, 0.2
      %v2741 = vmul.f32 %v2677, 0.2
      %v2742 = vmul.f32 %v2678, 0.2
      %v2743 = vmul.f32 %v2679, 0.2
      %v2744 = vmul.f32 %v2680, 0.2
      %v2745 = vmul.f32 %v2681, 0.2
      %v2746 = vmul.f32 %v2682, 0.2
      %v2747 = vmul.f32 %v2683, 0.2
      %v2748 = vmul.f32 %v2684, 0.2
      %v2749 = vmul.f32 %v2685, 0.2
      %v2750 = vmul.f32 %v2686, 0.2
      %v2751 = vmul.f32 %v2687, 0.2
      %v2752 = vmul.f32 %v2688, 0.2
      %v2753 = vmul.f32 %v2689, 0.2
      %v2754 = vsel %vm2690, %v2658, %v2722
      %v2755 = vsel %vm2691, %v2659, %v2723
      %v2756 = vsel %vm2692, %v2660, %v2724
      %v2757 = vsel %vm2693, %v2661, %v2725
      %v2758 = vsel %vm2694, %v2662, %v2726
      %v2759 = vsel %vm2695, %v2663, %v2727
      %v2760 = vsel %vm2696, %v2664, %v2728
      %v2761 = vsel %vm2697, %v2665, %v2729
      %v2762 = vsel %vm2698, %v2666, %v2730
      %v2763 = vsel %vm2699, %v2667, %v2731
      %v2764 = vsel %vm2700, %v2668, %v2732
      %v2765 = vsel %vm2701, %v2669, %v2733
      %v2766 = vsel %vm2702, %v2670, %v2734
      %v2767 = vsel %vm2703, %v2671, %v2735
      %v2768 = vsel %vm2704, %v2672, %v2736
      %v2769 = vsel %vm2705, %v2673, %v2737
      %v2770 = vsel %vm2706, %v2674, %v2738
      %v2771 = vsel %vm2707, %v2675, %v2739
      %v2772 = vsel %vm2708, %v2676, %v2740
      %v2773 = vsel %vm2709, %v2677, %v2741
      %v2774 = vsel %vm2710, %v2678, %v2742
      %v2775 = vsel %vm2711, %v2679, %v2743
      %v2776 = vsel %vm2712, %v2680, %v2744
      %v2777 = vsel %vm2713, %v2681, %v2745
      %v2778 = vsel %vm2714, %v2682, %v2746
      %v2779 = vsel %vm2715, %v2683, %v2747
      %v2780 = vsel %vm2716, %v2684, %v2748
      %v2781 = vsel %vm2717, %v2685, %v2749
      %v2782 = vsel %vm2718, %v2686, %v2750
      %v2783 = vsel %vm2719, %v2687, %v2751
      %v2784 = vsel %vm2720, %v2688, %v2752
      %v2785 = vsel %vm2721, %v2689, %v2753
      %v2786 = vsel %vm258, %v2754, -9e+15
      %v2787 = vsel %vm259, %v2755, -9e+15
      %v2788 = vsel %vm260, %v2756, -9e+15
      %v2789 = vsel %vm261, %v2757, -9e+15
      %v2790 = vsel %vm262, %v2758, -9e+15
      %v2791 = vsel %vm263, %v2759, -9e+15
      %v2792 = vsel %vm264, %v2760, -9e+15
      %v2793 = vsel %vm265, %v2761, -9e+15
      %v2794 = vsel %vm266, %v2762, -9e+15
      %v2795 = vsel %vm267, %v2763, -9e+15
      %v2796 = vsel %vm268, %v2764, -9e+15
      %v2797 = vsel %vm269, %v2765, -9e+15
      %v2798 = vsel %vm270, %v2766, -9e+15
      %v2799 = vsel %vm271, %v2767, -9e+15
      %v2800 = vsel %vm272, %v2768, -9e+15
      %v2801 = vsel %vm273, %v2769, -9e+15
      %v2802 = vsel %vm274, %v2770, -9e+15
      %v2803 = vsel %vm275, %v2771, -9e+15
      %v2804 = vsel %vm276, %v2772, -9e+15
      %v2805 = vsel %vm277, %v2773, -9e+15
      %v2806 = vsel %vm278, %v2774, -9e+15
      %v2807 = vsel %vm279, %v2775, -9e+15
      %v2808 = vsel %vm280, %v2776, -9e+15
      %v2809 = vsel %vm281, %v2777, -9e+15
      %v2810 = vsel %vm282, %v2778, -9e+15
      %v2811 = vsel %vm283, %v2779, -9e+15
      %v2812 = vsel %vm284, %v2780, -9e+15
      %v2813 = vsel %vm285, %v2781, -9e+15
      %v2814 = vsel %vm286, %v2782, -9e+15
      %v2815 = vsel %vm287, %v2783, -9e+15
      %v2816 = vsel %vm288, %v2784, -9e+15
      %v2817 = vsel %vm289, %v2785, -9e+15
      %v2818 = vmax.f32 %v2786, %v2787
      %2819 = vmax.xlane.f32.xlu0 %v2818
      %v2820 = vpop.xlane.xlu0 %2819
      %v2821 = vmax.f32 %v2788, %v2789
      %2822 = vmax.xlane.f32.xlu0 %v2821
      %v2823 = vpop.xlane.xlu0 %2822
      %v2824 = vmax.f32 %v2790, %v2791
      %2825 = vmax.xlane.f32.xlu0 %v2824
      %v2826 = vpop.xlane.xlu0 %2825
      %v2827 = vmax.f32 %v2792, %v2793
      %2828 = vmax.xlane.f32.xlu0 %v2827
      %v2829 = vpop.xlane.xlu0 %2828
      %v2830 = vmax.f32 %v2794, %v2795
      %2831 = vmax.xlane.f32.xlu0 %v2830
      %v2832 = vpop.xlane.xlu0 %2831
      %v2833 = vmax.f32 %v2796, %v2797
      %2834 = vmax.xlane.f32.xlu0 %v2833
      %v2835 = vpop.xlane.xlu0 %2834
      %v2836 = vmax.f32 %v2798, %v2799
      %2837 = vmax.xlane.f32.xlu0 %v2836
      %v2838 = vpop.xlane.xlu0 %2837
      %v2839 = vmax.f32 %v2800, %v2801
      %2840 = vmax.xlane.f32.xlu0 %v2839
      %v2841 = vpop.xlane.xlu0 %2840
      %v2842 = vmax.f32 %v2802, %v2803
      %2843 = vmax.xlane.f32.xlu0 %v2842
      %v2844 = vpop.xlane.xlu0 %2843
      %v2845 = vmax.f32 %v2804, %v2805
      %2846 = vmax.xlane.f32.xlu0 %v2845
      %v2847 = vpop.xlane.xlu0 %2846
      %v2848 = vmax.f32 %v2806, %v2807
      %2849 = vmax.xlane.f32.xlu0 %v2848
      %v2850 = vpop.xlane.xlu0 %2849
      %v2851 = vmax.f32 %v2808, %v2809
      %2852 = vmax.xlane.f32.xlu0 %v2851
      %v2853 = vpop.xlane.xlu0 %2852
      %v2854 = vmax.f32 %v2810, %v2811
      %2855 = vmax.xlane.f32.xlu0 %v2854
      %v2856 = vpop.xlane.xlu0 %2855
      %v2857 = vmax.f32 %v2812, %v2813
      %2858 = vmax.xlane.f32.xlu0 %v2857
      %v2859 = vpop.xlane.xlu0 %2858
      %v2860 = vmax.f32 %v2814, %v2815
      %2861 = vmax.xlane.f32.xlu0 %v2860
      %v2862 = vpop.xlane.xlu0 %2861
      %v2863 = vmax.f32 %v2816, %v2817
      %2864 = vmax.xlane.f32.xlu0 %v2863
      %v2865 = vpop.xlane.xlu0 %2864
      %v2866 = vsub.f32 %v2786, %v2820
      %v2867 = vsub.f32 %v2787, %v2820
      %v2868 = vsub.f32 %v2788, %v2823
      %v2869 = vsub.f32 %v2789, %v2823
      %v2870 = vsub.f32 %v2790, %v2826
      %v2871 = vsub.f32 %v2791, %v2826
      %v2872 = vsub.f32 %v2792, %v2829
      %v2873 = vsub.f32 %v2793, %v2829
      %v2874 = vsub.f32 %v2794, %v2832
      %v2875 = vsub.f32 %v2795, %v2832
      %v2876 = vsub.f32 %v2796, %v2835
      %v2877 = vsub.f32 %v2797, %v2835
      %v2878 = vsub.f32 %v2798, %v2838
      %v2879 = vsub.f32 %v2799, %v2838
      %v2880 = vsub.f32 %v2800, %v2841
      %v2881 = vsub.f32 %v2801, %v2841
      %v2882 = vsub.f32 %v2802, %v2844
      %v2883 = vsub.f32 %v2803, %v2844
      %v2884 = vsub.f32 %v2804, %v2847
      %v2885 = vsub.f32 %v2805, %v2847
      %v2886 = vsub.f32 %v2806, %v2850
      %v2887 = vsub.f32 %v2807, %v2850
      %v2888 = vsub.f32 %v2808, %v2853
      %v2889 = vsub.f32 %v2809, %v2853
      %v2890 = vsub.f32 %v2810, %v2856
      %v2891 = vsub.f32 %v2811, %v2856
      %v2892 = vsub.f32 %v2812, %v2859
      %v2893 = vsub.f32 %v2813, %v2859
      %v2894 = vsub.f32 %v2814, %v2862
      %v2895 = vsub.f32 %v2815, %v2862
      %v2896 = vsub.f32 %v2816, %v2865
      %v2897 = vsub.f32 %v2817, %v2865
      %v2898 = vmul.f32 %v2866, 1.442695
      %v2899 = vpow.pop %v2898
      %v2900 = vmul.f32 %v2867, 1.442695
      %v2901 = vpow.pop %v2900
      %v2902 = vmul.f32 %v2868, 1.442695
      %v2903 = vpow.pop %v2902
      %v2904 = vmul.f32 %v2869, 1.442695
      %v2905 = vpow.pop %v2904
      %v2906 = vmul.f32 %v2870, 1.442695
      %v2907 = vpow.pop %v2906
      %v2908 = vmul.f32 %v2871, 1.442695
      %v2909 = vpow.pop %v2908
      %v2910 = vmul.f32 %v2872, 1.442695
      %v2911 = vpow.pop %v2910
      %v2912 = vmul.f32 %v2873, 1.442695
      %v2913 = vpow.pop %v2912
      %v2914 = vmul.f32 %v2874, 1.442695
      %v2915 = vpow.pop %v2914
      %v2916 = vmul.f32 %v2875, 1.442695
      %v2917 = vpow.pop %v2916
      %v2918 = vmul.f32 %v2876, 1.442695
      %v2919 = vpow.pop %v2918
      %v2920 = vmul.f32 %v2877, 1.442695
      %v2921 = vpow.pop %v2920
      %v2922 = vmul.f32 %v2878, 1.442695
      %v2923 = vpow.pop %v2922
      %v2924 = vmul.f32 %v2879, 1.442695
      %v2925 = vpow.pop %v2924
      %v2926 = vmul.f32 %v2880, 1.442695
      %v2927 = vpow.pop %v2926
      %v2928 = vmul.f32 %v2881, 1.442695
      %v2929 = vpow.pop %v2928
      %v2930 = vmul.f32 %v2882, 1.442695
      %v2931 = vpow.pop %v2930
      %v2932 = vmul.f32 %v2883, 1.442695
      %v2933 = vpow.pop %v2932
      %v2934 = vmul.f32 %v2884, 1.442695
      %v2935 = vpow.pop %v2934
      %v2936 = vmul.f32 %v2885, 1.442695
      %v2937 = vpow.pop %v2936
      %v2938 = vmul.f32 %v2886, 1.442695
      %v2939 = vpow.pop %v2938
      %v2940 = vmul.f32 %v2887, 1.442695
      %v2941 = vpow.pop %v2940
      %v2942 = vmul.f32 %v2888, 1.442695
      %v2943 = vpow.pop %v2942
      %v2944 = vmul.f32 %v2889, 1.442695
      %v2945 = vpow.pop %v2944
      %v2946 = vmul.f32 %v2890, 1.442695
      %v2947 = vpow.pop %v2946
      %v2948 = vmul.f32 %v2891, 1.442695
      %v2949 = vpow.pop %v2948
      %v2950 = vmul.f32 %v2892, 1.442695
      %v2951 = vpow.pop %v2950
      %v2952 = vmul.f32 %v2893, 1.442695
      %v2953 = vpow.pop %v2952
      %v2954 = vmul.f32 %v2894, 1.442695
      %v2955 = vpow.pop %v2954
      %v2956 = vmul.f32 %v2895, 1.442695
      %v2957 = vpow.pop %v2956
      %v2958 = vmul.f32 %v2896, 1.442695
      %v2959 = vpow.pop %v2958
      %v2960 = vmul.f32 %v2897, 1.442695
      %v2961 = vpow.pop %v2960
      %v2962 = vadd.f32 %v2899, %v2901
      %2963 = vadd.xlane.f32.xlu0 %v2962
      %v2964 = vpop.xlane.xlu0 %2963
      %v2965 = vadd.f32 %v2903, %v2905
      %2966 = vadd.xlane.f32.xlu0 %v2965
      %v2967 = vpop.xlane.xlu0 %2966
      %v2968 = vadd.f32 %v2907, %v2909
      %2969 = vadd.xlane.f32.xlu0 %v2968
      %v2970 = vpop.xlane.xlu0 %2969
      %v2971 = vadd.f32 %v2911, %v2913
      %2972 = vadd.xlane.f32.xlu0 %v2971
      %v2973 = vpop.xlane.xlu0 %2972
      %v2974 = vadd.f32 %v2915, %v2917
      %2975 = vadd.xlane.f32.xlu0 %v2974
      %v2976 = vpop.xlane.xlu0 %2975
      %v2977 = vadd.f32 %v2919, %v2921
      %2978 = vadd.xlane.f32.xlu0 %v2977
      %v2979 = vpop.xlane.xlu0 %2978
      %v2980 = vadd.f32 %v2923, %v2925
      %2981 = vadd.xlane.f32.xlu0 %v2980
      %v2982 = vpop.xlane.xlu0 %2981
      %v2983 = vadd.f32 %v2927, %v2929
      %2984 = vadd.xlane.f32.xlu0 %v2983
      %v2985 = vpop.xlane.xlu0 %2984
      %v2986 = vadd.f32 %v2931, %v2933
      %2987 = vadd.xlane.f32.xlu0 %v2986
      %v2988 = vpop.xlane.xlu0 %2987
      %v2989 = vadd.f32 %v2935, %v2937
      %2990 = vadd.xlane.f32.xlu0 %v2989
      %v2991 = vpop.xlane.xlu0 %2990
      %v2992 = vadd.f32 %v2939, %v2941
      %2993 = vadd.xlane.f32.xlu0 %v2992
      %v2994 = vpop.xlane.xlu0 %2993
      %v2995 = vadd.f32 %v2943, %v2945
      %2996 = vadd.xlane.f32.xlu0 %v2995
      %v2997 = vpop.xlane.xlu0 %2996
      %v2998 = vadd.f32 %v2947, %v2949
      %2999 = vadd.xlane.f32.xlu0 %v2998
      %v3000 = vpop.xlane.xlu0 %2999
      %v3001 = vadd.f32 %v2951, %v2953
      %3002 = vadd.xlane.f32.xlu0 %v3001
      %v3003 = vpop.xlane.xlu0 %3002
      %v3004 = vadd.f32 %v2955, %v2957
      %3005 = vadd.xlane.f32.xlu0 %v3004
      %v3006 = vpop.xlane.xlu0 %3005
      %v3007 = vadd.f32 %v2959, %v2961
      %3008 = vadd.xlane.f32.xlu0 %v3007
      %v3009 = vpop.xlane.xlu0 %3008
      %v3010 = vrcp.pop %v2964
      %v3011 = vrcp.pop %v2967
      %v3012 = vrcp.pop %v2970
      %v3013 = vrcp.pop %v2973
      %v3014 = vrcp.pop %v2976
      %v3015 = vrcp.pop %v2979
      %v3016 = vrcp.pop %v2982
      %v3017 = vrcp.pop %v2985
      %v3018 = vrcp.pop %v2988
      %v3019 = vrcp.pop %v2991
      %v3020 = vrcp.pop %v2994
      %v3021 = vrcp.pop %v2997
      %v3022 = vrcp.pop %v3000
      %v3023 = vrcp.pop %v3003
      %v3024 = vrcp.pop %v3006
      %v3025 = vrcp.pop %v3009
      %v3026 = vmul.f32 %v2899, %v3010
      %v3027 = vmul.f32 %v2901, %v3010
      %v3028 = vmul.f32 %v2903, %v3011
      %v3029 = vmul.f32 %v2905, %v3011
      %v3030 = vmul.f32 %v2907, %v3012
      %v3031 = vmul.f32 %v2909, %v3012
      %v3032 = vmul.f32 %v2911, %v3013
      %v3033 = vmul.f32 %v2913, %v3013
      %v3034 = vmul.f32 %v2915, %v3014
      %v3035 = vmul.f32 %v2917, %v3014
      %v3036 = vmul.f32 %v2919, %v3015
      %v3037 = vmul.f32 %v2921, %v3015
      %v3038 = vmul.f32 %v2923, %v3016
      %v3039 = vmul.f32 %v2925, %v3016
      %v3040 = vmul.f32 %v2927, %v3017
      %v3041 = vmul.f32 %v2929, %v3017
      %v3042 = vmul.f32 %v2931, %v3018
      %v3043 = vmul.f32 %v2933, %v3018
      %v3044 = vmul.f32 %v2935, %v3019
      %v3045 = vmul.f32 %v2937, %v3019
      %v3046 = vmul.f32 %v2939, %v3020
      %v3047 = vmul.f32 %v2941, %v3020
      %v3048 = vmul.f32 %v2943, %v3021
      %v3049 = vmul.f32 %v2945, %v3021
      %v3050 = vmul.f32 %v2947, %v3022
      %v3051 = vmul.f32 %v2949, %v3022
      %v3052 = vmul.f32 %v2951, %v3023
      %v3053 = vmul.f32 %v2953, %v3023
      %v3054 = vmul.f32 %v2955, %v3024
      %v3055 = vmul.f32 %v2957, %v3024
      %v3056 = vmul.f32 %v2959, %v3025
      %v3057 = vmul.f32 %v2961, %v3025
      %v3058 = vpack.c.bf16 %v3028, %v3026
      %v3059 = vpack.c.bf16 %v3029, %v3027
      %v3060 = vpack.c.bf16 %v3032, %v3030
      %v3061 = vpack.c.bf16 %v3033, %v3031
      %v3062 = vpack.c.bf16 %v3036, %v3034
      %v3063 = vpack.c.bf16 %v3037, %v3035
      %v3064 = vpack.c.bf16 %v3040, %v3038
      %v3065 = vpack.c.bf16 %v3041, %v3039
      %v3066 = vpack.c.bf16 %v3044, %v3042
      %v3067 = vpack.c.bf16 %v3045, %v3043
      %v3068 = vpack.c.bf16 %v3048, %v3046
      %v3069 = vpack.c.bf16 %v3049, %v3047
      %v3070 = vpack.c.bf16 %v3052, %v3050
      %v3071 = vpack.c.bf16 %v3053, %v3051
      %v3072 = vpack.c.bf16 %v3056, %v3054
      %v3073 = vpack.c.bf16 %v3057, %v3055
      %3074 = vrot.lane.b32.xlu0 %v906, 32
      %v3075 = vpop.permute.xlu0 %3074
      %3076 = vrot.lane.b32.xlu0 %v907, 32
      %v3077 = vpop.permute.xlu0 %3076
      %3078 = vrot.lane.b32.xlu0 %v908, 32
      %v3079 = vpop.permute.xlu0 %3078
      %3080 = vrot.lane.b32.xlu0 %v909, 32
      %v3081 = vpop.permute.xlu0 %3080
      %3082 = vrot.lane.b32.xlu0 %v910, 32
      %v3083 = vpop.permute.xlu0 %3082
      %3084 = vrot.lane.b32.xlu0 %v911, 32
      %v3085 = vpop.permute.xlu0 %3084
      %3086 = vrot.lane.b32.xlu0 %v912, 32
      %v3087 = vpop.permute.xlu0 %3086
      %3088 = vrot.lane.b32.xlu0 %v913, 32
      %v3089 = vpop.permute.xlu0 %3088
      %3090 = vrot.lane.b32.xlu0 %v914, 32
      %v3091 = vpop.permute.xlu0 %3090
      %3092 = vrot.lane.b32.xlu0 %v915, 32
      %v3093 = vpop.permute.xlu0 %3092
      %3094 = vrot.lane.b32.xlu0 %v916, 32
      %v3095 = vpop.permute.xlu0 %3094
      %3096 = vrot.lane.b32.xlu0 %v917, 32
      %v3097 = vpop.permute.xlu0 %3096
      %3098 = vrot.lane.b32.xlu0 %v918, 32
      %v3099 = vpop.permute.xlu0 %3098
      %3100 = vrot.lane.b32.xlu0 %v919, 32
      %v3101 = vpop.permute.xlu0 %3100
      %3102 = vrot.lane.b32.xlu0 %v920, 32
      %v3103 = vpop.permute.xlu0 %3102
      %3104 = vrot.lane.b32.xlu0 %v921, 32
      %v3105 = vpop.permute.xlu0 %3104
      %3122 = vmatpush.bf16.msra.mxu0 %v3089
      %3123 = vmatpush.bf16.msra.mxu0 %v3087
      %3124 = vmatpush.bf16.msra.mxu0 %v3085
      %3125 = vmatpush.bf16.msra.mxu0 %v3083
      %3126 = vmatpush.bf16.msra.mxu0 %v3081
      %3127 = vmatpush.bf16.msra.mxu0 %v3079
      %3128 = vmatpush.bf16.msra.mxu0 %v3077
      %3129 = vmatpush.bf16.msra.mxu0 %v3075
      %3130 = vmatmul.bf16.gmra.mxu0 %v3058
      %v3131 = vpop.f32.mrf.mxu0
      %v3132 = vadd.f32 0.0, %v3131
      %v3133 = vpop.f32.mrf.mxu0
      %v3134 = vadd.f32 0.0, %v3133
      %3135 = vmatmul.bf16.gmra.mxu0 %v3060
      %v3136 = vpop.f32.mrf.mxu0
      %v3137 = vadd.f32 0.0, %v3136
      %v3138 = vpop.f32.mrf.mxu0
      %v3139 = vadd.f32 0.0, %v3138
      %3140 = vmatmul.bf16.gmra.mxu0 %v3062
      %v3141 = vpop.f32.mrf.mxu0
      %v3142 = vadd.f32 0.0, %v3141
      %v3143 = vpop.f32.mrf.mxu0
      %v3144 = vadd.f32 0.0, %v3143
      %3145 = vmatmul.bf16.gmra.mxu0 %v3064
      %v3146 = vpop.f32.mrf.mxu0
      %v3147 = vadd.f32 0.0, %v3146
      %v3148 = vpop.f32.mrf.mxu0
      %v3149 = vadd.f32 0.0, %v3148
      %3150 = vmatmul.bf16.gmra.mxu0 %v3066
      %v3151 = vpop.f32.mrf.mxu0
      %v3152 = vadd.f32 0.0, %v3151
      %v3153 = vpop.f32.mrf.mxu0
      %v3154 = vadd.f32 0.0, %v3153
      %3155 = vmatmul.bf16.gmra.mxu0 %v3068
      %v3156 = vpop.f32.mrf.mxu0
      %v3157 = vadd.f32 0.0, %v3156
      %v3158 = vpop.f32.mrf.mxu0
      %v3159 = vadd.f32 0.0, %v3158
      %3160 = vmatmul.bf16.gmra.mxu0 %v3070
      %v3161 = vpop.f32.mrf.mxu0
      %v3162 = vadd.f32 0.0, %v3161
      %v3163 = vpop.f32.mrf.mxu0
      %v3164 = vadd.f32 0.0, %v3163
      %3165 = vmatmul.bf16.gmra.mxu0 %v3072
      %v3166 = vpop.f32.mrf.mxu0
      %v3167 = vadd.f32 0.0, %v3166
      %v3168 = vpop.f32.mrf.mxu0
      %v3169 = vadd.f32 0.0, %v3168
      %3170 = vdwg.mxu0
      %3171 = vmatpush.bf16.msra.mxu0 %v3105
      %3172 = vmatpush.bf16.msra.mxu0 %v3103
      %3173 = vmatpush.bf16.msra.mxu0 %v3101
      %3174 = vmatpush.bf16.msra.mxu0 %v3099
      %3175 = vmatpush.bf16.msra.mxu0 %v3097
      %3176 = vmatpush.bf16.msra.mxu0 %v3095
      %3177 = vmatpush.bf16.msra.mxu0 %v3093
      %3178 = vmatpush.bf16.msra.mxu0 %v3091
      %3179 = vmatmul.bf16.gmra.mxu0 %v3059
      %v3180 = vpop.f32.mrf.mxu0
      %v3181 = vadd.f32 %v3132, %v3180
      %v3182 = vpop.f32.mrf.mxu0
      %v3183 = vadd.f32 %v3134, %v3182
      %3184 = vmatmul.bf16.gmra.mxu0 %v3061
      %v3185 = vpop.f32.mrf.mxu0
      %v3186 = vadd.f32 %v3137, %v3185
      %v3187 = vpop.f32.mrf.mxu0
      %v3188 = vadd.f32 %v3139, %v3187
      %3189 = vmatmul.bf16.gmra.mxu0 %v3063
      %v3190 = vpop.f32.mrf.mxu0
      %v3191 = vadd.f32 %v3142, %v3190
      %v3192 = vpop.f32.mrf.mxu0
      %v3193 = vadd.f32 %v3144, %v3192
      %3194 = vmatmul.bf16.gmra.mxu0 %v3065
      %v3195 = vpop.f32.mrf.mxu0
      %v3196 = vadd.f32 %v3147, %v3195
      %v3197 = vpop.f32.mrf.mxu0
      %v3198 = vadd.f32 %v3149, %v3197
      %3199 = vmatmul.bf16.gmra.mxu0 %v3067
      %v3200 = vpop.f32.mrf.mxu0
      %v3201 = vadd.f32 %v3152, %v3200
      %v3202 = vpop.f32.mrf.mxu0
      %v3203 = vadd.f32 %v3154, %v3202
      %3204 = vmatmul.bf16.gmra.mxu0 %v3069
      %v3205 = vpop.f32.mrf.mxu0
      %v3206 = vadd.f32 %v3157, %v3205
      %v3207 = vpop.f32.mrf.mxu0
      %v3208 = vadd.f32 %v3159, %v3207
      %3209 = vmatmul.bf16.gmra.mxu0 %v3071
      %v3210 = vpop.f32.mrf.mxu0
      %v3211 = vadd.f32 %v3162, %v3210
      %v3212 = vpop.f32.mrf.mxu0
      %v3213 = vadd.f32 %v3164, %v3212
      %3214 = vmatmul.bf16.gmra.mxu0 %v3073
      %v3215 = vpop.f32.mrf.mxu0
      %v3216 = vadd.f32 %v3167, %v3215
      %v3217 = vpop.f32.mrf.mxu0
      %v3218 = vadd.f32 %v3169, %v3217
      %3219 = vdwg.mxu0
      %vm3220 = vcmp.gt.f32.partialorder %v3181, 0.0
      %vm3221 = vcmp.gt.f32.partialorder %v3183, 0.0
      %vm3222 = vcmp.gt.f32.partialorder %v3186, 0.0
      %vm3223 = vcmp.gt.f32.partialorder %v3188, 0.0
      %vm3224 = vcmp.gt.f32.partialorder %v3191, 0.0
      %vm3225 = vcmp.gt.f32.partialorder %v3193, 0.0
      %vm3226 = vcmp.gt.f32.partialorder %v3196, 0.0
      %vm3227 = vcmp.gt.f32.partialorder %v3198, 0.0
      %vm3228 = vcmp.gt.f32.partialorder %v3201, 0.0
      %vm3229 = vcmp.gt.f32.partialorder %v3203, 0.0
      %vm3230 = vcmp.gt.f32.partialorder %v3206, 0.0
      %vm3231 = vcmp.gt.f32.partialorder %v3208, 0.0
      %vm3232 = vcmp.gt.f32.partialorder %v3211, 0.0
      %vm3233 = vcmp.gt.f32.partialorder %v3213, 0.0
      %vm3234 = vcmp.gt.f32.partialorder %v3216, 0.0
      %vm3235 = vcmp.gt.f32.partialorder %v3218, 0.0
      %v3236 = vmin.f32 %v3181, 0.0
      %v3237 = vmin.f32 %v3183, 0.0
      %v3238 = vmin.f32 %v3186, 0.0
      %v3239 = vmin.f32 %v3188, 0.0
      %v3240 = vmin.f32 %v3191, 0.0
      %v3241 = vmin.f32 %v3193, 0.0
      %v3242 = vmin.f32 %v3196, 0.0
      %v3243 = vmin.f32 %v3198, 0.0
      %v3244 = vmin.f32 %v3201, 0.0
      %v3245 = vmin.f32 %v3203, 0.0
      %v3246 = vmin.f32 %v3206, 0.0
      %v3247 = vmin.f32 %v3208, 0.0
      %v3248 = vmin.f32 %v3211, 0.0
      %v3249 = vmin.f32 %v3213, 0.0
      %v3250 = vmin.f32 %v3216, 0.0
      %v3251 = vmin.f32 %v3218, 0.0
      %v3252 = vmul.f32 %v3236, 1.442695
      %v3253 = vpow.pop %v3252
      %v3254 = vmul.f32 %v3237, 1.442695
      %v3255 = vpow.pop %v3254
      %v3256 = vmul.f32 %v3238, 1.442695
      %v3257 = vpow.pop %v3256
      %v3258 = vmul.f32 %v3239, 1.442695
      %v3259 = vpow.pop %v3258
      %v3260 = vmul.f32 %v3240, 1.442695
      %v3261 = vpow.pop %v3260
      %v3262 = vmul.f32 %v3241, 1.442695
      %v3263 = vpow.pop %v3262
      %v3264 = vmul.f32 %v3242, 1.442695
      %v3265 = vpow.pop %v3264
      %v3266 = vmul.f32 %v3243, 1.442695
      %v3267 = vpow.pop %v3266
      %v3268 = vmul.f32 %v3244, 1.442695
      %v3269 = vpow.pop %v3268
      %v3270 = vmul.f32 %v3245, 1.442695
      %v3271 = vpow.pop %v3270
      %v3272 = vmul.f32 %v3246, 1.442695
      %v3273 = vpow.pop %v3272
      %v3274 = vmul.f32 %v3247, 1.442695
      %v3275 = vpow.pop %v3274
      %v3276 = vmul.f32 %v3248, 1.442695
      %v3277 = vpow.pop %v3276
      %v3278 = vmul.f32 %v3249, 1.442695
      %v3279 = vpow.pop %v3278
      %v3280 = vmul.f32 %v3250, 1.442695
      %v3281 = vpow.pop %v3280
      %v3282 = vmul.f32 %v3251, 1.442695
      %v3283 = vpow.pop %v3282
      %v3284 = vsub.f32 %v3253, 1.0
      %v3285 = vsub.f32 %v3255, 1.0
      %v3286 = vsub.f32 %v3257, 1.0
      %v3287 = vsub.f32 %v3259, 1.0
      %v3288 = vsub.f32 %v3261, 1.0
      %v3289 = vsub.f32 %v3263, 1.0
      %v3290 = vsub.f32 %v3265, 1.0
      %v3291 = vsub.f32 %v3267, 1.0
      %v3292 = vsub.f32 %v3269, 1.0
      %v3293 = vsub.f32 %v3271, 1.0
      %v3294 = vsub.f32 %v3273, 1.0
      %v3295 = vsub.f32 %v3275, 1.0
      %v3296 = vsub.f32 %v3277, 1.0
      %v3297 = vsub.f32 %v3279, 1.0
      %v3298 = vsub.f32 %v3281, 1.0
      %v3299 = vsub.f32 %v3283, 1.0
      %v3300 = vsel %vm3220, %v3181, %v3284
      %v3301 = vsel %vm3221, %v3183, %v3285
      %v3302 = vsel %vm3222, %v3186, %v3286
      %v3303 = vsel %vm3223, %v3188, %v3287
      %v3304 = vsel %vm3224, %v3191, %v3288
      %v3305 = vsel %vm3225, %v3193, %v3289
      %v3306 = vsel %vm3226, %v3196, %v3290
      %v3307 = vsel %vm3227, %v3198, %v3291
      %v3308 = vsel %vm3228, %v3201, %v3292
      %v3309 = vsel %vm3229, %v3203, %v3293
      %v3310 = vsel %vm3230, %v3206, %v3294
      %v3311 = vsel %vm3231, %v3208, %v3295
      %v3312 = vsel %vm3232, %v3211, %v3296
      %v3313 = vsel %vm3233, %v3213, %v3297
      %v3314 = vsel %vm3234, %v3216, %v3298
      %v3315 = vsel %vm3235, %v3218, %v3299
      %3332 = vrot.lane.b32.xlu0 %v1844, 32
      %v3333 = vpop.permute.xlu0 %3332
      %3334 = vrot.lane.b32.xlu0 %v1845, 32
      %v3335 = vpop.permute.xlu0 %3334
      %3336 = vrot.lane.b32.xlu0 %v1846, 32
      %v3337 = vpop.permute.xlu0 %3336
      %3338 = vrot.lane.b32.xlu0 %v1847, 32
      %v3339 = vpop.permute.xlu0 %3338
      %3340 = vrot.lane.b32.xlu0 %v1848, 32
      %v3341 = vpop.permute.xlu0 %3340
      %3342 = vrot.lane.b32.xlu0 %v1849, 32
      %v3343 = vpop.permute.xlu0 %3342
      %3344 = vrot.lane.b32.xlu0 %v1850, 32
      %v3345 = vpop.permute.xlu0 %3344
      %3346 = vrot.lane.b32.xlu0 %v1851, 32
      %v3347 = vpop.permute.xlu0 %3346
      %3348 = vrot.lane.b32.xlu0 %v1852, 32
      %v3349 = vpop.permute.xlu0 %3348
      %3350 = vrot.lane.b32.xlu0 %v1853, 32
      %v3351 = vpop.permute.xlu0 %3350
      %3352 = vrot.lane.b32.xlu0 %v1854, 32
      %v3353 = vpop.permute.xlu0 %3352
      %3354 = vrot.lane.b32.xlu0 %v1855, 32
      %v3355 = vpop.permute.xlu0 %3354
      %3356 = vrot.lane.b32.xlu0 %v1856, 32
      %v3357 = vpop.permute.xlu0 %3356
      %3358 = vrot.lane.b32.xlu0 %v1857, 32
      %v3359 = vpop.permute.xlu0 %3358
      %3360 = vrot.lane.b32.xlu0 %v1858, 32
      %v3361 = vpop.permute.xlu0 %3360
      %3362 = vrot.lane.b32.xlu0 %v1859, 32
      %v3363 = vpop.permute.xlu0 %3362
      %3396 = vrot.lane.b32.xlu0 %v2572, 64
      %v3397 = vpop.permute.xlu0 %3396
      %3398 = vrot.lane.b32.xlu0 %v2573, 64
      %v3399 = vpop.permute.xlu0 %3398
      %3400 = vrot.lane.b32.xlu0 %v2574, 64
      %v3401 = vpop.permute.xlu0 %3400
      %3402 = vrot.lane.b32.xlu0 %v2575, 64
      %v3403 = vpop.permute.xlu0 %3402
      %3404 = vrot.lane.b32.xlu0 %v2576, 64
      %v3405 = vpop.permute.xlu0 %3404
      %3406 = vrot.lane.b32.xlu0 %v2577, 64
      %v3407 = vpop.permute.xlu0 %3406
      %3408 = vrot.lane.b32.xlu0 %v2578, 64
      %v3409 = vpop.permute.xlu0 %3408
      %3410 = vrot.lane.b32.xlu0 %v2579, 64
      %v3411 = vpop.permute.xlu0 %3410
      %3412 = vrot.lane.b32.xlu0 %v2580, 64
      %v3413 = vpop.permute.xlu0 %3412
      %3414 = vrot.lane.b32.xlu0 %v2581, 64
      %v3415 = vpop.permute.xlu0 %3414
      %3416 = vrot.lane.b32.xlu0 %v2582, 64
      %v3417 = vpop.permute.xlu0 %3416
      %3418 = vrot.lane.b32.xlu0 %v2583, 64
      %v3419 = vpop.permute.xlu0 %3418
      %3420 = vrot.lane.b32.xlu0 %v2584, 64
      %v3421 = vpop.permute.xlu0 %3420
      %3422 = vrot.lane.b32.xlu0 %v2585, 64
      %v3423 = vpop.permute.xlu0 %3422
      %3424 = vrot.lane.b32.xlu0 %v2586, 64
      %v3425 = vpop.permute.xlu0 %3424
      %3426 = vrot.lane.b32.xlu0 %v2587, 64
      %v3427 = vpop.permute.xlu0 %3426
      %3460 = vrot.lane.b32.xlu0 %v3300, 96
      %v3461 = vpop.permute.xlu0 %3460
      %3462 = vrot.lane.b32.xlu0 %v3301, 96
      %v3463 = vpop.permute.xlu0 %3462
      %3464 = vrot.lane.b32.xlu0 %v3302, 96
      %v3465 = vpop.permute.xlu0 %3464
      %3466 = vrot.lane.b32.xlu0 %v3303, 96
      %v3467 = vpop.permute.xlu0 %3466
      %3468 = vrot.lane.b32.xlu0 %v3304, 96
      %v3469 = vpop.permute.xlu0 %3468
      %3470 = vrot.lane.b32.xlu0 %v3305, 96
      %v3471 = vpop.permute.xlu0 %3470
      %3472 = vrot.lane.b32.xlu0 %v3306, 96
      %v3473 = vpop.permute.xlu0 %3472
      %3474 = vrot.lane.b32.xlu0 %v3307, 96
      %v3475 = vpop.permute.xlu0 %3474
      %3476 = vrot.lane.b32.xlu0 %v3308, 96
      %v3477 = vpop.permute.xlu0 %3476
      %3478 = vrot.lane.b32.xlu0 %v3309, 96
      %v3479 = vpop.permute.xlu0 %3478
      %3480 = vrot.lane.b32.xlu0 %v3310, 96
      %v3481 = vpop.permute.xlu0 %3480
      %3482 = vrot.lane.b32.xlu0 %v3311, 96
      %v3483 = vpop.permute.xlu0 %3482
      %3484 = vrot.lane.b32.xlu0 %v3312, 96
      %v3485 = vpop.permute.xlu0 %3484
      %3486 = vrot.lane.b32.xlu0 %v3313, 96
      %v3487 = vpop.permute.xlu0 %3486
      %3488 = vrot.lane.b32.xlu0 %v3314, 96
      %v3489 = vpop.permute.xlu0 %3488
      %3490 = vrot.lane.b32.xlu0 %v3315, 96
      %v3491 = vpop.permute.xlu0 %3490
      %vm3508 = vcmask 261120
      %v3509 = vsel %vm3508, %v1116, %v3333
      %v3510 = vsel %vm3508, %v1117, %v3335
      %v3511 = vsel %vm3508, %v1118, %v3337
      %v3512 = vsel %vm3508, %v1119, %v3339
      %v3513 = vsel %vm3508, %v1120, %v3341
      %v3514 = vsel %vm3508, %v1121, %v3343
      %v3515 = vsel %vm3508, %v1122, %v3345
      %v3516 = vsel %vm3508, %v1123, %v3347
      %v3517 = vsel %vm3508, %v1124, %v3349
      %v3518 = vsel %vm3508, %v1125, %v3351
      %v3519 = vsel %vm3508, %v1126, %v3353
      %v3520 = vsel %vm3508, %v1127, %v3355
      %v3521 = vsel %vm3508, %v1128, %v3357
      %v3522 = vsel %vm3508, %v1129, %v3359
      %v3523 = vsel %vm3508, %v1130, %v3361
      %v3524 = vsel %vm3508, %v1131, %v3363
      %vm3525 = vcmask 523264
      %v3526 = vsel %vm3525, %v3509, %v3397
      %v3527 = vsel %vm3525, %v3510, %v3399
      %v3528 = vsel %vm3525, %v3511, %v3401
      %v3529 = vsel %vm3525, %v3512, %v3403
      %v3530 = vsel %vm3525, %v3513, %v3405
      %v3531 = vsel %vm3525, %v3514, %v3407
      %v3532 = vsel %vm3525, %v3515, %v3409
      %v3533 = vsel %vm3525, %v3516, %v3411
      %v3534 = vsel %vm3525, %v3517, %v3413
      %v3535 = vsel %vm3525, %v3518, %v3415
      %v3536 = vsel %vm3525, %v3519, %v3417
      %v3537 = vsel %vm3525, %v3520, %v3419
      %v3538 = vsel %vm3525, %v3521, %v3421
      %v3539 = vsel %vm3525, %v3522, %v3423
      %v3540 = vsel %vm3525, %v3523, %v3425
      %v3541 = vsel %vm3525, %v3524, %v3427
      %vm3542 = vcmask 785408
      %v3543 = vsel %vm3542, %v3526, %v3461
      %v3544 = vsel %vm3542, %v3527, %v3463
      %v3545 = vsel %vm3542, %v3528, %v3465
      %v3546 = vsel %vm3542, %v3529, %v3467
      %v3547 = vsel %vm3542, %v3530, %v3469
      %v3548 = vsel %vm3542, %v3531, %v3471
      %v3549 = vsel %vm3542, %v3532, %v3473
      %v3550 = vsel %vm3542, %v3533, %v3475
      %v3551 = vsel %vm3542, %v3534, %v3477
      %v3552 = vsel %vm3542, %v3535, %v3479
      %v3553 = vsel %vm3542, %v3536, %v3481
      %v3554 = vsel %vm3542, %v3537, %v3483
      %v3555 = vsel %vm3542, %v3538, %v3485
      %v3556 = vsel %vm3542, %v3539, %v3487
      %v3557 = vsel %vm3542, %v3540, %v3489
      %v3558 = vsel %vm3542, %v3541, %v3491
      %3559 = vst [vmem:[%s224] sm:$0xff] %v3543
      %3560 = vst [vmem:[%s224 + $0x8] sm:$0xff] %v3544
      %3561 = vst [vmem:[%s224 + $0x10] sm:$0xff] %v3545
      %3562 = vst [vmem:[%s224 + $0x18] sm:$0xff] %v3546
      %3563 = vst [vmem:[%s224 + $0x20] sm:$0xff] %v3547
      %3564 = vst [vmem:[%s224 + $0x28] sm:$0xff] %v3548
      %3565 = vst [vmem:[%s224 + $0x30] sm:$0xff] %v3549
      %3566 = vst [vmem:[%s224 + $0x38] sm:$0xff] %v3550
      %3567 = vst [vmem:[%s224 + $0x40] sm:$0xff] %v3551
      %3568 = vst [vmem:[%s224 + $0x48] sm:$0xff] %v3552
      %3569 = vst [vmem:[%s224 + $0x50] sm:$0xff] %v3553
      %3570 = vst [vmem:[%s224 + $0x58] sm:$0xff] %v3554
      %3571 = vst [vmem:[%s224 + $0x60] sm:$0xff] %v3555
      %3572 = vst [vmem:[%s224 + $0x68] sm:$0xff] %v3556
      %3573 = vst [vmem:[%s224 + $0x70] sm:$0xff] %v3557
      %3574 = vst [vmem:[%s224 + $0x78] sm:$0xff] %v3558
      %s3575 = smul.u32 16, %s15
      %p3576 = scmp.lt.s32.totalorder %s3575, 31
      %s3577 = scalar_select %p3576, %s3575, 31
      %s3578 = smul.addr %s3577, 8
      %s3579 = scalar_lea.vmem %s4, %s3578
      // Predicated region
      $region37: #{gat_forward.7} parent=35 // pred_check
        %p3580 = pneg %p127
      $region38: #{gat_forward.7} parent=35 // pred_check_branch
        %3582 = sbr.rel (%p3580) target = $region40
      $region39: #{gat_forward.7} parent=35 // pred_region
        %s3583 = smul.u32 16, %s15
      $region40: #{gat_forward.7} parent=35 // pred_fallthru
        _
    $region36: #{gat_forward.7} parent=5 // pred_fallthru
      _
    %p3584 = scmp.le.s32.totalorder 2, %s10
    // Predicated region
    $region41: #{gat_forward.7} parent=5 // pred_check
      %p3585 = pneg %p3584
    $region42: #{gat_forward.7} parent=5 // pred_check_branch
      %3587 = sbr.rel (%p3585) target = $region44
    $region43: #{gat_forward.7} parent=5 // pred_region
      %s3588 = ssub.s32 %s10, 2
      // Predicated region
      $region45: #{gat_forward.7} parent=43 // pred_check
        %p3589 = pneg %p133
      $region46: #{gat_forward.7} parent=43 // pred_check_branch
        %3591 = sbr.rel (%p3589) target = $region48
      $region47: #{gat_forward.7} parent=43 // pred_region
        %s3592 = smul.u32 16, %s16
        %p3593 = scmp.lt.s32.totalorder %s3592, 31
        %s3594 = scalar_select %p3593, %s3592, 31
        %s3595 = smul.addr %s3594, 8
        %s3596 = scalar_lea.vmem %s4, %s3595
      $region48: #{gat_forward.7} parent=43 // pred_fallthru
        _
    $region44: #{gat_forward.7} parent=5 // pred_fallthru
      _
  $region6: #{gat_forward.7} parent=0 // loop_footer
    %s14 = sadd.s32 1, %s10
  $region7: #{gat_forward.7} parent=0 // loop_footer_branch
    %9 = sbr.rel target = $region3
  $region8: #{gat_forward.7} parent=0 // loop_exit
    _

// kernel: gat_forward.11
$region0: #{gat_forward.11}
  #allocation0 [shape = 'u32[]', space=smem, size = 0x4, offset = 0x4, fixed_abs, tag = 'smem constant byte address 0x4 - core index']
  #allocation1 [shape = 'u32[72,128]{1,0:T(1,128)}', space=vmem, size = 0x9000, scoped, tag = 'internal scratch']
  %s0 = inlined_call_operand.vmem [shape: f32[256,256], index: 0, kind: input, shape index: {}]
  %s1 = inlined_call_operand.vmem [shape: f32[256,1], index: 1, kind: input, shape index: {}]
  %s2 = inlined_call_operand.vmem [shape: f32[1,256], index: 2, kind: input, shape index: {}]
  %s3 = inlined_call_operand.vmem [shape: bf16[256,16], index: 3, kind: input, shape index: {}]
  %s4 = inlined_call_operand.vmem [shape: f32[256,16], index: 4, kind: output, shape index: {}]
  %s5 = sld [smem:[#allocation0]]
  $region49: #{gat_forward.11} parent=0
    _
  %s7 = ssub.s32 1, %s5
  %s8 = scalar_select 0, %s7, %s5
  loop: start=0, step=1, limit=4
  $region2: #{gat_forward.11} parent=0 // loop_pre_header
    _
  $region3: #{gat_forward.11} parent=0 // loop_header
    %s10 = sphi 0, %s14
    %p11 = scmp.ge.s32.totalorder %s10, 4
    %s20 = sphi 0, %s22
    %s23 = sphi 0, %s20
    %s24 = sphi 0, %s23
    %s40 = sphi 0, %s24
    %s46 = sphi 0, %s48
    %s49 = sphi 0, %s46
    %s50 = sphi 0, %s49
    %s66 = sphi 0, %s50
    %s70 = sphi 0, %s70
    %s72 = sphi 0, %s70
    %s73 = sphi 0, %s72
    %s87 = sphi 0, %s73
    %s91 = sphi 0, %s91
    %s93 = sphi 0, %s91
    %s94 = sphi 0, %s93
    %s108 = sphi 0, %s94
    %s114 = sphi 0, %s116
    %s117 = sphi 0, %s114
    %s118 = sphi 0, %s117
    %s134 = sphi 0, %s118
  $region4: #{gat_forward.11} parent=0 // loop_header_branch
    %13 = sbr.rel (%p11) target = $region8
  $region5: #{gat_forward.11} parent=0 // loop_body
    %s15 = ssub.s32 %s10, 1
    %s16 = ssub.s32 %s10, 2
    %s17 = sadd.s32 %s10, 1
    %s18 = ssub.s32 %s10, %s17
    %p19 = scmp.eq.s32.totalorder %s18, 0
    %s21 = sadd.s32 %s20, 1
    %s22 = scalar_select %p19, %s20, %s21
    %p25 = pneg %p19
    %p26 = scmp.eq.s32.totalorder %s10, 1
    %p27 = por %p25, %p26
    %p28 = scmp.ne.s32.totalorder %s20, %s23
    %p29 = scmp.eq.s32.totalorder %s10, 0
    %p30 = por %p28, %p29
    %p31 = scmp.ne.s32.totalorder %s20, %s23
    %p32 = scmp.eq.s32.totalorder %s15, 1
    %p33 = por %p31, %p32
    %p34 = scmp.ne.s32.totalorder %s23, %s24
    %p35 = scmp.eq.s32.totalorder %s15, 0
    %p36 = por %p34, %p35
    %p37 = scmp.ne.s32.totalorder %s23, %s24
    %p38 = scmp.eq.s32.totalorder %s16, 1
    %p39 = por %p37, %p38
    %p41 = scmp.ne.s32.totalorder %s24, %s40
    %p42 = scmp.eq.s32.totalorder %s16, 0
    %p43 = por %p41, %p42
    %s44 = ssub.s32 %s10, %s17
    %p45 = scmp.eq.s32.totalorder %s44, 0
    %s47 = sadd.s32 %s46, 1
    %s48 = scalar_select %p45, %s46, %s47
    %p51 = pneg %p45
    %p52 = scmp.eq.s32.totalorder %s10, 1
    %p53 = por %p51, %p52
    %p54 = scmp.ne.s32.totalorder %s46, %s49
    %p55 = scmp.eq.s32.totalorder %s10, 0
    %p56 = por %p54, %p55
    %p57 = scmp.ne.s32.totalorder %s46, %s49
    %p58 = scmp.eq.s32.totalorder %s15, 1
    %p59 = por %p57, %p58
    %p60 = scmp.ne.s32.totalorder %s49, %s50
    %p61 = scmp.eq.s32.totalorder %s15, 0
    %p62 = por %p60, %p61
    %p63 = scmp.ne.s32.totalorder %s49, %s50
    %p64 = scmp.eq.s32.totalorder %s16, 1
    %p65 = por %p63, %p64
    %p67 = scmp.ne.s32.totalorder %s50, %s66
    %p68 = scmp.eq.s32.totalorder %s16, 0
    %p69 = por %p67, %p68
    %s71 = sadd.s32 %s70, 1
    %p74 = scmp.eq.s32.totalorder %s10, 1
    %p75 = scmp.ne.s32.totalorder %s70, %s72
    %p76 = scmp.eq.s32.totalorder %s10, 0
    %p77 = por %p75, %p76
    %p78 = scmp.ne.s32.totalorder %s70, %s72
    %p79 = scmp.eq.s32.totalorder %s15, 1
    %p80 = por %p78, %p79
    %p81 = scmp.ne.s32.totalorder %s72, %s73
    %p82 = scmp.eq.s32.totalorder %s15, 0
    %p83 = por %p81, %p82
    %p84 = scmp.ne.s32.totalorder %s72, %s73
    %p85 = scmp.eq.s32.totalorder %s16, 1
    %p86 = por %p84, %p85
    %p88 = scmp.ne.s32.totalorder %s73, %s87
    %p89 = scmp.eq.s32.totalorder %s16, 0
    %p90 = por %p88, %p89
    %s92 = sadd.s32 %s91, 1
    %p95 = scmp.eq.s32.totalorder %s10, 1
    %p96 = scmp.ne.s32.totalorder %s91, %s93
    %p97 = scmp.eq.s32.totalorder %s10, 0
    %p98 = por %p96, %p97
    %p99 = scmp.ne.s32.totalorder %s91, %s93
    %p100 = scmp.eq.s32.totalorder %s15, 1
    %p101 = por %p99, %p100
    %p102 = scmp.ne.s32.totalorder %s93, %s94
    %p103 = scmp.eq.s32.totalorder %s15, 0
    %p104 = por %p102, %p103
    %p105 = scmp.ne.s32.totalorder %s93, %s94
    %p106 = scmp.eq.s32.totalorder %s16, 1
    %p107 = por %p105, %p106
    %p109 = scmp.ne.s32.totalorder %s94, %s108
    %p110 = scmp.eq.s32.totalorder %s16, 0
    %p111 = por %p109, %p110
    %s112 = ssub.s32 %s10, %s17
    %p113 = scmp.eq.s32.totalorder %s112, 0
    %s115 = sadd.s32 %s114, 1
    %s116 = scalar_select %p113, %s114, %s115
    %p119 = pneg %p113
    %p120 = scmp.eq.s32.totalorder %s10, 1
    %p121 = por %p119, %p120
    %p122 = scmp.ne.s32.totalorder %s114, %s117
    %p123 = scmp.eq.s32.totalorder %s10, 0
    %p124 = por %p122, %p123
    %p125 = scmp.ne.s32.totalorder %s114, %s117
    %p126 = scmp.eq.s32.totalorder %s15, 1
    %p127 = por %p125, %p126
    %p128 = scmp.ne.s32.totalorder %s117, %s118
    %p129 = scmp.eq.s32.totalorder %s15, 0
    %p130 = por %p128, %p129
    %p131 = scmp.ne.s32.totalorder %s117, %s118
    %p132 = scmp.eq.s32.totalorder %s16, 1
    %p133 = por %p131, %p132
    %p135 = scmp.ne.s32.totalorder %s118, %s134
    %p136 = scmp.eq.s32.totalorder %s16, 0
    %p137 = por %p135, %p136
    %p138 = scmp.le.s32.totalorder 1, %s10
    %p139 = scmp.lt.s32.totalorder %s10, 3
    %p140 = pnand %p138, %p139
    %p141 = pneg %p140
    // Predicated region
    $region9: #{gat_forward.11} parent=5 // pred_check
      _
    $region10: #{gat_forward.11} parent=5 // pred_check_branch
      %143 = sbr.rel (%p140) target = $region12
    $region11: #{gat_forward.11} parent=5 // pred_region
      %s144 = ssub.s32 %s10, 1
      // Predicated region
      $region13: #{gat_forward.11} parent=11 // pred_check
        %p145 = pneg %p83
      $region14: #{gat_forward.11} parent=11 // pred_check_branch
        %147 = sbr.rel (%p145) target = $region16
      $region15: #{gat_forward.11} parent=11 // pred_region
        _
      $region16: #{gat_forward.11} parent=11 // pred_fallthru
        _
      // Predicated region
      $region17: #{gat_forward.11} parent=11 // pred_check
        %p148 = pneg %p104
      $region18: #{gat_forward.11} parent=11 // pred_check_branch
        %150 = sbr.rel (%p148) target = $region20
      $region19: #{gat_forward.11} parent=11 // pred_region
        _
      $region20: #{gat_forward.11} parent=11 // pred_fallthru
        _
    $region12: #{gat_forward.11} parent=5 // pred_fallthru
      _
    %p151 = scmp.lt.s32.totalorder %s10, 2
    // Predicated region
    $region21: #{gat_forward.11} parent=5 // pred_check
      %p152 = pneg %p151
    $region22: #{gat_forward.11} parent=5 // pred_check_branch
      %154 = sbr.rel (%p152) target = $region24
    $region23: #{gat_forward.11} parent=5 // pred_region
      // Predicated region
      $region25: #{gat_forward.11} parent=23 // pred_check
        %p155 = pneg %p30
      $region26: #{gat_forward.11} parent=23 // pred_check_branch
        %157 = sbr.rel (%p155) target = $region28
      $region27: #{gat_forward.11} parent=23 // pred_region
        %s158 = smul.u32 16, %s10
        %p159 = scmp.lt.s32.totalorder %s158, 31
        %s160 = scalar_select %p159, %s158, 31
        %s161 = smul.addr %s160, 2
        %s162 = smul.addr %s161, 8
        %s163 = scalar_lea.vmem %s0, %s162
        %s164 = smul.u32 16, %s10
      $region28: #{gat_forward.11} parent=23 // pred_fallthru
        _
      // Predicated region
      $region29: #{gat_forward.11} parent=23 // pred_check
        %p165 = pneg %p56
      $region30: #{gat_forward.11} parent=23 // pred_check_branch
        %167 = sbr.rel (%p165) target = $region32
      $region31: #{gat_forward.11} parent=23 // pred_region
        %s168 = smul.u32 16, %s10
        %p169 = scmp.lt.s32.totalorder %s168, 31
        %s170 = scalar_select %p169, %s168, 31
        %s171 = smul.addr %s170, 8
        %s172 = scalar_lea.vmem %s1, %s171
        %s173 = smul.u32 16, %s10
      $region32: #{gat_forward.11} parent=23 // pred_fallthru
        _
    $region24: #{gat_forward.11} parent=5 // pred_fallthru
      _
    %p174 = scmp.le.s32.totalorder 1, %s10
    %p175 = scmp.lt.s32.totalorder %s10, 3
    %p176 = pnand %p174, %p175
    %p177 = pneg %p176
    // Predicated region
    $region33: #{gat_forward.11} parent=5 // pred_check
      _
    $region34: #{gat_forward.11} parent=5 // pred_check_branch
      %179 = sbr.rel (%p176) target = $region36
    $region35: #{gat_forward.11} parent=5 // pred_region
      %s180 = ssub.s32 %s10, 1
      %s181 = smul.u32 16, %s15
      %p182 = scmp.lt.s32.totalorder %s181, 31
      %s183 = scalar_select %p182, %s181, 31
      %s184 = smul.addr %s183, 2
      %s185 = smul.addr %s184, 8
      %s186 = scalar_lea.vmem %s0, %s185
      %p187 = pneg %p36
      %p188 = pneg %p33
      %s189 = smul.u32 16, %s15
      %p190 = scmp.lt.s32.totalorder %s189, 31
      %s191 = scalar_select %p190, %s189, 31
      %s192 = smul.addr %s191, 8
      %s193 = scalar_lea.vmem %s1, %s192
      %p194 = pneg %p62
      %p195 = pneg %p59
      %p196 = pneg %p83
      %p197 = pneg %p80
      %p198 = pneg %p104
      %p199 = pneg %p101
      %p200 = pneg %p130
      %p201 = pneg %p127
      %s202 = smul.u32 16, %s15
      %p203 = scmp.lt.s32.totalorder %s202, 31
      %s204 = scalar_select %p203, %s202, 31
      %s205 = smul.addr %s204, 8
      %s206 = scalar_lea.vmem %s4, %s205
      %s207 = smul.u32 16, %s15
      %p208 = scmp.lt.s32.totalorder %s207, 31
      %s209 = scalar_select %p208, %s207, 31
      %s210 = smul.addr %s209, 2
      %s211 = smul.addr %s210, 8
      %s212 = scalar_lea.vmem %s0, %s211
      %s213 = smul.u32 16, %s15
      %s214 = smul.u32 16, %s15
      %p215 = scmp.lt.s32.totalorder %s214, 31
      %s216 = scalar_select %p215, %s214, 31
      %s217 = smul.addr %s216, 8
      %s218 = scalar_lea.vmem %s1, %s217
      %s219 = smul.u32 16, %s15
      %s220 = smul.u32 16, %s15
      %p221 = scmp.lt.s32.totalorder %s220, 31
      %s222 = scalar_select %p221, %s220, 31
      %s223 = smul.addr %s222, 8
      %s224 = scalar_lea.vmem %s4, %s223
      %s225 = smul.u32 16, %s15
      %v226 = vld [vmem:[%s212] sm:$0xff]
      %v227 = vld [vmem:[%s212 + $0x8] sm:$0xff]
      %v228 = vld [vmem:[%s212 + $0x10] sm:$0xff]
      %v229 = vld [vmem:[%s212 + $0x18] sm:$0xff]
      %v230 = vld [vmem:[%s212 + $0x20] sm:$0xff]
      %v231 = vld [vmem:[%s212 + $0x28] sm:$0xff]
      %v232 = vld [vmem:[%s212 + $0x30] sm:$0xff]
      %v233 = vld [vmem:[%s212 + $0x38] sm:$0xff]
      %v234 = vld [vmem:[%s212 + $0x40] sm:$0xff]
      %v235 = vld [vmem:[%s212 + $0x48] sm:$0xff]
      %v236 = vld [vmem:[%s212 + $0x50] sm:$0xff]
      %v237 = vld [vmem:[%s212 + $0x58] sm:$0xff]
      %v238 = vld [vmem:[%s212 + $0x60] sm:$0xff]
      %v239 = vld [vmem:[%s212 + $0x68] sm:$0xff]
      %v240 = vld [vmem:[%s212 + $0x70] sm:$0xff]
      %v241 = vld [vmem:[%s212 + $0x78] sm:$0xff]
      %v242 = vld [vmem:[%s212 + $0x80] sm:$0xff]
      %v243 = vld [vmem:[%s212 + $0x88] sm:$0xff]
      %v244 = vld [vmem:[%s212 + $0x90] sm:$0xff]
      %v245 = vld [vmem:[%s212 + $0x98] sm:$0xff]
      %v246 = vld [vmem:[%s212 + $0xa0] sm:$0xff]
      %v247 = vld [vmem:[%s212 + $0xa8] sm:$0xff]
      %v248 = vld [vmem:[%s212 + $0xb0] sm:$0xff]
      %v249 = vld [vmem:[%s212 + $0xb8] sm:$0xff]
      %v250 = vld [vmem:[%s212 + $0xc0] sm:$0xff]
      %v251 = vld [vmem:[%s212 + $0xc8] sm:$0xff]
      %v252 = vld [vmem:[%s212 + $0xd0] sm:$0xff]
      %v253 = vld [vmem:[%s212 + $0xd8] sm:$0xff]
      %v254 = vld [vmem:[%s212 + $0xe0] sm:$0xff]
      %v255 = vld [vmem:[%s212 + $0xe8] sm:$0xff]
      %v256 = vld [vmem:[%s212 + $0xf0] sm:$0xff]
      %v257 = vld [vmem:[%s212 + $0xf8] sm:$0xff]
      %vm258 = vcmp.gt.f32.partialorder %v226, 0.0
      %vm259 = vcmp.gt.f32.partialorder %v227, 0.0
      %vm260 = vcmp.gt.f32.partialorder %v228, 0.0
      %vm261 = vcmp.gt.f32.partialorder %v229, 0.0
      %vm262 = vcmp.gt.f32.partialorder %v230, 0.0
      %vm263 = vcmp.gt.f32.partialorder %v231, 0.0
      %vm264 = vcmp.gt.f32.partialorder %v232, 0.0
      %vm265 = vcmp.gt.f32.partialorder %v233, 0.0
      %vm266 = vcmp.gt.f32.partialorder %v234, 0.0
      %vm267 = vcmp.gt.f32.partialorder %v235, 0.0
      %vm268 = vcmp.gt.f32.partialorder %v236, 0.0
      %vm269 = vcmp.gt.f32.partialorder %v237, 0.0
      %vm270 = vcmp.gt.f32.partialorder %v238, 0.0
      %vm271 = vcmp.gt.f32.partialorder %v239, 0.0
      %vm272 = vcmp.gt.f32.partialorder %v240, 0.0
      %vm273 = vcmp.gt.f32.partialorder %v241, 0.0
      %vm274 = vcmp.gt.f32.partialorder %v242, 0.0
      %vm275 = vcmp.gt.f32.partialorder %v243, 0.0
      %vm276 = vcmp.gt.f32.partialorder %v244, 0.0
      %vm277 = vcmp.gt.f32.partialorder %v245, 0.0
      %vm278 = vcmp.gt.f32.partialorder %v246, 0.0
      %vm279 = vcmp.gt.f32.partialorder %v247, 0.0
      %vm280 = vcmp.gt.f32.partialorder %v248, 0.0
      %vm281 = vcmp.gt.f32.partialorder %v249, 0.0
      %vm282 = vcmp.gt.f32.partialorder %v250, 0.0
      %vm283 = vcmp.gt.f32.partialorder %v251, 0.0
      %vm284 = vcmp.gt.f32.partialorder %v252, 0.0
      %vm285 = vcmp.gt.f32.partialorder %v253, 0.0
      %vm286 = vcmp.gt.f32.partialorder %v254, 0.0
      %vm287 = vcmp.gt.f32.partialorder %v255, 0.0
      %vm288 = vcmp.gt.f32.partialorder %v256, 0.0
      %vm289 = vcmp.gt.f32.partialorder %v257, 0.0
      %v290 = vld [vmem:[%s218] sm:$0xff]
      %v291 = vld [vmem:[%s218 + $0x8] sm:$0xff]
      %v292 = vld [vmem:[%s218 + $0x10] sm:$0xff]
      %v293 = vld [vmem:[%s218 + $0x18] sm:$0xff]
      %v294 = vld [vmem:[%s218 + $0x20] sm:$0xff]
      %v295 = vld [vmem:[%s218 + $0x28] sm:$0xff]
      %v296 = vld [vmem:[%s218 + $0x30] sm:$0xff]
      %v297 = vld [vmem:[%s218 + $0x38] sm:$0xff]
      %v298 = vld [vmem:[%s218 + $0x40] sm:$0xff]
      %v299 = vld [vmem:[%s218 + $0x48] sm:$0xff]
      %v300 = vld [vmem:[%s218 + $0x50] sm:$0xff]
      %v301 = vld [vmem:[%s218 + $0x58] sm:$0xff]
      %v302 = vld [vmem:[%s218 + $0x60] sm:$0xff]
      %v303 = vld [vmem:[%s218 + $0x68] sm:$0xff]
      %v304 = vld [vmem:[%s218 + $0x70] sm:$0xff]
      %v305 = vld [vmem:[%s218 + $0x78] sm:$0xff]
      %v306 = vld [vmem:[%s2] sm:$0x3]
      %v307 = vld [vmem:[%s3] sm:$0xf]
      %v308 = vld [vmem:[%s3 + $0x4] sm:$0xf]
      %v309 = vld [vmem:[%s3 + $0x8] sm:$0xf]
      %v310 = vld [vmem:[%s3 + $0xc] sm:$0xf]
      %v311 = vld [vmem:[%s3 + $0x10] sm:$0xf]
      %v312 = vld [vmem:[%s3 + $0x14] sm:$0xf]
      %v313 = vld [vmem:[%s3 + $0x18] sm:$0xf]
      %v314 = vld [vmem:[%s3 + $0x1c] sm:$0xf]
      %v315 = vld [vmem:[%s3 + $0x20] sm:$0xf]
      %v316 = vld [vmem:[%s3 + $0x24] sm:$0xf]
      %v317 = vld [vmem:[%s3 + $0x28] sm:$0xf]
      %v318 = vld [vmem:[%s3 + $0x2c] sm:$0xf]
      %v319 = vld [vmem:[%s3 + $0x30] sm:$0xf]
      %v320 = vld [vmem:[%s3 + $0x34] sm:$0xf]
      %v321 = vld [vmem:[%s3 + $0x38] sm:$0xf]
      %v322 = vld [vmem:[%s3 + $0x3c] sm:$0xf]
      %v323 = vld [vmem:[%s3 + $0x40] sm:$0xf]
      %v324 = vld [vmem:[%s3 + $0x44] sm:$0xf]
      %v325 = vld [vmem:[%s3 + $0x48] sm:$0xf]
      %v326 = vld [vmem:[%s3 + $0x4c] sm:$0xf]
      %v327 = vld [vmem:[%s3 + $0x50] sm:$0xf]
      %v328 = vld [vmem:[%s3 + $0x54] sm:$0xf]
      %v329 = vld [vmem:[%s3 + $0x58] sm:$0xf]
      %v330 = vld [vmem:[%s3 + $0x5c] sm:$0xf]
      %v331 = vld [vmem:[%s3 + $0x60] sm:$0xf]
      %v332 = vld [vmem:[%s3 + $0x64] sm:$0xf]
      %v333 = vld [vmem:[%s3 + $0x68] sm:$0xf]
      %v334 = vld [vmem:[%s3 + $0x6c] sm:$0xf]
      %v335 = vld [vmem:[%s3 + $0x70] sm:$0xf]
      %v336 = vld [vmem:[%s3 + $0x74] sm:$0xf]
      %v337 = vld [vmem:[%s3 + $0x78] sm:$0xf]
      %v338 = vld [vmem:[%s3 + $0x7c] sm:$0xf]
      %340 = vset.pattern.permute.xlu0 0
      %341 = vperm.xlu0 %340, %v290
      %v342 = vpop.permute.xlu0 %341
      %345 = vset.pattern.permute.xlu0 0
      %346 = vperm.xlu0 %345, %v291
      %v347 = vpop.permute.xlu0 %346
      %350 = vset.pattern.permute.xlu0 0
      %351 = vperm.xlu0 %350, %v292
      %v352 = vpop.permute.xlu0 %351
      %355 = vset.pattern.permute.xlu0 0
      %356 = vperm.xlu0 %355, %v293
      %v357 = vpop.permute.xlu0 %356
      %360 = vset.pattern.permute.xlu0 0
      %361 = vperm.xlu0 %360, %v294
      %v362 = vpop.permute.xlu0 %361
      %365 = vset.pattern.permute.xlu0 0
      %366 = vperm.xlu0 %365, %v295
      %v367 = vpop.permute.xlu0 %366
      %370 = vset.pattern.permute.xlu0 0
      %371 = vperm.xlu0 %370, %v296
      %v372 = vpop.permute.xlu0 %371
      %375 = vset.pattern.permute.xlu0 0
      %376 = vperm.xlu0 %375, %v297
      %v377 = vpop.permute.xlu0 %376
      %380 = vset.pattern.permute.xlu0 0
      %381 = vperm.xlu0 %380, %v298
      %v382 = vpop.permute.xlu0 %381
      %385 = vset.pattern.permute.xlu0 0
      %386 = vperm.xlu0 %385, %v299
      %v387 = vpop.permute.xlu0 %386
      %390 = vset.pattern.permute.xlu0 0
      %391 = vperm.xlu0 %390, %v300
      %v392 = vpop.permute.xlu0 %391
      %395 = vset.pattern.permute.xlu0 0
      %396 = vperm.xlu0 %395, %v301
      %v397 = vpop.permute.xlu0 %396
      %400 = vset.pattern.permute.xlu0 0
      %401 = vperm.xlu0 %400, %v302
      %v402 = vpop.permute.xlu0 %401
      %405 = vset.pattern.permute.xlu0 0
      %406 = vperm.xlu0 %405, %v303
      %v407 = vpop.permute.xlu0 %406
      %410 = vset.pattern.permute.xlu0 0
      %411 = vperm.xlu0 %410, %v304
      %v412 = vpop.permute.xlu0 %411
      %415 = vset.pattern.permute.xlu0 0
      %416 = vperm.xlu0 %415, %v305
      %v417 = vpop.permute.xlu0 %416
      %v420 = vperm.slane %v306, 0
      %v421 = vperm.slane %v306, 1
      %v424 = vadd.f32 %v342, %v420
      %v425 = vadd.f32 %v342, %v421
      %v426 = vadd.f32 %v347, %v420
      %v427 = vadd.f32 %v347, %v421
      %v428 = vadd.f32 %v352, %v420
      %v429 = vadd.f32 %v352, %v421
      %v430 = vadd.f32 %v357, %v420
      %v431 = vadd.f32 %v357, %v421
      %v432 = vadd.f32 %v362, %v420
      %v433 = vadd.f32 %v362, %v421
      %v434 = vadd.f32 %v367, %v420
      %v435 = vadd.f32 %v367, %v421
      %v436 = vadd.f32 %v372, %v420
      %v437 = vadd.f32 %v372, %v421
      %v438 = vadd.f32 %v377, %v420
      %v439 = vadd.f32 %v377, %v421
      %v440 = vadd.f32 %v382, %v420
      %v441 = vadd.f32 %v382, %v421
      %v442 = vadd.f32 %v387, %v420
      %v443 = vadd.f32 %v387, %v421
      %v444 = vadd.f32 %v392, %v420
      %v445 = vadd.f32 %v392, %v421
      %v446 = vadd.f32 %v397, %v420
      %v447 = vadd.f32 %v397, %v421
      %v448 = vadd.f32 %v402, %v420
      %v449 = vadd.f32 %v402, %v421
      %v450 = vadd.f32 %v407, %v420
      %v451 = vadd.f32 %v407, %v421
      %v452 = vadd.f32 %v412, %v420
      %v453 = vadd.f32 %v412, %v421
      %v454 = vadd.f32 %v417, %v420
      %v455 = vadd.f32 %v417, %v421
      %vm456 = vcmp.gt.f32.partialorder %v424, 0.0
      %vm457 = vcmp.gt.f32.partialorder %v425, 0.0
      %vm458 = vcmp.gt.f32.partialorder %v426, 0.0
      %vm459 = vcmp.gt.f32.partialorder %v427, 0.0
      %vm460 = vcmp.gt.f32.partialorder %v428, 0.0
      %vm461 = vcmp.gt.f32.partialorder %v429, 0.0
      %vm462 = vcmp.gt.f32.partialorder %v430, 0.0
      %vm463 = vcmp.gt.f32.partialorder %v431, 0.0
      %vm464 = vcmp.gt.f32.partialorder %v432, 0.0
      %vm465 = vcmp.gt.f32.partialorder %v433, 0.0
      %vm466 = vcmp.gt.f32.partialorder %v434, 0.0
      %vm467 = vcmp.gt.f32.partialorder %v435, 0.0
      %vm468 = vcmp.gt.f32.partialorder %v436, 0.0
      %vm469 = vcmp.gt.f32.partialorder %v437, 0.0
      %vm470 = vcmp.gt.f32.partialorder %v438, 0.0
      %vm471 = vcmp.gt.f32.partialorder %v439, 0.0
      %vm472 = vcmp.gt.f32.partialorder %v440, 0.0
      %vm473 = vcmp.gt.f32.partialorder %v441, 0.0
      %vm474 = vcmp.gt.f32.partialorder %v442, 0.0
      %vm475 = vcmp.gt.f32.partialorder %v443, 0.0
      %vm476 = vcmp.gt.f32.partialorder %v444, 0.0
      %vm477 = vcmp.gt.f32.partialorder %v445, 0.0
      %vm478 = vcmp.gt.f32.partialorder %v446, 0.0
      %vm479 = vcmp.gt.f32.partialorder %v447, 0.0
      %vm480 = vcmp.gt.f32.partialorder %v448, 0.0
      %vm481 = vcmp.gt.f32.partialorder %v449, 0.0
      %vm482 = vcmp.gt.f32.partialorder %v450, 0.0
      %vm483 = vcmp.gt.f32.partialorder %v451, 0.0
      %vm484 = vcmp.gt.f32.partialorder %v452, 0.0
      %vm485 = vcmp.gt.f32.partialorder %v453, 0.0
      %vm486 = vcmp.gt.f32.partialorder %v454, 0.0
      %vm487 = vcmp.gt.f32.partialorder %v455, 0.0
      %v488 = vmul.f32 %v424, 0.2
      %v489 = vmul.f32 %v425, 0.2
      %v490 = vmul.f32 %v426, 0.2
      %v491 = vmul.f32 %v427, 0.2
      %v492 = vmul.f32 %v428, 0.2
      %v493 = vmul.f32 %v429, 0.2
      %v494 = vmul.f32 %v430, 0.2
      %v495 = vmul.f32 %v431, 0.2
      %v496 = vmul.f32 %v432, 0.2
      %v497 = vmul.f32 %v433, 0.2
      %v498 = vmul.f32 %v434, 0.2
      %v499 = vmul.f32 %v435, 0.2
      %v500 = vmul.f32 %v436, 0.2
      %v501 = vmul.f32 %v437, 0.2
      %v502 = vmul.f32 %v438, 0.2
      %v503 = vmul.f32 %v439, 0.2
      %v504 = vmul.f32 %v440, 0.2
      %v505 = vmul.f32 %v441, 0.2
      %v506 = vmul.f32 %v442, 0.2
      %v507 = vmul.f32 %v443, 0.2
      %v508 = vmul.f32 %v444, 0.2
      %v509 = vmul.f32 %v445, 0.2
      %v510 = vmul.f32 %v446, 0.2
      %v511 = vmul.f32 %v447, 0.2
      %v512 = vmul.f32 %v448, 0.2
      %v513 = vmul.f32 %v449, 0.2
      %v514 = vmul.f32 %v450, 0.2
      %v515 = vmul.f32 %v451, 0.2
      %v516 = vmul.f32 %v452, 0.2
      %v517 = vmul.f32 %v453, 0.2
      %v518 = vmul.f32 %v454, 0.2
      %v519 = vmul.f32 %v455, 0.2
      %v520 = vsel %vm456, %v424, %v488
      %v521 = vsel %vm457, %v425, %v489
      %v522 = vsel %vm458, %v426, %v490
      %v523 = vsel %vm459, %v427, %v491
      %v524 = vsel %vm460, %v428, %v492
      %v525 = vsel %vm461, %v429, %v493
      %v526 = vsel %vm462, %v430, %v494
      %v527 = vsel %vm463, %v431, %v495
      %v528 = vsel %vm464, %v432, %v496
      %v529 = vsel %vm465, %v433, %v497
      %v530 = vsel %vm466, %v434, %v498
      %v531 = vsel %vm467, %v435, %v499
      %v532 = vsel %vm468, %v436, %v500
      %v533 = vsel %vm469, %v437, %v501
      %v534 = vsel %vm470, %v438, %v502
      %v535 = vsel %vm471, %v439, %v503
      %v536 = vsel %vm472, %v440, %v504
      %v537 = vsel %vm473, %v441, %v505
      %v538 = vsel %vm474, %v442, %v506
      %v539 = vsel %vm475, %v443, %v507
      %v540 = vsel %vm476, %v444, %v508
      %v541 = vsel %vm477, %v445, %v509
      %v542 = vsel %vm478, %v446, %v510
      %v543 = vsel %vm479, %v447, %v511
      %v544 = vsel %vm480, %v448, %v512
      %v545 = vsel %vm481, %v449, %v513
      %v546 = vsel %vm482, %v450, %v514
      %v547 = vsel %vm483, %v451, %v515
      %v548 = vsel %vm484, %v452, %v516
      %v549 = vsel %vm485, %v453, %v517
      %v550 = vsel %vm486, %v454, %v518
      %v551 = vsel %vm487, %v455, %v519
      %v552 = vsel %vm258, %v520, -9e+15
      %v553 = vsel %vm259, %v521, -9e+15
      %v554 = vsel %vm260, %v522, -9e+15
      %v555 = vsel %vm261, %v523, -9e+15
      %v556 = vsel %vm262, %v524, -9e+15
      %v557 = vsel %vm263, %v525, -9e+15
      %v558 = vsel %vm264, %v526, -9e+15
      %v559 = vsel %vm265, %v527, -9e+15
      %v560 = vsel %vm266, %v528, -9e+15
      %v561 = vsel %vm267, %v529, -9e+15
      %v562 = vsel %vm268, %v530, -9e+15
      %v563 = vsel %vm269, %v531, -9e+15
      %v564 = vsel %vm270, %v532, -9e+15
      %v565 = vsel %vm271, %v533, -9e+15
      %v566 = vsel %vm272, %v534, -9e+15
      %v567 = vsel %vm273, %v535, -9e+15
      %v568 = vsel %vm274, %v536, -9e+15
      %v569 = vsel %vm275, %v537, -9e+15
      %v570 = vsel %vm276, %v538, -9e+15
      %v571 = vsel %vm277, %v539, -9e+15
      %v572 = vsel %vm278, %v540, -9e+15
      %v573 = vsel %vm279, %v541, -9e+15
      %v574 = vsel %vm280, %v542, -9e+15
      %v575 = vsel %vm281, %v543, -9e+15
      %v576 = vsel %vm282, %v544, -9e+15
      %v577 = vsel %vm283, %v545, -9e+15
      %v578 = vsel %vm284, %v546, -9e+15
      %v579 = vsel %vm285, %v547, -9e+15
      %v580 = vsel %vm286, %v548, -9e+15
      %v581 = vsel %vm287, %v549, -9e+15
      %v582 = vsel %vm288, %v550, -9e+15
      %v583 = vsel %vm289, %v551, -9e+15
      %v584 = vmax.f32 %v552, %v553
      %585 = vmax.xlane.f32.xlu0 %v584
      %v586 = vpop.xlane.xlu0 %585
      %v587 = vmax.f32 %v554, %v555
      %588 = vmax.xlane.f32.xlu0 %v587
      %v589 = vpop.xlane.xlu0 %588
      %v590 = vmax.f32 %v556, %v557
      %591 = vmax.xlane.f32.xlu0 %v590
      %v592 = vpop.xlane.xlu0 %591
      %v593 = vmax.f32 %v558, %v559
      %594 = vmax.xlane.f32.xlu0 %v593
      %v595 = vpop.xlane.xlu0 %594
      %v596 = vmax.f32 %v560, %v561
      %597 = vmax.xlane.f32.xlu0 %v596
      %v598 = vpop.xlane.xlu0 %597
      %v599 = vmax.f32 %v562, %v563
      %600 = vmax.xlane.f32.xlu0 %v599
      %v601 = vpop.xlane.xlu0 %600
      %v602 = vmax.f32 %v564, %v565
      %603 = vmax.xlane.f32.xlu0 %v602
      %v604 = vpop.xlane.xlu0 %603
      %v605 = vmax.f32 %v566, %v567
      %606 = vmax.xlane.f32.xlu0 %v605
      %v607 = vpop.xlane.xlu0 %606
      %v608 = vmax.f32 %v568, %v569
      %609 = vmax.xlane.f32.xlu0 %v608
      %v610 = vpop.xlane.xlu0 %609
      %v611 = vmax.f32 %v570, %v571
      %612 = vmax.xlane.f32.xlu0 %v611
      %v613 = vpop.xlane.xlu0 %612
      %v614 = vmax.f32 %v572, %v573
      %615 = vmax.xlane.f32.xlu0 %v614
      %v616 = vpop.xlane.xlu0 %615
      %v617 = vmax.f32 %v574, %v575
      %618 = vmax.xlane.f32.xlu0 %v617
      %v619 = vpop.xlane.xlu0 %618
      %v620 = vmax.f32 %v576, %v577
      %621 = vmax.xlane.f32.xlu0 %v620
      %v622 = vpop.xlane.xlu0 %621
      %v623 = vmax.f32 %v578, %v579
      %624 = vmax.xlane.f32.xlu0 %v623
      %v625 = vpop.xlane.xlu0 %624
      %v626 = vmax.f32 %v580, %v581
      %627 = vmax.xlane.f32.xlu0 %v626
      %v628 = vpop.xlane.xlu0 %627
      %v629 = vmax.f32 %v582, %v583
      %630 = vmax.xlane.f32.xlu0 %v629
      %v631 = vpop.xlane.xlu0 %630
      %v632 = vsub.f32 %v552, %v586
      %v633 = vsub.f32 %v553, %v586
      %v634 = vsub.f32 %v554, %v589
      %v635 = vsub.f32 %v555, %v589
      %v636 = vsub.f32 %v556, %v592
      %v637 = vsub.f32 %v557, %v592
      %v638 = vsub.f32 %v558, %v595
      %v639 = vsub.f32 %v559, %v595
      %v640 = vsub.f32 %v560, %v598
      %v641 = vsub.f32 %v561, %v598
      %v642 = vsub.f32 %v562, %v601
      %v643 = vsub.f32 %v563, %v601
      %v644 = vsub.f32 %v564, %v604
      %v645 = vsub.f32 %v565, %v604
      %v646 = vsub.f32 %v566, %v607
      %v647 = vsub.f32 %v567, %v607
      %v648 = vsub.f32 %v568, %v610
      %v649 = vsub.f32 %v569, %v610
      %v650 = vsub.f32 %v570, %v613
      %v651 = vsub.f32 %v571, %v613
      %v652 = vsub.f32 %v572, %v616
      %v653 = vsub.f32 %v573, %v616
      %v654 = vsub.f32 %v574, %v619
      %v655 = vsub.f32 %v575, %v619
      %v656 = vsub.f32 %v576, %v622
      %v657 = vsub.f32 %v577, %v622
      %v658 = vsub.f32 %v578, %v625
      %v659 = vsub.f32 %v579, %v625
      %v660 = vsub.f32 %v580, %v628
      %v661 = vsub.f32 %v581, %v628
      %v662 = vsub.f32 %v582, %v631
      %v663 = vsub.f32 %v583, %v631
      %v664 = vmul.f32 %v632, 1.442695
      %v665 = vpow.pop %v664
      %v666 = vmul.f32 %v633, 1.442695
      %v667 = vpow.pop %v666
      %v668 = vmul.f32 %v634, 1.442695
      %v669 = vpow.pop %v668
      %v670 = vmul.f32 %v635, 1.442695
      %v671 = vpow.pop %v670
      %v672 = vmul.f32 %v636, 1.442695
      %v673 = vpow.pop %v672
      %v674 = vmul.f32 %v637, 1.442695
      %v675 = vpow.pop %v674
      %v676 = vmul.f32 %v638, 1.442695
      %v677 = vpow.pop %v676
      %v678 = vmul.f32 %v639, 1.442695
      %v679 = vpow.pop %v678
      %v680 = vmul.f32 %v640, 1.442695
      %v681 = vpow.pop %v680
      %v682 = vmul.f32 %v641, 1.442695
      %v683 = vpow.pop %v682
      %v684 = vmul.f32 %v642, 1.442695
      %v685 = vpow.pop %v684
      %v686 = vmul.f32 %v643, 1.442695
      %v687 = vpow.pop %v686
      %v688 = vmul.f32 %v644, 1.442695
      %v689 = vpow.pop %v688
      %v690 = vmul.f32 %v645, 1.442695
      %v691 = vpow.pop %v690
      %v692 = vmul.f32 %v646, 1.442695
      %v693 = vpow.pop %v692
      %v694 = vmul.f32 %v647, 1.442695
      %v695 = vpow.pop %v694
      %v696 = vmul.f32 %v648, 1.442695
      %v697 = vpow.pop %v696
      %v698 = vmul.f32 %v649, 1.442695
      %v699 = vpow.pop %v698
      %v700 = vmul.f32 %v650, 1.442695
      %v701 = vpow.pop %v700
      %v702 = vmul.f32 %v651, 1.442695
      %v703 = vpow.pop %v702
      %v704 = vmul.f32 %v652, 1.442695
      %v705 = vpow.pop %v704
      %v706 = vmul.f32 %v653, 1.442695
      %v707 = vpow.pop %v706
      %v708 = vmul.f32 %v654, 1.442695
      %v709 = vpow.pop %v708
      %v710 = vmul.f32 %v655, 1.442695
      %v711 = vpow.pop %v710
      %v712 = vmul.f32 %v656, 1.442695
      %v713 = vpow.pop %v712
      %v714 = vmul.f32 %v657, 1.442695
      %v715 = vpow.pop %v714
      %v716 = vmul.f32 %v658, 1.442695
      %v717 = vpow.pop %v716
      %v718 = vmul.f32 %v659, 1.442695
      %v719 = vpow.pop %v718
      %v720 = vmul.f32 %v660, 1.442695
      %v721 = vpow.pop %v720
      %v722 = vmul.f32 %v661, 1.442695
      %v723 = vpow.pop %v722
      %v724 = vmul.f32 %v662, 1.442695
      %v725 = vpow.pop %v724
      %v726 = vmul.f32 %v663, 1.442695
      %v727 = vpow.pop %v726
      %v728 = vadd.f32 %v665, %v667
      %729 = vadd.xlane.f32.xlu0 %v728
      %v730 = vpop.xlane.xlu0 %729
      %v731 = vadd.f32 %v669, %v671
      %732 = vadd.xlane.f32.xlu0 %v731
      %v733 = vpop.xlane.xlu0 %732
      %v734 = vadd.f32 %v673, %v675
      %735 = vadd.xlane.f32.xlu0 %v734
      %v736 = vpop.xlane.xlu0 %735
      %v737 = vadd.f32 %v677, %v679
      %738 = vadd.xlane.f32.xlu0 %v737
      %v739 = vpop.xlane.xlu0 %738
      %v740 = vadd.f32 %v681, %v683
      %741 = vadd.xlane.f32.xlu0 %v740
      %v742 = vpop.xlane.xlu0 %741
      %v743 = vadd.f32 %v685, %v687
      %744 = vadd.xlane.f32.xlu0 %v743
      %v745 = vpop.xlane.xlu0 %744
      %v746 = vadd.f32 %v689, %v691
      %747 = vadd.xlane.f32.xlu0 %v746
      %v748 = vpop.xlane.xlu0 %747
      %v749 = vadd.f32 %v693, %v695
      %750 = vadd.xlane.f32.xlu0 %v749
      %v751 = vpop.xlane.xlu0 %750
      %v752 = vadd.f32 %v697, %v699
      %753 = vadd.xlane.f32.xlu0 %v752
      %v754 = vpop.xlane.xlu0 %753
      %v755 = vadd.f32 %v701, %v703
      %756 = vadd.xlane.f32.xlu0 %v755
      %v757 = vpop.xlane.xlu0 %756
      %v758 = vadd.f32 %v705, %v707
      %759 = vadd.xlane.f32.xlu0 %v758
      %v760 = vpop.xlane.xlu0 %759
      %v761 = vadd.f32 %v709, %v711
      %762 = vadd.xlane.f32.xlu0 %v761
      %v763 = vpop.xlane.xlu0 %762
      %v764 = vadd.f32 %v713, %v715
      %765 = vadd.xlane.f32.xlu0 %v764
      %v766 = vpop.xlane.xlu0 %765
      %v767 = vadd.f32 %v717, %v719
      %768 = vadd.xlane.f32.xlu0 %v767
      %v769 = vpop.xlane.xlu0 %768
      %v770 = vadd.f32 %v721, %v723
      %771 = vadd.xlane.f32.xlu0 %v770
      %v772 = vpop.xlane.xlu0 %771
      %v773 = vadd.f32 %v725, %v727
      %774 = vadd.xlane.f32.xlu0 %v773
      %v775 = vpop.xlane.xlu0 %774
      %v776 = vrcp.pop %v730
      %v777 = vrcp.pop %v733
      %v778 = vrcp.pop %v736
      %v779 = vrcp.pop %v739
      %v780 = vrcp.pop %v742
      %v781 = vrcp.pop %v745
      %v782 = vrcp.pop %v748
      %v783 = vrcp.pop %v751
      %v784 = vrcp.pop %v754
      %v785 = vrcp.pop %v757
      %v786 = vrcp.pop %v760
      %v787 = vrcp.pop %v763
      %v788 = vrcp.pop %v766
      %v789 = vrcp.pop %v769
      %v790 = vrcp.pop %v772
      %v791 = vrcp.pop %v775
      %v792 = vmul.f32 %v665, %v776
      %v793 = vmul.f32 %v667, %v776
      %v794 = vmul.f32 %v669, %v777
      %v795 = vmul.f32 %v671, %v777
      %v796 = vmul.f32 %v673, %v778
      %v797 = vmul.f32 %v675, %v778
      %v798 = vmul.f32 %v677, %v779
      %v799 = vmul.f32 %v679, %v779
      %v800 = vmul.f32 %v681, %v780
      %v801 = vmul.f32 %v683, %v780
      %v802 = vmul.f32 %v685, %v781
      %v803 = vmul.f32 %v687, %v781
      %v804 = vmul.f32 %v689, %v782
      %v805 = vmul.f32 %v691, %v782
      %v806 = vmul.f32 %v693, %v783
      %v807 = vmul.f32 %v695, %v783
      %v808 = vmul.f32 %v697, %v784
      %v809 = vmul.f32 %v699, %v784
      %v810 = vmul.f32 %v701, %v785
      %v811 = vmul.f32 %v703, %v785
      %v812 = vmul.f32 %v705, %v786
      %v813 = vmul.f32 %v707, %v786
      %v814 = vmul.f32 %v709, %v787
      %v815 = vmul.f32 %v711, %v787
      %v816 = vmul.f32 %v713, %v788
      %v817 = vmul.f32 %v715, %v788
      %v818 = vmul.f32 %v717, %v789
      %v819 = vmul.f32 %v719, %v789
      %v820 = vmul.f32 %v721, %v790
      %v821 = vmul.f32 %v723, %v790
      %v822 = vmul.f32 %v725, %v791
      %v823 = vmul.f32 %v727, %v791
      %v824 = vpack.c.bf16 %v794, %v792
      %v825 = vpack.c.bf16 %v795, %v793
      %v826 = vpack.c.bf16 %v798, %v796
      %v827 = vpack.c.bf16 %v799, %v797
      %v828 = vpack.c.bf16 %v802, %v800
      %v829 = vpack.c.bf16 %v803, %v801
      %v830 = vpack.c.bf16 %v806, %v804
      %v831 = vpack.c.bf16 %v807, %v805
      %v832 = vpack.c.bf16 %v810, %v808
      %v833 = vpack.c.bf16 %v811, %v809
      %v834 = vpack.c.bf16 %v814, %v812
      %v835 = vpack.c.bf16 %v815, %v813
      %v836 = vpack.c.bf16 %v818, %v816
      %v837 = vpack.c.bf16 %v819, %v817
      %v838 = vpack.c.bf16 %v822, %v820
      %v839 = vpack.c.bf16 %v823, %v821
      %v872 = vunpack.c.l.b16 %v307
      %v873 = vunpack.c.l.b16 %v308
      %v874 = vunpack.c.l.b16 %v309
      %v875 = vunpack.c.l.b16 %v310
      %v876 = vunpack.c.l.b16 %v311
      %v877 = vunpack.c.l.b16 %v312
      %v878 = vunpack.c.l.b16 %v313
      %v879 = vunpack.c.l.b16 %v314
      %v880 = vunpack.c.l.b16 %v315
      %v881 = vunpack.c.l.b16 %v316
      %v882 = vunpack.c.l.b16 %v317
      %v883 = vunpack.c.l.b16 %v318
      %v884 = vunpack.c.l.b16 %v319
      %v885 = vunpack.c.l.b16 %v320
      %v886 = vunpack.c.l.b16 %v321
      %v887 = vunpack.c.l.b16 %v322
      %v888 = vunpack.c.l.b16 %v323
      %v889 = vunpack.c.l.b16 %v324
      %v890 = vunpack.c.l.b16 %v325
      %v891 = vunpack.c.l.b16 %v326
      %v892 = vunpack.c.l.b16 %v327
      %v893 = vunpack.c.l.b16 %v328
      %v894 = vunpack.c.l.b16 %v329
      %v895 = vunpack.c.l.b16 %v330
      %v896 = vunpack.c.l.b16 %v331
      %v897 = vunpack.c.l.b16 %v332
      %v898 = vunpack.c.l.b16 %v333
      %v899 = vunpack.c.l.b16 %v334
      %v900 = vunpack.c.l.b16 %v335
      %v901 = vunpack.c.l.b16 %v336
      %v902 = vunpack.c.l.b16 %v337
      %v903 = vunpack.c.l.b16 %v338
      %v904 = vpack.c.b16 %v873, %v872
      %v905 = vpack.c.b16 %v875, %v874
      %v906 = vpack.c.b16 %v877, %v876
      %v907 = vpack.c.b16 %v879, %v878
      %v908 = vpack.c.b16 %v881, %v880
      %v909 = vpack.c.b16 %v883, %v882
      %v910 = vpack.c.b16 %v885, %v884
      %v911 = vpack.c.b16 %v887, %v886
      %v912 = vpack.c.b16 %v889, %v888
      %v913 = vpack.c.b16 %v891, %v890
      %v914 = vpack.c.b16 %v893, %v892
      %v915 = vpack.c.b16 %v895, %v894
      %v916 = vpack.c.b16 %v897, %v896
      %v917 = vpack.c.b16 %v899, %v898
      %v918 = vpack.c.b16 %v901, %v900
      %v919 = vpack.c.b16 %v903, %v902
      %936 = vmatpush.bf16.msra.mxu0 %v911
      %937 = vmatpush.bf16.msra.mxu0 %v910
      %938 = vmatpush.bf16.msra.mxu0 %v909
      %939 = vmatpush.bf16.msra.mxu0 %v908
      %940 = vmatpush.bf16.msra.mxu0 %v907
      %941 = vmatpush.bf16.msra.mxu0 %v906
      %942 = vmatpush.bf16.msra.mxu0 %v905
      %943 = vmatpush.bf16.msra.mxu0 %v904
      %944 = vmatmul.bf16.gmra.mxu0 %v824
      %v945 = vpop.f32.mrf.mxu0
      %v946 = vadd.f32 0.0, %v945
      %v947 = vpop.f32.mrf.mxu0
      %v948 = vadd.f32 0.0, %v947
      %949 = vmatmul.bf16.gmra.mxu0 %v826
      %v950 = vpop.f32.mrf.mxu0
      %v951 = vadd.f32 0.0, %v950
      %v952 = vpop.f32.mrf.mxu0
      %v953 = vadd.f32 0.0, %v952
      %954 = vmatmul.bf16.gmra.mxu0 %v828
      %v955 = vpop.f32.mrf.mxu0
      %v956 = vadd.f32 0.0, %v955
      %v957 = vpop.f32.mrf.mxu0
      %v958 = vadd.f32 0.0, %v957
      %959 = vmatmul.bf16.gmra.mxu0 %v830
      %v960 = vpop.f32.mrf.mxu0
      %v961 = vadd.f32 0.0, %v960
      %v962 = vpop.f32.mrf.mxu0
      %v963 = vadd.f32 0.0, %v962
      %964 = vmatmul.bf16.gmra.mxu0 %v832
      %v965 = vpop.f32.mrf.mxu0
      %v966 = vadd.f32 0.0, %v965
      %v967 = vpop.f32.mrf.mxu0
      %v968 = vadd.f32 0.0, %v967
      %969 = vmatmul.bf16.gmra.mxu0 %v834
      %v970 = vpop.f32.mrf.mxu0
      %v971 = vadd.f32 0.0, %v970
      %v972 = vpop.f32.mrf.mxu0
      %v973 = vadd.f32 0.0, %v972
      %974 = vmatmul.bf16.gmra.mxu0 %v836
      %v975 = vpop.f32.mrf.mxu0
      %v976 = vadd.f32 0.0, %v975
      %v977 = vpop.f32.mrf.mxu0
      %v978 = vadd.f32 0.0, %v977
      %979 = vmatmul.bf16.gmra.mxu0 %v838
      %v980 = vpop.f32.mrf.mxu0
      %v981 = vadd.f32 0.0, %v980
      %v982 = vpop.f32.mrf.mxu0
      %v983 = vadd.f32 0.0, %v982
      %984 = vdwg.mxu0
      %985 = vmatpush.bf16.msra.mxu0 %v919
      %986 = vmatpush.bf16.msra.mxu0 %v918
      %987 = vmatpush.bf16.msra.mxu0 %v917
      %988 = vmatpush.bf16.msra.mxu0 %v916
      %989 = vmatpush.bf16.msra.mxu0 %v915
      %990 = vmatpush.bf16.msra.mxu0 %v914
      %991 = vmatpush.bf16.msra.mxu0 %v913
      %992 = vmatpush.bf16.msra.mxu0 %v912
      %993 = vmatmul.bf16.gmra.mxu0 %v825
      %v994 = vpop.f32.mrf.mxu0
      %v995 = vadd.f32 %v946, %v994
      %v996 = vpop.f32.mrf.mxu0
      %v997 = vadd.f32 %v948, %v996
      %998 = vmatmul.bf16.gmra.mxu0 %v827
      %v999 = vpop.f32.mrf.mxu0
      %v1000 = vadd.f32 %v951, %v999
      %v1001 = vpop.f32.mrf.mxu0
      %v1002 = vadd.f32 %v953, %v1001
      %1003 = vmatmul.bf16.gmra.mxu0 %v829
      %v1004 = vpop.f32.mrf.mxu0
      %v1005 = vadd.f32 %v956, %v1004
      %v1006 = vpop.f32.mrf.mxu0
      %v1007 = vadd.f32 %v958, %v1006
      %1008 = vmatmul.bf16.gmra.mxu0 %v831
      %v1009 = vpop.f32.mrf.mxu0
      %v1010 = vadd.f32 %v961, %v1009
      %v1011 = vpop.f32.mrf.mxu0
      %v1012 = vadd.f32 %v963, %v1011
      %1013 = vmatmul.bf16.gmra.mxu0 %v833
      %v1014 = vpop.f32.mrf.mxu0
      %v1015 = vadd.f32 %v966, %v1014
      %v1016 = vpop.f32.mrf.mxu0
      %v1017 = vadd.f32 %v968, %v1016
      %1018 = vmatmul.bf16.gmra.mxu0 %v835
      %v1019 = vpop.f32.mrf.mxu0
      %v1020 = vadd.f32 %v971, %v1019
      %v1021 = vpop.f32.mrf.mxu0
      %v1022 = vadd.f32 %v973, %v1021
      %1023 = vmatmul.bf16.gmra.mxu0 %v837
      %v1024 = vpop.f32.mrf.mxu0
      %v1025 = vadd.f32 %v976, %v1024
      %v1026 = vpop.f32.mrf.mxu0
      %v1027 = vadd.f32 %v978, %v1026
      %1028 = vmatmul.bf16.gmra.mxu0 %v839
      %v1029 = vpop.f32.mrf.mxu0
      %v1030 = vadd.f32 %v981, %v1029
      %v1031 = vpop.f32.mrf.mxu0
      %v1032 = vadd.f32 %v983, %v1031
      %1033 = vdwg.mxu0
      %vm1034 = vcmask 130048
      %1035 = vst.msk [vmem:[%s224] sm:$0xff] %vm1034, %v995
      %1036 = vst.msk [vmem:[%s224 + $0x8] sm:$0xff] %vm1034, %v997
      %1037 = vst.msk [vmem:[%s224 + $0x10] sm:$0xff] %vm1034, %v1000
      %1038 = vst.msk [vmem:[%s224 + $0x18] sm:$0xff] %vm1034, %v1002
      %1039 = vst.msk [vmem:[%s224 + $0x20] sm:$0xff] %vm1034, %v1005
      %1040 = vst.msk [vmem:[%s224 + $0x28] sm:$0xff] %vm1034, %v1007
      %1041 = vst.msk [vmem:[%s224 + $0x30] sm:$0xff] %vm1034, %v1010
      %1042 = vst.msk [vmem:[%s224 + $0x38] sm:$0xff] %vm1034, %v1012
      %1043 = vst.msk [vmem:[%s224 + $0x40] sm:$0xff] %vm1034, %v1015
      %1044 = vst.msk [vmem:[%s224 + $0x48] sm:$0xff] %vm1034, %v1017
      %1045 = vst.msk [vmem:[%s224 + $0x50] sm:$0xff] %vm1034, %v1020
      %1046 = vst.msk [vmem:[%s224 + $0x58] sm:$0xff] %vm1034, %v1022
      %1047 = vst.msk [vmem:[%s224 + $0x60] sm:$0xff] %vm1034, %v1025
      %1048 = vst.msk [vmem:[%s224 + $0x68] sm:$0xff] %vm1034, %v1027
      %1049 = vst.msk [vmem:[%s224 + $0x70] sm:$0xff] %vm1034, %v1030
      %1050 = vst.msk [vmem:[%s224 + $0x78] sm:$0xff] %vm1034, %v1032
      %s1051 = smul.u32 16, %s15
      %p1052 = scmp.lt.s32.totalorder %s1051, 31
      %s1053 = scalar_select %p1052, %s1051, 31
      %s1054 = smul.addr %s1053, 8
      %s1055 = scalar_lea.vmem %s4, %s1054
      // Predicated region
      $region37: #{gat_forward.11} parent=35 // pred_check
        %p1056 = pneg %p127
      $region38: #{gat_forward.11} parent=35 // pred_check_branch
        %1058 = sbr.rel (%p1056) target = $region40
      $region39: #{gat_forward.11} parent=35 // pred_region
        %s1059 = smul.u32 16, %s15
      $region40: #{gat_forward.11} parent=35 // pred_fallthru
        _
    $region36: #{gat_forward.11} parent=5 // pred_fallthru
      _
    %p1060 = scmp.le.s32.totalorder 2, %s10
    // Predicated region
    $region41: #{gat_forward.11} parent=5 // pred_check
      %p1061 = pneg %p1060
    $region42: #{gat_forward.11} parent=5 // pred_check_branch
      %1063 = sbr.rel (%p1061) target = $region44
    $region43: #{gat_forward.11} parent=5 // pred_region
      %s1064 = ssub.s32 %s10, 2
      // Predicated region
      $region45: #{gat_forward.11} parent=43 // pred_check
        %p1065 = pneg %p133
      $region46: #{gat_forward.11} parent=43 // pred_check_branch
        %1067 = sbr.rel (%p1065) target = $region48
      $region47: #{gat_forward.11} parent=43 // pred_region
        %s1068 = smul.u32 16, %s16
        %p1069 = scmp.lt.s32.totalorder %s1068, 31
        %s1070 = scalar_select %p1069, %s1068, 31
        %s1071 = smul.addr %s1070, 8
        %s1072 = scalar_lea.vmem %s4, %s1071
      $region48: #{gat_forward.11} parent=43 // pred_fallthru
        _
    $region44: #{gat_forward.11} parent=5 // pred_fallthru
      _
  $region6: #{gat_forward.11} parent=0 // loop_footer
    %s14 = sadd.s32 1, %s10
  $region7: #{gat_forward.11} parent=0 // loop_footer_branch
    %9 = sbr.rel target = $region3
  $region8: #{gat_forward.11} parent=0 // loop_exit
    _

</llo_original>
